<compile_context>
chip_gen: v7x
topology: tpu7x:2x2x1
jax: 0.10.0
libtpu: 0.0.40
codegen_flags: <defaults>
</compile_context>

<pallas_src>
import functools

import jax
import jax.numpy as jnp
from jax.experimental import pallas as pl
from jax.experimental.pallas import tpu as pltpu

EPS = 1e-5


# ------------------------------ small helpers ------------------------------ #

def _round_up(x, m):
    return (x + m - 1) // m * m


def _vmem_capacity_bytes():
    try:
        return int(pltpu.get_tpu_info().vmem_capacity_bytes)
    except Exception:
        return 64 * 1024 * 1024            # conservative default (v7x per-TC)


_VMEM_CAP = _vmem_capacity_bytes()
_TILE_BUDGET = int(_VMEM_CAP * 0.35)       # budget for double-buffered tiles


def _block_bytes(tm, kpad, ctot):
    # bf16 patches + weights + bf16 out (+identity, worst case) per grid step.
    return 2 * (tm * kpad + kpad * ctot + 2 * tm * ctot)


def _choose_tm(m, kpad, ctot):
    """Largest row tile whose double-buffered footprint fits the VMEM budget."""
    cap = max(256, min(2048, _round_up(-(-m // 2), 256)))   # >= 2 tiles total
    for tm in (2048, 1024, 512, 256):
        if tm > cap:
            continue
        if 2 * _block_bytes(tm, kpad, ctot) <= _TILE_BUDGET:
            return tm
    return 256


def _cparams(semantics, block_bytes):
    # Derive the scoped-VMEM limit from the actual block footprint (+ headroom)
    # instead of a flat large number; cap well below physical VMEM (64 MiB v7x).
    limit = int(min(int(_VMEM_CAP * 0.75), 2 * block_bytes + (16 << 20)))
    return pltpu.CompilerParams(dimension_semantics=semantics,
                                vmem_limit_bytes=limit)


def _pad2d(a, rows, cols):
    return jnp.pad(a, ((0, rows - a.shape[0]), (0, cols - a.shape[1])))


def _pad_vec(v, cpad):
    v = v.reshape(1, -1).astype(jnp.float32)
    return jnp.pad(v, ((0, 0), (0, cpad - v.shape[1])))


# ----------------------------- Pallas kernels ------------------------------ #

def _stats_kernel(p_ref, w_ref, *out_refs, store_acc):
    """Pass 1: per-channel sum / sum-of-squares (+ optional bf16 pre-BN store).

    Grid is (2, half): leading "parallel" axis -> one partial-stats block per
    TensorCore on v7x; inner "arbitrary" axis accumulates across row tiles.
    """
    if store_acc:
        stat_ref, acc_ref = out_refs
    else:
        (stat_ref,) = out_refs

    @pl.when(pl.program_id(1) == 0)
    def _init():
        stat_ref[...] = jnp.zeros_like(stat_ref)

    acc = jnp.dot(p_ref[...], w_ref[...], preferred_element_type=jnp.float32)
    s = jnp.sum(acc, axis=0, keepdims=True)           # (1, C)
    ss = jnp.sum(acc * acc, axis=0, keepdims=True)    # (1, C)
    stat_ref[...] += jnp.concatenate([s, ss], axis=0)[None]   # (1, 2, C)
    if store_acc:
        acc_ref[...] = acc.astype(acc_ref.dtype)


def _apply_kernel(*refs, recompute, relu):
    """Pass 2 (plain conv): normalize (+ ReLU), bf16 store."""
    if recompute:
        p_ref, w_ref, sc_ref, sh_ref, o_ref = refs
        acc = jnp.dot(p_ref[...], w_ref[...], preferred_element_type=jnp.float32)
    else:
        a_ref, sc_ref, sh_ref, o_ref = refs
        acc = a_ref[...].astype(jnp.float32)
    y = acc * sc_ref[...] + sh_ref[...]
    if relu:
        y = jnp.maximum(y, 0.0)
    o_ref[...] = y.astype(o_ref.dtype)


def _apply_split_kernel(p_ref, w_ref, sc_ref, sh_ref, o1_ref, oi_ref, *, cpad):
    """Fused conv_1(+BN1+ReLU) and identity conv(+BNi) sharing one patch tile."""
    acc = jnp.dot(p_ref[...], w_ref[...], preferred_element_type=jnp.float32)
    y = acc * sc_ref[...] + sh_ref[...]
    o1_ref[...] = jnp.maximum(y[:, :cpad], 0.0).astype(o1_ref.dtype)
    oi_ref[...] = y[:, cpad:].astype(oi_ref.dtype)


def _apply_add_relu_kernel(*refs, recompute):
    """Pass 2 (conv_2): normalize + residual add + ReLU, bf16 store."""
    if recompute:
        p_ref, w_ref, sc_ref, sh_ref, id_ref, o_ref = refs
        acc = jnp.dot(p_ref[...], w_ref[...], preferred_element_type=jnp.float32)
    else:
        a_ref, sc_ref, sh_ref, id_ref, o_ref = refs
        acc = a_ref[...].astype(jnp.float32)
    y = acc * sc_ref[...] + sh_ref[...] + id_ref[...].astype(jnp.float32)
    o_ref[...] = jnp.maximum(y, 0.0).astype(o_ref.dtype)


# ------------------------------- host helpers ------------------------------ #

def _im2col_padded(x_nhwc, stride, out_pad, tm):
    """ConvTranspose2d(k=3, p=1) -> zero-dilate + pad + im2col (bf16, padded)."""
    x_nhwc = x_nhwc.astype(jnp.bfloat16)
    N, H, W, C = x_nhwc.shape
    Hout = (H - 1) * stride - 2 + 3 + out_pad
    Wout = (W - 1) * stride - 2 + 3 + out_pad
    if stride > 1:
        xd = jnp.zeros((N, (H - 1) * stride + 1, (W - 1) * stride + 1, C),
                       x_nhwc.dtype)
        xd = xd.at[:, ::stride, ::stride, :].set(x_nhwc)
    else:
        xd = x_nhwc
    pad_lo, pad_hi = 1, 1 + out_pad          # (k-1-p), (k-1-p+output_padding)
    xp = jnp.pad(xd, ((0, 0), (pad_lo, pad_hi), (pad_lo, pad_hi), (0, 0)))
    taps = [xp[:, kh:kh + Hout, kw:kw + Wout, :]
            for kh in range(3) for kw in range(3)]
    patches = jnp.concatenate(taps, axis=-1).reshape(N * Hout * Wout, 9 * C)

    m = N * Hout * Wout
    kpad = _round_up(9 * C, 128)             # MXU-friendly contraction
    mpad = _round_up(m, 2 * tm)              # even tile count for 2-way stats
    patches = _pad2d(patches, mpad, kpad)    # zero rows/cols: exact
    return patches, m, Hout, Wout


def conv_bn_pallas(patches, weights, gamma, beta, m_true, tm, *, mode,
                   identity=None, cpad=None):
    """Two-pass ConvTranspose-as-matmul + train-mode BatchNorm on TPU.

    patches: (Mpad, Kpad) bf16   weights: (Kpad, Ctot) bf16
    gamma/beta: (1, Ctot) f32    mode: "relu" | "split" | "residual"
    Returns bf16 (Mpad, Ctot) output(s) (two (Mpad, cpad) outputs for "split").
    """
    mpad, kpad = patches.shape
    ctot = weights.shape[1]
    n_tiles = mpad // tm
    half = n_tiles // 2
    inv_count = 1.0 / float(m_true)
    # Store-and-reload of the bf16 pre-BN activation beats recomputing the
    # matmul in pass 2 once kpad >= ~2*ctot (2*ctot bytes written+read vs kpad
    # bytes re-read, plus it halves MXU work).  The fused "split" conv always
    # recomputes (sharing the patch tile is the point of the fusion).
    store_acc = (mode != "split") and (kpad >= 2 * ctot)
    blk = _block_bytes(tm, kpad, ctot)

    # ---- pass 1: global BN statistics (per-core partial sum / sum-sq) ----
    p1_spec = pl.BlockSpec((tm, kpad), lambda c, i: (c * half + i, 0))
    w1_spec = pl.BlockSpec((kpad, ctot), lambda c, i: (0, 0))
    stats_spec = pl.BlockSpec((1, 2, ctot), lambda c, i: (c, 0, 0))
    out_shape1 = jax.ShapeDtypeStruct((2, 2, ctot), jnp.float32)
    out_specs1 = stats_spec
    if store_acc:
        out_shape1 = (out_shape1,
                      jax.ShapeDtypeStruct((mpad, ctot), jnp.bfloat16))
        out_specs1 = (stats_spec,
                      pl.BlockSpec((tm, ctot), lambda c, i: (c * half + i, 0)))

    res1 = pl.pallas_call(
        functools.partial(_stats_kernel, store_acc=store_acc),
        out_shape=out_shape1,
        grid=(2, half),
        in_specs=[p1_spec, w1_spec],
        out_specs=out_specs1,
        compiler_params=_cparams(("parallel", "arbitrary"), blk),
        cost_estimate=pl.CostEstimate(
            flops=2 * mpad * kpad * ctot, transcendentals=0,
            bytes_accessed=(mpad * kpad * 2 + kpad * ctot * 2 + 4 * ctot * 4
                            + (mpad * ctot * 2 if store_acc else 0))),
    )(patches, weights)
    if store_acc:
        partials, acc_bf16 = res1
    else:
        partials, acc_bf16 = res1, None

    # ---- fold BN once per channel (tiny jnp op, outside the grid) ----
    # NOTE: E[x^2]-E[x]^2 in f32 with var clamped at 0; switch to a centered
    # pass if BN precision ever matters for extreme means.
    stats = jnp.sum(partials, axis=0)                       # (2, Ctot)
    mean = stats[0:1] * inv_count
    var = jnp.maximum(stats[1:2] * inv_count - mean * mean, 0.0)
    scale = gamma * jax.lax.rsqrt(var + EPS)                # (1, Ctot)
    shift = beta - mean * scale                             # (1, Ctot)

    # ---- pass 2: normalize (+ ReLU / residual add), bf16 outputs ----
    row_spec = pl.BlockSpec((tm, ctot), lambda i: (i, 0))
    vec_spec = pl.BlockSpec((1, ctot), lambda i: (0, 0))
    if store_acc:
        lead_specs = [row_spec]                      # bf16 pre-BN activation
        lead_args = (acc_bf16,)
        flops2 = 2 * mpad * ctot
        bytes_lead = mpad * ctot * 2
    else:
        lead_specs = [pl.BlockSpec((tm, kpad), lambda i: (i, 0)),
                      pl.BlockSpec((kpad, ctot), lambda i: (0, 0))]
        lead_args = (patches, weights)
        flops2 = 2 * mpad * kpad * ctot
        bytes_lead = mpad * kpad * 2 + kpad * ctot * 2

    if mode == "split":
        return pl.pallas_call(
            functools.partial(_apply_split_kernel, cpad=cpad),
            out_shape=(jax.ShapeDtypeStruct((mpad, cpad), jnp.bfloat16),
                       jax.ShapeDtypeStruct((mpad, cpad), jnp.bfloat16)),
            grid=(n_tiles,),
            in_specs=lead_specs + [vec_spec, vec_spec],
            out_specs=(pl.BlockSpec((tm, cpad), lambda i: (i, 0)),
                       pl.BlockSpec((tm, cpad), lambda i: (i, 0))),
            compiler_params=_cparams(("parallel",), blk),
            cost_estimate=pl.CostEstimate(
                flops=flops2, transcendentals=0,
                bytes_accessed=bytes_lead + 2 * ctot * 4 + 2 * mpad * cpad * 2),
        )(*lead_args, scale, shift)

    if mode == "residual":
        return pl.pallas_call(
            functools.partial(_apply_add_relu_kernel, recompute=not store_acc),
            out_shape=jax.ShapeDtypeStruct((mpad, ctot), jnp.bfloat16),
            grid=(n_tiles,),
            in_specs=lead_specs + [vec_spec, vec_spec, row_spec],
            out_specs=row_spec,
            compiler_params=_cparams(("parallel",), blk),
            cost_estimate=pl.CostEstimate(
                flops=flops2, transcendentals=0,
                bytes_accessed=bytes_lead + 2 * ctot * 4 + 2 * mpad * ctot * 2),
        )(*lead_args, scale, shift, identity)

    return pl.pallas_call(                       # mode == "relu"
        functools.partial(_apply_kernel, recompute=not store_acc, relu=True),
        out_shape=jax.ShapeDtypeStruct((mpad, ctot), jnp.bfloat16),
        grid=(n_tiles,),
        in_specs=lead_specs + [vec_spec, vec_spec],
        out_specs=row_spec,
        compiler_params=_cparams(("parallel",), blk),
        cost_estimate=pl.CostEstimate(
            flops=flops2, transcendentals=0,
            bytes_accessed=bytes_lead + 2 * ctot * 4 + mpad * ctot * 2),
    )(*lead_args, scale, shift)


# ------------------------- parameter init (deterministic) ------------------- #

def _prep_conv_weight(w_pt, kpad, cpad):
    # PyTorch ConvTranspose2d weight (Cin, Cout, kH, kW) -> correlation weight
    # (kh, kw, Cin, Cout) -> (9*Cin, Cout), zero-padded to (kpad, cpad), bf16.
    w = w_pt[:, :, ::-1, ::-1]                # spatial flip
    w = jnp.transpose(w, (2, 3, 0, 1)).reshape(-1, w_pt.shape[1])
    return _pad2d(w, kpad, cpad).astype(jnp.bfloat16)


def _init_conv_transpose_w(key, cin, cout):
    bound = 1.0 / (3.0 * (cin ** 0.5))        # PyTorch-style uniform scale
    return jax.random.uniform(key, (cin, cout, 3, 3), jnp.float32, -bound, bound)
    # ConvTranspose bias intentionally omitted: a per-channel constant cancels
    # exactly under train-mode BatchNorm mean-centering.


def _init_bn(key, c):
    k1, k2 = jax.random.split(key)
    gamma = 1.0 + 0.1 * jax.random.normal(k1, (c,), jnp.float32)
    beta = 0.1 * jax.random.normal(k2, (c,), jnp.float32)
    return gamma, beta


def init_block(key, cin, cout, upsample):
    if upsample and cin == cout:
        raise ValueError(
            "upsample=True requires in_channels != out_channels: the "
            "raw-resolution identity cannot be added to the upsampled main "
            "path (the PyTorch module fails on this config as well).")
    cpad = _round_up(cout, 128)
    kpad1 = _round_up(9 * cin, 128)
    kpad2 = _round_up(9 * cout, 128)
    identity_layer = cin != cout
    keys = jax.random.split(key, 6)
    p = {"upsample": upsample, "identity_layer": identity_layer,
         "cout": cout, "cpad": cpad}

    w1 = _init_conv_transpose_w(keys[0], cin, cout)
    g1, b1 = _init_bn(keys[1], cout)
    w2 = _init_conv_transpose_w(keys[2], cout, cout)
    g2, b2 = _init_bn(keys[3], cout)

    if identity_layer:
        wi = _init_conv_transpose_w(keys[4], cin, cout)
        gi, bi = _init_bn(keys[5], cout)
        # Fuse conv_1 and conv_i along Cout: both consume the same patches and
        # ctot = 2*cpad fills the 256-wide MXU of v6e/v7x.
        p["w1i"] = jnp.concatenate([_prep_conv_weight(w1, kpad1, cpad),
                                    _prep_conv_weight(wi, kpad1, cpad)], axis=1)
        p["g1i"] = jnp.concatenate([_pad_vec(g1, cpad), _pad_vec(gi, cpad)],
                                   axis=1)
        p["bt1i"] = jnp.concatenate([_pad_vec(b1, cpad), _pad_vec(bi, cpad)],
                                    axis=1)
    else:
        p["w1"] = _prep_conv_weight(w1, kpad1, cpad)
        p["g1"] = _pad_vec(g1, cpad)
        p["bt1"] = _pad_vec(b1, cpad)

    p["w2"] = _prep_conv_weight(w2, kpad2, cpad)
    p["g2"] = _pad_vec(g2, cpad)
    p["bt2"] = _pad_vec(b2, cpad)
    return p


def init_layer(key, cin, cout, n_blocks, upsample):
    keys = jax.random.split(key, n_blocks)
    blocks = [init_block(keys[0], cin, cout, upsample)]
    for i in range(1, n_blocks):
        blocks.append(init_block(keys[i], cout, cout, False))
    return blocks


# ------------------------------- forward pass ------------------------------- #

def reverse_res_block(x_nhwc, x_flat_pad, p):
    N, H, W, cin = x_nhwc.shape
    stride = 2 if p["upsample"] else 1
    out_pad = 1 if p["upsample"] else 0
    cout, cpad = p["cout"], p["cpad"]

    Hout = (H - 1) * stride + 1 + out_pad
    Wout = (W - 1) * stride + 1 + out_pad
    m = N * Hout * Wout

    kpad1 = _round_up(9 * cin, 128)
    ctot1 = 2 * cpad if p["identity_layer"] else cpad
    kpad2 = _round_up(9 * cout, 128)
    # One row tile per block so conv_1 / identity / conv_2 share the same Mpad.
    tm = min(_choose_tm(m, kpad1, ctot1), _choose_tm(m, kpad2, cpad))
    mpad = _round_up(m, 2 * tm)

    patches1, m1, Hout, Wout = _im2col_padded(x_nhwc, stride, out_pad, tm)

    if p["identity_layer"]:
        # conv_1(+BN1+ReLU) and conv_i(+BNi) fused into one kernel pair.
        h_flat, id_flat = conv_bn_pallas(patches1, p["w1i"], p["g1i"],
                                         p["bt1i"], m1, tm,
                                         mode="split", cpad=cpad)
    else:
        h_flat = conv_bn_pallas(patches1, p["w1"], p["g1"], p["bt1"], m1, tm,
                                mode="relu")
        if x_flat_pad is not None and x_flat_pad.shape == (mpad, cpad):
            id_flat = x_flat_pad      # previous block output: already bf16+padded
        else:
            x_flat = x_nhwc.reshape(N * H * W, cin).astype(jnp.bfloat16)
            id_flat = _pad2d(x_flat, mpad, cpad)

    # TODO(synk): this slice+reshape (and the one below) is the remaining extra
    # XLA copy between pallas_calls; goes away with in-kernel im2col.
    h_nhwc = h_flat[:m1, :cout].reshape(N, Hout, Wout, cout)
    patches2, m2, _, _ = _im2col_padded(h_nhwc, 1, 0, tm)
    out_flat = conv_bn_pallas(patches2, p["w2"], p["g2"], p["bt2"], m2, tm,
                              mode="residual", identity=id_flat)
    out_nhwc = out_flat[:m2, :cout].reshape(N, Hout, Wout, cout)
    return out_nhwc, out_flat


def reverse_res_layer(x_nchw, blocks):
    x = jnp.transpose(x_nchw, (0, 2, 3, 1))   # NCHW -> NHWC
    x_flat = None
    for p in blocks:
        x, x_flat = reverse_res_block(x, x_flat, p)
    return jnp.transpose(x, (0, 3, 1, 2)).astype(jnp.float32)   # NHWC -> NCHW


if __name__ == "__main__":
    key = jax.random.PRNGKey(0)
    kx, kp, kx2, kp2 = jax.random.split(key, 4)

    # Config 1: channel-changing, upsampling layer (module's intended use);
    # exercises the fused split kernel and the recompute pass-2 path.
    N, Cin, H, W = 2, 4, 16, 16
    Cout, n_blocks, upsample = 8, 2, True
    x = jax.random.normal(kx, (N, Cin, H, W), jnp.float32)
    blocks = init_layer(kp, Cin, Cout, n_blocks, upsample)
    fwd = jax.jit(lambda inp: reverse_res_layer(inp, blocks))
    out = jax.block_until_ready(fwd(x))
    assert out.shape == (N, Cout, 2 * H, 2 * W), out.shape
    assert bool(jnp.all(jnp.isfinite(out)))
    assert bool(jnp.all(out >= 0.0))          # final ReLU

    # Config 2: wider channels, no upsample; exercises the store-and-reload
    # pass-2 path (kpad >= 2*ctot) for both the plain and residual kernels.
    N2, Cin2, H2, W2 = 1, 8, 8, 8
    Cout2, n_blocks2 = 32, 2
    x2 = jax.random.normal(kx2, (N2, Cin2, H2, W2), jnp.float32)
    blocks2 = init_layer(kp2, Cin2, Cout2, n_blocks2, False)
    fwd2 = jax.jit(lambda inp: reverse_res_layer(inp, blocks2))
    out2 = jax.block_until_ready(fwd2(x2))
    assert out2.shape == (N2, Cout2, H2, W2), out2.shape
    assert bool(jnp.all(jnp.isfinite(out2)))
    assert bool(jnp.all(out2 >= 0.0))

    print("KERNEL_OK")
</pallas_src>

<mosaic_0001>
module attributes {stable_mosaic.version = 11 : i64} {
  func.func @_stats_kernel(%arg0: i32, %arg1: i32, %arg2: memref<1024x128xbf16, #tpu.memory_space<vmem>>, %arg3: memref<128x256xbf16, #tpu.memory_space<vmem>>, %arg4: memref<1x2x256xf32, #tpu.memory_space<vmem>>) attributes {dimension_semantics = [#tpu.dimension_semantics<parallel>, #tpu.dimension_semantics<arbitrary>], iteration_bounds = array<i64: 2, 1>, scalar_prefetch = 0 : i64, scratch_operands = 0 : i64, tpu.core_type = #tpu.core_type<tc>, window_params = [{transform_indices = @transform_0, window_bounds = array<i64: 1024, 128>}, {pipeline_mode = #tpu.pipeline_mode<synchronous>, transform_indices = @transform_1, window_bounds = array<i64: 128, 256>}, {transform_indices = @transform_2, window_bounds = array<i64: 1, 2, 256>}]} {
    %c0_i32 = arith.constant 0 : i32
    %0 = arith.cmpi eq, %arg1, %c0_i32 : i32
    %1 = arith.extui %0 : i1 to i32
    %c0_i32_0 = arith.constant 0 : i32
    %2 = arith.cmpi ne, %1, %c0_i32_0 : i32
    scf.if %2 {
      %cst_12 = arith.constant 0.000000e+00 : f32
      %16 = vector.broadcast %cst_12 : f32 to vector<1x2x256xf32>
      %c0_13 = arith.constant 0 : index
      %c0_14 = arith.constant 0 : index
      %c0_15 = arith.constant 0 : index
      %17 = vector.load %arg4[%c0_13, %c0_14, %c0_15] : memref<1x2x256xf32, #tpu.memory_space<vmem>>, vector<1x2x256xf32>
      tpu.vector_store %arg4[%c0_13, %c0_14, %c0_15], %16 {strides = array<i32>} : memref<1x2x256xf32, #tpu.memory_space<vmem>>, vector<1x2x256xf32>,
    } else {
    }
    %c0 = arith.constant 0 : index
    %c0_1 = arith.constant 0 : index
    %3 = vector.load %arg2[%c0, %c0_1] : memref<1024x128xbf16, #tpu.memory_space<vmem>>, vector<1024x128xbf16>
    %c0_2 = arith.constant 0 : index
    %c0_3 = arith.constant 0 : index
    %4 = vector.load %arg3[%c0_2, %c0_3] : memref<128x256xbf16, #tpu.memory_space<vmem>>, vector<128x256xbf16>
    %cst = arith.constant dense<0.000000e+00> : vector<1024x256xf32>
    %5 = tpu.matmul %3, %4, %cst {dimension_numbers = #tpu.dot_dimension_numbers<[1], [0], [0], [1], [0, 0, 1, 1], [], []>} : vector<1024x128xbf16>, vector<128x256xbf16>, vector<1024x256xf32> -> vector<1024x256xf32>
    %cst_4 = arith.constant dense<0.000000e+00> : vector<256xf32>
    %6 = vector.multi_reduction <add>, %5, %cst_4 [0] : vector<1024x256xf32> to vector<256xf32>
    %7 = vector.shape_cast %6 : vector<256xf32> to vector<1x256xf32>
    %8 = arith.mulf %5, %5 : vector<1024x256xf32>
    %cst_5 = arith.constant dense<0.000000e+00> : vector<256xf32>
    %9 = vector.multi_reduction <add>, %8, %cst_5 [0] : vector<1024x256xf32> to vector<256xf32>
    %10 = vector.shape_cast %9 : vector<256xf32> to vector<1x256xf32>
    %c0_6 = arith.constant 0 : index
    %c0_7 = arith.constant 0 : index
    %c0_8 = arith.constant 0 : index
    %11 = vector.load %arg4[%c0_6, %c0_7, %c0_8] : memref<1x2x256xf32, #tpu.memory_space<vmem>>, vector<1x2x256xf32>
    %12 = tpu.concatenate %7, %10 in 0 : vector<1x256xf32>, vector<1x256xf32> -> vector<2x256xf32>
    %13 = vector.shape_cast %12 : vector<2x256xf32> to vector<1x2x256xf32>
    %14 = arith.addf %11, %13 : vector<1x2x256xf32>
    %c0_9 = arith.constant 0 : index
    %c0_10 = arith.constant 0 : index
    %c0_11 = arith.constant 0 : index
    %15 = vector.load %arg4[%c0_9, %c0_10, %c0_11] : memref<1x2x256xf32, #tpu.memory_space<vmem>>, vector<1x2x256xf32>
    tpu.vector_store %arg4[%c0_9, %c0_10, %c0_11], %14 {strides = array<i32>} : memref<1x2x256xf32, #tpu.memory_space<vmem>>, vector<1x2x256xf32>,
    return
  }
  func.func @transform_0(%arg0: i32, %arg1: i32) -> (i32, i32) {
    %c1_i32 = arith.constant 1 : i32
    %0 = arith.muli %arg0, %c1_i32 : i32
    %1 = arith.addi %0, %arg1 : i32
    %c0_i32 = arith.constant 0 : i32
    %c0_i32_0 = arith.constant 0 : i32
    return %1, %c0_i32 : i32, i32
  }
  func.func @transform_1(%arg0: i32, %arg1: i32) -> (i32, i32) {
    %c0_i32 = arith.constant 0 : i32
    %c0_i32_0 = arith.constant 0 : i32
    %c0_i32_1 = arith.constant 0 : i32
    return %c0_i32, %c0_i32_0 : i32, i32
  }
  func.func @transform_2(%arg0: i32, %arg1: i32) -> (i32, i32, i32) {
    %c0_i32 = arith.constant 0 : i32
    %c0_i32_0 = arith.constant 0 : i32
    %c0_i32_1 = arith.constant 0 : i32
    return %arg0, %c0_i32, %c0_i32_0 : i32, i32, i32
  }
}

module attributes {stable_mosaic.version = 11 : i64} {
  func.func @_apply_split_kernel(%arg0: i32, %arg1: memref<1024x128xbf16, #tpu.memory_space<vmem>>, %arg2: memref<128x256xbf16, #tpu.memory_space<vmem>>, %arg3: memref<1x256xf32, #tpu.memory_space<vmem>>, %arg4: memref<1x256xf32, #tpu.memory_space<vmem>>, %arg5: memref<1024x128xbf16, #tpu.memory_space<vmem>>, %arg6: memref<1024x128xbf16, #tpu.memory_space<vmem>>) attributes {dimension_semantics = [#tpu.dimension_semantics<parallel>], iteration_bounds = array<i64: 2>, scalar_prefetch = 0 : i64, scratch_operands = 0 : i64, tpu.core_type = #tpu.core_type<tc>, window_params = [{transform_indices = @transform_0, window_bounds = array<i64: 1024, 128>}, {pipeline_mode = #tpu.pipeline_mode<synchronous>, transform_indices = @transform_1, window_bounds = array<i64: 128, 256>}, {pipeline_mode = #tpu.pipeline_mode<synchronous>, transform_indices = @transform_2, window_bounds = array<i64: 1, 256>}, {pipeline_mode = #tpu.pipeline_mode<synchronous>, transform_indices = @transform_3, window_bounds = array<i64: 1, 256>}, {transform_indices = @transform_4, window_bounds = array<i64: 1024, 128>}, {transform_indices = @transform_5, window_bounds = array<i64: 1024, 128>}]} {
    %c0 = arith.constant 0 : index
    %c0_0 = arith.constant 0 : index
    %0 = vector.load %arg1[%c0, %c0_0] : memref<1024x128xbf16, #tpu.memory_space<vmem>>, vector<1024x128xbf16>
    %c0_1 = arith.constant 0 : index
    %c0_2 = arith.constant 0 : index
    %1 = vector.load %arg2[%c0_1, %c0_2] : memref<128x256xbf16, #tpu.memory_space<vmem>>, vector<128x256xbf16>
    %cst = arith.constant dense<0.000000e+00> : vector<1024x256xf32>
    %2 = tpu.matmul %0, %1, %cst {dimension_numbers = #tpu.dot_dimension_numbers<[1], [0], [0], [1], [0, 0, 1, 1], [], []>} : vector<1024x128xbf16>, vector<128x256xbf16>, vector<1024x256xf32> -> vector<1024x256xf32>
    %c0_3 = arith.constant 0 : index
    %c0_4 = arith.constant 0 : index
    %3 = vector.load %arg3[%c0_3, %c0_4] : memref<1x256xf32, #tpu.memory_space<vmem>>, vector<1x256xf32>
    %4 = vector.broadcast %3 : vector<1x256xf32> to vector<1024x256xf32>
    %5 = arith.mulf %2, %4 : vector<1024x256xf32>
    %c0_5 = arith.constant 0 : index
    %c0_6 = arith.constant 0 : index
    %6 = vector.load %arg4[%c0_5, %c0_6] : memref<1x256xf32, #tpu.memory_space<vmem>>, vector<1x256xf32>
    %7 = vector.broadcast %6 : vector<1x256xf32> to vector<1024x256xf32>
    %8 = arith.addf %5, %7 : vector<1024x256xf32>
    %9 = vector.extract_strided_slice %8 {offsets = [0, 0], sizes = [1024, 128], strides = [1, 1]} : vector<1024x256xf32> to vector<1024x128xf32>
    %cst_7 = arith.constant 0.000000e+00 : f32
    %10 = vector.broadcast %cst_7 : f32 to vector<1024x128xf32>
    %11 = arith.maximumf %9, %10 : vector<1024x128xf32>
    %12 = arith.truncf %11 : vector<1024x128xf32> to vector<1024x128xbf16>
    %c0_8 = arith.constant 0 : index
    %c0_9 = arith.constant 0 : index
    %13 = vector.load %arg5[%c0_8, %c0_9] : memref<1024x128xbf16, #tpu.memory_space<vmem>>, vector<1024x128xbf16>
    tpu.vector_store %arg5[%c0_8, %c0_9], %12 {strides = array<i32>} : memref<1024x128xbf16, #tpu.memory_space<vmem>>, vector<1024x128xbf16>,
    %14 = vector.extract_strided_slice %8 {offsets = [0, 128], sizes = [1024, 128], strides = [1, 1]} : vector<1024x256xf32> to vector<1024x128xf32>
    %15 = arith.truncf %14 : vector<1024x128xf32> to vector<1024x128xbf16>
    %c0_10 = arith.constant 0 : index
    %c0_11 = arith.constant 0 : index
    %16 = vector.load %arg6[%c0_10, %c0_11] : memref<1024x128xbf16, #tpu.memory_space<vmem>>, vector<1024x128xbf16>
    tpu.vector_store %arg6[%c0_10, %c0_11], %15 {strides = array<i32>} : memref<1024x128xbf16, #tpu.memory_space<vmem>>, vector<1024x128xbf16>,
    return
  }
  func.func @transform_0(%arg0: i32) -> (i32, i32) {
    %c0_i32 = arith.constant 0 : i32
    %c0_i32_0 = arith.constant 0 : i32
    return %arg0, %c0_i32 : i32, i32
  }
  func.func @transform_1(%arg0: i32) -> (i32, i32) {
    %c0_i32 = arith.constant 0 : i32
    %c0_i32_0 = arith.constant 0 : i32
    %c0_i32_1 = arith.constant 0 : i32
    return %c0_i32, %c0_i32_0 : i32, i32
  }
  func.func @transform_2(%arg0: i32) -> (i32, i32) {
    %c0_i32 = arith.constant 0 : i32
    %c0_i32_0 = arith.constant 0 : i32
    %c0_i32_1 = arith.constant 0 : i32
    return %c0_i32, %c0_i32_0 : i32, i32
  }
  func.func @transform_3(%arg0: i32) -> (i32, i32) {
    %c0_i32 = arith.constant 0 : i32
    %c0_i32_0 = arith.constant 0 : i32
    %c0_i32_1 = arith.constant 0 : i32
    return %c0_i32, %c0_i32_0 : i32, i32
  }
  func.func @transform_4(%arg0: i32) -> (i32, i32) {
    %c0_i32 = arith.constant 0 : i32
    %c0_i32_0 = arith.constant 0 : i32
    return %arg0, %c0_i32 : i32, i32
  }
  func.func @transform_5(%arg0: i32) -> (i32, i32) {
    %c0_i32 = arith.constant 0 : i32
    %c0_i32_0 = arith.constant 0 : i32
    return %arg0, %c0_i32 : i32, i32
  }
}

module attributes {stable_mosaic.version = 11 : i64} {
  func.func @_stats_kernel(%arg0: i32, %arg1: i32, %arg2: memref<1024x128xbf16, #tpu.memory_space<vmem>>, %arg3: memref<128x128xbf16, #tpu.memory_space<vmem>>, %arg4: memref<1x2x128xf32, #tpu.memory_space<vmem>>) attributes {dimension_semantics = [#tpu.dimension_semantics<parallel>, #tpu.dimension_semantics<arbitrary>], iteration_bounds = array<i64: 2, 1>, scalar_prefetch = 0 : i64, scratch_operands = 0 : i64, tpu.core_type = #tpu.core_type<tc>, window_params = [{transform_indices = @transform_0, window_bounds = array<i64: 1024, 128>}, {pipeline_mode = #tpu.pipeline_mode<synchronous>, transform_indices = @transform_1, window_bounds = array<i64: 128, 128>}, {transform_indices = @transform_2, window_bounds = array<i64: 1, 2, 128>}]} {
    %c0_i32 = arith.constant 0 : i32
    %0 = arith.cmpi eq, %arg1, %c0_i32 : i32
    %1 = arith.extui %0 : i1 to i32
    %c0_i32_0 = arith.constant 0 : i32
    %2 = arith.cmpi ne, %1, %c0_i32_0 : i32
    scf.if %2 {
      %cst_12 = arith.constant 0.000000e+00 : f32
      %16 = vector.broadcast %cst_12 : f32 to vector<1x2x128xf32>
      %c0_13 = arith.constant 0 : index
      %c0_14 = arith.constant 0 : index
      %c0_15 = arith.constant 0 : index
      %17 = vector.load %arg4[%c0_13, %c0_14, %c0_15] : memref<1x2x128xf32, #tpu.memory_space<vmem>>, vector<1x2x128xf32>
      tpu.vector_store %arg4[%c0_13, %c0_14, %c0_15], %16 {strides = array<i32>} : memref<1x2x128xf32, #tpu.memory_space<vmem>>, vector<1x2x128xf32>,
    } else {
    }
    %c0 = arith.constant 0 : index
    %c0_1 = arith.constant 0 : index
    %3 = vector.load %arg2[%c0, %c0_1] : memref<1024x128xbf16, #tpu.memory_space<vmem>>, vector<1024x128xbf16>
    %c0_2 = arith.constant 0 : index
    %c0_3 = arith.constant 0 : index
    %4 = vector.load %arg3[%c0_2, %c0_3] : memref<128x128xbf16, #tpu.memory_space<vmem>>, vector<128x128xbf16>
    %cst = arith.constant dense<0.000000e+00> : vector<1024x128xf32>
    %5 = tpu.matmul %3, %4, %cst {dimension_numbers = #tpu.dot_dimension_numbers<[1], [0], [0], [1], [0, 0, 1, 1], [], []>} : vector<1024x128xbf16>, vector<128x128xbf16>, vector<1024x128xf32> -> vector<1024x128xf32>
    %cst_4 = arith.constant dense<0.000000e+00> : vector<128xf32>
    %6 = vector.multi_reduction <add>, %5, %cst_4 [0] : vector<1024x128xf32> to vector<128xf32>
    %7 = vector.shape_cast %6 : vector<128xf32> to vector<1x128xf32>
    %8 = arith.mulf %5, %5 : vector<1024x128xf32>
    %cst_5 = arith.constant dense<0.000000e+00> : vector<128xf32>
    %9 = vector.multi_reduction <add>, %8, %cst_5 [0] : vector<1024x128xf32> to vector<128xf32>
    %10 = vector.shape_cast %9 : vector<128xf32> to vector<1x128xf32>
    %c0_6 = arith.constant 0 : index
    %c0_7 = arith.constant 0 : index
    %c0_8 = arith.constant 0 : index
    %11 = vector.load %arg4[%c0_6, %c0_7, %c0_8] : memref<1x2x128xf32, #tpu.memory_space<vmem>>, vector<1x2x128xf32>
    %12 = tpu.concatenate %7, %10 in 0 : vector<1x128xf32>, vector<1x128xf32> -> vector<2x128xf32>
    %13 = vector.shape_cast %12 : vector<2x128xf32> to vector<1x2x128xf32>
    %14 = arith.addf %11, %13 : vector<1x2x128xf32>
    %c0_9 = arith.constant 0 : index
    %c0_10 = arith.constant 0 : index
    %c0_11 = arith.constant 0 : index
    %15 = vector.load %arg4[%c0_9, %c0_10, %c0_11] : memref<1x2x128xf32, #tpu.memory_space<vmem>>, vector<1x2x128xf32>
    tpu.vector_store %arg4[%c0_9, %c0_10, %c0_11], %14 {strides = array<i32>} : memref<1x2x128xf32, #tpu.memory_space<vmem>>, vector<1x2x128xf32>,
    return
  }
  func.func @transform_0(%arg0: i32, %arg1: i32) -> (i32, i32) {
    %c1_i32 = arith.constant 1 : i32
    %0 = arith.muli %arg0, %c1_i32 : i32
    %1 = arith.addi %0, %arg1 : i32
    %c0_i32 = arith.constant 0 : i32
    %c0_i32_0 = arith.constant 0 : i32
    return %1, %c0_i32 : i32, i32
  }
  func.func @transform_1(%arg0: i32, %arg1: i32) -> (i32, i32) {
    %c0_i32 = arith.constant 0 : i32
    %c0_i32_0 = arith.constant 0 : i32
    %c0_i32_1 = arith.constant 0 : i32
    return %c0_i32, %c0_i32_0 : i32, i32
  }
  func.func @transform_2(%arg0: i32, %arg1: i32) -> (i32, i32, i32) {
    %c0_i32 = arith.constant 0 : i32
    %c0_i32_0 = arith.constant 0 : i32
    %c0_i32_1 = arith.constant 0 : i32
    return %arg0, %c0_i32, %c0_i32_0 : i32, i32, i32
  }
}

module attributes {stable_mosaic.version = 11 : i64} {
  func.func @_apply_add_relu_kernel(%arg0: i32, %arg1: memref<1024x128xbf16, #tpu.memory_space<vmem>>, %arg2: memref<128x128xbf16, #tpu.memory_space<vmem>>, %arg3: memref<1x128xf32, #tpu.memory_space<vmem>>, %arg4: memref<1x128xf32, #tpu.memory_space<vmem>>, %arg5: memref<1024x128xbf16, #tpu.memory_space<vmem>>, %arg6: memref<1024x128xbf16, #tpu.memory_space<vmem>>) attributes {dimension_semantics = [#tpu.dimension_semantics<parallel>], iteration_bounds = array<i64: 2>, scalar_prefetch = 0 : i64, scratch_operands = 0 : i64, tpu.core_type = #tpu.core_type<tc>, window_params = [{transform_indices = @transform_0, window_bounds = array<i64: 1024, 128>}, {pipeline_mode = #tpu.pipeline_mode<synchronous>, transform_indices = @transform_1, window_bounds = array<i64: 128, 128>}, {pipeline_mode = #tpu.pipeline_mode<synchronous>, transform_indices = @transform_2, window_bounds = array<i64: 1, 128>}, {pipeline_mode = #tpu.pipeline_mode<synchronous>, transform_indices = @transform_3, window_bounds = array<i64: 1, 128>}, {transform_indices = @transform_4, window_bounds = array<i64: 1024, 128>}, {transform_indices = @transform_5, window_bounds = array<i64: 1024, 128>}]} {
    %c0 = arith.constant 0 : index
    %c0_0 = arith.constant 0 : index
    %0 = vector.load %arg1[%c0, %c0_0] : memref<1024x128xbf16, #tpu.memory_space<vmem>>, vector<1024x128xbf16>
    %c0_1 = arith.constant 0 : index
    %c0_2 = arith.constant 0 : index
    %1 = vector.load %arg2[%c0_1, %c0_2] : memref<128x128xbf16, #tpu.memory_space<vmem>>, vector<128x128xbf16>
    %cst = arith.constant dense<0.000000e+00> : vector<1024x128xf32>
    %2 = tpu.matmul %0, %1, %cst {dimension_numbers = #tpu.dot_dimension_numbers<[1], [0], [0], [1], [0, 0, 1, 1], [], []>} : vector<1024x128xbf16>, vector<128x128xbf16>, vector<1024x128xf32> -> vector<1024x128xf32>
    %c0_3 = arith.constant 0 : index
    %c0_4 = arith.constant 0 : index
    %3 = vector.load %arg3[%c0_3, %c0_4] : memref<1x128xf32, #tpu.memory_space<vmem>>, vector<1x128xf32>
    %4 = vector.broadcast %3 : vector<1x128xf32> to vector<1024x128xf32>
    %5 = arith.mulf %2, %4 : vector<1024x128xf32>
    %c0_5 = arith.constant 0 : index
    %c0_6 = arith.constant 0 : index
    %6 = vector.load %arg4[%c0_5, %c0_6] : memref<1x128xf32, #tpu.memory_space<vmem>>, vector<1x128xf32>
    %7 = vector.broadcast %6 : vector<1x128xf32> to vector<1024x128xf32>
    %8 = arith.addf %5, %7 : vector<1024x128xf32>
    %c0_7 = arith.constant 0 : index
    %c0_8 = arith.constant 0 : index
    %9 = vector.load %arg5[%c0_7, %c0_8] : memref<1024x128xbf16, #tpu.memory_space<vmem>>, vector<1024x128xbf16>
    %10 = arith.extf %9 : vector<1024x128xbf16> to vector<1024x128xf32>
    %11 = arith.addf %8, %10 : vector<1024x128xf32>
    %cst_9 = arith.constant 0.000000e+00 : f32
    %12 = vector.broadcast %cst_9 : f32 to vector<1024x128xf32>
    %13 = arith.maximumf %11, %12 : vector<1024x128xf32>
    %14 = arith.truncf %13 : vector<1024x128xf32> to vector<1024x128xbf16>
    %c0_10 = arith.constant 0 : index
    %c0_11 = arith.constant 0 : index
    %15 = vector.load %arg6[%c0_10, %c0_11] : memref<1024x128xbf16, #tpu.memory_space<vmem>>, vector<1024x128xbf16>
    tpu.vector_store %arg6[%c0_10, %c0_11], %14 {strides = array<i32>} : memref<1024x128xbf16, #tpu.memory_space<vmem>>, vector<1024x128xbf16>,
    return
  }
  func.func @transform_0(%arg0: i32) -> (i32, i32) {
    %c0_i32 = arith.constant 0 : i32
    %c0_i32_0 = arith.constant 0 : i32
    return %arg0, %c0_i32 : i32, i32
  }
  func.func @transform_1(%arg0: i32) -> (i32, i32) {
    %c0_i32 = arith.constant 0 : i32
    %c0_i32_0 = arith.constant 0 : i32
    %c0_i32_1 = arith.constant 0 : i32
    return %c0_i32, %c0_i32_0 : i32, i32
  }
  func.func @transform_2(%arg0: i32) -> (i32, i32) {
    %c0_i32 = arith.constant 0 : i32
    %c0_i32_0 = arith.constant 0 : i32
    %c0_i32_1 = arith.constant 0 : i32
    return %c0_i32, %c0_i32_0 : i32, i32
  }
  func.func @transform_3(%arg0: i32) -> (i32, i32) {
    %c0_i32 = arith.constant 0 : i32
    %c0_i32_0 = arith.constant 0 : i32
    %c0_i32_1 = arith.constant 0 : i32
    return %c0_i32, %c0_i32_0 : i32, i32
  }
  func.func @transform_4(%arg0: i32) -> (i32, i32) {
    %c0_i32 = arith.constant 0 : i32
    %c0_i32_0 = arith.constant 0 : i32
    return %arg0, %c0_i32 : i32, i32
  }
  func.func @transform_5(%arg0: i32) -> (i32, i32) {
    %c0_i32 = arith.constant 0 : i32
    %c0_i32_0 = arith.constant 0 : i32
    return %arg0, %c0_i32 : i32, i32
  }
}

module attributes {stable_mosaic.version = 11 : i64} {
  func.func @_apply_kernel(%arg0: i32, %arg1: memref<1024x128xbf16, #tpu.memory_space<vmem>>, %arg2: memref<128x128xbf16, #tpu.memory_space<vmem>>, %arg3: memref<1x128xf32, #tpu.memory_space<vmem>>, %arg4: memref<1x128xf32, #tpu.memory_space<vmem>>, %arg5: memref<1024x128xbf16, #tpu.memory_space<vmem>>) attributes {dimension_semantics = [#tpu.dimension_semantics<parallel>], iteration_bounds = array<i64: 2>, scalar_prefetch = 0 : i64, scratch_operands = 0 : i64, tpu.core_type = #tpu.core_type<tc>, window_params = [{transform_indices = @transform_0, window_bounds = array<i64: 1024, 128>}, {pipeline_mode = #tpu.pipeline_mode<synchronous>, transform_indices = @transform_1, window_bounds = array<i64: 128, 128>}, {pipeline_mode = #tpu.pipeline_mode<synchronous>, transform_indices = @transform_2, window_bounds = array<i64: 1, 128>}, {pipeline_mode = #tpu.pipeline_mode<synchronous>, transform_indices = @transform_3, window_bounds = array<i64: 1, 128>}, {transform_indices = @transform_4, window_bounds = array<i64: 1024, 128>}]} {
    %c0 = arith.constant 0 : index
    %c0_0 = arith.constant 0 : index
    %0 = vector.load %arg1[%c0, %c0_0] : memref<1024x128xbf16, #tpu.memory_space<vmem>>, vector<1024x128xbf16>
    %c0_1 = arith.constant 0 : index
    %c0_2 = arith.constant 0 : index
    %1 = vector.load %arg2[%c0_1, %c0_2] : memref<128x128xbf16, #tpu.memory_space<vmem>>, vector<128x128xbf16>
    %cst = arith.constant dense<0.000000e+00> : vector<1024x128xf32>
    %2 = tpu.matmul %0, %1, %cst {dimension_numbers = #tpu.dot_dimension_numbers<[1], [0], [0], [1], [0, 0, 1, 1], [], []>} : vector<1024x128xbf16>, vector<128x128xbf16>, vector<1024x128xf32> -> vector<1024x128xf32>
    %c0_3 = arith.constant 0 : index
    %c0_4 = arith.constant 0 : index
    %3 = vector.load %arg3[%c0_3, %c0_4] : memref<1x128xf32, #tpu.memory_space<vmem>>, vector<1x128xf32>
    %4 = vector.broadcast %3 : vector<1x128xf32> to vector<1024x128xf32>
    %5 = arith.mulf %2, %4 : vector<1024x128xf32>
    %c0_5 = arith.constant 0 : index
    %c0_6 = arith.constant 0 : index
    %6 = vector.load %arg4[%c0_5, %c0_6] : memref<1x128xf32, #tpu.memory_space<vmem>>, vector<1x128xf32>
    %7 = vector.broadcast %6 : vector<1x128xf32> to vector<1024x128xf32>
    %8 = arith.addf %5, %7 : vector<1024x128xf32>
    %cst_7 = arith.constant 0.000000e+00 : f32
    %9 = vector.broadcast %cst_7 : f32 to vector<1024x128xf32>
    %10 = arith.maximumf %8, %9 : vector<1024x128xf32>
    %11 = arith.truncf %10 : vector<1024x128xf32> to vector<1024x128xbf16>
    %c0_8 = arith.constant 0 : index
    %c0_9 = arith.constant 0 : index
    %12 = vector.load %arg5[%c0_8, %c0_9] : memref<1024x128xbf16, #tpu.memory_space<vmem>>, vector<1024x128xbf16>
    tpu.vector_store %arg5[%c0_8, %c0_9], %11 {strides = array<i32>} : memref<1024x128xbf16, #tpu.memory_space<vmem>>, vector<1024x128xbf16>,
    return
  }
  func.func @transform_0(%arg0: i32) -> (i32, i32) {
    %c0_i32 = arith.constant 0 : i32
    %c0_i32_0 = arith.constant 0 : i32
    return %arg0, %c0_i32 : i32, i32
  }
  func.func @transform_1(%arg0: i32) -> (i32, i32) {
    %c0_i32 = arith.constant 0 : i32
    %c0_i32_0 = arith.constant 0 : i32
    %c0_i32_1 = arith.constant 0 : i32
    return %c0_i32, %c0_i32_0 : i32, i32
  }
  func.func @transform_2(%arg0: i32) -> (i32, i32) {
    %c0_i32 = arith.constant 0 : i32
    %c0_i32_0 = arith.constant 0 : i32
    %c0_i32_1 = arith.constant 0 : i32
    return %c0_i32, %c0_i32_0 : i32, i32
  }
  func.func @transform_3(%arg0: i32) -> (i32, i32) {
    %c0_i32 = arith.constant 0 : i32
    %c0_i32_0 = arith.constant 0 : i32
    %c0_i32_1 = arith.constant 0 : i32
    return %c0_i32, %c0_i32_0 : i32, i32
  }
  func.func @transform_4(%arg0: i32) -> (i32, i32) {
    %c0_i32 = arith.constant 0 : i32
    %c0_i32_0 = arith.constant 0 : i32
    return %arg0, %c0_i32 : i32, i32
  }
}

</mosaic_0001>

<llo_original>
// kernel: _lambda_.8
$region0: #{_lambda_.8}
  #allocation0 [shape = 'u32[]', space=smem, size = 0x4, offset = 0x4, fixed_abs, tag = 'smem constant byte address 0x4 - core index']
  #allocation1 [shape = 'u32[144,128]{1,0:T(1,128)}', space=vmem, size = 0x12000, scoped, tag = 'internal scratch']
  %s0 = inlined_call_operand.vmem [shape: bf16[2048,128], index: 0, kind: input, shape index: {}]
  %s1 = inlined_call_operand.vmem [shape: bf16[128,256], index: 1, kind: input, shape index: {}]
  %s2 = inlined_call_operand.vmem [shape: f32[2,2,256], index: 2, kind: output, shape index: {}]
  %s3 = sld [smem:[#allocation0]]
  $region45: #{_lambda_.8} parent=0
    _
  %s5 = ssub.s32 1, %s3
  %s6 = scalar_select 0, %s5, %s3
  loop: start=0, step=1, limit=4
  $region2: #{_lambda_.8} parent=0 // loop_pre_header
    _
  $region3: #{_lambda_.8} parent=0 // loop_header
    %s8 = sphi 0, %s12
    %p9 = scmp.ge.s32.totalorder %s8, 4
    %s15 = sphi 0, %s27
    %s16 = sphi 0, %s23
    %s17 = sphi 0, %s15
    %s18 = sphi 0, %s16
    %s19 = sphi 0, %s17
    %s20 = sphi 0, %s18
    %s32 = sphi 0, %s34
    %s35 = sphi 0, %s32
    %s36 = sphi 0, %s35
    %s52 = sphi 0, %s36
    %s56 = sphi 0, %s56
    %s58 = sphi 0, %s56
    %s59 = sphi 0, %s58
    %s73 = sphi 0, %s59
    %s79 = sphi 0, %s81
    %s82 = sphi 0, %s79
    %s83 = sphi 0, %s82
    %s99 = sphi 0, %s83
  $region4: #{_lambda_.8} parent=0 // loop_header_branch
    %11 = sbr.rel (%p9) target = $region8
  $region5: #{_lambda_.8} parent=0 // loop_body
    %s13 = ssub.s32 %s8, 1
    %s14 = ssub.s32 %s8, 2
    %s21 = sadd.s32 1, %s16
    %p22 = scmp.ge.s32.totalorder %s21, 1
    %s23 = scalar_select %p22, 0, %s21
    %s24 = sadd.s32 1, %s15
    %s25 = scalar_select %p22, %s24, %s15
    %p26 = scmp.ge.s32.totalorder %s25, 2
    %s27 = scalar_select %p26, 0, %s25
    %s28 = sadd.s32 %s15, %s16
    %s29 = sadd.s32 %s27, %s23
    %s30 = ssub.s32 %s28, %s29
    %p31 = scmp.eq.s32.totalorder %s30, 0
    %s33 = sadd.s32 %s32, 1
    %s34 = scalar_select %p31, %s32, %s33
    %p37 = pneg %p31
    %p38 = scmp.eq.s32.totalorder %s8, 1
    %p39 = por %p37, %p38
    %p40 = scmp.ne.s32.totalorder %s32, %s35
    %p41 = scmp.eq.s32.totalorder %s8, 0
    %p42 = por %p40, %p41
    %p43 = scmp.ne.s32.totalorder %s32, %s35
    %p44 = scmp.eq.s32.totalorder %s13, 1
    %p45 = por %p43, %p44
    %p46 = scmp.ne.s32.totalorder %s35, %s36
    %p47 = scmp.eq.s32.totalorder %s13, 0
    %p48 = por %p46, %p47
    %p49 = scmp.ne.s32.totalorder %s35, %s36
    %p50 = scmp.eq.s32.totalorder %s14, 1
    %p51 = por %p49, %p50
    %p53 = scmp.ne.s32.totalorder %s36, %s52
    %p54 = scmp.eq.s32.totalorder %s14, 0
    %p55 = por %p53, %p54
    %s57 = sadd.s32 %s56, 1
    %p60 = scmp.eq.s32.totalorder %s8, 1
    %p61 = scmp.ne.s32.totalorder %s56, %s58
    %p62 = scmp.eq.s32.totalorder %s8, 0
    %p63 = por %p61, %p62
    %p64 = scmp.ne.s32.totalorder %s56, %s58
    %p65 = scmp.eq.s32.totalorder %s13, 1
    %p66 = por %p64, %p65
    %p67 = scmp.ne.s32.totalorder %s58, %s59
    %p68 = scmp.eq.s32.totalorder %s13, 0
    %p69 = por %p67, %p68
    %p70 = scmp.ne.s32.totalorder %s58, %s59
    %p71 = scmp.eq.s32.totalorder %s14, 1
    %p72 = por %p70, %p71
    %p74 = scmp.ne.s32.totalorder %s59, %s73
    %p75 = scmp.eq.s32.totalorder %s14, 0
    %p76 = por %p74, %p75
    %s77 = ssub.s32 %s15, %s27
    %p78 = scmp.eq.s32.totalorder %s77, 0
    %s80 = sadd.s32 %s79, 1
    %s81 = scalar_select %p78, %s79, %s80
    %p84 = pneg %p78
    %p85 = scmp.eq.s32.totalorder %s8, 1
    %p86 = por %p84, %p85
    %p87 = scmp.ne.s32.totalorder %s79, %s82
    %p88 = scmp.eq.s32.totalorder %s8, 0
    %p89 = por %p87, %p88
    %p90 = scmp.ne.s32.totalorder %s79, %s82
    %p91 = scmp.eq.s32.totalorder %s13, 1
    %p92 = por %p90, %p91
    %p93 = scmp.ne.s32.totalorder %s82, %s83
    %p94 = scmp.eq.s32.totalorder %s13, 0
    %p95 = por %p93, %p94
    %p96 = scmp.ne.s32.totalorder %s82, %s83
    %p97 = scmp.eq.s32.totalorder %s14, 1
    %p98 = por %p96, %p97
    %p100 = scmp.ne.s32.totalorder %s83, %s99
    %p101 = scmp.eq.s32.totalorder %s14, 0
    %p102 = por %p100, %p101
    %p103 = scmp.le.s32.totalorder 1, %s8
    %p104 = scmp.lt.s32.totalorder %s8, 3
    %p105 = pnand %p103, %p104
    %p106 = pneg %p105
    // Predicated region
    $region9: #{_lambda_.8} parent=5 // pred_check
      _
    $region10: #{_lambda_.8} parent=5 // pred_check_branch
      %108 = sbr.rel (%p105) target = $region12
    $region11: #{_lambda_.8} parent=5 // pred_region
      %s109 = ssub.s32 %s8, 1
      // Predicated region
      $region13: #{_lambda_.8} parent=11 // pred_check
        %p110 = pneg %p69
      $region14: #{_lambda_.8} parent=11 // pred_check_branch
        %112 = sbr.rel (%p110) target = $region16
      $region15: #{_lambda_.8} parent=11 // pred_region
        _
      $region16: #{_lambda_.8} parent=11 // pred_fallthru
        _
    $region12: #{_lambda_.8} parent=5 // pred_fallthru
      _
    %p113 = scmp.lt.s32.totalorder %s8, 2
    // Predicated region
    $region17: #{_lambda_.8} parent=5 // pred_check
      %p114 = pneg %p113
    $region18: #{_lambda_.8} parent=5 // pred_check_branch
      %116 = sbr.rel (%p114) target = $region20
    $region19: #{_lambda_.8} parent=5 // pred_region
      // Predicated region
      $region21: #{_lambda_.8} parent=19 // pred_check
        %p117 = pneg %p42
      $region22: #{_lambda_.8} parent=19 // pred_check_branch
        %119 = sbr.rel (%p117) target = $region24
      $region23: #{_lambda_.8} parent=19 // pred_region
        %s120 = sadd.s32 %s15, %s16
        %s121 = smul.u32 128, %s120
        %p122 = scmp.lt.s32.totalorder %s121, 255
        %s123 = scalar_select %p122, %s121, 255
        %s124 = smul.addr %s123, 4
        %s125 = scalar_lea.vmem %s0, %s124
        %s126 = sadd.s32 %s15, %s16
        %s127 = smul.u32 128, %s126
      $region24: #{_lambda_.8} parent=19 // pred_fallthru
        _
    $region20: #{_lambda_.8} parent=5 // pred_fallthru
      _
    %p128 = scmp.le.s32.totalorder 1, %s8
    %p129 = scmp.lt.s32.totalorder %s8, 3
    %p130 = pnand %p128, %p129
    %p131 = pneg %p130
    // Predicated region
    $region25: #{_lambda_.8} parent=5 // pred_check
      _
    $region26: #{_lambda_.8} parent=5 // pred_check_branch
      %133 = sbr.rel (%p130) target = $region28
    $region27: #{_lambda_.8} parent=5 // pred_region
      %s134 = ssub.s32 %s8, 1
      %s135 = sadd.s32 %s17, %s18
      %s136 = smul.u32 128, %s135
      %p137 = scmp.lt.s32.totalorder %s136, 255
      %s138 = scalar_select %p137, %s136, 255
      %s139 = smul.addr %s138, 4
      %s140 = scalar_lea.vmem %s0, %s139
      %p141 = pneg %p48
      %p142 = pneg %p45
      %p143 = pneg %p69
      %p144 = pneg %p66
      %p145 = pneg %p95
      %p146 = pneg %p92
      %p147 = scmp.lt.s32.totalorder %s17, 1
      %s148 = scalar_select %p147, %s17, 1
      %s149 = smul.addr %s148, 2
      %s150 = smul.addr %s149, 2
      %s151 = scalar_lea.vmem %s2, %s150
      %s152 = sadd.s32 %s17, %s18
      %s153 = smul.u32 128, %s152
      %p154 = scmp.lt.s32.totalorder %s153, 255
      %s155 = scalar_select %p154, %s153, 255
      %s156 = smul.addr %s155, 4
      %s157 = scalar_lea.vmem %s0, %s156
      %s158 = sadd.s32 %s17, %s18
      %s159 = smul.u32 128, %s158
      %p160 = scmp.lt.s32.totalorder %s17, 1
      %s161 = scalar_select %p160, %s17, 1
      %s162 = smul.addr %s161, 2
      %s163 = smul.addr %s162, 2
      %s164 = scalar_lea.vmem %s2, %s163
      %p166 = scmp.eq.s32.totalorder %s18, 0
      // Predicated region
      $region29: #{_lambda_.8} parent=27 // pred_check
        %p167 = pneg %p166
      $region30: #{_lambda_.8} parent=27 // pred_check_branch
        %169 = sbr.rel (%p167) target = $region32
      $region31: #{_lambda_.8} parent=27 // pred_region
        %170 = vst [vmem:[%s164] sm:$0xf] 0.0
      $region32: #{_lambda_.8} parent=27 // pred_fallthru
        _
      %v171 = vld [vmem:[%s157] sm:$0xf]
      %v172 = vld [vmem:[%s157 + $0x4] sm:$0xf]
      %v173 = vld [vmem:[%s157 + $0x8] sm:$0xf]
      %v174 = vld [vmem:[%s157 + $0xc] sm:$0xf]
      %v175 = vld [vmem:[%s157 + $0x10] sm:$0xf]
      %v176 = vld [vmem:[%s157 + $0x14] sm:$0xf]
      %v177 = vld [vmem:[%s157 + $0x18] sm:$0xf]
      %v178 = vld [vmem:[%s157 + $0x1c] sm:$0xf]
      %v179 = vld [vmem:[%s157 + $0x20] sm:$0xf]
      %v180 = vld [vmem:[%s157 + $0x24] sm:$0xf]
      %v181 = vld [vmem:[%s157 + $0x28] sm:$0xf]
      %v182 = vld [vmem:[%s157 + $0x2c] sm:$0xf]
      %v183 = vld [vmem:[%s157 + $0x30] sm:$0xf]
      %v184 = vld [vmem:[%s157 + $0x34] sm:$0xf]
      %v185 = vld [vmem:[%s157 + $0x38] sm:$0xf]
      %v186 = vld [vmem:[%s157 + $0x3c] sm:$0xf]
      %v187 = vld [vmem:[%s157 + $0x40] sm:$0xf]
      %v188 = vld [vmem:[%s157 + $0x44] sm:$0xf]
      %v189 = vld [vmem:[%s157 + $0x48] sm:$0xf]
      %v190 = vld [vmem:[%s157 + $0x4c] sm:$0xf]
      %v191 = vld [vmem:[%s157 + $0x50] sm:$0xf]
      %v192 = vld [vmem:[%s157 + $0x54] sm:$0xf]
      %v193 = vld [vmem:[%s157 + $0x58] sm:$0xf]
      %v194 = vld [vmem:[%s157 + $0x5c] sm:$0xf]
      %v195 = vld [vmem:[%s157 + $0x60] sm:$0xf]
      %v196 = vld [vmem:[%s157 + $0x64] sm:$0xf]
      %v197 = vld [vmem:[%s157 + $0x68] sm:$0xf]
      %v198 = vld [vmem:[%s157 + $0x6c] sm:$0xf]
      %v199 = vld [vmem:[%s157 + $0x70] sm:$0xf]
      %v200 = vld [vmem:[%s157 + $0x74] sm:$0xf]
      %v201 = vld [vmem:[%s157 + $0x78] sm:$0xf]
      %v202 = vld [vmem:[%s157 + $0x7c] sm:$0xf]
      %v203 = vld [vmem:[%s157 + $0x80] sm:$0xf]
      %v204 = vld [vmem:[%s157 + $0x84] sm:$0xf]
      %v205 = vld [vmem:[%s157 + $0x88] sm:$0xf]
      %v206 = vld [vmem:[%s157 + $0x8c] sm:$0xf]
      %v207 = vld [vmem:[%s157 + $0x90] sm:$0xf]
      %v208 = vld [vmem:[%s157 + $0x94] sm:$0xf]
      %v209 = vld [vmem:[%s157 + $0x98] sm:$0xf]
      %v210 = vld [vmem:[%s157 + $0x9c] sm:$0xf]
      %v211 = vld [vmem:[%s157 + $0xa0] sm:$0xf]
      %v212 = vld [vmem:[%s157 + $0xa4] sm:$0xf]
      %v213 = vld [vmem:[%s157 + $0xa8] sm:$0xf]
      %v214 = vld [vmem:[%s157 + $0xac] sm:$0xf]
      %v215 = vld [vmem:[%s157 + $0xb0] sm:$0xf]
      %v216 = vld [vmem:[%s157 + $0xb4] sm:$0xf]
      %v217 = vld [vmem:[%s157 + $0xb8] sm:$0xf]
      %v218 = vld [vmem:[%s157 + $0xbc] sm:$0xf]
      %v219 = vld [vmem:[%s157 + $0xc0] sm:$0xf]
      %v220 = vld [vmem:[%s157 + $0xc4] sm:$0xf]
      %v221 = vld [vmem:[%s157 + $0xc8] sm:$0xf]
      %v222 = vld [vmem:[%s157 + $0xcc] sm:$0xf]
      %v223 = vld [vmem:[%s157 + $0xd0] sm:$0xf]
      %v224 = vld [vmem:[%s157 + $0xd4] sm:$0xf]
      %v225 = vld [vmem:[%s157 + $0xd8] sm:$0xf]
      %v226 = vld [vmem:[%s157 + $0xdc] sm:$0xf]
      %v227 = vld [vmem:[%s157 + $0xe0] sm:$0xf]
      %v228 = vld [vmem:[%s157 + $0xe4] sm:$0xf]
      %v229 = vld [vmem:[%s157 + $0xe8] sm:$0xf]
      %v230 = vld [vmem:[%s157 + $0xec] sm:$0xf]
      %v231 = vld [vmem:[%s157 + $0xf0] sm:$0xf]
      %v232 = vld [vmem:[%s157 + $0xf4] sm:$0xf]
      %v233 = vld [vmem:[%s157 + $0xf8] sm:$0xf]
      %v234 = vld [vmem:[%s157 + $0xfc] sm:$0xf]
      %v235 = vld [vmem:[%s157 + $0x100] sm:$0xf]
      %v236 = vld [vmem:[%s157 + $0x104] sm:$0xf]
      %v237 = vld [vmem:[%s157 + $0x108] sm:$0xf]
      %v238 = vld [vmem:[%s157 + $0x10c] sm:$0xf]
      %v239 = vld [vmem:[%s157 + $0x110] sm:$0xf]
      %v240 = vld [vmem:[%s157 + $0x114] sm:$0xf]
      %v241 = vld [vmem:[%s157 + $0x118] sm:$0xf]
      %v242 = vld [vmem:[%s157 + $0x11c] sm:$0xf]
      %v243 = vld [vmem:[%s157 + $0x120] sm:$0xf]
      %v244 = vld [vmem:[%s157 + $0x124] sm:$0xf]
      %v245 = vld [vmem:[%s157 + $0x128] sm:$0xf]
      %v246 = vld [vmem:[%s157 + $0x12c] sm:$0xf]
      %v247 = vld [vmem:[%s157 + $0x130] sm:$0xf]
      %v248 = vld [vmem:[%s157 + $0x134] sm:$0xf]
      %v249 = vld [vmem:[%s157 + $0x138] sm:$0xf]
      %v250 = vld [vmem:[%s157 + $0x13c] sm:$0xf]
      %v251 = vld [vmem:[%s157 + $0x140] sm:$0xf]
      %v252 = vld [vmem:[%s157 + $0x144] sm:$0xf]
      %v253 = vld [vmem:[%s157 + $0x148] sm:$0xf]
      %v254 = vld [vmem:[%s157 + $0x14c] sm:$0xf]
      %v255 = vld [vmem:[%s157 + $0x150] sm:$0xf]
      %v256 = vld [vmem:[%s157 + $0x154] sm:$0xf]
      %v257 = vld [vmem:[%s157 + $0x158] sm:$0xf]
      %v258 = vld [vmem:[%s157 + $0x15c] sm:$0xf]
      %v259 = vld [vmem:[%s157 + $0x160] sm:$0xf]
      %v260 = vld [vmem:[%s157 + $0x164] sm:$0xf]
      %v261 = vld [vmem:[%s157 + $0x168] sm:$0xf]
      %v262 = vld [vmem:[%s157 + $0x16c] sm:$0xf]
      %v263 = vld [vmem:[%s157 + $0x170] sm:$0xf]
      %v264 = vld [vmem:[%s157 + $0x174] sm:$0xf]
      %v265 = vld [vmem:[%s157 + $0x178] sm:$0xf]
      %v266 = vld [vmem:[%s157 + $0x17c] sm:$0xf]
      %v267 = vld [vmem:[%s157 + $0x180] sm:$0xf]
      %v268 = vld [vmem:[%s157 + $0x184] sm:$0xf]
      %v269 = vld [vmem:[%s157 + $0x188] sm:$0xf]
      %v270 = vld [vmem:[%s157 + $0x18c] sm:$0xf]
      %v271 = vld [vmem:[%s157 + $0x190] sm:$0xf]
      %v272 = vld [vmem:[%s157 + $0x194] sm:$0xf]
      %v273 = vld [vmem:[%s157 + $0x198] sm:$0xf]
      %v274 = vld [vmem:[%s157 + $0x19c] sm:$0xf]
      %v275 = vld [vmem:[%s157 + $0x1a0] sm:$0xf]
      %v276 = vld [vmem:[%s157 + $0x1a4] sm:$0xf]
      %v277 = vld [vmem:[%s157 + $0x1a8] sm:$0xf]
      %v278 = vld [vmem:[%s157 + $0x1ac] sm:$0xf]
      %v279 = vld [vmem:[%s157 + $0x1b0] sm:$0xf]
      %v280 = vld [vmem:[%s157 + $0x1b4] sm:$0xf]
      %v281 = vld [vmem:[%s157 + $0x1b8] sm:$0xf]
      %v282 = vld [vmem:[%s157 + $0x1bc] sm:$0xf]
      %v283 = vld [vmem:[%s157 + $0x1c0] sm:$0xf]
      %v284 = vld [vmem:[%s157 + $0x1c4] sm:$0xf]
      %v285 = vld [vmem:[%s157 + $0x1c8] sm:$0xf]
      %v286 = vld [vmem:[%s157 + $0x1cc] sm:$0xf]
      %v287 = vld [vmem:[%s157 + $0x1d0] sm:$0xf]
      %v288 = vld [vmem:[%s157 + $0x1d4] sm:$0xf]
      %v289 = vld [vmem:[%s157 + $0x1d8] sm:$0xf]
      %v290 = vld [vmem:[%s157 + $0x1dc] sm:$0xf]
      %v291 = vld [vmem:[%s157 + $0x1e0] sm:$0xf]
      %v292 = vld [vmem:[%s157 + $0x1e4] sm:$0xf]
      %v293 = vld [vmem:[%s157 + $0x1e8] sm:$0xf]
      %v294 = vld [vmem:[%s157 + $0x1ec] sm:$0xf]
      %v295 = vld [vmem:[%s157 + $0x1f0] sm:$0xf]
      %v296 = vld [vmem:[%s157 + $0x1f4] sm:$0xf]
      %v297 = vld [vmem:[%s157 + $0x1f8] sm:$0xf]
      %v298 = vld [vmem:[%s157 + $0x1fc] sm:$0xf]
      %v299 = vld [vmem:[%s1] sm:$0xff]
      %v300 = vld [vmem:[%s1 + $0x8] sm:$0xff]
      %v301 = vld [vmem:[%s1 + $0x10] sm:$0xff]
      %v302 = vld [vmem:[%s1 + $0x18] sm:$0xff]
      %v303 = vld [vmem:[%s1 + $0x20] sm:$0xff]
      %v304 = vld [vmem:[%s1 + $0x28] sm:$0xff]
      %v305 = vld [vmem:[%s1 + $0x30] sm:$0xff]
      %v306 = vld [vmem:[%s1 + $0x38] sm:$0xff]
      %v307 = vld [vmem:[%s1 + $0x40] sm:$0xff]
      %v308 = vld [vmem:[%s1 + $0x48] sm:$0xff]
      %v309 = vld [vmem:[%s1 + $0x50] sm:$0xff]
      %v310 = vld [vmem:[%s1 + $0x58] sm:$0xff]
      %v311 = vld [vmem:[%s1 + $0x60] sm:$0xff]
      %v312 = vld [vmem:[%s1 + $0x68] sm:$0xff]
      %v313 = vld [vmem:[%s1 + $0x70] sm:$0xff]
      %v314 = vld [vmem:[%s1 + $0x78] sm:$0xff]
      %v443 = vunpack.c.l.b16 %v171
      %v444 = vunpack.c.l.b16 %v172
      %v445 = vunpack.c.l.b16 %v173
      %v446 = vunpack.c.l.b16 %v174
      %v447 = vunpack.c.l.b16 %v175
      %v448 = vunpack.c.l.b16 %v176
      %v449 = vunpack.c.l.b16 %v177
      %v450 = vunpack.c.l.b16 %v178
      %v451 = vunpack.c.l.b16 %v179
      %v452 = vunpack.c.l.b16 %v180
      %v453 = vunpack.c.l.b16 %v181
      %v454 = vunpack.c.l.b16 %v182
      %v455 = vunpack.c.l.b16 %v183
      %v456 = vunpack.c.l.b16 %v184
      %v457 = vunpack.c.l.b16 %v185
      %v458 = vunpack.c.l.b16 %v186
      %v459 = vunpack.c.l.b16 %v187
      %v460 = vunpack.c.l.b16 %v188
      %v461 = vunpack.c.l.b16 %v189
      %v462 = vunpack.c.l.b16 %v190
      %v463 = vunpack.c.l.b16 %v191
      %v464 = vunpack.c.l.b16 %v192
      %v465 = vunpack.c.l.b16 %v193
      %v466 = vunpack.c.l.b16 %v194
      %v467 = vunpack.c.l.b16 %v195
      %v468 = vunpack.c.l.b16 %v196
      %v469 = vunpack.c.l.b16 %v197
      %v470 = vunpack.c.l.b16 %v198
      %v471 = vunpack.c.l.b16 %v199
      %v472 = vunpack.c.l.b16 %v200
      %v473 = vunpack.c.l.b16 %v201
      %v474 = vunpack.c.l.b16 %v202
      %v475 = vunpack.c.l.b16 %v203
      %v476 = vunpack.c.l.b16 %v204
      %v477 = vunpack.c.l.b16 %v205
      %v478 = vunpack.c.l.b16 %v206
      %v479 = vunpack.c.l.b16 %v207
      %v480 = vunpack.c.l.b16 %v208
      %v481 = vunpack.c.l.b16 %v209
      %v482 = vunpack.c.l.b16 %v210
      %v483 = vunpack.c.l.b16 %v211
      %v484 = vunpack.c.l.b16 %v212
      %v485 = vunpack.c.l.b16 %v213
      %v486 = vunpack.c.l.b16 %v214
      %v487 = vunpack.c.l.b16 %v215
      %v488 = vunpack.c.l.b16 %v216
      %v489 = vunpack.c.l.b16 %v217
      %v490 = vunpack.c.l.b16 %v218
      %v491 = vunpack.c.l.b16 %v219
      %v492 = vunpack.c.l.b16 %v220
      %v493 = vunpack.c.l.b16 %v221
      %v494 = vunpack.c.l.b16 %v222
      %v495 = vunpack.c.l.b16 %v223
      %v496 = vunpack.c.l.b16 %v224
      %v497 = vunpack.c.l.b16 %v225
      %v498 = vunpack.c.l.b16 %v226
      %v499 = vunpack.c.l.b16 %v227
      %v500 = vunpack.c.l.b16 %v228
      %v501 = vunpack.c.l.b16 %v229
      %v502 = vunpack.c.l.b16 %v230
      %v503 = vunpack.c.l.b16 %v231
      %v504 = vunpack.c.l.b16 %v232
      %v505 = vunpack.c.l.b16 %v233
      %v506 = vunpack.c.l.b16 %v234
      %v507 = vunpack.c.l.b16 %v235
      %v508 = vunpack.c.l.b16 %v236
      %v509 = vunpack.c.l.b16 %v237
      %v510 = vunpack.c.l.b16 %v238
      %v511 = vunpack.c.l.b16 %v239
      %v512 = vunpack.c.l.b16 %v240
      %v513 = vunpack.c.l.b16 %v241
      %v514 = vunpack.c.l.b16 %v242
      %v515 = vunpack.c.l.b16 %v243
      %v516 = vunpack.c.l.b16 %v244
      %v517 = vunpack.c.l.b16 %v245
      %v518 = vunpack.c.l.b16 %v246
      %v519 = vunpack.c.l.b16 %v247
      %v520 = vunpack.c.l.b16 %v248
      %v521 = vunpack.c.l.b16 %v249
      %v522 = vunpack.c.l.b16 %v250
      %v523 = vunpack.c.l.b16 %v251
      %v524 = vunpack.c.l.b16 %v252
      %v525 = vunpack.c.l.b16 %v253
      %v526 = vunpack.c.l.b16 %v254
      %v527 = vunpack.c.l.b16 %v255
      %v528 = vunpack.c.l.b16 %v256
      %v529 = vunpack.c.l.b16 %v257
      %v530 = vunpack.c.l.b16 %v258
      %v531 = vunpack.c.l.b16 %v259
      %v532 = vunpack.c.l.b16 %v260
      %v533 = vunpack.c.l.b16 %v261
      %v534 = vunpack.c.l.b16 %v262
      %v535 = vunpack.c.l.b16 %v263
      %v536 = vunpack.c.l.b16 %v264
      %v537 = vunpack.c.l.b16 %v265
      %v538 = vunpack.c.l.b16 %v266
      %v539 = vunpack.c.l.b16 %v267
      %v540 = vunpack.c.l.b16 %v268
      %v541 = vunpack.c.l.b16 %v269
      %v542 = vunpack.c.l.b16 %v270
      %v543 = vunpack.c.l.b16 %v271
      %v544 = vunpack.c.l.b16 %v272
      %v545 = vunpack.c.l.b16 %v273
      %v546 = vunpack.c.l.b16 %v274
      %v547 = vunpack.c.l.b16 %v275
      %v548 = vunpack.c.l.b16 %v276
      %v549 = vunpack.c.l.b16 %v277
      %v550 = vunpack.c.l.b16 %v278
      %v551 = vunpack.c.l.b16 %v279
      %v552 = vunpack.c.l.b16 %v280
      %v553 = vunpack.c.l.b16 %v281
      %v554 = vunpack.c.l.b16 %v282
      %v555 = vunpack.c.l.b16 %v283
      %v556 = vunpack.c.l.b16 %v284
      %v557 = vunpack.c.l.b16 %v285
      %v558 = vunpack.c.l.b16 %v286
      %v559 = vunpack.c.l.b16 %v287
      %v560 = vunpack.c.l.b16 %v288
      %v561 = vunpack.c.l.b16 %v289
      %v562 = vunpack.c.l.b16 %v290
      %v563 = vunpack.c.l.b16 %v291
      %v564 = vunpack.c.l.b16 %v292
      %v565 = vunpack.c.l.b16 %v293
      %v566 = vunpack.c.l.b16 %v294
      %v567 = vunpack.c.l.b16 %v295
      %v568 = vunpack.c.l.b16 %v296
      %v569 = vunpack.c.l.b16 %v297
      %v570 = vunpack.c.l.b16 %v298
      %v571 = vpack.c.b16 %v444, %v443
      %v572 = vpack.c.b16 %v446, %v445
      %v573 = vpack.c.b16 %v448, %v447
      %v574 = vpack.c.b16 %v450, %v449
      %v575 = vpack.c.b16 %v452, %v451
      %v576 = vpack.c.b16 %v454, %v453
      %v577 = vpack.c.b16 %v456, %v455
      %v578 = vpack.c.b16 %v458, %v457
      %v579 = vpack.c.b16 %v460, %v459
      %v580 = vpack.c.b16 %v462, %v461
      %v581 = vpack.c.b16 %v464, %v463
      %v582 = vpack.c.b16 %v466, %v465
      %v583 = vpack.c.b16 %v468, %v467
      %v584 = vpack.c.b16 %v470, %v469
      %v585 = vpack.c.b16 %v472, %v471
      %v586 = vpack.c.b16 %v474, %v473
      %v587 = vpack.c.b16 %v476, %v475
      %v588 = vpack.c.b16 %v478, %v477
      %v589 = vpack.c.b16 %v480, %v479
      %v590 = vpack.c.b16 %v482, %v481
      %v591 = vpack.c.b16 %v484, %v483
      %v592 = vpack.c.b16 %v486, %v485
      %v593 = vpack.c.b16 %v488, %v487
      %v594 = vpack.c.b16 %v490, %v489
      %v595 = vpack.c.b16 %v492, %v491
      %v596 = vpack.c.b16 %v494, %v493
      %v597 = vpack.c.b16 %v496, %v495
      %v598 = vpack.c.b16 %v498, %v497
      %v599 = vpack.c.b16 %v500, %v499
      %v600 = vpack.c.b16 %v502, %v501
      %v601 = vpack.c.b16 %v504, %v503
      %v602 = vpack.c.b16 %v506, %v505
      %v603 = vpack.c.b16 %v508, %v507
      %v604 = vpack.c.b16 %v510, %v509
      %v605 = vpack.c.b16 %v512, %v511
      %v606 = vpack.c.b16 %v514, %v513
      %v607 = vpack.c.b16 %v516, %v515
      %v608 = vpack.c.b16 %v518, %v517
      %v609 = vpack.c.b16 %v520, %v519
      %v610 = vpack.c.b16 %v522, %v521
      %v611 = vpack.c.b16 %v524, %v523
      %v612 = vpack.c.b16 %v526, %v525
      %v613 = vpack.c.b16 %v528, %v527
      %v614 = vpack.c.b16 %v530, %v529
      %v615 = vpack.c.b16 %v532, %v531
      %v616 = vpack.c.b16 %v534, %v533
      %v617 = vpack.c.b16 %v536, %v535
      %v618 = vpack.c.b16 %v538, %v537
      %v619 = vpack.c.b16 %v540, %v539
      %v620 = vpack.c.b16 %v542, %v541
      %v621 = vpack.c.b16 %v544, %v543
      %v622 = vpack.c.b16 %v546, %v545
      %v623 = vpack.c.b16 %v548, %v547
      %v624 = vpack.c.b16 %v550, %v549
      %v625 = vpack.c.b16 %v552, %v551
      %v626 = vpack.c.b16 %v554, %v553
      %v627 = vpack.c.b16 %v556, %v555
      %v628 = vpack.c.b16 %v558, %v557
      %v629 = vpack.c.b16 %v560, %v559
      %v630 = vpack.c.b16 %v562, %v561
      %v631 = vpack.c.b16 %v564, %v563
      %v632 = vpack.c.b16 %v566, %v565
      %v633 = vpack.c.b16 %v568, %v567
      %v634 = vpack.c.b16 %v570, %v569
      %v715 = vunpack.c.l.b16 %v299
      %v716 = vunpack.c.h.b16 %v299
      %v717 = vunpack.c.l.b16 %v300
      %v718 = vunpack.c.h.b16 %v300
      %v719 = vunpack.c.l.b16 %v301
      %v720 = vunpack.c.h.b16 %v301
      %v721 = vunpack.c.l.b16 %v302
      %v722 = vunpack.c.h.b16 %v302
      %v723 = vunpack.c.l.b16 %v303
      %v724 = vunpack.c.h.b16 %v303
      %v725 = vunpack.c.l.b16 %v304
      %v726 = vunpack.c.h.b16 %v304
      %v727 = vunpack.c.l.b16 %v305
      %v728 = vunpack.c.h.b16 %v305
      %v729 = vunpack.c.l.b16 %v306
      %v730 = vunpack.c.h.b16 %v306
      %v731 = vunpack.c.l.b16 %v307
      %v732 = vunpack.c.h.b16 %v307
      %v733 = vunpack.c.l.b16 %v308
      %v734 = vunpack.c.h.b16 %v308
      %v735 = vunpack.c.l.b16 %v309
      %v736 = vunpack.c.h.b16 %v309
      %v737 = vunpack.c.l.b16 %v310
      %v738 = vunpack.c.h.b16 %v310
      %v739 = vunpack.c.l.b16 %v311
      %v740 = vunpack.c.h.b16 %v311
      %v741 = vunpack.c.l.b16 %v312
      %v742 = vunpack.c.h.b16 %v312
      %v743 = vunpack.c.l.b16 %v313
      %v744 = vunpack.c.h.b16 %v313
      %v745 = vunpack.c.l.b16 %v314
      %v746 = vunpack.c.h.b16 %v314
      %v747 = vpack.c.b16 %v717, %v715
      %v748 = vpack.c.b16 %v718, %v716
      %v749 = vpack.c.b16 %v721, %v719
      %v750 = vpack.c.b16 %v722, %v720
      %v751 = vpack.c.b16 %v725, %v723
      %v752 = vpack.c.b16 %v726, %v724
      %v753 = vpack.c.b16 %v729, %v727
      %v754 = vpack.c.b16 %v730, %v728
      %v755 = vpack.c.b16 %v733, %v731
      %v756 = vpack.c.b16 %v734, %v732
      %v757 = vpack.c.b16 %v737, %v735
      %v758 = vpack.c.b16 %v738, %v736
      %v759 = vpack.c.b16 %v741, %v739
      %v760 = vpack.c.b16 %v742, %v740
      %v761 = vpack.c.b16 %v745, %v743
      %v762 = vpack.c.b16 %v746, %v744
      %779 = vmatprep.subr.bf16.mxu0 %v748
      %780 = vmatpush1.bf16.msra.mxu0 %v747
      %781 = vmatprep.subr.bf16.mxu0 %v750
      %782 = vmatpush1.bf16.msra.mxu0 %v749
      %783 = vmatprep.subr.bf16.mxu0 %v752
      %784 = vmatpush1.bf16.msra.mxu0 %v751
      %785 = vmatprep.subr.bf16.mxu0 %v754
      %786 = vmatpush1.bf16.msra.mxu0 %v753
      %787 = vmatprep.subr.bf16.mxu0 %v756
      %788 = vmatpush1.bf16.msra.mxu0 %v755
      %789 = vmatprep.subr.bf16.mxu0 %v758
      %790 = vmatpush1.bf16.msra.mxu0 %v757
      %791 = vmatprep.subr.bf16.mxu0 %v760
      %792 = vmatpush1.bf16.msra.mxu0 %v759
      %793 = vmatprep.subr.bf16.mxu0 %v762
      %794 = vmatpush1.bf16.msra.mxu0 %v761
      %795 = vmatprep.subr.bf16.mxu0 0
      %796 = vmatpush1.bf16.msra.mxu0 0
      %797 = vmatprep.subr.bf16.mxu0 0
      %798 = vmatpush1.bf16.msra.mxu0 0
      %799 = vmatprep.subr.bf16.mxu0 0
      %800 = vmatpush1.bf16.msra.mxu0 0
      %801 = vmatprep.subr.bf16.mxu0 0
      %802 = vmatpush1.bf16.msra.mxu0 0
      %803 = vmatprep.subr.bf16.mxu0 0
      %804 = vmatpush1.bf16.msra.mxu0 0
      %805 = vmatprep.subr.bf16.mxu0 0
      %806 = vmatpush1.bf16.msra.mxu0 0
      %807 = vmatprep.subr.bf16.mxu0 0
      %808 = vmatpush1.bf16.msra.mxu0 0
      %809 = vmatprep.subr.bf16.mxu0 0
      %810 = vmatpush1.bf16.msra.mxu0 0
      %811 = vmatprep.mubr.bf16.mxu0 0
      %812 = vmatmul.mubr.bf16.gmra.mrb[0].mxu0 %v571
      %v813 = vpop.f32.mrb[0].mxu0
      %v814 = vadd.f32 0.0, %v813
      %v815 = vpop.f32.mrb[0].mxu0
      %v816 = vadd.f32 0.0, %v815
      %v817 = vpop.f32.mrb[0].mxu0
      %v818 = vadd.f32 0.0, %v817
      %v819 = vpop.f32.mrb[0].mxu0
      %v820 = vadd.f32 0.0, %v819
      %821 = vmatprep.mubr.bf16.mxu0 0
      %822 = vmatmul.mubr.bf16.gmra.mrb[0].mxu0 %v572
      %v823 = vpop.f32.mrb[0].mxu0
      %v824 = vadd.f32 0.0, %v823
      %v825 = vpop.f32.mrb[0].mxu0
      %v826 = vadd.f32 0.0, %v825
      %v827 = vpop.f32.mrb[0].mxu0
      %v828 = vadd.f32 0.0, %v827
      %v829 = vpop.f32.mrb[0].mxu0
      %v830 = vadd.f32 0.0, %v829
      %831 = vmatprep.mubr.bf16.mxu0 0
      %832 = vmatmul.mubr.bf16.gmra.mrb[0].mxu0 %v573
      %v833 = vpop.f32.mrb[0].mxu0
      %v834 = vadd.f32 0.0, %v833
      %v835 = vpop.f32.mrb[0].mxu0
      %v836 = vadd.f32 0.0, %v835
      %v837 = vpop.f32.mrb[0].mxu0
      %v838 = vadd.f32 0.0, %v837
      %v839 = vpop.f32.mrb[0].mxu0
      %v840 = vadd.f32 0.0, %v839
      %841 = vmatprep.mubr.bf16.mxu0 0
      %842 = vmatmul.mubr.bf16.gmra.mrb[0].mxu0 %v574
      %v843 = vpop.f32.mrb[0].mxu0
      %v844 = vadd.f32 0.0, %v843
      %v845 = vpop.f32.mrb[0].mxu0
      %v846 = vadd.f32 0.0, %v845
      %v847 = vpop.f32.mrb[0].mxu0
      %v848 = vadd.f32 0.0, %v847
      %v849 = vpop.f32.mrb[0].mxu0
      %v850 = vadd.f32 0.0, %v849
      %851 = vmatprep.mubr.bf16.mxu0 0
      %852 = vmatmul.mubr.bf16.gmra.mrb[0].mxu0 %v575
      %v853 = vpop.f32.mrb[0].mxu0
      %v854 = vadd.f32 0.0, %v853
      %v855 = vpop.f32.mrb[0].mxu0
      %v856 = vadd.f32 0.0, %v855
      %v857 = vpop.f32.mrb[0].mxu0
      %v858 = vadd.f32 0.0, %v857
      %v859 = vpop.f32.mrb[0].mxu0
      %v860 = vadd.f32 0.0, %v859
      %861 = vmatprep.mubr.bf16.mxu0 0
      %862 = vmatmul.mubr.bf16.gmra.mrb[0].mxu0 %v576
      %v863 = vpop.f32.mrb[0].mxu0
      %v864 = vadd.f32 0.0, %v863
      %v865 = vpop.f32.mrb[0].mxu0
      %v866 = vadd.f32 0.0, %v865
      %v867 = vpop.f32.mrb[0].mxu0
      %v868 = vadd.f32 0.0, %v867
      %v869 = vpop.f32.mrb[0].mxu0
      %v870 = vadd.f32 0.0, %v869
      %871 = vmatprep.mubr.bf16.mxu0 0
      %872 = vmatmul.mubr.bf16.gmra.mrb[0].mxu0 %v577
      %v873 = vpop.f32.mrb[0].mxu0
      %v874 = vadd.f32 0.0, %v873
      %v875 = vpop.f32.mrb[0].mxu0
      %v876 = vadd.f32 0.0, %v875
      %v877 = vpop.f32.mrb[0].mxu0
      %v878 = vadd.f32 0.0, %v877
      %v879 = vpop.f32.mrb[0].mxu0
      %v880 = vadd.f32 0.0, %v879
      %881 = vmatprep.mubr.bf16.mxu0 0
      %882 = vmatmul.mubr.bf16.gmra.mrb[0].mxu0 %v578
      %v883 = vpop.f32.mrb[0].mxu0
      %v884 = vadd.f32 0.0, %v883
      %v885 = vpop.f32.mrb[0].mxu0
      %v886 = vadd.f32 0.0, %v885
      %v887 = vpop.f32.mrb[0].mxu0
      %v888 = vadd.f32 0.0, %v887
      %v889 = vpop.f32.mrb[0].mxu0
      %v890 = vadd.f32 0.0, %v889
      %891 = vmatprep.mubr.bf16.mxu0 0
      %892 = vmatmul.mubr.bf16.gmra.mrb[0].mxu0 %v579
      %v893 = vpop.f32.mrb[0].mxu0
      %v894 = vadd.f32 0.0, %v893
      %v895 = vpop.f32.mrb[0].mxu0
      %v896 = vadd.f32 0.0, %v895
      %v897 = vpop.f32.mrb[0].mxu0
      %v898 = vadd.f32 0.0, %v897
      %v899 = vpop.f32.mrb[0].mxu0
      %v900 = vadd.f32 0.0, %v899
      %901 = vmatprep.mubr.bf16.mxu0 0
      %902 = vmatmul.mubr.bf16.gmra.mrb[0].mxu0 %v580
      %v903 = vpop.f32.mrb[0].mxu0
      %v904 = vadd.f32 0.0, %v903
      %v905 = vpop.f32.mrb[0].mxu0
      %v906 = vadd.f32 0.0, %v905
      %v907 = vpop.f32.mrb[0].mxu0
      %v908 = vadd.f32 0.0, %v907
      %v909 = vpop.f32.mrb[0].mxu0
      %v910 = vadd.f32 0.0, %v909
      %911 = vmatprep.mubr.bf16.mxu0 0
      %912 = vmatmul.mubr.bf16.gmra.mrb[0].mxu0 %v581
      %v913 = vpop.f32.mrb[0].mxu0
      %v914 = vadd.f32 0.0, %v913
      %v915 = vpop.f32.mrb[0].mxu0
      %v916 = vadd.f32 0.0, %v915
      %v917 = vpop.f32.mrb[0].mxu0
      %v918 = vadd.f32 0.0, %v917
      %v919 = vpop.f32.mrb[0].mxu0
      %v920 = vadd.f32 0.0, %v919
      %921 = vmatprep.mubr.bf16.mxu0 0
      %922 = vmatmul.mubr.bf16.gmra.mrb[0].mxu0 %v582
      %v923 = vpop.f32.mrb[0].mxu0
      %v924 = vadd.f32 0.0, %v923
      %v925 = vpop.f32.mrb[0].mxu0
      %v926 = vadd.f32 0.0, %v925
      %v927 = vpop.f32.mrb[0].mxu0
      %v928 = vadd.f32 0.0, %v927
      %v929 = vpop.f32.mrb[0].mxu0
      %v930 = vadd.f32 0.0, %v929
      %931 = vmatprep.mubr.bf16.mxu0 0
      %932 = vmatmul.mubr.bf16.gmra.mrb[0].mxu0 %v583
      %v933 = vpop.f32.mrb[0].mxu0
      %v934 = vadd.f32 0.0, %v933
      %v935 = vpop.f32.mrb[0].mxu0
      %v936 = vadd.f32 0.0, %v935
      %v937 = vpop.f32.mrb[0].mxu0
      %v938 = vadd.f32 0.0, %v937
      %v939 = vpop.f32.mrb[0].mxu0
      %v940 = vadd.f32 0.0, %v939
      %941 = vmatprep.mubr.bf16.mxu0 0
      %942 = vmatmul.mubr.bf16.gmra.mrb[0].mxu0 %v584
      %v943 = vpop.f32.mrb[0].mxu0
      %v944 = vadd.f32 0.0, %v943
      %v945 = vpop.f32.mrb[0].mxu0
      %v946 = vadd.f32 0.0, %v945
      %v947 = vpop.f32.mrb[0].mxu0
      %v948 = vadd.f32 0.0, %v947
      %v949 = vpop.f32.mrb[0].mxu0
      %v950 = vadd.f32 0.0, %v949
      %951 = vmatprep.mubr.bf16.mxu0 0
      %952 = vmatmul.mubr.bf16.gmra.mrb[0].mxu0 %v585
      %v953 = vpop.f32.mrb[0].mxu0
      %v954 = vadd.f32 0.0, %v953
      %v955 = vpop.f32.mrb[0].mxu0
      %v956 = vadd.f32 0.0, %v955
      %v957 = vpop.f32.mrb[0].mxu0
      %v958 = vadd.f32 0.0, %v957
      %v959 = vpop.f32.mrb[0].mxu0
      %v960 = vadd.f32 0.0, %v959
      %961 = vmatprep.mubr.bf16.mxu0 0
      %962 = vmatmul.mubr.bf16.gmra.mrb[0].mxu0 %v586
      %v963 = vpop.f32.mrb[0].mxu0
      %v964 = vadd.f32 0.0, %v963
      %v965 = vpop.f32.mrb[0].mxu0
      %v966 = vadd.f32 0.0, %v965
      %v967 = vpop.f32.mrb[0].mxu0
      %v968 = vadd.f32 0.0, %v967
      %v969 = vpop.f32.mrb[0].mxu0
      %v970 = vadd.f32 0.0, %v969
      %971 = vmatprep.mubr.bf16.mxu0 0
      %972 = vmatmul.mubr.bf16.gmra.mrb[0].mxu0 %v587
      %v973 = vpop.f32.mrb[0].mxu0
      %v974 = vadd.f32 0.0, %v973
      %v975 = vpop.f32.mrb[0].mxu0
      %v976 = vadd.f32 0.0, %v975
      %v977 = vpop.f32.mrb[0].mxu0
      %v978 = vadd.f32 0.0, %v977
      %v979 = vpop.f32.mrb[0].mxu0
      %v980 = vadd.f32 0.0, %v979
      %981 = vmatprep.mubr.bf16.mxu0 0
      %982 = vmatmul.mubr.bf16.gmra.mrb[0].mxu0 %v588
      %v983 = vpop.f32.mrb[0].mxu0
      %v984 = vadd.f32 0.0, %v983
      %v985 = vpop.f32.mrb[0].mxu0
      %v986 = vadd.f32 0.0, %v985
      %v987 = vpop.f32.mrb[0].mxu0
      %v988 = vadd.f32 0.0, %v987
      %v989 = vpop.f32.mrb[0].mxu0
      %v990 = vadd.f32 0.0, %v989
      %991 = vmatprep.mubr.bf16.mxu0 0
      %992 = vmatmul.mubr.bf16.gmra.mrb[0].mxu0 %v589
      %v993 = vpop.f32.mrb[0].mxu0
      %v994 = vadd.f32 0.0, %v993
      %v995 = vpop.f32.mrb[0].mxu0
      %v996 = vadd.f32 0.0, %v995
      %v997 = vpop.f32.mrb[0].mxu0
      %v998 = vadd.f32 0.0, %v997
      %v999 = vpop.f32.mrb[0].mxu0
      %v1000 = vadd.f32 0.0, %v999
      %1001 = vmatprep.mubr.bf16.mxu0 0
      %1002 = vmatmul.mubr.bf16.gmra.mrb[0].mxu0 %v590
      %v1003 = vpop.f32.mrb[0].mxu0
      %v1004 = vadd.f32 0.0, %v1003
      %v1005 = vpop.f32.mrb[0].mxu0
      %v1006 = vadd.f32 0.0, %v1005
      %v1007 = vpop.f32.mrb[0].mxu0
      %v1008 = vadd.f32 0.0, %v1007
      %v1009 = vpop.f32.mrb[0].mxu0
      %v1010 = vadd.f32 0.0, %v1009
      %1011 = vmatprep.mubr.bf16.mxu0 0
      %1012 = vmatmul.mubr.bf16.gmra.mrb[0].mxu0 %v591
      %v1013 = vpop.f32.mrb[0].mxu0
      %v1014 = vadd.f32 0.0, %v1013
      %v1015 = vpop.f32.mrb[0].mxu0
      %v1016 = vadd.f32 0.0, %v1015
      %v1017 = vpop.f32.mrb[0].mxu0
      %v1018 = vadd.f32 0.0, %v1017
      %v1019 = vpop.f32.mrb[0].mxu0
      %v1020 = vadd.f32 0.0, %v1019
      %1021 = vmatprep.mubr.bf16.mxu0 0
      %1022 = vmatmul.mubr.bf16.gmra.mrb[0].mxu0 %v592
      %v1023 = vpop.f32.mrb[0].mxu0
      %v1024 = vadd.f32 0.0, %v1023
      %v1025 = vpop.f32.mrb[0].mxu0
      %v1026 = vadd.f32 0.0, %v1025
      %v1027 = vpop.f32.mrb[0].mxu0
      %v1028 = vadd.f32 0.0, %v1027
      %v1029 = vpop.f32.mrb[0].mxu0
      %v1030 = vadd.f32 0.0, %v1029
      %1031 = vmatprep.mubr.bf16.mxu0 0
      %1032 = vmatmul.mubr.bf16.gmra.mrb[0].mxu0 %v593
      %v1033 = vpop.f32.mrb[0].mxu0
      %v1034 = vadd.f32 0.0, %v1033
      %v1035 = vpop.f32.mrb[0].mxu0
      %v1036 = vadd.f32 0.0, %v1035
      %v1037 = vpop.f32.mrb[0].mxu0
      %v1038 = vadd.f32 0.0, %v1037
      %v1039 = vpop.f32.mrb[0].mxu0
      %v1040 = vadd.f32 0.0, %v1039
      %1041 = vmatprep.mubr.bf16.mxu0 0
      %1042 = vmatmul.mubr.bf16.gmra.mrb[0].mxu0 %v594
      %v1043 = vpop.f32.mrb[0].mxu0
      %v1044 = vadd.f32 0.0, %v1043
      %v1045 = vpop.f32.mrb[0].mxu0
      %v1046 = vadd.f32 0.0, %v1045
      %v1047 = vpop.f32.mrb[0].mxu0
      %v1048 = vadd.f32 0.0, %v1047
      %v1049 = vpop.f32.mrb[0].mxu0
      %v1050 = vadd.f32 0.0, %v1049
      %1051 = vmatprep.mubr.bf16.mxu0 0
      %1052 = vmatmul.mubr.bf16.gmra.mrb[0].mxu0 %v595
      %v1053 = vpop.f32.mrb[0].mxu0
      %v1054 = vadd.f32 0.0, %v1053
      %v1055 = vpop.f32.mrb[0].mxu0
      %v1056 = vadd.f32 0.0, %v1055
      %v1057 = vpop.f32.mrb[0].mxu0
      %v1058 = vadd.f32 0.0, %v1057
      %v1059 = vpop.f32.mrb[0].mxu0
      %v1060 = vadd.f32 0.0, %v1059
      %1061 = vmatprep.mubr.bf16.mxu0 0
      %1062 = vmatmul.mubr.bf16.gmra.mrb[0].mxu0 %v596
      %v1063 = vpop.f32.mrb[0].mxu0
      %v1064 = vadd.f32 0.0, %v1063
      %v1065 = vpop.f32.mrb[0].mxu0
      %v1066 = vadd.f32 0.0, %v1065
      %v1067 = vpop.f32.mrb[0].mxu0
      %v1068 = vadd.f32 0.0, %v1067
      %v1069 = vpop.f32.mrb[0].mxu0
      %v1070 = vadd.f32 0.0, %v1069
      %1071 = vmatprep.mubr.bf16.mxu0 0
      %1072 = vmatmul.mubr.bf16.gmra.mrb[0].mxu0 %v597
      %v1073 = vpop.f32.mrb[0].mxu0
      %v1074 = vadd.f32 0.0, %v1073
      %v1075 = vpop.f32.mrb[0].mxu0
      %v1076 = vadd.f32 0.0, %v1075
      %v1077 = vpop.f32.mrb[0].mxu0
      %v1078 = vadd.f32 0.0, %v1077
      %v1079 = vpop.f32.mrb[0].mxu0
      %v1080 = vadd.f32 0.0, %v1079
      %1081 = vmatprep.mubr.bf16.mxu0 0
      %1082 = vmatmul.mubr.bf16.gmra.mrb[0].mxu0 %v598
      %v1083 = vpop.f32.mrb[0].mxu0
      %v1084 = vadd.f32 0.0, %v1083
      %v1085 = vpop.f32.mrb[0].mxu0
      %v1086 = vadd.f32 0.0, %v1085
      %v1087 = vpop.f32.mrb[0].mxu0
      %v1088 = vadd.f32 0.0, %v1087
      %v1089 = vpop.f32.mrb[0].mxu0
      %v1090 = vadd.f32 0.0, %v1089
      %1091 = vmatprep.mubr.bf16.mxu0 0
      %1092 = vmatmul.mubr.bf16.gmra.mrb[0].mxu0 %v599
      %v1093 = vpop.f32.mrb[0].mxu0
      %v1094 = vadd.f32 0.0, %v1093
      %v1095 = vpop.f32.mrb[0].mxu0
      %v1096 = vadd.f32 0.0, %v1095
      %v1097 = vpop.f32.mrb[0].mxu0
      %v1098 = vadd.f32 0.0, %v1097
      %v1099 = vpop.f32.mrb[0].mxu0
      %v1100 = vadd.f32 0.0, %v1099
      %1101 = vmatprep.mubr.bf16.mxu0 0
      %1102 = vmatmul.mubr.bf16.gmra.mrb[0].mxu0 %v600
      %v1103 = vpop.f32.mrb[0].mxu0
      %v1104 = vadd.f32 0.0, %v1103
      %v1105 = vpop.f32.mrb[0].mxu0
      %v1106 = vadd.f32 0.0, %v1105
      %v1107 = vpop.f32.mrb[0].mxu0
      %v1108 = vadd.f32 0.0, %v1107
      %v1109 = vpop.f32.mrb[0].mxu0
      %v1110 = vadd.f32 0.0, %v1109
      %1111 = vmatprep.mubr.bf16.mxu0 0
      %1112 = vmatmul.mubr.bf16.gmra.mrb[0].mxu0 %v601
      %v1113 = vpop.f32.mrb[0].mxu0
      %v1114 = vadd.f32 0.0, %v1113
      %v1115 = vpop.f32.mrb[0].mxu0
      %v1116 = vadd.f32 0.0, %v1115
      %v1117 = vpop.f32.mrb[0].mxu0
      %v1118 = vadd.f32 0.0, %v1117
      %v1119 = vpop.f32.mrb[0].mxu0
      %v1120 = vadd.f32 0.0, %v1119
      %1121 = vmatprep.mubr.bf16.mxu0 0
      %1122 = vmatmul.mubr.bf16.gmra.mrb[0].mxu0 %v602
      %v1123 = vpop.f32.mrb[0].mxu0
      %v1124 = vadd.f32 0.0, %v1123
      %v1125 = vpop.f32.mrb[0].mxu0
      %v1126 = vadd.f32 0.0, %v1125
      %v1127 = vpop.f32.mrb[0].mxu0
      %v1128 = vadd.f32 0.0, %v1127
      %v1129 = vpop.f32.mrb[0].mxu0
      %v1130 = vadd.f32 0.0, %v1129
      %1131 = vmatprep.mubr.bf16.mxu0 0
      %1132 = vmatmul.mubr.bf16.gmra.mrb[0].mxu0 %v603
      %v1133 = vpop.f32.mrb[0].mxu0
      %v1134 = vadd.f32 0.0, %v1133
      %v1135 = vpop.f32.mrb[0].mxu0
      %v1136 = vadd.f32 0.0, %v1135
      %v1137 = vpop.f32.mrb[0].mxu0
      %v1138 = vadd.f32 0.0, %v1137
      %v1139 = vpop.f32.mrb[0].mxu0
      %v1140 = vadd.f32 0.0, %v1139
      %1141 = vmatprep.mubr.bf16.mxu0 0
      %1142 = vmatmul.mubr.bf16.gmra.mrb[0].mxu0 %v604
      %v1143 = vpop.f32.mrb[0].mxu0
      %v1144 = vadd.f32 0.0, %v1143
      %v1145 = vpop.f32.mrb[0].mxu0
      %v1146 = vadd.f32 0.0, %v1145
      %v1147 = vpop.f32.mrb[0].mxu0
      %v1148 = vadd.f32 0.0, %v1147
      %v1149 = vpop.f32.mrb[0].mxu0
      %v1150 = vadd.f32 0.0, %v1149
      %1151 = vmatprep.mubr.bf16.mxu0 0
      %1152 = vmatmul.mubr.bf16.gmra.mrb[0].mxu0 %v605
      %v1153 = vpop.f32.mrb[0].mxu0
      %v1154 = vadd.f32 0.0, %v1153
      %v1155 = vpop.f32.mrb[0].mxu0
      %v1156 = vadd.f32 0.0, %v1155
      %v1157 = vpop.f32.mrb[0].mxu0
      %v1158 = vadd.f32 0.0, %v1157
      %v1159 = vpop.f32.mrb[0].mxu0
      %v1160 = vadd.f32 0.0, %v1159
      %1161 = vmatprep.mubr.bf16.mxu0 0
      %1162 = vmatmul.mubr.bf16.gmra.mrb[0].mxu0 %v606
      %v1163 = vpop.f32.mrb[0].mxu0
      %v1164 = vadd.f32 0.0, %v1163
      %v1165 = vpop.f32.mrb[0].mxu0
      %v1166 = vadd.f32 0.0, %v1165
      %v1167 = vpop.f32.mrb[0].mxu0
      %v1168 = vadd.f32 0.0, %v1167
      %v1169 = vpop.f32.mrb[0].mxu0
      %v1170 = vadd.f32 0.0, %v1169
      %1171 = vmatprep.mubr.bf16.mxu0 0
      %1172 = vmatmul.mubr.bf16.gmra.mrb[0].mxu0 %v607
      %v1173 = vpop.f32.mrb[0].mxu0
      %v1174 = vadd.f32 0.0, %v1173
      %v1175 = vpop.f32.mrb[0].mxu0
      %v1176 = vadd.f32 0.0, %v1175
      %v1177 = vpop.f32.mrb[0].mxu0
      %v1178 = vadd.f32 0.0, %v1177
      %v1179 = vpop.f32.mrb[0].mxu0
      %v1180 = vadd.f32 0.0, %v1179
      %1181 = vmatprep.mubr.bf16.mxu0 0
      %1182 = vmatmul.mubr.bf16.gmra.mrb[0].mxu0 %v608
      %v1183 = vpop.f32.mrb[0].mxu0
      %v1184 = vadd.f32 0.0, %v1183
      %v1185 = vpop.f32.mrb[0].mxu0
      %v1186 = vadd.f32 0.0, %v1185
      %v1187 = vpop.f32.mrb[0].mxu0
      %v1188 = vadd.f32 0.0, %v1187
      %v1189 = vpop.f32.mrb[0].mxu0
      %v1190 = vadd.f32 0.0, %v1189
      %1191 = vmatprep.mubr.bf16.mxu0 0
      %1192 = vmatmul.mubr.bf16.gmra.mrb[0].mxu0 %v609
      %v1193 = vpop.f32.mrb[0].mxu0
      %v1194 = vadd.f32 0.0, %v1193
      %v1195 = vpop.f32.mrb[0].mxu0
      %v1196 = vadd.f32 0.0, %v1195
      %v1197 = vpop.f32.mrb[0].mxu0
      %v1198 = vadd.f32 0.0, %v1197
      %v1199 = vpop.f32.mrb[0].mxu0
      %v1200 = vadd.f32 0.0, %v1199
      %1201 = vmatprep.mubr.bf16.mxu0 0
      %1202 = vmatmul.mubr.bf16.gmra.mrb[0].mxu0 %v610
      %v1203 = vpop.f32.mrb[0].mxu0
      %v1204 = vadd.f32 0.0, %v1203
      %v1205 = vpop.f32.mrb[0].mxu0
      %v1206 = vadd.f32 0.0, %v1205
      %v1207 = vpop.f32.mrb[0].mxu0
      %v1208 = vadd.f32 0.0, %v1207
      %v1209 = vpop.f32.mrb[0].mxu0
      %v1210 = vadd.f32 0.0, %v1209
      %1211 = vmatprep.mubr.bf16.mxu0 0
      %1212 = vmatmul.mubr.bf16.gmra.mrb[0].mxu0 %v611
      %v1213 = vpop.f32.mrb[0].mxu0
      %v1214 = vadd.f32 0.0, %v1213
      %v1215 = vpop.f32.mrb[0].mxu0
      %v1216 = vadd.f32 0.0, %v1215
      %v1217 = vpop.f32.mrb[0].mxu0
      %v1218 = vadd.f32 0.0, %v1217
      %v1219 = vpop.f32.mrb[0].mxu0
      %v1220 = vadd.f32 0.0, %v1219
      %1221 = vmatprep.mubr.bf16.mxu0 0
      %1222 = vmatmul.mubr.bf16.gmra.mrb[0].mxu0 %v612
      %v1223 = vpop.f32.mrb[0].mxu0
      %v1224 = vadd.f32 0.0, %v1223
      %v1225 = vpop.f32.mrb[0].mxu0
      %v1226 = vadd.f32 0.0, %v1225
      %v1227 = vpop.f32.mrb[0].mxu0
      %v1228 = vadd.f32 0.0, %v1227
      %v1229 = vpop.f32.mrb[0].mxu0
      %v1230 = vadd.f32 0.0, %v1229
      %1231 = vmatprep.mubr.bf16.mxu0 0
      %1232 = vmatmul.mubr.bf16.gmra.mrb[0].mxu0 %v613
      %v1233 = vpop.f32.mrb[0].mxu0
      %v1234 = vadd.f32 0.0, %v1233
      %v1235 = vpop.f32.mrb[0].mxu0
      %v1236 = vadd.f32 0.0, %v1235
      %v1237 = vpop.f32.mrb[0].mxu0
      %v1238 = vadd.f32 0.0, %v1237
      %v1239 = vpop.f32.mrb[0].mxu0
      %v1240 = vadd.f32 0.0, %v1239
      %1241 = vmatprep.mubr.bf16.mxu0 0
      %1242 = vmatmul.mubr.bf16.gmra.mrb[0].mxu0 %v614
      %v1243 = vpop.f32.mrb[0].mxu0
      %v1244 = vadd.f32 0.0, %v1243
      %v1245 = vpop.f32.mrb[0].mxu0
      %v1246 = vadd.f32 0.0, %v1245
      %v1247 = vpop.f32.mrb[0].mxu0
      %v1248 = vadd.f32 0.0, %v1247
      %v1249 = vpop.f32.mrb[0].mxu0
      %v1250 = vadd.f32 0.0, %v1249
      %1251 = vmatprep.mubr.bf16.mxu0 0
      %1252 = vmatmul.mubr.bf16.gmra.mrb[0].mxu0 %v615
      %v1253 = vpop.f32.mrb[0].mxu0
      %v1254 = vadd.f32 0.0, %v1253
      %v1255 = vpop.f32.mrb[0].mxu0
      %v1256 = vadd.f32 0.0, %v1255
      %v1257 = vpop.f32.mrb[0].mxu0
      %v1258 = vadd.f32 0.0, %v1257
      %v1259 = vpop.f32.mrb[0].mxu0
      %v1260 = vadd.f32 0.0, %v1259
      %1261 = vmatprep.mubr.bf16.mxu0 0
      %1262 = vmatmul.mubr.bf16.gmra.mrb[0].mxu0 %v616
      %v1263 = vpop.f32.mrb[0].mxu0
      %v1264 = vadd.f32 0.0, %v1263
      %v1265 = vpop.f32.mrb[0].mxu0
      %v1266 = vadd.f32 0.0, %v1265
      %v1267 = vpop.f32.mrb[0].mxu0
      %v1268 = vadd.f32 0.0, %v1267
      %v1269 = vpop.f32.mrb[0].mxu0
      %v1270 = vadd.f32 0.0, %v1269
      %1271 = vmatprep.mubr.bf16.mxu0 0
      %1272 = vmatmul.mubr.bf16.gmra.mrb[0].mxu0 %v617
      %v1273 = vpop.f32.mrb[0].mxu0
      %v1274 = vadd.f32 0.0, %v1273
      %v1275 = vpop.f32.mrb[0].mxu0
      %v1276 = vadd.f32 0.0, %v1275
      %v1277 = vpop.f32.mrb[0].mxu0
      %v1278 = vadd.f32 0.0, %v1277
      %v1279 = vpop.f32.mrb[0].mxu0
      %v1280 = vadd.f32 0.0, %v1279
      %1281 = vmatprep.mubr.bf16.mxu0 0
      %1282 = vmatmul.mubr.bf16.gmra.mrb[0].mxu0 %v618
      %v1283 = vpop.f32.mrb[0].mxu0
      %v1284 = vadd.f32 0.0, %v1283
      %v1285 = vpop.f32.mrb[0].mxu0
      %v1286 = vadd.f32 0.0, %v1285
      %v1287 = vpop.f32.mrb[0].mxu0
      %v1288 = vadd.f32 0.0, %v1287
      %v1289 = vpop.f32.mrb[0].mxu0
      %v1290 = vadd.f32 0.0, %v1289
      %1291 = vmatprep.mubr.bf16.mxu0 0
      %1292 = vmatmul.mubr.bf16.gmra.mrb[0].mxu0 %v619
      %v1293 = vpop.f32.mrb[0].mxu0
      %v1294 = vadd.f32 0.0, %v1293
      %v1295 = vpop.f32.mrb[0].mxu0
      %v1296 = vadd.f32 0.0, %v1295
      %v1297 = vpop.f32.mrb[0].mxu0
      %v1298 = vadd.f32 0.0, %v1297
      %v1299 = vpop.f32.mrb[0].mxu0
      %v1300 = vadd.f32 0.0, %v1299
      %1301 = vmatprep.mubr.bf16.mxu0 0
      %1302 = vmatmul.mubr.bf16.gmra.mrb[0].mxu0 %v620
      %v1303 = vpop.f32.mrb[0].mxu0
      %v1304 = vadd.f32 0.0, %v1303
      %v1305 = vpop.f32.mrb[0].mxu0
      %v1306 = vadd.f32 0.0, %v1305
      %v1307 = vpop.f32.mrb[0].mxu0
      %v1308 = vadd.f32 0.0, %v1307
      %v1309 = vpop.f32.mrb[0].mxu0
      %v1310 = vadd.f32 0.0, %v1309
      %1311 = vmatprep.mubr.bf16.mxu0 0
      %1312 = vmatmul.mubr.bf16.gmra.mrb[0].mxu0 %v621
      %v1313 = vpop.f32.mrb[0].mxu0
      %v1314 = vadd.f32 0.0, %v1313
      %v1315 = vpop.f32.mrb[0].mxu0
      %v1316 = vadd.f32 0.0, %v1315
      %v1317 = vpop.f32.mrb[0].mxu0
      %v1318 = vadd.f32 0.0, %v1317
      %v1319 = vpop.f32.mrb[0].mxu0
      %v1320 = vadd.f32 0.0, %v1319
      %1321 = vmatprep.mubr.bf16.mxu0 0
      %1322 = vmatmul.mubr.bf16.gmra.mrb[0].mxu0 %v622
      %v1323 = vpop.f32.mrb[0].mxu0
      %v1324 = vadd.f32 0.0, %v1323
      %v1325 = vpop.f32.mrb[0].mxu0
      %v1326 = vadd.f32 0.0, %v1325
      %v1327 = vpop.f32.mrb[0].mxu0
      %v1328 = vadd.f32 0.0, %v1327
      %v1329 = vpop.f32.mrb[0].mxu0
      %v1330 = vadd.f32 0.0, %v1329
      %1331 = vmatprep.mubr.bf16.mxu0 0
      %1332 = vmatmul.mubr.bf16.gmra.mrb[0].mxu0 %v623
      %v1333 = vpop.f32.mrb[0].mxu0
      %v1334 = vadd.f32 0.0, %v1333
      %v1335 = vpop.f32.mrb[0].mxu0
      %v1336 = vadd.f32 0.0, %v1335
      %v1337 = vpop.f32.mrb[0].mxu0
      %v1338 = vadd.f32 0.0, %v1337
      %v1339 = vpop.f32.mrb[0].mxu0
      %v1340 = vadd.f32 0.0, %v1339
      %1341 = vmatprep.mubr.bf16.mxu0 0
      %1342 = vmatmul.mubr.bf16.gmra.mrb[0].mxu0 %v624
      %v1343 = vpop.f32.mrb[0].mxu0
      %v1344 = vadd.f32 0.0, %v1343
      %v1345 = vpop.f32.mrb[0].mxu0
      %v1346 = vadd.f32 0.0, %v1345
      %v1347 = vpop.f32.mrb[0].mxu0
      %v1348 = vadd.f32 0.0, %v1347
      %v1349 = vpop.f32.mrb[0].mxu0
      %v1350 = vadd.f32 0.0, %v1349
      %1351 = vmatprep.mubr.bf16.mxu0 0
      %1352 = vmatmul.mubr.bf16.gmra.mrb[0].mxu0 %v625
      %v1353 = vpop.f32.mrb[0].mxu0
      %v1354 = vadd.f32 0.0, %v1353
      %v1355 = vpop.f32.mrb[0].mxu0
      %v1356 = vadd.f32 0.0, %v1355
      %v1357 = vpop.f32.mrb[0].mxu0
      %v1358 = vadd.f32 0.0, %v1357
      %v1359 = vpop.f32.mrb[0].mxu0
      %v1360 = vadd.f32 0.0, %v1359
      %1361 = vmatprep.mubr.bf16.mxu0 0
      %1362 = vmatmul.mubr.bf16.gmra.mrb[0].mxu0 %v626
      %v1363 = vpop.f32.mrb[0].mxu0
      %v1364 = vadd.f32 0.0, %v1363
      %v1365 = vpop.f32.mrb[0].mxu0
      %v1366 = vadd.f32 0.0, %v1365
      %v1367 = vpop.f32.mrb[0].mxu0
      %v1368 = vadd.f32 0.0, %v1367
      %v1369 = vpop.f32.mrb[0].mxu0
      %v1370 = vadd.f32 0.0, %v1369
      %1371 = vmatprep.mubr.bf16.mxu0 0
      %1372 = vmatmul.mubr.bf16.gmra.mrb[0].mxu0 %v627
      %v1373 = vpop.f32.mrb[0].mxu0
      %v1374 = vadd.f32 0.0, %v1373
      %v1375 = vpop.f32.mrb[0].mxu0
      %v1376 = vadd.f32 0.0, %v1375
      %v1377 = vpop.f32.mrb[0].mxu0
      %v1378 = vadd.f32 0.0, %v1377
      %v1379 = vpop.f32.mrb[0].mxu0
      %v1380 = vadd.f32 0.0, %v1379
      %1381 = vmatprep.mubr.bf16.mxu0 0
      %1382 = vmatmul.mubr.bf16.gmra.mrb[0].mxu0 %v628
      %v1383 = vpop.f32.mrb[0].mxu0
      %v1384 = vadd.f32 0.0, %v1383
      %v1385 = vpop.f32.mrb[0].mxu0
      %v1386 = vadd.f32 0.0, %v1385
      %v1387 = vpop.f32.mrb[0].mxu0
      %v1388 = vadd.f32 0.0, %v1387
      %v1389 = vpop.f32.mrb[0].mxu0
      %v1390 = vadd.f32 0.0, %v1389
      %1391 = vmatprep.mubr.bf16.mxu0 0
      %1392 = vmatmul.mubr.bf16.gmra.mrb[0].mxu0 %v629
      %v1393 = vpop.f32.mrb[0].mxu0
      %v1394 = vadd.f32 0.0, %v1393
      %v1395 = vpop.f32.mrb[0].mxu0
      %v1396 = vadd.f32 0.0, %v1395
      %v1397 = vpop.f32.mrb[0].mxu0
      %v1398 = vadd.f32 0.0, %v1397
      %v1399 = vpop.f32.mrb[0].mxu0
      %v1400 = vadd.f32 0.0, %v1399
      %1401 = vmatprep.mubr.bf16.mxu0 0
      %1402 = vmatmul.mubr.bf16.gmra.mrb[0].mxu0 %v630
      %v1403 = vpop.f32.mrb[0].mxu0
      %v1404 = vadd.f32 0.0, %v1403
      %v1405 = vpop.f32.mrb[0].mxu0
      %v1406 = vadd.f32 0.0, %v1405
      %v1407 = vpop.f32.mrb[0].mxu0
      %v1408 = vadd.f32 0.0, %v1407
      %v1409 = vpop.f32.mrb[0].mxu0
      %v1410 = vadd.f32 0.0, %v1409
      %1411 = vmatprep.mubr.bf16.mxu0 0
      %1412 = vmatmul.mubr.bf16.gmra.mrb[0].mxu0 %v631
      %v1413 = vpop.f32.mrb[0].mxu0
      %v1414 = vadd.f32 0.0, %v1413
      %v1415 = vpop.f32.mrb[0].mxu0
      %v1416 = vadd.f32 0.0, %v1415
      %v1417 = vpop.f32.mrb[0].mxu0
      %v1418 = vadd.f32 0.0, %v1417
      %v1419 = vpop.f32.mrb[0].mxu0
      %v1420 = vadd.f32 0.0, %v1419
      %1421 = vmatprep.mubr.bf16.mxu0 0
      %1422 = vmatmul.mubr.bf16.gmra.mrb[0].mxu0 %v632
      %v1423 = vpop.f32.mrb[0].mxu0
      %v1424 = vadd.f32 0.0, %v1423
      %v1425 = vpop.f32.mrb[0].mxu0
      %v1426 = vadd.f32 0.0, %v1425
      %v1427 = vpop.f32.mrb[0].mxu0
      %v1428 = vadd.f32 0.0, %v1427
      %v1429 = vpop.f32.mrb[0].mxu0
      %v1430 = vadd.f32 0.0, %v1429
      %1431 = vmatprep.mubr.bf16.mxu0 0
      %1432 = vmatmul.mubr.bf16.gmra.mrb[0].mxu0 %v633
      %v1433 = vpop.f32.mrb[0].mxu0
      %v1434 = vadd.f32 0.0, %v1433
      %v1435 = vpop.f32.mrb[0].mxu0
      %v1436 = vadd.f32 0.0, %v1435
      %v1437 = vpop.f32.mrb[0].mxu0
      %v1438 = vadd.f32 0.0, %v1437
      %v1439 = vpop.f32.mrb[0].mxu0
      %v1440 = vadd.f32 0.0, %v1439
      %1441 = vmatprep.mubr.bf16.mxu0 0
      %1442 = vmatmul.mubr.bf16.gmra.mrb[0].mxu0 %v634
      %v1443 = vpop.f32.mrb[0].mxu0
      %v1444 = vadd.f32 0.0, %v1443
      %v1445 = vpop.f32.mrb[0].mxu0
      %v1446 = vadd.f32 0.0, %v1445
      %v1447 = vpop.f32.mrb[0].mxu0
      %v1448 = vadd.f32 0.0, %v1447
      %v1449 = vpop.f32.mrb[0].mxu0
      %v1450 = vadd.f32 0.0, %v1449
      %1451 = vdwg.mxu0
      %v1452 = vadd.f32 %v814, %v818
      %v1453 = vadd.f32 %v1452, %v824
      %v1454 = vadd.f32 %v1453, %v828
      %v1455 = vadd.f32 %v1454, %v834
      %v1456 = vadd.f32 %v1455, %v838
      %v1457 = vadd.f32 %v1456, %v844
      %v1458 = vadd.f32 %v1457, %v848
      %v1459 = vadd.f32 %v1458, %v854
      %v1460 = vadd.f32 %v1459, %v858
      %v1461 = vadd.f32 %v1460, %v864
      %v1462 = vadd.f32 %v1461, %v868
      %v1463 = vadd.f32 %v1462, %v874
      %v1464 = vadd.f32 %v1463, %v878
      %v1465 = vadd.f32 %v1464, %v884
      %v1466 = vadd.f32 %v1465, %v888
      %v1467 = vadd.f32 %v1466, %v894
      %v1468 = vadd.f32 %v1467, %v898
      %v1469 = vadd.f32 %v1468, %v904
      %v1470 = vadd.f32 %v1469, %v908
      %v1471 = vadd.f32 %v1470, %v914
      %v1472 = vadd.f32 %v1471, %v918
      %v1473 = vadd.f32 %v1472, %v924
      %v1474 = vadd.f32 %v1473, %v928
      %v1475 = vadd.f32 %v1474, %v934
      %v1476 = vadd.f32 %v1475, %v938
      %v1477 = vadd.f32 %v1476, %v944
      %v1478 = vadd.f32 %v1477, %v948
      %v1479 = vadd.f32 %v1478, %v954
      %v1480 = vadd.f32 %v1479, %v958
      %v1481 = vadd.f32 %v1480, %v964
      %v1482 = vadd.f32 %v1481, %v968
      %v1483 = vadd.f32 %v1482, %v974
      %v1484 = vadd.f32 %v1483, %v978
      %v1485 = vadd.f32 %v1484, %v984
      %v1486 = vadd.f32 %v1485, %v988
      %v1487 = vadd.f32 %v1486, %v994
      %v1488 = vadd.f32 %v1487, %v998
      %v1489 = vadd.f32 %v1488, %v1004
      %v1490 = vadd.f32 %v1489, %v1008
      %v1491 = vadd.f32 %v1490, %v1014
      %v1492 = vadd.f32 %v1491, %v1018
      %v1493 = vadd.f32 %v1492, %v1024
      %v1494 = vadd.f32 %v1493, %v1028
      %v1495 = vadd.f32 %v1494, %v1034
      %v1496 = vadd.f32 %v1495, %v1038
      %v1497 = vadd.f32 %v1496, %v1044
      %v1498 = vadd.f32 %v1497, %v1048
      %v1499 = vadd.f32 %v1498, %v1054
      %v1500 = vadd.f32 %v1499, %v1058
      %v1501 = vadd.f32 %v1500, %v1064
      %v1502 = vadd.f32 %v1501, %v1068
      %v1503 = vadd.f32 %v1502, %v1074
      %v1504 = vadd.f32 %v1503, %v1078
      %v1505 = vadd.f32 %v1504, %v1084
      %v1506 = vadd.f32 %v1505, %v1088
      %v1507 = vadd.f32 %v1506, %v1094
      %v1508 = vadd.f32 %v1507, %v1098
      %v1509 = vadd.f32 %v1508, %v1104
      %v1510 = vadd.f32 %v1509, %v1108
      %v1511 = vadd.f32 %v1510, %v1114
      %v1512 = vadd.f32 %v1511, %v1118
      %v1513 = vadd.f32 %v1512, %v1124
      %v1514 = vadd.f32 %v1513, %v1128
      %v1515 = vadd.f32 %v1514, %v1134
      %v1516 = vadd.f32 %v1515, %v1138
      %v1517 = vadd.f32 %v1516, %v1144
      %v1518 = vadd.f32 %v1517, %v1148
      %v1519 = vadd.f32 %v1518, %v1154
      %v1520 = vadd.f32 %v1519, %v1158
      %v1521 = vadd.f32 %v1520, %v1164
      %v1522 = vadd.f32 %v1521, %v1168
      %v1523 = vadd.f32 %v1522, %v1174
      %v1524 = vadd.f32 %v1523, %v1178
      %v1525 = vadd.f32 %v1524, %v1184
      %v1526 = vadd.f32 %v1525, %v1188
      %v1527 = vadd.f32 %v1526, %v1194
      %v1528 = vadd.f32 %v1527, %v1198
      %v1529 = vadd.f32 %v1528, %v1204
      %v1530 = vadd.f32 %v1529, %v1208
      %v1531 = vadd.f32 %v1530, %v1214
      %v1532 = vadd.f32 %v1531, %v1218
      %v1533 = vadd.f32 %v1532, %v1224
      %v1534 = vadd.f32 %v1533, %v1228
      %v1535 = vadd.f32 %v1534, %v1234
      %v1536 = vadd.f32 %v1535, %v1238
      %v1537 = vadd.f32 %v1536, %v1244
      %v1538 = vadd.f32 %v1537, %v1248
      %v1539 = vadd.f32 %v1538, %v1254
      %v1540 = vadd.f32 %v1539, %v1258
      %v1541 = vadd.f32 %v1540, %v1264
      %v1542 = vadd.f32 %v1541, %v1268
      %v1543 = vadd.f32 %v1542, %v1274
      %v1544 = vadd.f32 %v1543, %v1278
      %v1545 = vadd.f32 %v1544, %v1284
      %v1546 = vadd.f32 %v1545, %v1288
      %v1547 = vadd.f32 %v1546, %v1294
      %v1548 = vadd.f32 %v1547, %v1298
      %v1549 = vadd.f32 %v1548, %v1304
      %v1550 = vadd.f32 %v1549, %v1308
      %v1551 = vadd.f32 %v1550, %v1314
      %v1552 = vadd.f32 %v1551, %v1318
      %v1553 = vadd.f32 %v1552, %v1324
      %v1554 = vadd.f32 %v1553, %v1328
      %v1555 = vadd.f32 %v1554, %v1334
      %v1556 = vadd.f32 %v1555, %v1338
      %v1557 = vadd.f32 %v1556, %v1344
      %v1558 = vadd.f32 %v1557, %v1348
      %v1559 = vadd.f32 %v1558, %v1354
      %v1560 = vadd.f32 %v1559, %v1358
      %v1561 = vadd.f32 %v1560, %v1364
      %v1562 = vadd.f32 %v1561, %v1368
      %v1563 = vadd.f32 %v1562, %v1374
      %v1564 = vadd.f32 %v1563, %v1378
      %v1565 = vadd.f32 %v1564, %v1384
      %v1566 = vadd.f32 %v1565, %v1388
      %v1567 = vadd.f32 %v1566, %v1394
      %v1568 = vadd.f32 %v1567, %v1398
      %v1569 = vadd.f32 %v1568, %v1404
      %v1570 = vadd.f32 %v1569, %v1408
      %v1571 = vadd.f32 %v1570, %v1414
      %v1572 = vadd.f32 %v1571, %v1418
      %v1573 = vadd.f32 %v1572, %v1424
      %v1574 = vadd.f32 %v1573, %v1428
      %v1575 = vadd.f32 %v1574, %v1434
      %v1576 = vadd.f32 %v1575, %v1438
      %v1577 = vadd.f32 %v1576, %v1444
      %v1578 = vadd.f32 %v1577, %v1448
      %v1579 = vrot.slane %v1578, 4
      %v1580 = vadd.f32 %v1578, %v1579
      %v1581 = vrot.slane %v1580, 2
      %v1582 = vadd.f32 %v1580, %v1581
      %v1583 = vrot.slane %v1582, 1
      %v1584 = vadd.f32 %v1582, %v1583
      %v1585 = vadd.f32 %v816, %v820
      %v1586 = vadd.f32 %v1585, %v826
      %v1587 = vadd.f32 %v1586, %v830
      %v1588 = vadd.f32 %v1587, %v836
      %v1589 = vadd.f32 %v1588, %v840
      %v1590 = vadd.f32 %v1589, %v846
      %v1591 = vadd.f32 %v1590, %v850
      %v1592 = vadd.f32 %v1591, %v856
      %v1593 = vadd.f32 %v1592, %v860
      %v1594 = vadd.f32 %v1593, %v866
      %v1595 = vadd.f32 %v1594, %v870
      %v1596 = vadd.f32 %v1595, %v876
      %v1597 = vadd.f32 %v1596, %v880
      %v1598 = vadd.f32 %v1597, %v886
      %v1599 = vadd.f32 %v1598, %v890
      %v1600 = vadd.f32 %v1599, %v896
      %v1601 = vadd.f32 %v1600, %v900
      %v1602 = vadd.f32 %v1601, %v906
      %v1603 = vadd.f32 %v1602, %v910
      %v1604 = vadd.f32 %v1603, %v916
      %v1605 = vadd.f32 %v1604, %v920
      %v1606 = vadd.f32 %v1605, %v926
      %v1607 = vadd.f32 %v1606, %v930
      %v1608 = vadd.f32 %v1607, %v936
      %v1609 = vadd.f32 %v1608, %v940
      %v1610 = vadd.f32 %v1609, %v946
      %v1611 = vadd.f32 %v1610, %v950
      %v1612 = vadd.f32 %v1611, %v956
      %v1613 = vadd.f32 %v1612, %v960
      %v1614 = vadd.f32 %v1613, %v966
      %v1615 = vadd.f32 %v1614, %v970
      %v1616 = vadd.f32 %v1615, %v976
      %v1617 = vadd.f32 %v1616, %v980
      %v1618 = vadd.f32 %v1617, %v986
      %v1619 = vadd.f32 %v1618, %v990
      %v1620 = vadd.f32 %v1619, %v996
      %v1621 = vadd.f32 %v1620, %v1000
      %v1622 = vadd.f32 %v1621, %v1006
      %v1623 = vadd.f32 %v1622, %v1010
      %v1624 = vadd.f32 %v1623, %v1016
      %v1625 = vadd.f32 %v1624, %v1020
      %v1626 = vadd.f32 %v1625, %v1026
      %v1627 = vadd.f32 %v1626, %v1030
      %v1628 = vadd.f32 %v1627, %v1036
      %v1629 = vadd.f32 %v1628, %v1040
      %v1630 = vadd.f32 %v1629, %v1046
      %v1631 = vadd.f32 %v1630, %v1050
      %v1632 = vadd.f32 %v1631, %v1056
      %v1633 = vadd.f32 %v1632, %v1060
      %v1634 = vadd.f32 %v1633, %v1066
      %v1635 = vadd.f32 %v1634, %v1070
      %v1636 = vadd.f32 %v1635, %v1076
      %v1637 = vadd.f32 %v1636, %v1080
      %v1638 = vadd.f32 %v1637, %v1086
      %v1639 = vadd.f32 %v1638, %v1090
      %v1640 = vadd.f32 %v1639, %v1096
      %v1641 = vadd.f32 %v1640, %v1100
      %v1642 = vadd.f32 %v1641, %v1106
      %v1643 = vadd.f32 %v1642, %v1110
      %v1644 = vadd.f32 %v1643, %v1116
      %v1645 = vadd.f32 %v1644, %v1120
      %v1646 = vadd.f32 %v1645, %v1126
      %v1647 = vadd.f32 %v1646, %v1130
      %v1648 = vadd.f32 %v1647, %v1136
      %v1649 = vadd.f32 %v1648, %v1140
      %v1650 = vadd.f32 %v1649, %v1146
      %v1651 = vadd.f32 %v1650, %v1150
      %v1652 = vadd.f32 %v1651, %v1156
      %v1653 = vadd.f32 %v1652, %v1160
      %v1654 = vadd.f32 %v1653, %v1166
      %v1655 = vadd.f32 %v1654, %v1170
      %v1656 = vadd.f32 %v1655, %v1176
      %v1657 = vadd.f32 %v1656, %v1180
      %v1658 = vadd.f32 %v1657, %v1186
      %v1659 = vadd.f32 %v1658, %v1190
      %v1660 = vadd.f32 %v1659, %v1196
      %v1661 = vadd.f32 %v1660, %v1200
      %v1662 = vadd.f32 %v1661, %v1206
      %v1663 = vadd.f32 %v1662, %v1210
      %v1664 = vadd.f32 %v1663, %v1216
      %v1665 = vadd.f32 %v1664, %v1220
      %v1666 = vadd.f32 %v1665, %v1226
      %v1667 = vadd.f32 %v1666, %v1230
      %v1668 = vadd.f32 %v1667, %v1236
      %v1669 = vadd.f32 %v1668, %v1240
      %v1670 = vadd.f32 %v1669, %v1246
      %v1671 = vadd.f32 %v1670, %v1250
      %v1672 = vadd.f32 %v1671, %v1256
      %v1673 = vadd.f32 %v1672, %v1260
      %v1674 = vadd.f32 %v1673, %v1266
      %v1675 = vadd.f32 %v1674, %v1270
      %v1676 = vadd.f32 %v1675, %v1276
      %v1677 = vadd.f32 %v1676, %v1280
      %v1678 = vadd.f32 %v1677, %v1286
      %v1679 = vadd.f32 %v1678, %v1290
      %v1680 = vadd.f32 %v1679, %v1296
      %v1681 = vadd.f32 %v1680, %v1300
      %v1682 = vadd.f32 %v1681, %v1306
      %v1683 = vadd.f32 %v1682, %v1310
      %v1684 = vadd.f32 %v1683, %v1316
      %v1685 = vadd.f32 %v1684, %v1320
      %v1686 = vadd.f32 %v1685, %v1326
      %v1687 = vadd.f32 %v1686, %v1330
      %v1688 = vadd.f32 %v1687, %v1336
      %v1689 = vadd.f32 %v1688, %v1340
      %v1690 = vadd.f32 %v1689, %v1346
      %v1691 = vadd.f32 %v1690, %v1350
      %v1692 = vadd.f32 %v1691, %v1356
      %v1693 = vadd.f32 %v1692, %v1360
      %v1694 = vadd.f32 %v1693, %v1366
      %v1695 = vadd.f32 %v1694, %v1370
      %v1696 = vadd.f32 %v1695, %v1376
      %v1697 = vadd.f32 %v1696, %v1380
      %v1698 = vadd.f32 %v1697, %v1386
      %v1699 = vadd.f32 %v1698, %v1390
      %v1700 = vadd.f32 %v1699, %v1396
      %v1701 = vadd.f32 %v1700, %v1400
      %v1702 = vadd.f32 %v1701, %v1406
      %v1703 = vadd.f32 %v1702, %v1410
      %v1704 = vadd.f32 %v1703, %v1416
      %v1705 = vadd.f32 %v1704, %v1420
      %v1706 = vadd.f32 %v1705, %v1426
      %v1707 = vadd.f32 %v1706, %v1430
      %v1708 = vadd.f32 %v1707, %v1436
      %v1709 = vadd.f32 %v1708, %v1440
      %v1710 = vadd.f32 %v1709, %v1446
      %v1711 = vadd.f32 %v1710, %v1450
      %v1712 = vrot.slane %v1711, 4
      %v1713 = vadd.f32 %v1711, %v1712
      %v1714 = vrot.slane %v1713, 2
      %v1715 = vadd.f32 %v1713, %v1714
      %v1716 = vrot.slane %v1715, 1
      %v1717 = vadd.f32 %v1715, %v1716
      %v1718 = vmul.f32 %v814, %v814
      %v1719 = vmul.f32 %v816, %v816
      %v1720 = vmul.f32 %v818, %v818
      %v1721 = vmul.f32 %v820, %v820
      %v1722 = vmul.f32 %v824, %v824
      %v1723 = vmul.f32 %v826, %v826
      %v1724 = vmul.f32 %v828, %v828
      %v1725 = vmul.f32 %v830, %v830
      %v1726 = vmul.f32 %v834, %v834
      %v1727 = vmul.f32 %v836, %v836
      %v1728 = vmul.f32 %v838, %v838
      %v1729 = vmul.f32 %v840, %v840
      %v1730 = vmul.f32 %v844, %v844
      %v1731 = vmul.f32 %v846, %v846
      %v1732 = vmul.f32 %v848, %v848
      %v1733 = vmul.f32 %v850, %v850
      %v1734 = vmul.f32 %v854, %v854
      %v1735 = vmul.f32 %v856, %v856
      %v1736 = vmul.f32 %v858, %v858
      %v1737 = vmul.f32 %v860, %v860
      %v1738 = vmul.f32 %v864, %v864
      %v1739 = vmul.f32 %v866, %v866
      %v1740 = vmul.f32 %v868, %v868
      %v1741 = vmul.f32 %v870, %v870
      %v1742 = vmul.f32 %v874, %v874
      %v1743 = vmul.f32 %v876, %v876
      %v1744 = vmul.f32 %v878, %v878
      %v1745 = vmul.f32 %v880, %v880
      %v1746 = vmul.f32 %v884, %v884
      %v1747 = vmul.f32 %v886, %v886
      %v1748 = vmul.f32 %v888, %v888
      %v1749 = vmul.f32 %v890, %v890
      %v1750 = vmul.f32 %v894, %v894
      %v1751 = vmul.f32 %v896, %v896
      %v1752 = vmul.f32 %v898, %v898
      %v1753 = vmul.f32 %v900, %v900
      %v1754 = vmul.f32 %v904, %v904
      %v1755 = vmul.f32 %v906, %v906
      %v1756 = vmul.f32 %v908, %v908
      %v1757 = vmul.f32 %v910, %v910
      %v1758 = vmul.f32 %v914, %v914
      %v1759 = vmul.f32 %v916, %v916
      %v1760 = vmul.f32 %v918, %v918
      %v1761 = vmul.f32 %v920, %v920
      %v1762 = vmul.f32 %v924, %v924
      %v1763 = vmul.f32 %v926, %v926
      %v1764 = vmul.f32 %v928, %v928
      %v1765 = vmul.f32 %v930, %v930
      %v1766 = vmul.f32 %v934, %v934
      %v1767 = vmul.f32 %v936, %v936
      %v1768 = vmul.f32 %v938, %v938
      %v1769 = vmul.f32 %v940, %v940
      %v1770 = vmul.f32 %v944, %v944
      %v1771 = vmul.f32 %v946, %v946
      %v1772 = vmul.f32 %v948, %v948
      %v1773 = vmul.f32 %v950, %v950
      %v1774 = vmul.f32 %v954, %v954
      %v1775 = vmul.f32 %v956, %v956
      %v1776 = vmul.f32 %v958, %v958
      %v1777 = vmul.f32 %v960, %v960
      %v1778 = vmul.f32 %v964, %v964
      %v1779 = vmul.f32 %v966, %v966
      %v1780 = vmul.f32 %v968, %v968
      %v1781 = vmul.f32 %v970, %v970
      %v1782 = vmul.f32 %v974, %v974
      %v1783 = vmul.f32 %v976, %v976
      %v1784 = vmul.f32 %v978, %v978
      %v1785 = vmul.f32 %v980, %v980
      %v1786 = vmul.f32 %v984, %v984
      %v1787 = vmul.f32 %v986, %v986
      %v1788 = vmul.f32 %v988, %v988
      %v1789 = vmul.f32 %v990, %v990
      %v1790 = vmul.f32 %v994, %v994
      %v1791 = vmul.f32 %v996, %v996
      %v1792 = vmul.f32 %v998, %v998
      %v1793 = vmul.f32 %v1000, %v1000
      %v1794 = vmul.f32 %v1004, %v1004
      %v1795 = vmul.f32 %v1006, %v1006
      %v1796 = vmul.f32 %v1008, %v1008
      %v1797 = vmul.f32 %v1010, %v1010
      %v1798 = vmul.f32 %v1014, %v1014
      %v1799 = vmul.f32 %v1016, %v1016
      %v1800 = vmul.f32 %v1018, %v1018
      %v1801 = vmul.f32 %v1020, %v1020
      %v1802 = vmul.f32 %v1024, %v1024
      %v1803 = vmul.f32 %v1026, %v1026
      %v1804 = vmul.f32 %v1028, %v1028
      %v1805 = vmul.f32 %v1030, %v1030
      %v1806 = vmul.f32 %v1034, %v1034
      %v1807 = vmul.f32 %v1036, %v1036
      %v1808 = vmul.f32 %v1038, %v1038
      %v1809 = vmul.f32 %v1040, %v1040
      %v1810 = vmul.f32 %v1044, %v1044
      %v1811 = vmul.f32 %v1046, %v1046
      %v1812 = vmul.f32 %v1048, %v1048
      %v1813 = vmul.f32 %v1050, %v1050
      %v1814 = vmul.f32 %v1054, %v1054
      %v1815 = vmul.f32 %v1056, %v1056
      %v1816 = vmul.f32 %v1058, %v1058
      %v1817 = vmul.f32 %v1060, %v1060
      %v1818 = vmul.f32 %v1064, %v1064
      %v1819 = vmul.f32 %v1066, %v1066
      %v1820 = vmul.f32 %v1068, %v1068
      %v1821 = vmul.f32 %v1070, %v1070
      %v1822 = vmul.f32 %v1074, %v1074
      %v1823 = vmul.f32 %v1076, %v1076
      %v1824 = vmul.f32 %v1078, %v1078
      %v1825 = vmul.f32 %v1080, %v1080
      %v1826 = vmul.f32 %v1084, %v1084
      %v1827 = vmul.f32 %v1086, %v1086
      %v1828 = vmul.f32 %v1088, %v1088
      %v1829 = vmul.f32 %v1090, %v1090
      %v1830 = vmul.f32 %v1094, %v1094
      %v1831 = vmul.f32 %v1096, %v1096
      %v1832 = vmul.f32 %v1098, %v1098
      %v1833 = vmul.f32 %v1100, %v1100
      %v1834 = vmul.f32 %v1104, %v1104
      %v1835 = vmul.f32 %v1106, %v1106
      %v1836 = vmul.f32 %v1108, %v1108
      %v1837 = vmul.f32 %v1110, %v1110
      %v1838 = vmul.f32 %v1114, %v1114
      %v1839 = vmul.f32 %v1116, %v1116
      %v1840 = vmul.f32 %v1118, %v1118
      %v1841 = vmul.f32 %v1120, %v1120
      %v1842 = vmul.f32 %v1124, %v1124
      %v1843 = vmul.f32 %v1126, %v1126
      %v1844 = vmul.f32 %v1128, %v1128
      %v1845 = vmul.f32 %v1130, %v1130
      %v1846 = vmul.f32 %v1134, %v1134
      %v1847 = vmul.f32 %v1136, %v1136
      %v1848 = vmul.f32 %v1138, %v1138
      %v1849 = vmul.f32 %v1140, %v1140
      %v1850 = vmul.f32 %v1144, %v1144
      %v1851 = vmul.f32 %v1146, %v1146
      %v1852 = vmul.f32 %v1148, %v1148
      %v1853 = vmul.f32 %v1150, %v1150
      %v1854 = vmul.f32 %v1154, %v1154
      %v1855 = vmul.f32 %v1156, %v1156
      %v1856 = vmul.f32 %v1158, %v1158
      %v1857 = vmul.f32 %v1160, %v1160
      %v1858 = vmul.f32 %v1164, %v1164
      %v1859 = vmul.f32 %v1166, %v1166
      %v1860 = vmul.f32 %v1168, %v1168
      %v1861 = vmul.f32 %v1170, %v1170
      %v1862 = vmul.f32 %v1174, %v1174
      %v1863 = vmul.f32 %v1176, %v1176
      %v1864 = vmul.f32 %v1178, %v1178
      %v1865 = vmul.f32 %v1180, %v1180
      %v1866 = vmul.f32 %v1184, %v1184
      %v1867 = vmul.f32 %v1186, %v1186
      %v1868 = vmul.f32 %v1188, %v1188
      %v1869 = vmul.f32 %v1190, %v1190
      %v1870 = vmul.f32 %v1194, %v1194
      %v1871 = vmul.f32 %v1196, %v1196
      %v1872 = vmul.f32 %v1198, %v1198
      %v1873 = vmul.f32 %v1200, %v1200
      %v1874 = vmul.f32 %v1204, %v1204
      %v1875 = vmul.f32 %v1206, %v1206
      %v1876 = vmul.f32 %v1208, %v1208
      %v1877 = vmul.f32 %v1210, %v1210
      %v1878 = vmul.f32 %v1214, %v1214
      %v1879 = vmul.f32 %v1216, %v1216
      %v1880 = vmul.f32 %v1218, %v1218
      %v1881 = vmul.f32 %v1220, %v1220
      %v1882 = vmul.f32 %v1224, %v1224
      %v1883 = vmul.f32 %v1226, %v1226
      %v1884 = vmul.f32 %v1228, %v1228
      %v1885 = vmul.f32 %v1230, %v1230
      %v1886 = vmul.f32 %v1234, %v1234
      %v1887 = vmul.f32 %v1236, %v1236
      %v1888 = vmul.f32 %v1238, %v1238
      %v1889 = vmul.f32 %v1240, %v1240
      %v1890 = vmul.f32 %v1244, %v1244
      %v1891 = vmul.f32 %v1246, %v1246
      %v1892 = vmul.f32 %v1248, %v1248
      %v1893 = vmul.f32 %v1250, %v1250
      %v1894 = vmul.f32 %v1254, %v1254
      %v1895 = vmul.f32 %v1256, %v1256
      %v1896 = vmul.f32 %v1258, %v1258
      %v1897 = vmul.f32 %v1260, %v1260
      %v1898 = vmul.f32 %v1264, %v1264
      %v1899 = vmul.f32 %v1266, %v1266
      %v1900 = vmul.f32 %v1268, %v1268
      %v1901 = vmul.f32 %v1270, %v1270
      %v1902 = vmul.f32 %v1274, %v1274
      %v1903 = vmul.f32 %v1276, %v1276
      %v1904 = vmul.f32 %v1278, %v1278
      %v1905 = vmul.f32 %v1280, %v1280
      %v1906 = vmul.f32 %v1284, %v1284
      %v1907 = vmul.f32 %v1286, %v1286
      %v1908 = vmul.f32 %v1288, %v1288
      %v1909 = vmul.f32 %v1290, %v1290
      %v1910 = vmul.f32 %v1294, %v1294
      %v1911 = vmul.f32 %v1296, %v1296
      %v1912 = vmul.f32 %v1298, %v1298
      %v1913 = vmul.f32 %v1300, %v1300
      %v1914 = vmul.f32 %v1304, %v1304
      %v1915 = vmul.f32 %v1306, %v1306
      %v1916 = vmul.f32 %v1308, %v1308
      %v1917 = vmul.f32 %v1310, %v1310
      %v1918 = vmul.f32 %v1314, %v1314
      %v1919 = vmul.f32 %v1316, %v1316
      %v1920 = vmul.f32 %v1318, %v1318
      %v1921 = vmul.f32 %v1320, %v1320
      %v1922 = vmul.f32 %v1324, %v1324
      %v1923 = vmul.f32 %v1326, %v1326
      %v1924 = vmul.f32 %v1328, %v1328
      %v1925 = vmul.f32 %v1330, %v1330
      %v1926 = vmul.f32 %v1334, %v1334
      %v1927 = vmul.f32 %v1336, %v1336
      %v1928 = vmul.f32 %v1338, %v1338
      %v1929 = vmul.f32 %v1340, %v1340
      %v1930 = vmul.f32 %v1344, %v1344
      %v1931 = vmul.f32 %v1346, %v1346
      %v1932 = vmul.f32 %v1348, %v1348
      %v1933 = vmul.f32 %v1350, %v1350
      %v1934 = vmul.f32 %v1354, %v1354
      %v1935 = vmul.f32 %v1356, %v1356
      %v1936 = vmul.f32 %v1358, %v1358
      %v1937 = vmul.f32 %v1360, %v1360
      %v1938 = vmul.f32 %v1364, %v1364
      %v1939 = vmul.f32 %v1366, %v1366
      %v1940 = vmul.f32 %v1368, %v1368
      %v1941 = vmul.f32 %v1370, %v1370
      %v1942 = vmul.f32 %v1374, %v1374
      %v1943 = vmul.f32 %v1376, %v1376
      %v1944 = vmul.f32 %v1378, %v1378
      %v1945 = vmul.f32 %v1380, %v1380
      %v1946 = vmul.f32 %v1384, %v1384
      %v1947 = vmul.f32 %v1386, %v1386
      %v1948 = vmul.f32 %v1388, %v1388
      %v1949 = vmul.f32 %v1390, %v1390
      %v1950 = vmul.f32 %v1394, %v1394
      %v1951 = vmul.f32 %v1396, %v1396
      %v1952 = vmul.f32 %v1398, %v1398
      %v1953 = vmul.f32 %v1400, %v1400
      %v1954 = vmul.f32 %v1404, %v1404
      %v1955 = vmul.f32 %v1406, %v1406
      %v1956 = vmul.f32 %v1408, %v1408
      %v1957 = vmul.f32 %v1410, %v1410
      %v1958 = vmul.f32 %v1414, %v1414
      %v1959 = vmul.f32 %v1416, %v1416
      %v1960 = vmul.f32 %v1418, %v1418
      %v1961 = vmul.f32 %v1420, %v1420
      %v1962 = vmul.f32 %v1424, %v1424
      %v1963 = vmul.f32 %v1426, %v1426
      %v1964 = vmul.f32 %v1428, %v1428
      %v1965 = vmul.f32 %v1430, %v1430
      %v1966 = vmul.f32 %v1434, %v1434
      %v1967 = vmul.f32 %v1436, %v1436
      %v1968 = vmul.f32 %v1438, %v1438
      %v1969 = vmul.f32 %v1440, %v1440
      %v1970 = vmul.f32 %v1444, %v1444
      %v1971 = vmul.f32 %v1446, %v1446
      %v1972 = vmul.f32 %v1448, %v1448
      %v1973 = vmul.f32 %v1450, %v1450
      %v1974 = vadd.f32 %v1718, %v1720
      %v1975 = vadd.f32 %v1974, %v1722
      %v1976 = vadd.f32 %v1975, %v1724
      %v1977 = vadd.f32 %v1976, %v1726
      %v1978 = vadd.f32 %v1977, %v1728
      %v1979 = vadd.f32 %v1978, %v1730
      %v1980 = vadd.f32 %v1979, %v1732
      %v1981 = vadd.f32 %v1980, %v1734
      %v1982 = vadd.f32 %v1981, %v1736
      %v1983 = vadd.f32 %v1982, %v1738
      %v1984 = vadd.f32 %v1983, %v1740
      %v1985 = vadd.f32 %v1984, %v1742
      %v1986 = vadd.f32 %v1985, %v1744
      %v1987 = vadd.f32 %v1986, %v1746
      %v1988 = vadd.f32 %v1987, %v1748
      %v1989 = vadd.f32 %v1988, %v1750
      %v1990 = vadd.f32 %v1989, %v1752
      %v1991 = vadd.f32 %v1990, %v1754
      %v1992 = vadd.f32 %v1991, %v1756
      %v1993 = vadd.f32 %v1992, %v1758
      %v1994 = vadd.f32 %v1993, %v1760
      %v1995 = vadd.f32 %v1994, %v1762
      %v1996 = vadd.f32 %v1995, %v1764
      %v1997 = vadd.f32 %v1996, %v1766
      %v1998 = vadd.f32 %v1997, %v1768
      %v1999 = vadd.f32 %v1998, %v1770
      %v2000 = vadd.f32 %v1999, %v1772
      %v2001 = vadd.f32 %v2000, %v1774
      %v2002 = vadd.f32 %v2001, %v1776
      %v2003 = vadd.f32 %v2002, %v1778
      %v2004 = vadd.f32 %v2003, %v1780
      %v2005 = vadd.f32 %v2004, %v1782
      %v2006 = vadd.f32 %v2005, %v1784
      %v2007 = vadd.f32 %v2006, %v1786
      %v2008 = vadd.f32 %v2007, %v1788
      %v2009 = vadd.f32 %v2008, %v1790
      %v2010 = vadd.f32 %v2009, %v1792
      %v2011 = vadd.f32 %v2010, %v1794
      %v2012 = vadd.f32 %v2011, %v1796
      %v2013 = vadd.f32 %v2012, %v1798
      %v2014 = vadd.f32 %v2013, %v1800
      %v2015 = vadd.f32 %v2014, %v1802
      %v2016 = vadd.f32 %v2015, %v1804
      %v2017 = vadd.f32 %v2016, %v1806
      %v2018 = vadd.f32 %v2017, %v1808
      %v2019 = vadd.f32 %v2018, %v1810
      %v2020 = vadd.f32 %v2019, %v1812
      %v2021 = vadd.f32 %v2020, %v1814
      %v2022 = vadd.f32 %v2021, %v1816
      %v2023 = vadd.f32 %v2022, %v1818
      %v2024 = vadd.f32 %v2023, %v1820
      %v2025 = vadd.f32 %v2024, %v1822
      %v2026 = vadd.f32 %v2025, %v1824
      %v2027 = vadd.f32 %v2026, %v1826
      %v2028 = vadd.f32 %v2027, %v1828
      %v2029 = vadd.f32 %v2028, %v1830
      %v2030 = vadd.f32 %v2029, %v1832
      %v2031 = vadd.f32 %v2030, %v1834
      %v2032 = vadd.f32 %v2031, %v1836
      %v2033 = vadd.f32 %v2032, %v1838
      %v2034 = vadd.f32 %v2033, %v1840
      %v2035 = vadd.f32 %v2034, %v1842
      %v2036 = vadd.f32 %v2035, %v1844
      %v2037 = vadd.f32 %v2036, %v1846
      %v2038 = vadd.f32 %v2037, %v1848
      %v2039 = vadd.f32 %v2038, %v1850
      %v2040 = vadd.f32 %v2039, %v1852
      %v2041 = vadd.f32 %v2040, %v1854
      %v2042 = vadd.f32 %v2041, %v1856
      %v2043 = vadd.f32 %v2042, %v1858
      %v2044 = vadd.f32 %v2043, %v1860
      %v2045 = vadd.f32 %v2044, %v1862
      %v2046 = vadd.f32 %v2045, %v1864
      %v2047 = vadd.f32 %v2046, %v1866
      %v2048 = vadd.f32 %v2047, %v1868
      %v2049 = vadd.f32 %v2048, %v1870
      %v2050 = vadd.f32 %v2049, %v1872
      %v2051 = vadd.f32 %v2050, %v1874
      %v2052 = vadd.f32 %v2051, %v1876
      %v2053 = vadd.f32 %v2052, %v1878
      %v2054 = vadd.f32 %v2053, %v1880
      %v2055 = vadd.f32 %v2054, %v1882
      %v2056 = vadd.f32 %v2055, %v1884
      %v2057 = vadd.f32 %v2056, %v1886
      %v2058 = vadd.f32 %v2057, %v1888
      %v2059 = vadd.f32 %v2058, %v1890
      %v2060 = vadd.f32 %v2059, %v1892
      %v2061 = vadd.f32 %v2060, %v1894
      %v2062 = vadd.f32 %v2061, %v1896
      %v2063 = vadd.f32 %v2062, %v1898
      %v2064 = vadd.f32 %v2063, %v1900
      %v2065 = vadd.f32 %v2064, %v1902
      %v2066 = vadd.f32 %v2065, %v1904
      %v2067 = vadd.f32 %v2066, %v1906
      %v2068 = vadd.f32 %v2067, %v1908
      %v2069 = vadd.f32 %v2068, %v1910
      %v2070 = vadd.f32 %v2069, %v1912
      %v2071 = vadd.f32 %v2070, %v1914
      %v2072 = vadd.f32 %v2071, %v1916
      %v2073 = vadd.f32 %v2072, %v1918
      %v2074 = vadd.f32 %v2073, %v1920
      %v2075 = vadd.f32 %v2074, %v1922
      %v2076 = vadd.f32 %v2075, %v1924
      %v2077 = vadd.f32 %v2076, %v1926
      %v2078 = vadd.f32 %v2077, %v1928
      %v2079 = vadd.f32 %v2078, %v1930
      %v2080 = vadd.f32 %v2079, %v1932
      %v2081 = vadd.f32 %v2080, %v1934
      %v2082 = vadd.f32 %v2081, %v1936
      %v2083 = vadd.f32 %v2082, %v1938
      %v2084 = vadd.f32 %v2083, %v1940
      %v2085 = vadd.f32 %v2084, %v1942
      %v2086 = vadd.f32 %v2085, %v1944
      %v2087 = vadd.f32 %v2086, %v1946
      %v2088 = vadd.f32 %v2087, %v1948
      %v2089 = vadd.f32 %v2088, %v1950
      %v2090 = vadd.f32 %v2089, %v1952
      %v2091 = vadd.f32 %v2090, %v1954
      %v2092 = vadd.f32 %v2091, %v1956
      %v2093 = vadd.f32 %v2092, %v1958
      %v2094 = vadd.f32 %v2093, %v1960
      %v2095 = vadd.f32 %v2094, %v1962
      %v2096 = vadd.f32 %v2095, %v1964
      %v2097 = vadd.f32 %v2096, %v1966
      %v2098 = vadd.f32 %v2097, %v1968
      %v2099 = vadd.f32 %v2098, %v1970
      %v2100 = vadd.f32 %v2099, %v1972
      %v2101 = vrot.slane %v2100, 4
      %v2102 = vadd.f32 %v2100, %v2101
      %v2103 = vrot.slane %v2102, 2
      %v2104 = vadd.f32 %v2102, %v2103
      %v2105 = vrot.slane %v2104, 1
      %v2106 = vadd.f32 %v2104, %v2105
      %v2107 = vadd.f32 %v1719, %v1721
      %v2108 = vadd.f32 %v2107, %v1723
      %v2109 = vadd.f32 %v2108, %v1725
      %v2110 = vadd.f32 %v2109, %v1727
      %v2111 = vadd.f32 %v2110, %v1729
      %v2112 = vadd.f32 %v2111, %v1731
      %v2113 = vadd.f32 %v2112, %v1733
      %v2114 = vadd.f32 %v2113, %v1735
      %v2115 = vadd.f32 %v2114, %v1737
      %v2116 = vadd.f32 %v2115, %v1739
      %v2117 = vadd.f32 %v2116, %v1741
      %v2118 = vadd.f32 %v2117, %v1743
      %v2119 = vadd.f32 %v2118, %v1745
      %v2120 = vadd.f32 %v2119, %v1747
      %v2121 = vadd.f32 %v2120, %v1749
      %v2122 = vadd.f32 %v2121, %v1751
      %v2123 = vadd.f32 %v2122, %v1753
      %v2124 = vadd.f32 %v2123, %v1755
      %v2125 = vadd.f32 %v2124, %v1757
      %v2126 = vadd.f32 %v2125, %v1759
      %v2127 = vadd.f32 %v2126, %v1761
      %v2128 = vadd.f32 %v2127, %v1763
      %v2129 = vadd.f32 %v2128, %v1765
      %v2130 = vadd.f32 %v2129, %v1767
      %v2131 = vadd.f32 %v2130, %v1769
      %v2132 = vadd.f32 %v2131, %v1771
      %v2133 = vadd.f32 %v2132, %v1773
      %v2134 = vadd.f32 %v2133, %v1775
      %v2135 = vadd.f32 %v2134, %v1777
      %v2136 = vadd.f32 %v2135, %v1779
      %v2137 = vadd.f32 %v2136, %v1781
      %v2138 = vadd.f32 %v2137, %v1783
      %v2139 = vadd.f32 %v2138, %v1785
      %v2140 = vadd.f32 %v2139, %v1787
      %v2141 = vadd.f32 %v2140, %v1789
      %v2142 = vadd.f32 %v2141, %v1791
      %v2143 = vadd.f32 %v2142, %v1793
      %v2144 = vadd.f32 %v2143, %v1795
      %v2145 = vadd.f32 %v2144, %v1797
      %v2146 = vadd.f32 %v2145, %v1799
      %v2147 = vadd.f32 %v2146, %v1801
      %v2148 = vadd.f32 %v2147, %v1803
      %v2149 = vadd.f32 %v2148, %v1805
      %v2150 = vadd.f32 %v2149, %v1807
      %v2151 = vadd.f32 %v2150, %v1809
      %v2152 = vadd.f32 %v2151, %v1811
      %v2153 = vadd.f32 %v2152, %v1813
      %v2154 = vadd.f32 %v2153, %v1815
      %v2155 = vadd.f32 %v2154, %v1817
      %v2156 = vadd.f32 %v2155, %v1819
      %v2157 = vadd.f32 %v2156, %v1821
      %v2158 = vadd.f32 %v2157, %v1823
      %v2159 = vadd.f32 %v2158, %v1825
      %v2160 = vadd.f32 %v2159, %v1827
      %v2161 = vadd.f32 %v2160, %v1829
      %v2162 = vadd.f32 %v2161, %v1831
      %v2163 = vadd.f32 %v2162, %v1833
      %v2164 = vadd.f32 %v2163, %v1835
      %v2165 = vadd.f32 %v2164, %v1837
      %v2166 = vadd.f32 %v2165, %v1839
      %v2167 = vadd.f32 %v2166, %v1841
      %v2168 = vadd.f32 %v2167, %v1843
      %v2169 = vadd.f32 %v2168, %v1845
      %v2170 = vadd.f32 %v2169, %v1847
      %v2171 = vadd.f32 %v2170, %v1849
      %v2172 = vadd.f32 %v2171, %v1851
      %v2173 = vadd.f32 %v2172, %v1853
      %v2174 = vadd.f32 %v2173, %v1855
      %v2175 = vadd.f32 %v2174, %v1857
      %v2176 = vadd.f32 %v2175, %v1859
      %v2177 = vadd.f32 %v2176, %v1861
      %v2178 = vadd.f32 %v2177, %v1863
      %v2179 = vadd.f32 %v2178, %v1865
      %v2180 = vadd.f32 %v2179, %v1867
      %v2181 = vadd.f32 %v2180, %v1869
      %v2182 = vadd.f32 %v2181, %v1871
      %v2183 = vadd.f32 %v2182, %v1873
      %v2184 = vadd.f32 %v2183, %v1875
      %v2185 = vadd.f32 %v2184, %v1877
      %v2186 = vadd.f32 %v2185, %v1879
      %v2187 = vadd.f32 %v2186, %v1881
      %v2188 = vadd.f32 %v2187, %v1883
      %v2189 = vadd.f32 %v2188, %v1885
      %v2190 = vadd.f32 %v2189, %v1887
      %v2191 = vadd.f32 %v2190, %v1889
      %v2192 = vadd.f32 %v2191, %v1891
      %v2193 = vadd.f32 %v2192, %v1893
      %v2194 = vadd.f32 %v2193, %v1895
      %v2195 = vadd.f32 %v2194, %v1897
      %v2196 = vadd.f32 %v2195, %v1899
      %v2197 = vadd.f32 %v2196, %v1901
      %v2198 = vadd.f32 %v2197, %v1903
      %v2199 = vadd.f32 %v2198, %v1905
      %v2200 = vadd.f32 %v2199, %v1907
      %v2201 = vadd.f32 %v2200, %v1909
      %v2202 = vadd.f32 %v2201, %v1911
      %v2203 = vadd.f32 %v2202, %v1913
      %v2204 = vadd.f32 %v2203, %v1915
      %v2205 = vadd.f32 %v2204, %v1917
      %v2206 = vadd.f32 %v2205, %v1919
      %v2207 = vadd.f32 %v2206, %v1921
      %v2208 = vadd.f32 %v2207, %v1923
      %v2209 = vadd.f32 %v2208, %v1925
      %v2210 = vadd.f32 %v2209, %v1927
      %v2211 = vadd.f32 %v2210, %v1929
      %v2212 = vadd.f32 %v2211, %v1931
      %v2213 = vadd.f32 %v2212, %v1933
      %v2214 = vadd.f32 %v2213, %v1935
      %v2215 = vadd.f32 %v2214, %v1937
      %v2216 = vadd.f32 %v2215, %v1939
      %v2217 = vadd.f32 %v2216, %v1941
      %v2218 = vadd.f32 %v2217, %v1943
      %v2219 = vadd.f32 %v2218, %v1945
      %v2220 = vadd.f32 %v2219, %v1947
      %v2221 = vadd.f32 %v2220, %v1949
      %v2222 = vadd.f32 %v2221, %v1951
      %v2223 = vadd.f32 %v2222, %v1953
      %v2224 = vadd.f32 %v2223, %v1955
      %v2225 = vadd.f32 %v2224, %v1957
      %v2226 = vadd.f32 %v2225, %v1959
      %v2227 = vadd.f32 %v2226, %v1961
      %v2228 = vadd.f32 %v2227, %v1963
      %v2229 = vadd.f32 %v2228, %v1965
      %v2230 = vadd.f32 %v2229, %v1967
      %v2231 = vadd.f32 %v2230, %v1969
      %v2232 = vadd.f32 %v2231, %v1971
      %v2233 = vadd.f32 %v2232, %v1973
      %v2234 = vrot.slane %v2233, 4
      %v2235 = vadd.f32 %v2233, %v2234
      %v2236 = vrot.slane %v2235, 2
      %v2237 = vadd.f32 %v2235, %v2236
      %v2238 = vrot.slane %v2237, 1
      %v2239 = vadd.f32 %v2237, %v2238
      %v2240 = vld [vmem:[%s164] sm:$0xf]
      %vm2241 = vcmask 1040384
      %v2242 = vsel %vm2241, %v1584, %v2106
      %v2243 = vsel %vm2241, %v1717, %v2239
      %v2246 = vcombine.low %v2242, %v2243
      %v2248 = vunpack.c.l.s4 1983009808
      %v2249 = vunpack.c.0.s8 %v2248
      %v2250 = vlaneseq
      %v2251 = vshrl.u32 %v2250, 7
      %v2252 = vsub.s32 %v2249, %v2251
      %v2253 = vrot.slane %v2246, %v2252
      %v2255 = vadd.f32 %v2240, %v2253
      %2256 = vst [vmem:[%s164] sm:$0xf] %v2255
      %p2257 = scmp.lt.s32.totalorder %s17, 1
      %s2258 = scalar_select %p2257, %s17, 1
      %s2259 = smul.addr %s2258, 2
      %s2260 = smul.addr %s2259, 2
      %s2261 = scalar_lea.vmem %s2, %s2260
      // Predicated region
      $region33: #{_lambda_.8} parent=27 // pred_check
        %p2262 = pneg %p92
      $region34: #{_lambda_.8} parent=27 // pred_check_branch
        %2264 = sbr.rel (%p2262) target = $region36
      $region35: #{_lambda_.8} parent=27 // pred_region
        _
      $region36: #{_lambda_.8} parent=27 // pred_fallthru
        _
    $region28: #{_lambda_.8} parent=5 // pred_fallthru
      _
    %p2265 = scmp.le.s32.totalorder 2, %s8
    // Predicated region
    $region37: #{_lambda_.8} parent=5 // pred_check
      %p2266 = pneg %p2265
    $region38: #{_lambda_.8} parent=5 // pred_check_branch
      %2268 = sbr.rel (%p2266) target = $region40
    $region39: #{_lambda_.8} parent=5 // pred_region
      %s2269 = ssub.s32 %s8, 2
      // Predicated region
      $region41: #{_lambda_.8} parent=39 // pred_check
        %p2270 = pneg %p98
      $region42: #{_lambda_.8} parent=39 // pred_check_branch
        %2272 = sbr.rel (%p2270) target = $region44
      $region43: #{_lambda_.8} parent=39 // pred_region
        %p2273 = scmp.lt.s32.totalorder %s19, 1
        %s2274 = scalar_select %p2273, %s19, 1
        %s2275 = smul.addr %s2274, 2
        %s2276 = smul.addr %s2275, 2
        %s2277 = scalar_lea.vmem %s2, %s2276
      $region44: #{_lambda_.8} parent=39 // pred_fallthru
        _
    $region40: #{_lambda_.8} parent=5 // pred_fallthru
      _
  $region6: #{_lambda_.8} parent=0 // loop_footer
    %s12 = sadd.s32 1, %s8
  $region7: #{_lambda_.8} parent=0 // loop_footer_branch
    %7 = sbr.rel target = $region3
  $region8: #{_lambda_.8} parent=0 // loop_exit
    _

// kernel: _lambda_.9
$region0: #{_lambda_.9}
  #allocation0 [shape = 'u32[]', space=smem, size = 0x4, offset = 0x4, fixed_abs, tag = 'smem constant byte address 0x4 - core index']
  #allocation1 [shape = 'u32[144,128]{1,0:T(1,128)}', space=vmem, size = 0x12000, scoped, tag = 'internal scratch']
  %s0 = inlined_call_operand.vmem [shape: bf16[2048,128], index: 0, kind: input, shape index: {}]
  %s1 = inlined_call_operand.vmem [shape: bf16[128,256], index: 1, kind: input, shape index: {}]
  %s2 = inlined_call_operand.vmem [shape: f32[1,256], index: 2, kind: input, shape index: {}]
  %s3 = inlined_call_operand.vmem [shape: f32[1,256], index: 3, kind: input, shape index: {}]
  %s4 = inlined_call_operand.vmem [shape: bf16[2048,128], index: 4, kind: output, shape index: {0}]
  %s5 = inlined_call_operand.vmem [shape: bf16[2048,128], index: 5, kind: output, shape index: {1}]
  %6 = xla_tuple %s4, %s5
  %s7 = sld [smem:[#allocation0]]
  $region57: #{_lambda_.9} parent=0
    _
  %s9 = ssub.s32 1, %s7
  %s10 = scalar_select 0, %s9, %s7
  loop: start=0, step=1, limit=4
  $region2: #{_lambda_.9} parent=0 // loop_pre_header
    _
  $region3: #{_lambda_.9} parent=0 // loop_header
    %s12 = sphi 0, %s16
    %p13 = scmp.ge.s32.totalorder %s12, 4
    %s22 = sphi 0, %s24
    %s25 = sphi 0, %s22
    %s26 = sphi 0, %s25
    %s42 = sphi 0, %s26
    %s46 = sphi 0, %s46
    %s48 = sphi 0, %s46
    %s49 = sphi 0, %s48
    %s63 = sphi 0, %s49
    %s67 = sphi 0, %s67
    %s69 = sphi 0, %s67
    %s70 = sphi 0, %s69
    %s84 = sphi 0, %s70
    %s88 = sphi 0, %s88
    %s90 = sphi 0, %s88
    %s91 = sphi 0, %s90
    %s105 = sphi 0, %s91
    %s111 = sphi 0, %s113
    %s114 = sphi 0, %s111
    %s115 = sphi 0, %s114
    %s131 = sphi 0, %s115
    %s137 = sphi 0, %s139
    %s140 = sphi 0, %s137
    %s141 = sphi 0, %s140
    %s157 = sphi 0, %s141
  $region4: #{_lambda_.9} parent=0 // loop_header_branch
    %15 = sbr.rel (%p13) target = $region8
  $region5: #{_lambda_.9} parent=0 // loop_body
    %s17 = ssub.s32 %s12, 1
    %s18 = ssub.s32 %s12, 2
    %s19 = sadd.s32 %s12, 1
    %s20 = ssub.s32 %s12, %s19
    %p21 = scmp.eq.s32.totalorder %s20, 0
    %s23 = sadd.s32 %s22, 1
    %s24 = scalar_select %p21, %s22, %s23
    %p27 = pneg %p21
    %p28 = scmp.eq.s32.totalorder %s12, 1
    %p29 = por %p27, %p28
    %p30 = scmp.ne.s32.totalorder %s22, %s25
    %p31 = scmp.eq.s32.totalorder %s12, 0
    %p32 = por %p30, %p31
    %p33 = scmp.ne.s32.totalorder %s22, %s25
    %p34 = scmp.eq.s32.totalorder %s17, 1
    %p35 = por %p33, %p34
    %p36 = scmp.ne.s32.totalorder %s25, %s26
    %p37 = scmp.eq.s32.totalorder %s17, 0
    %p38 = por %p36, %p37
    %p39 = scmp.ne.s32.totalorder %s25, %s26
    %p40 = scmp.eq.s32.totalorder %s18, 1
    %p41 = por %p39, %p40
    %p43 = scmp.ne.s32.totalorder %s26, %s42
    %p44 = scmp.eq.s32.totalorder %s18, 0
    %p45 = por %p43, %p44
    %s47 = sadd.s32 %s46, 1
    %p50 = scmp.eq.s32.totalorder %s12, 1
    %p51 = scmp.ne.s32.totalorder %s46, %s48
    %p52 = scmp.eq.s32.totalorder %s12, 0
    %p53 = por %p51, %p52
    %p54 = scmp.ne.s32.totalorder %s46, %s48
    %p55 = scmp.eq.s32.totalorder %s17, 1
    %p56 = por %p54, %p55
    %p57 = scmp.ne.s32.totalorder %s48, %s49
    %p58 = scmp.eq.s32.totalorder %s17, 0
    %p59 = por %p57, %p58
    %p60 = scmp.ne.s32.totalorder %s48, %s49
    %p61 = scmp.eq.s32.totalorder %s18, 1
    %p62 = por %p60, %p61
    %p64 = scmp.ne.s32.totalorder %s49, %s63
    %p65 = scmp.eq.s32.totalorder %s18, 0
    %p66 = por %p64, %p65
    %s68 = sadd.s32 %s67, 1
    %p71 = scmp.eq.s32.totalorder %s12, 1
    %p72 = scmp.ne.s32.totalorder %s67, %s69
    %p73 = scmp.eq.s32.totalorder %s12, 0
    %p74 = por %p72, %p73
    %p75 = scmp.ne.s32.totalorder %s67, %s69
    %p76 = scmp.eq.s32.totalorder %s17, 1
    %p77 = por %p75, %p76
    %p78 = scmp.ne.s32.totalorder %s69, %s70
    %p79 = scmp.eq.s32.totalorder %s17, 0
    %p80 = por %p78, %p79
    %p81 = scmp.ne.s32.totalorder %s69, %s70
    %p82 = scmp.eq.s32.totalorder %s18, 1
    %p83 = por %p81, %p82
    %p85 = scmp.ne.s32.totalorder %s70, %s84
    %p86 = scmp.eq.s32.totalorder %s18, 0
    %p87 = por %p85, %p86
    %s89 = sadd.s32 %s88, 1
    %p92 = scmp.eq.s32.totalorder %s12, 1
    %p93 = scmp.ne.s32.totalorder %s88, %s90
    %p94 = scmp.eq.s32.totalorder %s12, 0
    %p95 = por %p93, %p94
    %p96 = scmp.ne.s32.totalorder %s88, %s90
    %p97 = scmp.eq.s32.totalorder %s17, 1
    %p98 = por %p96, %p97
    %p99 = scmp.ne.s32.totalorder %s90, %s91
    %p100 = scmp.eq.s32.totalorder %s17, 0
    %p101 = por %p99, %p100
    %p102 = scmp.ne.s32.totalorder %s90, %s91
    %p103 = scmp.eq.s32.totalorder %s18, 1
    %p104 = por %p102, %p103
    %p106 = scmp.ne.s32.totalorder %s91, %s105
    %p107 = scmp.eq.s32.totalorder %s18, 0
    %p108 = por %p106, %p107
    %s109 = ssub.s32 %s12, %s19
    %p110 = scmp.eq.s32.totalorder %s109, 0
    %s112 = sadd.s32 %s111, 1
    %s113 = scalar_select %p110, %s111, %s112
    %p116 = pneg %p110
    %p117 = scmp.eq.s32.totalorder %s12, 1
    %p118 = por %p116, %p117
    %p119 = scmp.ne.s32.totalorder %s111, %s114
    %p120 = scmp.eq.s32.totalorder %s12, 0
    %p121 = por %p119, %p120
    %p122 = scmp.ne.s32.totalorder %s111, %s114
    %p123 = scmp.eq.s32.totalorder %s17, 1
    %p124 = por %p122, %p123
    %p125 = scmp.ne.s32.totalorder %s114, %s115
    %p126 = scmp.eq.s32.totalorder %s17, 0
    %p127 = por %p125, %p126
    %p128 = scmp.ne.s32.totalorder %s114, %s115
    %p129 = scmp.eq.s32.totalorder %s18, 1
    %p130 = por %p128, %p129
    %p132 = scmp.ne.s32.totalorder %s115, %s131
    %p133 = scmp.eq.s32.totalorder %s18, 0
    %p134 = por %p132, %p133
    %s135 = ssub.s32 %s12, %s19
    %p136 = scmp.eq.s32.totalorder %s135, 0
    %s138 = sadd.s32 %s137, 1
    %s139 = scalar_select %p136, %s137, %s138
    %p142 = pneg %p136
    %p143 = scmp.eq.s32.totalorder %s12, 1
    %p144 = por %p142, %p143
    %p145 = scmp.ne.s32.totalorder %s137, %s140
    %p146 = scmp.eq.s32.totalorder %s12, 0
    %p147 = por %p145, %p146
    %p148 = scmp.ne.s32.totalorder %s137, %s140
    %p149 = scmp.eq.s32.totalorder %s17, 1
    %p150 = por %p148, %p149
    %p151 = scmp.ne.s32.totalorder %s140, %s141
    %p152 = scmp.eq.s32.totalorder %s17, 0
    %p153 = por %p151, %p152
    %p154 = scmp.ne.s32.totalorder %s140, %s141
    %p155 = scmp.eq.s32.totalorder %s18, 1
    %p156 = por %p154, %p155
    %p158 = scmp.ne.s32.totalorder %s141, %s157
    %p159 = scmp.eq.s32.totalorder %s18, 0
    %p160 = por %p158, %p159
    %p161 = scmp.le.s32.totalorder 1, %s12
    %p162 = scmp.lt.s32.totalorder %s12, 3
    %p163 = pnand %p161, %p162
    %p164 = pneg %p163
    // Predicated region
    $region9: #{_lambda_.9} parent=5 // pred_check
      _
    $region10: #{_lambda_.9} parent=5 // pred_check_branch
      %166 = sbr.rel (%p163) target = $region12
    $region11: #{_lambda_.9} parent=5 // pred_region
      %s167 = ssub.s32 %s12, 1
      // Predicated region
      $region13: #{_lambda_.9} parent=11 // pred_check
        %p168 = pneg %p59
      $region14: #{_lambda_.9} parent=11 // pred_check_branch
        %170 = sbr.rel (%p168) target = $region16
      $region15: #{_lambda_.9} parent=11 // pred_region
        _
      $region16: #{_lambda_.9} parent=11 // pred_fallthru
        _
      // Predicated region
      $region17: #{_lambda_.9} parent=11 // pred_check
        %p171 = pneg %p80
      $region18: #{_lambda_.9} parent=11 // pred_check_branch
        %173 = sbr.rel (%p171) target = $region20
      $region19: #{_lambda_.9} parent=11 // pred_region
        _
      $region20: #{_lambda_.9} parent=11 // pred_fallthru
        _
      // Predicated region
      $region21: #{_lambda_.9} parent=11 // pred_check
        %p174 = pneg %p101
      $region22: #{_lambda_.9} parent=11 // pred_check_branch
        %176 = sbr.rel (%p174) target = $region24
      $region23: #{_lambda_.9} parent=11 // pred_region
        _
      $region24: #{_lambda_.9} parent=11 // pred_fallthru
        _
    $region12: #{_lambda_.9} parent=5 // pred_fallthru
      _
    %p177 = scmp.lt.s32.totalorder %s12, 2
    // Predicated region
    $region25: #{_lambda_.9} parent=5 // pred_check
      %p178 = pneg %p177
    $region26: #{_lambda_.9} parent=5 // pred_check_branch
      %180 = sbr.rel (%p178) target = $region28
    $region27: #{_lambda_.9} parent=5 // pred_region
      // Predicated region
      $region29: #{_lambda_.9} parent=27 // pred_check
        %p181 = pneg %p32
      $region30: #{_lambda_.9} parent=27 // pred_check_branch
        %183 = sbr.rel (%p181) target = $region32
      $region31: #{_lambda_.9} parent=27 // pred_region
        %s184 = smul.u32 128, %s12
        %p185 = scmp.lt.s32.totalorder %s184, 255
        %s186 = scalar_select %p185, %s184, 255
        %s187 = smul.addr %s186, 4
        %s188 = scalar_lea.vmem %s0, %s187
        %s189 = smul.u32 128, %s12
      $region32: #{_lambda_.9} parent=27 // pred_fallthru
        _
    $region28: #{_lambda_.9} parent=5 // pred_fallthru
      _
    %p190 = scmp.le.s32.totalorder 1, %s12
    %p191 = scmp.lt.s32.totalorder %s12, 3
    %p192 = pnand %p190, %p191
    %p193 = pneg %p192
    // Predicated region
    $region33: #{_lambda_.9} parent=5 // pred_check
      _
    $region34: #{_lambda_.9} parent=5 // pred_check_branch
      %195 = sbr.rel (%p192) target = $region36
    $region35: #{_lambda_.9} parent=5 // pred_region
      %s196 = ssub.s32 %s12, 1
      %s197 = smul.u32 128, %s17
      %p198 = scmp.lt.s32.totalorder %s197, 255
      %s199 = scalar_select %p198, %s197, 255
      %s200 = smul.addr %s199, 4
      %s201 = scalar_lea.vmem %s0, %s200
      %p202 = pneg %p38
      %p203 = pneg %p35
      %p204 = pneg %p59
      %p205 = pneg %p56
      %p206 = pneg %p80
      %p207 = pneg %p77
      %p208 = pneg %p101
      %p209 = pneg %p98
      %p210 = pneg %p127
      %p211 = pneg %p124
      %s212 = smul.u32 128, %s17
      %p213 = scmp.lt.s32.totalorder %s212, 255
      %s214 = scalar_select %p213, %s212, 255
      %s215 = smul.addr %s214, 4
      %s216 = scalar_lea.vmem %s4, %s215
      %p217 = pneg %p153
      %p218 = pneg %p150
      %s219 = smul.u32 128, %s17
      %p220 = scmp.lt.s32.totalorder %s219, 255
      %s221 = scalar_select %p220, %s219, 255
      %s222 = smul.addr %s221, 4
      %s223 = scalar_lea.vmem %s5, %s222
      %s224 = smul.u32 128, %s17
      %p225 = scmp.lt.s32.totalorder %s224, 255
      %s226 = scalar_select %p225, %s224, 255
      %s227 = smul.addr %s226, 4
      %s228 = scalar_lea.vmem %s0, %s227
      %s229 = smul.u32 128, %s17
      %s230 = smul.u32 128, %s17
      %p231 = scmp.lt.s32.totalorder %s230, 255
      %s232 = scalar_select %p231, %s230, 255
      %s233 = smul.addr %s232, 4
      %s234 = scalar_lea.vmem %s4, %s233
      %s235 = smul.u32 128, %s17
      %s236 = smul.u32 128, %s17
      %p237 = scmp.lt.s32.totalorder %s236, 255
      %s238 = scalar_select %p237, %s236, 255
      %s239 = smul.addr %s238, 4
      %s240 = scalar_lea.vmem %s5, %s239
      %s241 = smul.u32 128, %s17
      %v243 = vld [vmem:[%s228] sm:$0xf]
      %v244 = vld [vmem:[%s228 + $0x4] sm:$0xf]
      %v245 = vld [vmem:[%s228 + $0x8] sm:$0xf]
      %v246 = vld [vmem:[%s228 + $0xc] sm:$0xf]
      %v247 = vld [vmem:[%s228 + $0x10] sm:$0xf]
      %v248 = vld [vmem:[%s228 + $0x14] sm:$0xf]
      %v249 = vld [vmem:[%s228 + $0x18] sm:$0xf]
      %v250 = vld [vmem:[%s228 + $0x1c] sm:$0xf]
      %v251 = vld [vmem:[%s228 + $0x20] sm:$0xf]
      %v252 = vld [vmem:[%s228 + $0x24] sm:$0xf]
      %v253 = vld [vmem:[%s228 + $0x28] sm:$0xf]
      %v254 = vld [vmem:[%s228 + $0x2c] sm:$0xf]
      %v255 = vld [vmem:[%s228 + $0x30] sm:$0xf]
      %v256 = vld [vmem:[%s228 + $0x34] sm:$0xf]
      %v257 = vld [vmem:[%s228 + $0x38] sm:$0xf]
      %v258 = vld [vmem:[%s228 + $0x3c] sm:$0xf]
      %v259 = vld [vmem:[%s228 + $0x40] sm:$0xf]
      %v260 = vld [vmem:[%s228 + $0x44] sm:$0xf]
      %v261 = vld [vmem:[%s228 + $0x48] sm:$0xf]
      %v262 = vld [vmem:[%s228 + $0x4c] sm:$0xf]
      %v263 = vld [vmem:[%s228 + $0x50] sm:$0xf]
      %v264 = vld [vmem:[%s228 + $0x54] sm:$0xf]
      %v265 = vld [vmem:[%s228 + $0x58] sm:$0xf]
      %v266 = vld [vmem:[%s228 + $0x5c] sm:$0xf]
      %v267 = vld [vmem:[%s228 + $0x60] sm:$0xf]
      %v268 = vld [vmem:[%s228 + $0x64] sm:$0xf]
      %v269 = vld [vmem:[%s228 + $0x68] sm:$0xf]
      %v270 = vld [vmem:[%s228 + $0x6c] sm:$0xf]
      %v271 = vld [vmem:[%s228 + $0x70] sm:$0xf]
      %v272 = vld [vmem:[%s228 + $0x74] sm:$0xf]
      %v273 = vld [vmem:[%s228 + $0x78] sm:$0xf]
      %v274 = vld [vmem:[%s228 + $0x7c] sm:$0xf]
      %v275 = vld [vmem:[%s228 + $0x80] sm:$0xf]
      %v276 = vld [vmem:[%s228 + $0x84] sm:$0xf]
      %v277 = vld [vmem:[%s228 + $0x88] sm:$0xf]
      %v278 = vld [vmem:[%s228 + $0x8c] sm:$0xf]
      %v279 = vld [vmem:[%s228 + $0x90] sm:$0xf]
      %v280 = vld [vmem:[%s228 + $0x94] sm:$0xf]
      %v281 = vld [vmem:[%s228 + $0x98] sm:$0xf]
      %v282 = vld [vmem:[%s228 + $0x9c] sm:$0xf]
      %v283 = vld [vmem:[%s228 + $0xa0] sm:$0xf]
      %v284 = vld [vmem:[%s228 + $0xa4] sm:$0xf]
      %v285 = vld [vmem:[%s228 + $0xa8] sm:$0xf]
      %v286 = vld [vmem:[%s228 + $0xac] sm:$0xf]
      %v287 = vld [vmem:[%s228 + $0xb0] sm:$0xf]
      %v288 = vld [vmem:[%s228 + $0xb4] sm:$0xf]
      %v289 = vld [vmem:[%s228 + $0xb8] sm:$0xf]
      %v290 = vld [vmem:[%s228 + $0xbc] sm:$0xf]
      %v291 = vld [vmem:[%s228 + $0xc0] sm:$0xf]
      %v292 = vld [vmem:[%s228 + $0xc4] sm:$0xf]
      %v293 = vld [vmem:[%s228 + $0xc8] sm:$0xf]
      %v294 = vld [vmem:[%s228 + $0xcc] sm:$0xf]
      %v295 = vld [vmem:[%s228 + $0xd0] sm:$0xf]
      %v296 = vld [vmem:[%s228 + $0xd4] sm:$0xf]
      %v297 = vld [vmem:[%s228 + $0xd8] sm:$0xf]
      %v298 = vld [vmem:[%s228 + $0xdc] sm:$0xf]
      %v299 = vld [vmem:[%s228 + $0xe0] sm:$0xf]
      %v300 = vld [vmem:[%s228 + $0xe4] sm:$0xf]
      %v301 = vld [vmem:[%s228 + $0xe8] sm:$0xf]
      %v302 = vld [vmem:[%s228 + $0xec] sm:$0xf]
      %v303 = vld [vmem:[%s228 + $0xf0] sm:$0xf]
      %v304 = vld [vmem:[%s228 + $0xf4] sm:$0xf]
      %v305 = vld [vmem:[%s228 + $0xf8] sm:$0xf]
      %v306 = vld [vmem:[%s228 + $0xfc] sm:$0xf]
      %v307 = vld [vmem:[%s228 + $0x100] sm:$0xf]
      %v308 = vld [vmem:[%s228 + $0x104] sm:$0xf]
      %v309 = vld [vmem:[%s228 + $0x108] sm:$0xf]
      %v310 = vld [vmem:[%s228 + $0x10c] sm:$0xf]
      %v311 = vld [vmem:[%s228 + $0x110] sm:$0xf]
      %v312 = vld [vmem:[%s228 + $0x114] sm:$0xf]
      %v313 = vld [vmem:[%s228 + $0x118] sm:$0xf]
      %v314 = vld [vmem:[%s228 + $0x11c] sm:$0xf]
      %v315 = vld [vmem:[%s228 + $0x120] sm:$0xf]
      %v316 = vld [vmem:[%s228 + $0x124] sm:$0xf]
      %v317 = vld [vmem:[%s228 + $0x128] sm:$0xf]
      %v318 = vld [vmem:[%s228 + $0x12c] sm:$0xf]
      %v319 = vld [vmem:[%s228 + $0x130] sm:$0xf]
      %v320 = vld [vmem:[%s228 + $0x134] sm:$0xf]
      %v321 = vld [vmem:[%s228 + $0x138] sm:$0xf]
      %v322 = vld [vmem:[%s228 + $0x13c] sm:$0xf]
      %v323 = vld [vmem:[%s228 + $0x140] sm:$0xf]
      %v324 = vld [vmem:[%s228 + $0x144] sm:$0xf]
      %v325 = vld [vmem:[%s228 + $0x148] sm:$0xf]
      %v326 = vld [vmem:[%s228 + $0x14c] sm:$0xf]
      %v327 = vld [vmem:[%s228 + $0x150] sm:$0xf]
      %v328 = vld [vmem:[%s228 + $0x154] sm:$0xf]
      %v329 = vld [vmem:[%s228 + $0x158] sm:$0xf]
      %v330 = vld [vmem:[%s228 + $0x15c] sm:$0xf]
      %v331 = vld [vmem:[%s228 + $0x160] sm:$0xf]
      %v332 = vld [vmem:[%s228 + $0x164] sm:$0xf]
      %v333 = vld [vmem:[%s228 + $0x168] sm:$0xf]
      %v334 = vld [vmem:[%s228 + $0x16c] sm:$0xf]
      %v335 = vld [vmem:[%s228 + $0x170] sm:$0xf]
      %v336 = vld [vmem:[%s228 + $0x174] sm:$0xf]
      %v337 = vld [vmem:[%s228 + $0x178] sm:$0xf]
      %v338 = vld [vmem:[%s228 + $0x17c] sm:$0xf]
      %v339 = vld [vmem:[%s228 + $0x180] sm:$0xf]
      %v340 = vld [vmem:[%s228 + $0x184] sm:$0xf]
      %v341 = vld [vmem:[%s228 + $0x188] sm:$0xf]
      %v342 = vld [vmem:[%s228 + $0x18c] sm:$0xf]
      %v343 = vld [vmem:[%s228 + $0x190] sm:$0xf]
      %v344 = vld [vmem:[%s228 + $0x194] sm:$0xf]
      %v345 = vld [vmem:[%s228 + $0x198] sm:$0xf]
      %v346 = vld [vmem:[%s228 + $0x19c] sm:$0xf]
      %v347 = vld [vmem:[%s228 + $0x1a0] sm:$0xf]
      %v348 = vld [vmem:[%s228 + $0x1a4] sm:$0xf]
      %v349 = vld [vmem:[%s228 + $0x1a8] sm:$0xf]
      %v350 = vld [vmem:[%s228 + $0x1ac] sm:$0xf]
      %v351 = vld [vmem:[%s228 + $0x1b0] sm:$0xf]
      %v352 = vld [vmem:[%s228 + $0x1b4] sm:$0xf]
      %v353 = vld [vmem:[%s228 + $0x1b8] sm:$0xf]
      %v354 = vld [vmem:[%s228 + $0x1bc] sm:$0xf]
      %v355 = vld [vmem:[%s228 + $0x1c0] sm:$0xf]
      %v356 = vld [vmem:[%s228 + $0x1c4] sm:$0xf]
      %v357 = vld [vmem:[%s228 + $0x1c8] sm:$0xf]
      %v358 = vld [vmem:[%s228 + $0x1cc] sm:$0xf]
      %v359 = vld [vmem:[%s228 + $0x1d0] sm:$0xf]
      %v360 = vld [vmem:[%s228 + $0x1d4] sm:$0xf]
      %v361 = vld [vmem:[%s228 + $0x1d8] sm:$0xf]
      %v362 = vld [vmem:[%s228 + $0x1dc] sm:$0xf]
      %v363 = vld [vmem:[%s228 + $0x1e0] sm:$0xf]
      %v364 = vld [vmem:[%s228 + $0x1e4] sm:$0xf]
      %v365 = vld [vmem:[%s228 + $0x1e8] sm:$0xf]
      %v366 = vld [vmem:[%s228 + $0x1ec] sm:$0xf]
      %v367 = vld [vmem:[%s228 + $0x1f0] sm:$0xf]
      %v368 = vld [vmem:[%s228 + $0x1f4] sm:$0xf]
      %v369 = vld [vmem:[%s228 + $0x1f8] sm:$0xf]
      %v370 = vld [vmem:[%s228 + $0x1fc] sm:$0xf]
      %v371 = vld [vmem:[%s1] sm:$0xff]
      %v372 = vld [vmem:[%s1 + $0x8] sm:$0xff]
      %v373 = vld [vmem:[%s1 + $0x10] sm:$0xff]
      %v374 = vld [vmem:[%s1 + $0x18] sm:$0xff]
      %v375 = vld [vmem:[%s1 + $0x20] sm:$0xff]
      %v376 = vld [vmem:[%s1 + $0x28] sm:$0xff]
      %v377 = vld [vmem:[%s1 + $0x30] sm:$0xff]
      %v378 = vld [vmem:[%s1 + $0x38] sm:$0xff]
      %v379 = vld [vmem:[%s1 + $0x40] sm:$0xff]
      %v380 = vld [vmem:[%s1 + $0x48] sm:$0xff]
      %v381 = vld [vmem:[%s1 + $0x50] sm:$0xff]
      %v382 = vld [vmem:[%s1 + $0x58] sm:$0xff]
      %v383 = vld [vmem:[%s1 + $0x60] sm:$0xff]
      %v384 = vld [vmem:[%s1 + $0x68] sm:$0xff]
      %v385 = vld [vmem:[%s1 + $0x70] sm:$0xff]
      %v386 = vld [vmem:[%s1 + $0x78] sm:$0xff]
      %v515 = vunpack.c.l.b16 %v243
      %v516 = vunpack.c.l.b16 %v244
      %v517 = vunpack.c.l.b16 %v245
      %v518 = vunpack.c.l.b16 %v246
      %v519 = vunpack.c.l.b16 %v247
      %v520 = vunpack.c.l.b16 %v248
      %v521 = vunpack.c.l.b16 %v249
      %v522 = vunpack.c.l.b16 %v250
      %v523 = vunpack.c.l.b16 %v251
      %v524 = vunpack.c.l.b16 %v252
      %v525 = vunpack.c.l.b16 %v253
      %v526 = vunpack.c.l.b16 %v254
      %v527 = vunpack.c.l.b16 %v255
      %v528 = vunpack.c.l.b16 %v256
      %v529 = vunpack.c.l.b16 %v257
      %v530 = vunpack.c.l.b16 %v258
      %v531 = vunpack.c.l.b16 %v259
      %v532 = vunpack.c.l.b16 %v260
      %v533 = vunpack.c.l.b16 %v261
      %v534 = vunpack.c.l.b16 %v262
      %v535 = vunpack.c.l.b16 %v263
      %v536 = vunpack.c.l.b16 %v264
      %v537 = vunpack.c.l.b16 %v265
      %v538 = vunpack.c.l.b16 %v266
      %v539 = vunpack.c.l.b16 %v267
      %v540 = vunpack.c.l.b16 %v268
      %v541 = vunpack.c.l.b16 %v269
      %v542 = vunpack.c.l.b16 %v270
      %v543 = vunpack.c.l.b16 %v271
      %v544 = vunpack.c.l.b16 %v272
      %v545 = vunpack.c.l.b16 %v273
      %v546 = vunpack.c.l.b16 %v274
      %v547 = vunpack.c.l.b16 %v275
      %v548 = vunpack.c.l.b16 %v276
      %v549 = vunpack.c.l.b16 %v277
      %v550 = vunpack.c.l.b16 %v278
      %v551 = vunpack.c.l.b16 %v279
      %v552 = vunpack.c.l.b16 %v280
      %v553 = vunpack.c.l.b16 %v281
      %v554 = vunpack.c.l.b16 %v282
      %v555 = vunpack.c.l.b16 %v283
      %v556 = vunpack.c.l.b16 %v284
      %v557 = vunpack.c.l.b16 %v285
      %v558 = vunpack.c.l.b16 %v286
      %v559 = vunpack.c.l.b16 %v287
      %v560 = vunpack.c.l.b16 %v288
      %v561 = vunpack.c.l.b16 %v289
      %v562 = vunpack.c.l.b16 %v290
      %v563 = vunpack.c.l.b16 %v291
      %v564 = vunpack.c.l.b16 %v292
      %v565 = vunpack.c.l.b16 %v293
      %v566 = vunpack.c.l.b16 %v294
      %v567 = vunpack.c.l.b16 %v295
      %v568 = vunpack.c.l.b16 %v296
      %v569 = vunpack.c.l.b16 %v297
      %v570 = vunpack.c.l.b16 %v298
      %v571 = vunpack.c.l.b16 %v299
      %v572 = vunpack.c.l.b16 %v300
      %v573 = vunpack.c.l.b16 %v301
      %v574 = vunpack.c.l.b16 %v302
      %v575 = vunpack.c.l.b16 %v303
      %v576 = vunpack.c.l.b16 %v304
      %v577 = vunpack.c.l.b16 %v305
      %v578 = vunpack.c.l.b16 %v306
      %v579 = vunpack.c.l.b16 %v307
      %v580 = vunpack.c.l.b16 %v308
      %v581 = vunpack.c.l.b16 %v309
      %v582 = vunpack.c.l.b16 %v310
      %v583 = vunpack.c.l.b16 %v311
      %v584 = vunpack.c.l.b16 %v312
      %v585 = vunpack.c.l.b16 %v313
      %v586 = vunpack.c.l.b16 %v314
      %v587 = vunpack.c.l.b16 %v315
      %v588 = vunpack.c.l.b16 %v316
      %v589 = vunpack.c.l.b16 %v317
      %v590 = vunpack.c.l.b16 %v318
      %v591 = vunpack.c.l.b16 %v319
      %v592 = vunpack.c.l.b16 %v320
      %v593 = vunpack.c.l.b16 %v321
      %v594 = vunpack.c.l.b16 %v322
      %v595 = vunpack.c.l.b16 %v323
      %v596 = vunpack.c.l.b16 %v324
      %v597 = vunpack.c.l.b16 %v325
      %v598 = vunpack.c.l.b16 %v326
      %v599 = vunpack.c.l.b16 %v327
      %v600 = vunpack.c.l.b16 %v328
      %v601 = vunpack.c.l.b16 %v329
      %v602 = vunpack.c.l.b16 %v330
      %v603 = vunpack.c.l.b16 %v331
      %v604 = vunpack.c.l.b16 %v332
      %v605 = vunpack.c.l.b16 %v333
      %v606 = vunpack.c.l.b16 %v334
      %v607 = vunpack.c.l.b16 %v335
      %v608 = vunpack.c.l.b16 %v336
      %v609 = vunpack.c.l.b16 %v337
      %v610 = vunpack.c.l.b16 %v338
      %v611 = vunpack.c.l.b16 %v339
      %v612 = vunpack.c.l.b16 %v340
      %v613 = vunpack.c.l.b16 %v341
      %v614 = vunpack.c.l.b16 %v342
      %v615 = vunpack.c.l.b16 %v343
      %v616 = vunpack.c.l.b16 %v344
      %v617 = vunpack.c.l.b16 %v345
      %v618 = vunpack.c.l.b16 %v346
      %v619 = vunpack.c.l.b16 %v347
      %v620 = vunpack.c.l.b16 %v348
      %v621 = vunpack.c.l.b16 %v349
      %v622 = vunpack.c.l.b16 %v350
      %v623 = vunpack.c.l.b16 %v351
      %v624 = vunpack.c.l.b16 %v352
      %v625 = vunpack.c.l.b16 %v353
      %v626 = vunpack.c.l.b16 %v354
      %v627 = vunpack.c.l.b16 %v355
      %v628 = vunpack.c.l.b16 %v356
      %v629 = vunpack.c.l.b16 %v357
      %v630 = vunpack.c.l.b16 %v358
      %v631 = vunpack.c.l.b16 %v359
      %v632 = vunpack.c.l.b16 %v360
      %v633 = vunpack.c.l.b16 %v361
      %v634 = vunpack.c.l.b16 %v362
      %v635 = vunpack.c.l.b16 %v363
      %v636 = vunpack.c.l.b16 %v364
      %v637 = vunpack.c.l.b16 %v365
      %v638 = vunpack.c.l.b16 %v366
      %v639 = vunpack.c.l.b16 %v367
      %v640 = vunpack.c.l.b16 %v368
      %v641 = vunpack.c.l.b16 %v369
      %v642 = vunpack.c.l.b16 %v370
      %v643 = vpack.c.b16 %v516, %v515
      %v644 = vpack.c.b16 %v518, %v517
      %v645 = vpack.c.b16 %v520, %v519
      %v646 = vpack.c.b16 %v522, %v521
      %v647 = vpack.c.b16 %v524, %v523
      %v648 = vpack.c.b16 %v526, %v525
      %v649 = vpack.c.b16 %v528, %v527
      %v650 = vpack.c.b16 %v530, %v529
      %v651 = vpack.c.b16 %v532, %v531
      %v652 = vpack.c.b16 %v534, %v533
      %v653 = vpack.c.b16 %v536, %v535
      %v654 = vpack.c.b16 %v538, %v537
      %v655 = vpack.c.b16 %v540, %v539
      %v656 = vpack.c.b16 %v542, %v541
      %v657 = vpack.c.b16 %v544, %v543
      %v658 = vpack.c.b16 %v546, %v545
      %v659 = vpack.c.b16 %v548, %v547
      %v660 = vpack.c.b16 %v550, %v549
      %v661 = vpack.c.b16 %v552, %v551
      %v662 = vpack.c.b16 %v554, %v553
      %v663 = vpack.c.b16 %v556, %v555
      %v664 = vpack.c.b16 %v558, %v557
      %v665 = vpack.c.b16 %v560, %v559
      %v666 = vpack.c.b16 %v562, %v561
      %v667 = vpack.c.b16 %v564, %v563
      %v668 = vpack.c.b16 %v566, %v565
      %v669 = vpack.c.b16 %v568, %v567
      %v670 = vpack.c.b16 %v570, %v569
      %v671 = vpack.c.b16 %v572, %v571
      %v672 = vpack.c.b16 %v574, %v573
      %v673 = vpack.c.b16 %v576, %v575
      %v674 = vpack.c.b16 %v578, %v577
      %v675 = vpack.c.b16 %v580, %v579
      %v676 = vpack.c.b16 %v582, %v581
      %v677 = vpack.c.b16 %v584, %v583
      %v678 = vpack.c.b16 %v586, %v585
      %v679 = vpack.c.b16 %v588, %v587
      %v680 = vpack.c.b16 %v590, %v589
      %v681 = vpack.c.b16 %v592, %v591
      %v682 = vpack.c.b16 %v594, %v593
      %v683 = vpack.c.b16 %v596, %v595
      %v684 = vpack.c.b16 %v598, %v597
      %v685 = vpack.c.b16 %v600, %v599
      %v686 = vpack.c.b16 %v602, %v601
      %v687 = vpack.c.b16 %v604, %v603
      %v688 = vpack.c.b16 %v606, %v605
      %v689 = vpack.c.b16 %v608, %v607
      %v690 = vpack.c.b16 %v610, %v609
      %v691 = vpack.c.b16 %v612, %v611
      %v692 = vpack.c.b16 %v614, %v613
      %v693 = vpack.c.b16 %v616, %v615
      %v694 = vpack.c.b16 %v618, %v617
      %v695 = vpack.c.b16 %v620, %v619
      %v696 = vpack.c.b16 %v622, %v621
      %v697 = vpack.c.b16 %v624, %v623
      %v698 = vpack.c.b16 %v626, %v625
      %v699 = vpack.c.b16 %v628, %v627
      %v700 = vpack.c.b16 %v630, %v629
      %v701 = vpack.c.b16 %v632, %v631
      %v702 = vpack.c.b16 %v634, %v633
      %v703 = vpack.c.b16 %v636, %v635
      %v704 = vpack.c.b16 %v638, %v637
      %v705 = vpack.c.b16 %v640, %v639
      %v706 = vpack.c.b16 %v642, %v641
      %v787 = vunpack.c.l.b16 %v371
      %v788 = vunpack.c.h.b16 %v371
      %v789 = vunpack.c.l.b16 %v372
      %v790 = vunpack.c.h.b16 %v372
      %v791 = vunpack.c.l.b16 %v373
      %v792 = vunpack.c.h.b16 %v373
      %v793 = vunpack.c.l.b16 %v374
      %v794 = vunpack.c.h.b16 %v374
      %v795 = vunpack.c.l.b16 %v375
      %v796 = vunpack.c.h.b16 %v375
      %v797 = vunpack.c.l.b16 %v376
      %v798 = vunpack.c.h.b16 %v376
      %v799 = vunpack.c.l.b16 %v377
      %v800 = vunpack.c.h.b16 %v377
      %v801 = vunpack.c.l.b16 %v378
      %v802 = vunpack.c.h.b16 %v378
      %v803 = vunpack.c.l.b16 %v379
      %v804 = vunpack.c.h.b16 %v379
      %v805 = vunpack.c.l.b16 %v380
      %v806 = vunpack.c.h.b16 %v380
      %v807 = vunpack.c.l.b16 %v381
      %v808 = vunpack.c.h.b16 %v381
      %v809 = vunpack.c.l.b16 %v382
      %v810 = vunpack.c.h.b16 %v382
      %v811 = vunpack.c.l.b16 %v383
      %v812 = vunpack.c.h.b16 %v383
      %v813 = vunpack.c.l.b16 %v384
      %v814 = vunpack.c.h.b16 %v384
      %v815 = vunpack.c.l.b16 %v385
      %v816 = vunpack.c.h.b16 %v385
      %v817 = vunpack.c.l.b16 %v386
      %v818 = vunpack.c.h.b16 %v386
      %v819 = vpack.c.b16 %v789, %v787
      %v820 = vpack.c.b16 %v790, %v788
      %v821 = vpack.c.b16 %v793, %v791
      %v822 = vpack.c.b16 %v794, %v792
      %v823 = vpack.c.b16 %v797, %v795
      %v824 = vpack.c.b16 %v798, %v796
      %v825 = vpack.c.b16 %v801, %v799
      %v826 = vpack.c.b16 %v802, %v800
      %v827 = vpack.c.b16 %v805, %v803
      %v828 = vpack.c.b16 %v806, %v804
      %v829 = vpack.c.b16 %v809, %v807
      %v830 = vpack.c.b16 %v810, %v808
      %v831 = vpack.c.b16 %v813, %v811
      %v832 = vpack.c.b16 %v814, %v812
      %v833 = vpack.c.b16 %v817, %v815
      %v834 = vpack.c.b16 %v818, %v816
      %851 = vmatprep.subr.bf16.mxu0 %v820
      %852 = vmatpush1.bf16.msra.mxu0 %v819
      %853 = vmatprep.subr.bf16.mxu0 %v822
      %854 = vmatpush1.bf16.msra.mxu0 %v821
      %855 = vmatprep.subr.bf16.mxu0 %v824
      %856 = vmatpush1.bf16.msra.mxu0 %v823
      %857 = vmatprep.subr.bf16.mxu0 %v826
      %858 = vmatpush1.bf16.msra.mxu0 %v825
      %859 = vmatprep.subr.bf16.mxu0 %v828
      %860 = vmatpush1.bf16.msra.mxu0 %v827
      %861 = vmatprep.subr.bf16.mxu0 %v830
      %862 = vmatpush1.bf16.msra.mxu0 %v829
      %863 = vmatprep.subr.bf16.mxu0 %v832
      %864 = vmatpush1.bf16.msra.mxu0 %v831
      %865 = vmatprep.subr.bf16.mxu0 %v834
      %866 = vmatpush1.bf16.msra.mxu0 %v833
      %867 = vmatprep.subr.bf16.mxu0 0
      %868 = vmatpush1.bf16.msra.mxu0 0
      %869 = vmatprep.subr.bf16.mxu0 0
      %870 = vmatpush1.bf16.msra.mxu0 0
      %871 = vmatprep.subr.bf16.mxu0 0
      %872 = vmatpush1.bf16.msra.mxu0 0
      %873 = vmatprep.subr.bf16.mxu0 0
      %874 = vmatpush1.bf16.msra.mxu0 0
      %875 = vmatprep.subr.bf16.mxu0 0
      %876 = vmatpush1.bf16.msra.mxu0 0
      %877 = vmatprep.subr.bf16.mxu0 0
      %878 = vmatpush1.bf16.msra.mxu0 0
      %879 = vmatprep.subr.bf16.mxu0 0
      %880 = vmatpush1.bf16.msra.mxu0 0
      %881 = vmatprep.subr.bf16.mxu0 0
      %882 = vmatpush1.bf16.msra.mxu0 0
      %883 = vmatprep.mubr.bf16.mxu0 0
      %884 = vmatmul.mubr.bf16.gmra.mrb[0].mxu0 %v643
      %v885 = vpop.f32.mrb[0].mxu0
      %v886 = vadd.f32 0.0, %v885
      %v887 = vpop.f32.mrb[0].mxu0
      %v888 = vadd.f32 0.0, %v887
      %v889 = vpop.f32.mrb[0].mxu0
      %v890 = vadd.f32 0.0, %v889
      %v891 = vpop.f32.mrb[0].mxu0
      %v892 = vadd.f32 0.0, %v891
      %893 = vmatprep.mubr.bf16.mxu0 0
      %894 = vmatmul.mubr.bf16.gmra.mrb[0].mxu0 %v644
      %v895 = vpop.f32.mrb[0].mxu0
      %v896 = vadd.f32 0.0, %v895
      %v897 = vpop.f32.mrb[0].mxu0
      %v898 = vadd.f32 0.0, %v897
      %v899 = vpop.f32.mrb[0].mxu0
      %v900 = vadd.f32 0.0, %v899
      %v901 = vpop.f32.mrb[0].mxu0
      %v902 = vadd.f32 0.0, %v901
      %903 = vmatprep.mubr.bf16.mxu0 0
      %904 = vmatmul.mubr.bf16.gmra.mrb[0].mxu0 %v645
      %v905 = vpop.f32.mrb[0].mxu0
      %v906 = vadd.f32 0.0, %v905
      %v907 = vpop.f32.mrb[0].mxu0
      %v908 = vadd.f32 0.0, %v907
      %v909 = vpop.f32.mrb[0].mxu0
      %v910 = vadd.f32 0.0, %v909
      %v911 = vpop.f32.mrb[0].mxu0
      %v912 = vadd.f32 0.0, %v911
      %913 = vmatprep.mubr.bf16.mxu0 0
      %914 = vmatmul.mubr.bf16.gmra.mrb[0].mxu0 %v646
      %v915 = vpop.f32.mrb[0].mxu0
      %v916 = vadd.f32 0.0, %v915
      %v917 = vpop.f32.mrb[0].mxu0
      %v918 = vadd.f32 0.0, %v917
      %v919 = vpop.f32.mrb[0].mxu0
      %v920 = vadd.f32 0.0, %v919
      %v921 = vpop.f32.mrb[0].mxu0
      %v922 = vadd.f32 0.0, %v921
      %923 = vmatprep.mubr.bf16.mxu0 0
      %924 = vmatmul.mubr.bf16.gmra.mrb[0].mxu0 %v647
      %v925 = vpop.f32.mrb[0].mxu0
      %v926 = vadd.f32 0.0, %v925
      %v927 = vpop.f32.mrb[0].mxu0
      %v928 = vadd.f32 0.0, %v927
      %v929 = vpop.f32.mrb[0].mxu0
      %v930 = vadd.f32 0.0, %v929
      %v931 = vpop.f32.mrb[0].mxu0
      %v932 = vadd.f32 0.0, %v931
      %933 = vmatprep.mubr.bf16.mxu0 0
      %934 = vmatmul.mubr.bf16.gmra.mrb[0].mxu0 %v648
      %v935 = vpop.f32.mrb[0].mxu0
      %v936 = vadd.f32 0.0, %v935
      %v937 = vpop.f32.mrb[0].mxu0
      %v938 = vadd.f32 0.0, %v937
      %v939 = vpop.f32.mrb[0].mxu0
      %v940 = vadd.f32 0.0, %v939
      %v941 = vpop.f32.mrb[0].mxu0
      %v942 = vadd.f32 0.0, %v941
      %943 = vmatprep.mubr.bf16.mxu0 0
      %944 = vmatmul.mubr.bf16.gmra.mrb[0].mxu0 %v649
      %v945 = vpop.f32.mrb[0].mxu0
      %v946 = vadd.f32 0.0, %v945
      %v947 = vpop.f32.mrb[0].mxu0
      %v948 = vadd.f32 0.0, %v947
      %v949 = vpop.f32.mrb[0].mxu0
      %v950 = vadd.f32 0.0, %v949
      %v951 = vpop.f32.mrb[0].mxu0
      %v952 = vadd.f32 0.0, %v951
      %953 = vmatprep.mubr.bf16.mxu0 0
      %954 = vmatmul.mubr.bf16.gmra.mrb[0].mxu0 %v650
      %v955 = vpop.f32.mrb[0].mxu0
      %v956 = vadd.f32 0.0, %v955
      %v957 = vpop.f32.mrb[0].mxu0
      %v958 = vadd.f32 0.0, %v957
      %v959 = vpop.f32.mrb[0].mxu0
      %v960 = vadd.f32 0.0, %v959
      %v961 = vpop.f32.mrb[0].mxu0
      %v962 = vadd.f32 0.0, %v961
      %963 = vmatprep.mubr.bf16.mxu0 0
      %964 = vmatmul.mubr.bf16.gmra.mrb[0].mxu0 %v651
      %v965 = vpop.f32.mrb[0].mxu0
      %v966 = vadd.f32 0.0, %v965
      %v967 = vpop.f32.mrb[0].mxu0
      %v968 = vadd.f32 0.0, %v967
      %v969 = vpop.f32.mrb[0].mxu0
      %v970 = vadd.f32 0.0, %v969
      %v971 = vpop.f32.mrb[0].mxu0
      %v972 = vadd.f32 0.0, %v971
      %973 = vmatprep.mubr.bf16.mxu0 0
      %974 = vmatmul.mubr.bf16.gmra.mrb[0].mxu0 %v652
      %v975 = vpop.f32.mrb[0].mxu0
      %v976 = vadd.f32 0.0, %v975
      %v977 = vpop.f32.mrb[0].mxu0
      %v978 = vadd.f32 0.0, %v977
      %v979 = vpop.f32.mrb[0].mxu0
      %v980 = vadd.f32 0.0, %v979
      %v981 = vpop.f32.mrb[0].mxu0
      %v982 = vadd.f32 0.0, %v981
      %983 = vmatprep.mubr.bf16.mxu0 0
      %984 = vmatmul.mubr.bf16.gmra.mrb[0].mxu0 %v653
      %v985 = vpop.f32.mrb[0].mxu0
      %v986 = vadd.f32 0.0, %v985
      %v987 = vpop.f32.mrb[0].mxu0
      %v988 = vadd.f32 0.0, %v987
      %v989 = vpop.f32.mrb[0].mxu0
      %v990 = vadd.f32 0.0, %v989
      %v991 = vpop.f32.mrb[0].mxu0
      %v992 = vadd.f32 0.0, %v991
      %993 = vmatprep.mubr.bf16.mxu0 0
      %994 = vmatmul.mubr.bf16.gmra.mrb[0].mxu0 %v654
      %v995 = vpop.f32.mrb[0].mxu0
      %v996 = vadd.f32 0.0, %v995
      %v997 = vpop.f32.mrb[0].mxu0
      %v998 = vadd.f32 0.0, %v997
      %v999 = vpop.f32.mrb[0].mxu0
      %v1000 = vadd.f32 0.0, %v999
      %v1001 = vpop.f32.mrb[0].mxu0
      %v1002 = vadd.f32 0.0, %v1001
      %1003 = vmatprep.mubr.bf16.mxu0 0
      %1004 = vmatmul.mubr.bf16.gmra.mrb[0].mxu0 %v655
      %v1005 = vpop.f32.mrb[0].mxu0
      %v1006 = vadd.f32 0.0, %v1005
      %v1007 = vpop.f32.mrb[0].mxu0
      %v1008 = vadd.f32 0.0, %v1007
      %v1009 = vpop.f32.mrb[0].mxu0
      %v1010 = vadd.f32 0.0, %v1009
      %v1011 = vpop.f32.mrb[0].mxu0
      %v1012 = vadd.f32 0.0, %v1011
      %1013 = vmatprep.mubr.bf16.mxu0 0
      %1014 = vmatmul.mubr.bf16.gmra.mrb[0].mxu0 %v656
      %v1015 = vpop.f32.mrb[0].mxu0
      %v1016 = vadd.f32 0.0, %v1015
      %v1017 = vpop.f32.mrb[0].mxu0
      %v1018 = vadd.f32 0.0, %v1017
      %v1019 = vpop.f32.mrb[0].mxu0
      %v1020 = vadd.f32 0.0, %v1019
      %v1021 = vpop.f32.mrb[0].mxu0
      %v1022 = vadd.f32 0.0, %v1021
      %1023 = vmatprep.mubr.bf16.mxu0 0
      %1024 = vmatmul.mubr.bf16.gmra.mrb[0].mxu0 %v657
      %v1025 = vpop.f32.mrb[0].mxu0
      %v1026 = vadd.f32 0.0, %v1025
      %v1027 = vpop.f32.mrb[0].mxu0
      %v1028 = vadd.f32 0.0, %v1027
      %v1029 = vpop.f32.mrb[0].mxu0
      %v1030 = vadd.f32 0.0, %v1029
      %v1031 = vpop.f32.mrb[0].mxu0
      %v1032 = vadd.f32 0.0, %v1031
      %1033 = vmatprep.mubr.bf16.mxu0 0
      %1034 = vmatmul.mubr.bf16.gmra.mrb[0].mxu0 %v658
      %v1035 = vpop.f32.mrb[0].mxu0
      %v1036 = vadd.f32 0.0, %v1035
      %v1037 = vpop.f32.mrb[0].mxu0
      %v1038 = vadd.f32 0.0, %v1037
      %v1039 = vpop.f32.mrb[0].mxu0
      %v1040 = vadd.f32 0.0, %v1039
      %v1041 = vpop.f32.mrb[0].mxu0
      %v1042 = vadd.f32 0.0, %v1041
      %1043 = vmatprep.mubr.bf16.mxu0 0
      %1044 = vmatmul.mubr.bf16.gmra.mrb[0].mxu0 %v659
      %v1045 = vpop.f32.mrb[0].mxu0
      %v1046 = vadd.f32 0.0, %v1045
      %v1047 = vpop.f32.mrb[0].mxu0
      %v1048 = vadd.f32 0.0, %v1047
      %v1049 = vpop.f32.mrb[0].mxu0
      %v1050 = vadd.f32 0.0, %v1049
      %v1051 = vpop.f32.mrb[0].mxu0
      %v1052 = vadd.f32 0.0, %v1051
      %1053 = vmatprep.mubr.bf16.mxu0 0
      %1054 = vmatmul.mubr.bf16.gmra.mrb[0].mxu0 %v660
      %v1055 = vpop.f32.mrb[0].mxu0
      %v1056 = vadd.f32 0.0, %v1055
      %v1057 = vpop.f32.mrb[0].mxu0
      %v1058 = vadd.f32 0.0, %v1057
      %v1059 = vpop.f32.mrb[0].mxu0
      %v1060 = vadd.f32 0.0, %v1059
      %v1061 = vpop.f32.mrb[0].mxu0
      %v1062 = vadd.f32 0.0, %v1061
      %1063 = vmatprep.mubr.bf16.mxu0 0
      %1064 = vmatmul.mubr.bf16.gmra.mrb[0].mxu0 %v661
      %v1065 = vpop.f32.mrb[0].mxu0
      %v1066 = vadd.f32 0.0, %v1065
      %v1067 = vpop.f32.mrb[0].mxu0
      %v1068 = vadd.f32 0.0, %v1067
      %v1069 = vpop.f32.mrb[0].mxu0
      %v1070 = vadd.f32 0.0, %v1069
      %v1071 = vpop.f32.mrb[0].mxu0
      %v1072 = vadd.f32 0.0, %v1071
      %1073 = vmatprep.mubr.bf16.mxu0 0
      %1074 = vmatmul.mubr.bf16.gmra.mrb[0].mxu0 %v662
      %v1075 = vpop.f32.mrb[0].mxu0
      %v1076 = vadd.f32 0.0, %v1075
      %v1077 = vpop.f32.mrb[0].mxu0
      %v1078 = vadd.f32 0.0, %v1077
      %v1079 = vpop.f32.mrb[0].mxu0
      %v1080 = vadd.f32 0.0, %v1079
      %v1081 = vpop.f32.mrb[0].mxu0
      %v1082 = vadd.f32 0.0, %v1081
      %1083 = vmatprep.mubr.bf16.mxu0 0
      %1084 = vmatmul.mubr.bf16.gmra.mrb[0].mxu0 %v663
      %v1085 = vpop.f32.mrb[0].mxu0
      %v1086 = vadd.f32 0.0, %v1085
      %v1087 = vpop.f32.mrb[0].mxu0
      %v1088 = vadd.f32 0.0, %v1087
      %v1089 = vpop.f32.mrb[0].mxu0
      %v1090 = vadd.f32 0.0, %v1089
      %v1091 = vpop.f32.mrb[0].mxu0
      %v1092 = vadd.f32 0.0, %v1091
      %1093 = vmatprep.mubr.bf16.mxu0 0
      %1094 = vmatmul.mubr.bf16.gmra.mrb[0].mxu0 %v664
      %v1095 = vpop.f32.mrb[0].mxu0
      %v1096 = vadd.f32 0.0, %v1095
      %v1097 = vpop.f32.mrb[0].mxu0
      %v1098 = vadd.f32 0.0, %v1097
      %v1099 = vpop.f32.mrb[0].mxu0
      %v1100 = vadd.f32 0.0, %v1099
      %v1101 = vpop.f32.mrb[0].mxu0
      %v1102 = vadd.f32 0.0, %v1101
      %1103 = vmatprep.mubr.bf16.mxu0 0
      %1104 = vmatmul.mubr.bf16.gmra.mrb[0].mxu0 %v665
      %v1105 = vpop.f32.mrb[0].mxu0
      %v1106 = vadd.f32 0.0, %v1105
      %v1107 = vpop.f32.mrb[0].mxu0
      %v1108 = vadd.f32 0.0, %v1107
      %v1109 = vpop.f32.mrb[0].mxu0
      %v1110 = vadd.f32 0.0, %v1109
      %v1111 = vpop.f32.mrb[0].mxu0
      %v1112 = vadd.f32 0.0, %v1111
      %1113 = vmatprep.mubr.bf16.mxu0 0
      %1114 = vmatmul.mubr.bf16.gmra.mrb[0].mxu0 %v666
      %v1115 = vpop.f32.mrb[0].mxu0
      %v1116 = vadd.f32 0.0, %v1115
      %v1117 = vpop.f32.mrb[0].mxu0
      %v1118 = vadd.f32 0.0, %v1117
      %v1119 = vpop.f32.mrb[0].mxu0
      %v1120 = vadd.f32 0.0, %v1119
      %v1121 = vpop.f32.mrb[0].mxu0
      %v1122 = vadd.f32 0.0, %v1121
      %1123 = vmatprep.mubr.bf16.mxu0 0
      %1124 = vmatmul.mubr.bf16.gmra.mrb[0].mxu0 %v667
      %v1125 = vpop.f32.mrb[0].mxu0
      %v1126 = vadd.f32 0.0, %v1125
      %v1127 = vpop.f32.mrb[0].mxu0
      %v1128 = vadd.f32 0.0, %v1127
      %v1129 = vpop.f32.mrb[0].mxu0
      %v1130 = vadd.f32 0.0, %v1129
      %v1131 = vpop.f32.mrb[0].mxu0
      %v1132 = vadd.f32 0.0, %v1131
      %1133 = vmatprep.mubr.bf16.mxu0 0
      %1134 = vmatmul.mubr.bf16.gmra.mrb[0].mxu0 %v668
      %v1135 = vpop.f32.mrb[0].mxu0
      %v1136 = vadd.f32 0.0, %v1135
      %v1137 = vpop.f32.mrb[0].mxu0
      %v1138 = vadd.f32 0.0, %v1137
      %v1139 = vpop.f32.mrb[0].mxu0
      %v1140 = vadd.f32 0.0, %v1139
      %v1141 = vpop.f32.mrb[0].mxu0
      %v1142 = vadd.f32 0.0, %v1141
      %1143 = vmatprep.mubr.bf16.mxu0 0
      %1144 = vmatmul.mubr.bf16.gmra.mrb[0].mxu0 %v669
      %v1145 = vpop.f32.mrb[0].mxu0
      %v1146 = vadd.f32 0.0, %v1145
      %v1147 = vpop.f32.mrb[0].mxu0
      %v1148 = vadd.f32 0.0, %v1147
      %v1149 = vpop.f32.mrb[0].mxu0
      %v1150 = vadd.f32 0.0, %v1149
      %v1151 = vpop.f32.mrb[0].mxu0
      %v1152 = vadd.f32 0.0, %v1151
      %1153 = vmatprep.mubr.bf16.mxu0 0
      %1154 = vmatmul.mubr.bf16.gmra.mrb[0].mxu0 %v670
      %v1155 = vpop.f32.mrb[0].mxu0
      %v1156 = vadd.f32 0.0, %v1155
      %v1157 = vpop.f32.mrb[0].mxu0
      %v1158 = vadd.f32 0.0, %v1157
      %v1159 = vpop.f32.mrb[0].mxu0
      %v1160 = vadd.f32 0.0, %v1159
      %v1161 = vpop.f32.mrb[0].mxu0
      %v1162 = vadd.f32 0.0, %v1161
      %1163 = vmatprep.mubr.bf16.mxu0 0
      %1164 = vmatmul.mubr.bf16.gmra.mrb[0].mxu0 %v671
      %v1165 = vpop.f32.mrb[0].mxu0
      %v1166 = vadd.f32 0.0, %v1165
      %v1167 = vpop.f32.mrb[0].mxu0
      %v1168 = vadd.f32 0.0, %v1167
      %v1169 = vpop.f32.mrb[0].mxu0
      %v1170 = vadd.f32 0.0, %v1169
      %v1171 = vpop.f32.mrb[0].mxu0
      %v1172 = vadd.f32 0.0, %v1171
      %1173 = vmatprep.mubr.bf16.mxu0 0
      %1174 = vmatmul.mubr.bf16.gmra.mrb[0].mxu0 %v672
      %v1175 = vpop.f32.mrb[0].mxu0
      %v1176 = vadd.f32 0.0, %v1175
      %v1177 = vpop.f32.mrb[0].mxu0
      %v1178 = vadd.f32 0.0, %v1177
      %v1179 = vpop.f32.mrb[0].mxu0
      %v1180 = vadd.f32 0.0, %v1179
      %v1181 = vpop.f32.mrb[0].mxu0
      %v1182 = vadd.f32 0.0, %v1181
      %1183 = vmatprep.mubr.bf16.mxu0 0
      %1184 = vmatmul.mubr.bf16.gmra.mrb[0].mxu0 %v673
      %v1185 = vpop.f32.mrb[0].mxu0
      %v1186 = vadd.f32 0.0, %v1185
      %v1187 = vpop.f32.mrb[0].mxu0
      %v1188 = vadd.f32 0.0, %v1187
      %v1189 = vpop.f32.mrb[0].mxu0
      %v1190 = vadd.f32 0.0, %v1189
      %v1191 = vpop.f32.mrb[0].mxu0
      %v1192 = vadd.f32 0.0, %v1191
      %1193 = vmatprep.mubr.bf16.mxu0 0
      %1194 = vmatmul.mubr.bf16.gmra.mrb[0].mxu0 %v674
      %v1195 = vpop.f32.mrb[0].mxu0
      %v1196 = vadd.f32 0.0, %v1195
      %v1197 = vpop.f32.mrb[0].mxu0
      %v1198 = vadd.f32 0.0, %v1197
      %v1199 = vpop.f32.mrb[0].mxu0
      %v1200 = vadd.f32 0.0, %v1199
      %v1201 = vpop.f32.mrb[0].mxu0
      %v1202 = vadd.f32 0.0, %v1201
      %1203 = vmatprep.mubr.bf16.mxu0 0
      %1204 = vmatmul.mubr.bf16.gmra.mrb[0].mxu0 %v675
      %v1205 = vpop.f32.mrb[0].mxu0
      %v1206 = vadd.f32 0.0, %v1205
      %v1207 = vpop.f32.mrb[0].mxu0
      %v1208 = vadd.f32 0.0, %v1207
      %v1209 = vpop.f32.mrb[0].mxu0
      %v1210 = vadd.f32 0.0, %v1209
      %v1211 = vpop.f32.mrb[0].mxu0
      %v1212 = vadd.f32 0.0, %v1211
      %1213 = vmatprep.mubr.bf16.mxu0 0
      %1214 = vmatmul.mubr.bf16.gmra.mrb[0].mxu0 %v676
      %v1215 = vpop.f32.mrb[0].mxu0
      %v1216 = vadd.f32 0.0, %v1215
      %v1217 = vpop.f32.mrb[0].mxu0
      %v1218 = vadd.f32 0.0, %v1217
      %v1219 = vpop.f32.mrb[0].mxu0
      %v1220 = vadd.f32 0.0, %v1219
      %v1221 = vpop.f32.mrb[0].mxu0
      %v1222 = vadd.f32 0.0, %v1221
      %1223 = vmatprep.mubr.bf16.mxu0 0
      %1224 = vmatmul.mubr.bf16.gmra.mrb[0].mxu0 %v677
      %v1225 = vpop.f32.mrb[0].mxu0
      %v1226 = vadd.f32 0.0, %v1225
      %v1227 = vpop.f32.mrb[0].mxu0
      %v1228 = vadd.f32 0.0, %v1227
      %v1229 = vpop.f32.mrb[0].mxu0
      %v1230 = vadd.f32 0.0, %v1229
      %v1231 = vpop.f32.mrb[0].mxu0
      %v1232 = vadd.f32 0.0, %v1231
      %1233 = vmatprep.mubr.bf16.mxu0 0
      %1234 = vmatmul.mubr.bf16.gmra.mrb[0].mxu0 %v678
      %v1235 = vpop.f32.mrb[0].mxu0
      %v1236 = vadd.f32 0.0, %v1235
      %v1237 = vpop.f32.mrb[0].mxu0
      %v1238 = vadd.f32 0.0, %v1237
      %v1239 = vpop.f32.mrb[0].mxu0
      %v1240 = vadd.f32 0.0, %v1239
      %v1241 = vpop.f32.mrb[0].mxu0
      %v1242 = vadd.f32 0.0, %v1241
      %1243 = vmatprep.mubr.bf16.mxu0 0
      %1244 = vmatmul.mubr.bf16.gmra.mrb[0].mxu0 %v679
      %v1245 = vpop.f32.mrb[0].mxu0
      %v1246 = vadd.f32 0.0, %v1245
      %v1247 = vpop.f32.mrb[0].mxu0
      %v1248 = vadd.f32 0.0, %v1247
      %v1249 = vpop.f32.mrb[0].mxu0
      %v1250 = vadd.f32 0.0, %v1249
      %v1251 = vpop.f32.mrb[0].mxu0
      %v1252 = vadd.f32 0.0, %v1251
      %1253 = vmatprep.mubr.bf16.mxu0 0
      %1254 = vmatmul.mubr.bf16.gmra.mrb[0].mxu0 %v680
      %v1255 = vpop.f32.mrb[0].mxu0
      %v1256 = vadd.f32 0.0, %v1255
      %v1257 = vpop.f32.mrb[0].mxu0
      %v1258 = vadd.f32 0.0, %v1257
      %v1259 = vpop.f32.mrb[0].mxu0
      %v1260 = vadd.f32 0.0, %v1259
      %v1261 = vpop.f32.mrb[0].mxu0
      %v1262 = vadd.f32 0.0, %v1261
      %1263 = vmatprep.mubr.bf16.mxu0 0
      %1264 = vmatmul.mubr.bf16.gmra.mrb[0].mxu0 %v681
      %v1265 = vpop.f32.mrb[0].mxu0
      %v1266 = vadd.f32 0.0, %v1265
      %v1267 = vpop.f32.mrb[0].mxu0
      %v1268 = vadd.f32 0.0, %v1267
      %v1269 = vpop.f32.mrb[0].mxu0
      %v1270 = vadd.f32 0.0, %v1269
      %v1271 = vpop.f32.mrb[0].mxu0
      %v1272 = vadd.f32 0.0, %v1271
      %1273 = vmatprep.mubr.bf16.mxu0 0
      %1274 = vmatmul.mubr.bf16.gmra.mrb[0].mxu0 %v682
      %v1275 = vpop.f32.mrb[0].mxu0
      %v1276 = vadd.f32 0.0, %v1275
      %v1277 = vpop.f32.mrb[0].mxu0
      %v1278 = vadd.f32 0.0, %v1277
      %v1279 = vpop.f32.mrb[0].mxu0
      %v1280 = vadd.f32 0.0, %v1279
      %v1281 = vpop.f32.mrb[0].mxu0
      %v1282 = vadd.f32 0.0, %v1281
      %1283 = vmatprep.mubr.bf16.mxu0 0
      %1284 = vmatmul.mubr.bf16.gmra.mrb[0].mxu0 %v683
      %v1285 = vpop.f32.mrb[0].mxu0
      %v1286 = vadd.f32 0.0, %v1285
      %v1287 = vpop.f32.mrb[0].mxu0
      %v1288 = vadd.f32 0.0, %v1287
      %v1289 = vpop.f32.mrb[0].mxu0
      %v1290 = vadd.f32 0.0, %v1289
      %v1291 = vpop.f32.mrb[0].mxu0
      %v1292 = vadd.f32 0.0, %v1291
      %1293 = vmatprep.mubr.bf16.mxu0 0
      %1294 = vmatmul.mubr.bf16.gmra.mrb[0].mxu0 %v684
      %v1295 = vpop.f32.mrb[0].mxu0
      %v1296 = vadd.f32 0.0, %v1295
      %v1297 = vpop.f32.mrb[0].mxu0
      %v1298 = vadd.f32 0.0, %v1297
      %v1299 = vpop.f32.mrb[0].mxu0
      %v1300 = vadd.f32 0.0, %v1299
      %v1301 = vpop.f32.mrb[0].mxu0
      %v1302 = vadd.f32 0.0, %v1301
      %1303 = vmatprep.mubr.bf16.mxu0 0
      %1304 = vmatmul.mubr.bf16.gmra.mrb[0].mxu0 %v685
      %v1305 = vpop.f32.mrb[0].mxu0
      %v1306 = vadd.f32 0.0, %v1305
      %v1307 = vpop.f32.mrb[0].mxu0
      %v1308 = vadd.f32 0.0, %v1307
      %v1309 = vpop.f32.mrb[0].mxu0
      %v1310 = vadd.f32 0.0, %v1309
      %v1311 = vpop.f32.mrb[0].mxu0
      %v1312 = vadd.f32 0.0, %v1311
      %1313 = vmatprep.mubr.bf16.mxu0 0
      %1314 = vmatmul.mubr.bf16.gmra.mrb[0].mxu0 %v686
      %v1315 = vpop.f32.mrb[0].mxu0
      %v1316 = vadd.f32 0.0, %v1315
      %v1317 = vpop.f32.mrb[0].mxu0
      %v1318 = vadd.f32 0.0, %v1317
      %v1319 = vpop.f32.mrb[0].mxu0
      %v1320 = vadd.f32 0.0, %v1319
      %v1321 = vpop.f32.mrb[0].mxu0
      %v1322 = vadd.f32 0.0, %v1321
      %1323 = vmatprep.mubr.bf16.mxu0 0
      %1324 = vmatmul.mubr.bf16.gmra.mrb[0].mxu0 %v687
      %v1325 = vpop.f32.mrb[0].mxu0
      %v1326 = vadd.f32 0.0, %v1325
      %v1327 = vpop.f32.mrb[0].mxu0
      %v1328 = vadd.f32 0.0, %v1327
      %v1329 = vpop.f32.mrb[0].mxu0
      %v1330 = vadd.f32 0.0, %v1329
      %v1331 = vpop.f32.mrb[0].mxu0
      %v1332 = vadd.f32 0.0, %v1331
      %1333 = vmatprep.mubr.bf16.mxu0 0
      %1334 = vmatmul.mubr.bf16.gmra.mrb[0].mxu0 %v688
      %v1335 = vpop.f32.mrb[0].mxu0
      %v1336 = vadd.f32 0.0, %v1335
      %v1337 = vpop.f32.mrb[0].mxu0
      %v1338 = vadd.f32 0.0, %v1337
      %v1339 = vpop.f32.mrb[0].mxu0
      %v1340 = vadd.f32 0.0, %v1339
      %v1341 = vpop.f32.mrb[0].mxu0
      %v1342 = vadd.f32 0.0, %v1341
      %1343 = vmatprep.mubr.bf16.mxu0 0
      %1344 = vmatmul.mubr.bf16.gmra.mrb[0].mxu0 %v689
      %v1345 = vpop.f32.mrb[0].mxu0
      %v1346 = vadd.f32 0.0, %v1345
      %v1347 = vpop.f32.mrb[0].mxu0
      %v1348 = vadd.f32 0.0, %v1347
      %v1349 = vpop.f32.mrb[0].mxu0
      %v1350 = vadd.f32 0.0, %v1349
      %v1351 = vpop.f32.mrb[0].mxu0
      %v1352 = vadd.f32 0.0, %v1351
      %1353 = vmatprep.mubr.bf16.mxu0 0
      %1354 = vmatmul.mubr.bf16.gmra.mrb[0].mxu0 %v690
      %v1355 = vpop.f32.mrb[0].mxu0
      %v1356 = vadd.f32 0.0, %v1355
      %v1357 = vpop.f32.mrb[0].mxu0
      %v1358 = vadd.f32 0.0, %v1357
      %v1359 = vpop.f32.mrb[0].mxu0
      %v1360 = vadd.f32 0.0, %v1359
      %v1361 = vpop.f32.mrb[0].mxu0
      %v1362 = vadd.f32 0.0, %v1361
      %1363 = vmatprep.mubr.bf16.mxu0 0
      %1364 = vmatmul.mubr.bf16.gmra.mrb[0].mxu0 %v691
      %v1365 = vpop.f32.mrb[0].mxu0
      %v1366 = vadd.f32 0.0, %v1365
      %v1367 = vpop.f32.mrb[0].mxu0
      %v1368 = vadd.f32 0.0, %v1367
      %v1369 = vpop.f32.mrb[0].mxu0
      %v1370 = vadd.f32 0.0, %v1369
      %v1371 = vpop.f32.mrb[0].mxu0
      %v1372 = vadd.f32 0.0, %v1371
      %1373 = vmatprep.mubr.bf16.mxu0 0
      %1374 = vmatmul.mubr.bf16.gmra.mrb[0].mxu0 %v692
      %v1375 = vpop.f32.mrb[0].mxu0
      %v1376 = vadd.f32 0.0, %v1375
      %v1377 = vpop.f32.mrb[0].mxu0
      %v1378 = vadd.f32 0.0, %v1377
      %v1379 = vpop.f32.mrb[0].mxu0
      %v1380 = vadd.f32 0.0, %v1379
      %v1381 = vpop.f32.mrb[0].mxu0
      %v1382 = vadd.f32 0.0, %v1381
      %1383 = vmatprep.mubr.bf16.mxu0 0
      %1384 = vmatmul.mubr.bf16.gmra.mrb[0].mxu0 %v693
      %v1385 = vpop.f32.mrb[0].mxu0
      %v1386 = vadd.f32 0.0, %v1385
      %v1387 = vpop.f32.mrb[0].mxu0
      %v1388 = vadd.f32 0.0, %v1387
      %v1389 = vpop.f32.mrb[0].mxu0
      %v1390 = vadd.f32 0.0, %v1389
      %v1391 = vpop.f32.mrb[0].mxu0
      %v1392 = vadd.f32 0.0, %v1391
      %1393 = vmatprep.mubr.bf16.mxu0 0
      %1394 = vmatmul.mubr.bf16.gmra.mrb[0].mxu0 %v694
      %v1395 = vpop.f32.mrb[0].mxu0
      %v1396 = vadd.f32 0.0, %v1395
      %v1397 = vpop.f32.mrb[0].mxu0
      %v1398 = vadd.f32 0.0, %v1397
      %v1399 = vpop.f32.mrb[0].mxu0
      %v1400 = vadd.f32 0.0, %v1399
      %v1401 = vpop.f32.mrb[0].mxu0
      %v1402 = vadd.f32 0.0, %v1401
      %1403 = vmatprep.mubr.bf16.mxu0 0
      %1404 = vmatmul.mubr.bf16.gmra.mrb[0].mxu0 %v695
      %v1405 = vpop.f32.mrb[0].mxu0
      %v1406 = vadd.f32 0.0, %v1405
      %v1407 = vpop.f32.mrb[0].mxu0
      %v1408 = vadd.f32 0.0, %v1407
      %v1409 = vpop.f32.mrb[0].mxu0
      %v1410 = vadd.f32 0.0, %v1409
      %v1411 = vpop.f32.mrb[0].mxu0
      %v1412 = vadd.f32 0.0, %v1411
      %1413 = vmatprep.mubr.bf16.mxu0 0
      %1414 = vmatmul.mubr.bf16.gmra.mrb[0].mxu0 %v696
      %v1415 = vpop.f32.mrb[0].mxu0
      %v1416 = vadd.f32 0.0, %v1415
      %v1417 = vpop.f32.mrb[0].mxu0
      %v1418 = vadd.f32 0.0, %v1417
      %v1419 = vpop.f32.mrb[0].mxu0
      %v1420 = vadd.f32 0.0, %v1419
      %v1421 = vpop.f32.mrb[0].mxu0
      %v1422 = vadd.f32 0.0, %v1421
      %1423 = vmatprep.mubr.bf16.mxu0 0
      %1424 = vmatmul.mubr.bf16.gmra.mrb[0].mxu0 %v697
      %v1425 = vpop.f32.mrb[0].mxu0
      %v1426 = vadd.f32 0.0, %v1425
      %v1427 = vpop.f32.mrb[0].mxu0
      %v1428 = vadd.f32 0.0, %v1427
      %v1429 = vpop.f32.mrb[0].mxu0
      %v1430 = vadd.f32 0.0, %v1429
      %v1431 = vpop.f32.mrb[0].mxu0
      %v1432 = vadd.f32 0.0, %v1431
      %1433 = vmatprep.mubr.bf16.mxu0 0
      %1434 = vmatmul.mubr.bf16.gmra.mrb[0].mxu0 %v698
      %v1435 = vpop.f32.mrb[0].mxu0
      %v1436 = vadd.f32 0.0, %v1435
      %v1437 = vpop.f32.mrb[0].mxu0
      %v1438 = vadd.f32 0.0, %v1437
      %v1439 = vpop.f32.mrb[0].mxu0
      %v1440 = vadd.f32 0.0, %v1439
      %v1441 = vpop.f32.mrb[0].mxu0
      %v1442 = vadd.f32 0.0, %v1441
      %1443 = vmatprep.mubr.bf16.mxu0 0
      %1444 = vmatmul.mubr.bf16.gmra.mrb[0].mxu0 %v699
      %v1445 = vpop.f32.mrb[0].mxu0
      %v1446 = vadd.f32 0.0, %v1445
      %v1447 = vpop.f32.mrb[0].mxu0
      %v1448 = vadd.f32 0.0, %v1447
      %v1449 = vpop.f32.mrb[0].mxu0
      %v1450 = vadd.f32 0.0, %v1449
      %v1451 = vpop.f32.mrb[0].mxu0
      %v1452 = vadd.f32 0.0, %v1451
      %1453 = vmatprep.mubr.bf16.mxu0 0
      %1454 = vmatmul.mubr.bf16.gmra.mrb[0].mxu0 %v700
      %v1455 = vpop.f32.mrb[0].mxu0
      %v1456 = vadd.f32 0.0, %v1455
      %v1457 = vpop.f32.mrb[0].mxu0
      %v1458 = vadd.f32 0.0, %v1457
      %v1459 = vpop.f32.mrb[0].mxu0
      %v1460 = vadd.f32 0.0, %v1459
      %v1461 = vpop.f32.mrb[0].mxu0
      %v1462 = vadd.f32 0.0, %v1461
      %1463 = vmatprep.mubr.bf16.mxu0 0
      %1464 = vmatmul.mubr.bf16.gmra.mrb[0].mxu0 %v701
      %v1465 = vpop.f32.mrb[0].mxu0
      %v1466 = vadd.f32 0.0, %v1465
      %v1467 = vpop.f32.mrb[0].mxu0
      %v1468 = vadd.f32 0.0, %v1467
      %v1469 = vpop.f32.mrb[0].mxu0
      %v1470 = vadd.f32 0.0, %v1469
      %v1471 = vpop.f32.mrb[0].mxu0
      %v1472 = vadd.f32 0.0, %v1471
      %1473 = vmatprep.mubr.bf16.mxu0 0
      %1474 = vmatmul.mubr.bf16.gmra.mrb[0].mxu0 %v702
      %v1475 = vpop.f32.mrb[0].mxu0
      %v1476 = vadd.f32 0.0, %v1475
      %v1477 = vpop.f32.mrb[0].mxu0
      %v1478 = vadd.f32 0.0, %v1477
      %v1479 = vpop.f32.mrb[0].mxu0
      %v1480 = vadd.f32 0.0, %v1479
      %v1481 = vpop.f32.mrb[0].mxu0
      %v1482 = vadd.f32 0.0, %v1481
      %1483 = vmatprep.mubr.bf16.mxu0 0
      %1484 = vmatmul.mubr.bf16.gmra.mrb[0].mxu0 %v703
      %v1485 = vpop.f32.mrb[0].mxu0
      %v1486 = vadd.f32 0.0, %v1485
      %v1487 = vpop.f32.mrb[0].mxu0
      %v1488 = vadd.f32 0.0, %v1487
      %v1489 = vpop.f32.mrb[0].mxu0
      %v1490 = vadd.f32 0.0, %v1489
      %v1491 = vpop.f32.mrb[0].mxu0
      %v1492 = vadd.f32 0.0, %v1491
      %1493 = vmatprep.mubr.bf16.mxu0 0
      %1494 = vmatmul.mubr.bf16.gmra.mrb[0].mxu0 %v704
      %v1495 = vpop.f32.mrb[0].mxu0
      %v1496 = vadd.f32 0.0, %v1495
      %v1497 = vpop.f32.mrb[0].mxu0
      %v1498 = vadd.f32 0.0, %v1497
      %v1499 = vpop.f32.mrb[0].mxu0
      %v1500 = vadd.f32 0.0, %v1499
      %v1501 = vpop.f32.mrb[0].mxu0
      %v1502 = vadd.f32 0.0, %v1501
      %1503 = vmatprep.mubr.bf16.mxu0 0
      %1504 = vmatmul.mubr.bf16.gmra.mrb[0].mxu0 %v705
      %v1505 = vpop.f32.mrb[0].mxu0
      %v1506 = vadd.f32 0.0, %v1505
      %v1507 = vpop.f32.mrb[0].mxu0
      %v1508 = vadd.f32 0.0, %v1507
      %v1509 = vpop.f32.mrb[0].mxu0
      %v1510 = vadd.f32 0.0, %v1509
      %v1511 = vpop.f32.mrb[0].mxu0
      %v1512 = vadd.f32 0.0, %v1511
      %1513 = vmatprep.mubr.bf16.mxu0 0
      %1514 = vmatmul.mubr.bf16.gmra.mrb[0].mxu0 %v706
      %v1515 = vpop.f32.mrb[0].mxu0
      %v1516 = vadd.f32 0.0, %v1515
      %v1517 = vpop.f32.mrb[0].mxu0
      %v1518 = vadd.f32 0.0, %v1517
      %v1519 = vpop.f32.mrb[0].mxu0
      %v1520 = vadd.f32 0.0, %v1519
      %v1521 = vpop.f32.mrb[0].mxu0
      %v1522 = vadd.f32 0.0, %v1521
      %1523 = vdwg.mxu0
      %v1524 = vld [vmem:[%s2] sm:$0x3]
      %v1526 = vlaneseq
      %v1527 = vshrl.u32 %v1526, 7
      %v1528 = vsub.s32 0, %v1527
      %v1529 = vrot.slane %v1524, %v1528
      %v1530 = vlaneseq
      %v1531 = vshrl.u32 %v1530, 7
      %v1532 = vsub.s32 1, %v1531
      %v1533 = vrot.slane %v1524, %v1532
      %v1536 = vmul.f32 %v886, %v1529
      %v1537 = vmul.f32 %v888, %v1533
      %v1538 = vmul.f32 %v890, %v1529
      %v1539 = vmul.f32 %v892, %v1533
      %v1540 = vmul.f32 %v896, %v1529
      %v1541 = vmul.f32 %v898, %v1533
      %v1542 = vmul.f32 %v900, %v1529
      %v1543 = vmul.f32 %v902, %v1533
      %v1544 = vmul.f32 %v906, %v1529
      %v1545 = vmul.f32 %v908, %v1533
      %v1546 = vmul.f32 %v910, %v1529
      %v1547 = vmul.f32 %v912, %v1533
      %v1548 = vmul.f32 %v916, %v1529
      %v1549 = vmul.f32 %v918, %v1533
      %v1550 = vmul.f32 %v920, %v1529
      %v1551 = vmul.f32 %v922, %v1533
      %v1552 = vmul.f32 %v926, %v1529
      %v1553 = vmul.f32 %v928, %v1533
      %v1554 = vmul.f32 %v930, %v1529
      %v1555 = vmul.f32 %v932, %v1533
      %v1556 = vmul.f32 %v936, %v1529
      %v1557 = vmul.f32 %v938, %v1533
      %v1558 = vmul.f32 %v940, %v1529
      %v1559 = vmul.f32 %v942, %v1533
      %v1560 = vmul.f32 %v946, %v1529
      %v1561 = vmul.f32 %v948, %v1533
      %v1562 = vmul.f32 %v950, %v1529
      %v1563 = vmul.f32 %v952, %v1533
      %v1564 = vmul.f32 %v956, %v1529
      %v1565 = vmul.f32 %v958, %v1533
      %v1566 = vmul.f32 %v960, %v1529
      %v1567 = vmul.f32 %v962, %v1533
      %v1568 = vmul.f32 %v966, %v1529
      %v1569 = vmul.f32 %v968, %v1533
      %v1570 = vmul.f32 %v970, %v1529
      %v1571 = vmul.f32 %v972, %v1533
      %v1572 = vmul.f32 %v976, %v1529
      %v1573 = vmul.f32 %v978, %v1533
      %v1574 = vmul.f32 %v980, %v1529
      %v1575 = vmul.f32 %v982, %v1533
      %v1576 = vmul.f32 %v986, %v1529
      %v1577 = vmul.f32 %v988, %v1533
      %v1578 = vmul.f32 %v990, %v1529
      %v1579 = vmul.f32 %v992, %v1533
      %v1580 = vmul.f32 %v996, %v1529
      %v1581 = vmul.f32 %v998, %v1533
      %v1582 = vmul.f32 %v1000, %v1529
      %v1583 = vmul.f32 %v1002, %v1533
      %v1584 = vmul.f32 %v1006, %v1529
      %v1585 = vmul.f32 %v1008, %v1533
      %v1586 = vmul.f32 %v1010, %v1529
      %v1587 = vmul.f32 %v1012, %v1533
      %v1588 = vmul.f32 %v1016, %v1529
      %v1589 = vmul.f32 %v1018, %v1533
      %v1590 = vmul.f32 %v1020, %v1529
      %v1591 = vmul.f32 %v1022, %v1533
      %v1592 = vmul.f32 %v1026, %v1529
      %v1593 = vmul.f32 %v1028, %v1533
      %v1594 = vmul.f32 %v1030, %v1529
      %v1595 = vmul.f32 %v1032, %v1533
      %v1596 = vmul.f32 %v1036, %v1529
      %v1597 = vmul.f32 %v1038, %v1533
      %v1598 = vmul.f32 %v1040, %v1529
      %v1599 = vmul.f32 %v1042, %v1533
      %v1600 = vmul.f32 %v1046, %v1529
      %v1601 = vmul.f32 %v1048, %v1533
      %v1602 = vmul.f32 %v1050, %v1529
      %v1603 = vmul.f32 %v1052, %v1533
      %v1604 = vmul.f32 %v1056, %v1529
      %v1605 = vmul.f32 %v1058, %v1533
      %v1606 = vmul.f32 %v1060, %v1529
      %v1607 = vmul.f32 %v1062, %v1533
      %v1608 = vmul.f32 %v1066, %v1529
      %v1609 = vmul.f32 %v1068, %v1533
      %v1610 = vmul.f32 %v1070, %v1529
      %v1611 = vmul.f32 %v1072, %v1533
      %v1612 = vmul.f32 %v1076, %v1529
      %v1613 = vmul.f32 %v1078, %v1533
      %v1614 = vmul.f32 %v1080, %v1529
      %v1615 = vmul.f32 %v1082, %v1533
      %v1616 = vmul.f32 %v1086, %v1529
      %v1617 = vmul.f32 %v1088, %v1533
      %v1618 = vmul.f32 %v1090, %v1529
      %v1619 = vmul.f32 %v1092, %v1533
      %v1620 = vmul.f32 %v1096, %v1529
      %v1621 = vmul.f32 %v1098, %v1533
      %v1622 = vmul.f32 %v1100, %v1529
      %v1623 = vmul.f32 %v1102, %v1533
      %v1624 = vmul.f32 %v1106, %v1529
      %v1625 = vmul.f32 %v1108, %v1533
      %v1626 = vmul.f32 %v1110, %v1529
      %v1627 = vmul.f32 %v1112, %v1533
      %v1628 = vmul.f32 %v1116, %v1529
      %v1629 = vmul.f32 %v1118, %v1533
      %v1630 = vmul.f32 %v1120, %v1529
      %v1631 = vmul.f32 %v1122, %v1533
      %v1632 = vmul.f32 %v1126, %v1529
      %v1633 = vmul.f32 %v1128, %v1533
      %v1634 = vmul.f32 %v1130, %v1529
      %v1635 = vmul.f32 %v1132, %v1533
      %v1636 = vmul.f32 %v1136, %v1529
      %v1637 = vmul.f32 %v1138, %v1533
      %v1638 = vmul.f32 %v1140, %v1529
      %v1639 = vmul.f32 %v1142, %v1533
      %v1640 = vmul.f32 %v1146, %v1529
      %v1641 = vmul.f32 %v1148, %v1533
      %v1642 = vmul.f32 %v1150, %v1529
      %v1643 = vmul.f32 %v1152, %v1533
      %v1644 = vmul.f32 %v1156, %v1529
      %v1645 = vmul.f32 %v1158, %v1533
      %v1646 = vmul.f32 %v1160, %v1529
      %v1647 = vmul.f32 %v1162, %v1533
      %v1648 = vmul.f32 %v1166, %v1529
      %v1649 = vmul.f32 %v1168, %v1533
      %v1650 = vmul.f32 %v1170, %v1529
      %v1651 = vmul.f32 %v1172, %v1533
      %v1652 = vmul.f32 %v1176, %v1529
      %v1653 = vmul.f32 %v1178, %v1533
      %v1654 = vmul.f32 %v1180, %v1529
      %v1655 = vmul.f32 %v1182, %v1533
      %v1656 = vmul.f32 %v1186, %v1529
      %v1657 = vmul.f32 %v1188, %v1533
      %v1658 = vmul.f32 %v1190, %v1529
      %v1659 = vmul.f32 %v1192, %v1533
      %v1660 = vmul.f32 %v1196, %v1529
      %v1661 = vmul.f32 %v1198, %v1533
      %v1662 = vmul.f32 %v1200, %v1529
      %v1663 = vmul.f32 %v1202, %v1533
      %v1664 = vmul.f32 %v1206, %v1529
      %v1665 = vmul.f32 %v1208, %v1533
      %v1666 = vmul.f32 %v1210, %v1529
      %v1667 = vmul.f32 %v1212, %v1533
      %v1668 = vmul.f32 %v1216, %v1529
      %v1669 = vmul.f32 %v1218, %v1533
      %v1670 = vmul.f32 %v1220, %v1529
      %v1671 = vmul.f32 %v1222, %v1533
      %v1672 = vmul.f32 %v1226, %v1529
      %v1673 = vmul.f32 %v1228, %v1533
      %v1674 = vmul.f32 %v1230, %v1529
      %v1675 = vmul.f32 %v1232, %v1533
      %v1676 = vmul.f32 %v1236, %v1529
      %v1677 = vmul.f32 %v1238, %v1533
      %v1678 = vmul.f32 %v1240, %v1529
      %v1679 = vmul.f32 %v1242, %v1533
      %v1680 = vmul.f32 %v1246, %v1529
      %v1681 = vmul.f32 %v1248, %v1533
      %v1682 = vmul.f32 %v1250, %v1529
      %v1683 = vmul.f32 %v1252, %v1533
      %v1684 = vmul.f32 %v1256, %v1529
      %v1685 = vmul.f32 %v1258, %v1533
      %v1686 = vmul.f32 %v1260, %v1529
      %v1687 = vmul.f32 %v1262, %v1533
      %v1688 = vmul.f32 %v1266, %v1529
      %v1689 = vmul.f32 %v1268, %v1533
      %v1690 = vmul.f32 %v1270, %v1529
      %v1691 = vmul.f32 %v1272, %v1533
      %v1692 = vmul.f32 %v1276, %v1529
      %v1693 = vmul.f32 %v1278, %v1533
      %v1694 = vmul.f32 %v1280, %v1529
      %v1695 = vmul.f32 %v1282, %v1533
      %v1696 = vmul.f32 %v1286, %v1529
      %v1697 = vmul.f32 %v1288, %v1533
      %v1698 = vmul.f32 %v1290, %v1529
      %v1699 = vmul.f32 %v1292, %v1533
      %v1700 = vmul.f32 %v1296, %v1529
      %v1701 = vmul.f32 %v1298, %v1533
      %v1702 = vmul.f32 %v1300, %v1529
      %v1703 = vmul.f32 %v1302, %v1533
      %v1704 = vmul.f32 %v1306, %v1529
      %v1705 = vmul.f32 %v1308, %v1533
      %v1706 = vmul.f32 %v1310, %v1529
      %v1707 = vmul.f32 %v1312, %v1533
      %v1708 = vmul.f32 %v1316, %v1529
      %v1709 = vmul.f32 %v1318, %v1533
      %v1710 = vmul.f32 %v1320, %v1529
      %v1711 = vmul.f32 %v1322, %v1533
      %v1712 = vmul.f32 %v1326, %v1529
      %v1713 = vmul.f32 %v1328, %v1533
      %v1714 = vmul.f32 %v1330, %v1529
      %v1715 = vmul.f32 %v1332, %v1533
      %v1716 = vmul.f32 %v1336, %v1529
      %v1717 = vmul.f32 %v1338, %v1533
      %v1718 = vmul.f32 %v1340, %v1529
      %v1719 = vmul.f32 %v1342, %v1533
      %v1720 = vmul.f32 %v1346, %v1529
      %v1721 = vmul.f32 %v1348, %v1533
      %v1722 = vmul.f32 %v1350, %v1529
      %v1723 = vmul.f32 %v1352, %v1533
      %v1724 = vmul.f32 %v1356, %v1529
      %v1725 = vmul.f32 %v1358, %v1533
      %v1726 = vmul.f32 %v1360, %v1529
      %v1727 = vmul.f32 %v1362, %v1533
      %v1728 = vmul.f32 %v1366, %v1529
      %v1729 = vmul.f32 %v1368, %v1533
      %v1730 = vmul.f32 %v1370, %v1529
      %v1731 = vmul.f32 %v1372, %v1533
      %v1732 = vmul.f32 %v1376, %v1529
      %v1733 = vmul.f32 %v1378, %v1533
      %v1734 = vmul.f32 %v1380, %v1529
      %v1735 = vmul.f32 %v1382, %v1533
      %v1736 = vmul.f32 %v1386, %v1529
      %v1737 = vmul.f32 %v1388, %v1533
      %v1738 = vmul.f32 %v1390, %v1529
      %v1739 = vmul.f32 %v1392, %v1533
      %v1740 = vmul.f32 %v1396, %v1529
      %v1741 = vmul.f32 %v1398, %v1533
      %v1742 = vmul.f32 %v1400, %v1529
      %v1743 = vmul.f32 %v1402, %v1533
      %v1744 = vmul.f32 %v1406, %v1529
      %v1745 = vmul.f32 %v1408, %v1533
      %v1746 = vmul.f32 %v1410, %v1529
      %v1747 = vmul.f32 %v1412, %v1533
      %v1748 = vmul.f32 %v1416, %v1529
      %v1749 = vmul.f32 %v1418, %v1533
      %v1750 = vmul.f32 %v1420, %v1529
      %v1751 = vmul.f32 %v1422, %v1533
      %v1752 = vmul.f32 %v1426, %v1529
      %v1753 = vmul.f32 %v1428, %v1533
      %v1754 = vmul.f32 %v1430, %v1529
      %v1755 = vmul.f32 %v1432, %v1533
      %v1756 = vmul.f32 %v1436, %v1529
      %v1757 = vmul.f32 %v1438, %v1533
      %v1758 = vmul.f32 %v1440, %v1529
      %v1759 = vmul.f32 %v1442, %v1533
      %v1760 = vmul.f32 %v1446, %v1529
      %v1761 = vmul.f32 %v1448, %v1533
      %v1762 = vmul.f32 %v1450, %v1529
      %v1763 = vmul.f32 %v1452, %v1533
      %v1764 = vmul.f32 %v1456, %v1529
      %v1765 = vmul.f32 %v1458, %v1533
      %v1766 = vmul.f32 %v1460, %v1529
      %v1767 = vmul.f32 %v1462, %v1533
      %v1768 = vmul.f32 %v1466, %v1529
      %v1769 = vmul.f32 %v1468, %v1533
      %v1770 = vmul.f32 %v1470, %v1529
      %v1771 = vmul.f32 %v1472, %v1533
      %v1772 = vmul.f32 %v1476, %v1529
      %v1773 = vmul.f32 %v1478, %v1533
      %v1774 = vmul.f32 %v1480, %v1529
      %v1775 = vmul.f32 %v1482, %v1533
      %v1776 = vmul.f32 %v1486, %v1529
      %v1777 = vmul.f32 %v1488, %v1533
      %v1778 = vmul.f32 %v1490, %v1529
      %v1779 = vmul.f32 %v1492, %v1533
      %v1780 = vmul.f32 %v1496, %v1529
      %v1781 = vmul.f32 %v1498, %v1533
      %v1782 = vmul.f32 %v1500, %v1529
      %v1783 = vmul.f32 %v1502, %v1533
      %v1784 = vmul.f32 %v1506, %v1529
      %v1785 = vmul.f32 %v1508, %v1533
      %v1786 = vmul.f32 %v1510, %v1529
      %v1787 = vmul.f32 %v1512, %v1533
      %v1788 = vmul.f32 %v1516, %v1529
      %v1789 = vmul.f32 %v1518, %v1533
      %v1790 = vmul.f32 %v1520, %v1529
      %v1791 = vmul.f32 %v1522, %v1533
      %v1792 = vld [vmem:[%s3] sm:$0x3]
      %v1794 = vlaneseq
      %v1795 = vshrl.u32 %v1794, 7
      %v1796 = vsub.s32 0, %v1795
      %v1797 = vrot.slane %v1792, %v1796
      %v1798 = vlaneseq
      %v1799 = vshrl.u32 %v1798, 7
      %v1800 = vsub.s32 1, %v1799
      %v1801 = vrot.slane %v1792, %v1800
      %v1804 = vadd.f32 %v1536, %v1797
      %v1805 = vadd.f32 %v1537, %v1801
      %v1806 = vadd.f32 %v1538, %v1797
      %v1807 = vadd.f32 %v1539, %v1801
      %v1808 = vadd.f32 %v1540, %v1797
      %v1809 = vadd.f32 %v1541, %v1801
      %v1810 = vadd.f32 %v1542, %v1797
      %v1811 = vadd.f32 %v1543, %v1801
      %v1812 = vadd.f32 %v1544, %v1797
      %v1813 = vadd.f32 %v1545, %v1801
      %v1814 = vadd.f32 %v1546, %v1797
      %v1815 = vadd.f32 %v1547, %v1801
      %v1816 = vadd.f32 %v1548, %v1797
      %v1817 = vadd.f32 %v1549, %v1801
      %v1818 = vadd.f32 %v1550, %v1797
      %v1819 = vadd.f32 %v1551, %v1801
      %v1820 = vadd.f32 %v1552, %v1797
      %v1821 = vadd.f32 %v1553, %v1801
      %v1822 = vadd.f32 %v1554, %v1797
      %v1823 = vadd.f32 %v1555, %v1801
      %v1824 = vadd.f32 %v1556, %v1797
      %v1825 = vadd.f32 %v1557, %v1801
      %v1826 = vadd.f32 %v1558, %v1797
      %v1827 = vadd.f32 %v1559, %v1801
      %v1828 = vadd.f32 %v1560, %v1797
      %v1829 = vadd.f32 %v1561, %v1801
      %v1830 = vadd.f32 %v1562, %v1797
      %v1831 = vadd.f32 %v1563, %v1801
      %v1832 = vadd.f32 %v1564, %v1797
      %v1833 = vadd.f32 %v1565, %v1801
      %v1834 = vadd.f32 %v1566, %v1797
      %v1835 = vadd.f32 %v1567, %v1801
      %v1836 = vadd.f32 %v1568, %v1797
      %v1837 = vadd.f32 %v1569, %v1801
      %v1838 = vadd.f32 %v1570, %v1797
      %v1839 = vadd.f32 %v1571, %v1801
      %v1840 = vadd.f32 %v1572, %v1797
      %v1841 = vadd.f32 %v1573, %v1801
      %v1842 = vadd.f32 %v1574, %v1797
      %v1843 = vadd.f32 %v1575, %v1801
      %v1844 = vadd.f32 %v1576, %v1797
      %v1845 = vadd.f32 %v1577, %v1801
      %v1846 = vadd.f32 %v1578, %v1797
      %v1847 = vadd.f32 %v1579, %v1801
      %v1848 = vadd.f32 %v1580, %v1797
      %v1849 = vadd.f32 %v1581, %v1801
      %v1850 = vadd.f32 %v1582, %v1797
      %v1851 = vadd.f32 %v1583, %v1801
      %v1852 = vadd.f32 %v1584, %v1797
      %v1853 = vadd.f32 %v1585, %v1801
      %v1854 = vadd.f32 %v1586, %v1797
      %v1855 = vadd.f32 %v1587, %v1801
      %v1856 = vadd.f32 %v1588, %v1797
      %v1857 = vadd.f32 %v1589, %v1801
      %v1858 = vadd.f32 %v1590, %v1797
      %v1859 = vadd.f32 %v1591, %v1801
      %v1860 = vadd.f32 %v1592, %v1797
      %v1861 = vadd.f32 %v1593, %v1801
      %v1862 = vadd.f32 %v1594, %v1797
      %v1863 = vadd.f32 %v1595, %v1801
      %v1864 = vadd.f32 %v1596, %v1797
      %v1865 = vadd.f32 %v1597, %v1801
      %v1866 = vadd.f32 %v1598, %v1797
      %v1867 = vadd.f32 %v1599, %v1801
      %v1868 = vadd.f32 %v1600, %v1797
      %v1869 = vadd.f32 %v1601, %v1801
      %v1870 = vadd.f32 %v1602, %v1797
      %v1871 = vadd.f32 %v1603, %v1801
      %v1872 = vadd.f32 %v1604, %v1797
      %v1873 = vadd.f32 %v1605, %v1801
      %v1874 = vadd.f32 %v1606, %v1797
      %v1875 = vadd.f32 %v1607, %v1801
      %v1876 = vadd.f32 %v1608, %v1797
      %v1877 = vadd.f32 %v1609, %v1801
      %v1878 = vadd.f32 %v1610, %v1797
      %v1879 = vadd.f32 %v1611, %v1801
      %v1880 = vadd.f32 %v1612, %v1797
      %v1881 = vadd.f32 %v1613, %v1801
      %v1882 = vadd.f32 %v1614, %v1797
      %v1883 = vadd.f32 %v1615, %v1801
      %v1884 = vadd.f32 %v1616, %v1797
      %v1885 = vadd.f32 %v1617, %v1801
      %v1886 = vadd.f32 %v1618, %v1797
      %v1887 = vadd.f32 %v1619, %v1801
      %v1888 = vadd.f32 %v1620, %v1797
      %v1889 = vadd.f32 %v1621, %v1801
      %v1890 = vadd.f32 %v1622, %v1797
      %v1891 = vadd.f32 %v1623, %v1801
      %v1892 = vadd.f32 %v1624, %v1797
      %v1893 = vadd.f32 %v1625, %v1801
      %v1894 = vadd.f32 %v1626, %v1797
      %v1895 = vadd.f32 %v1627, %v1801
      %v1896 = vadd.f32 %v1628, %v1797
      %v1897 = vadd.f32 %v1629, %v1801
      %v1898 = vadd.f32 %v1630, %v1797
      %v1899 = vadd.f32 %v1631, %v1801
      %v1900 = vadd.f32 %v1632, %v1797
      %v1901 = vadd.f32 %v1633, %v1801
      %v1902 = vadd.f32 %v1634, %v1797
      %v1903 = vadd.f32 %v1635, %v1801
      %v1904 = vadd.f32 %v1636, %v1797
      %v1905 = vadd.f32 %v1637, %v1801
      %v1906 = vadd.f32 %v1638, %v1797
      %v1907 = vadd.f32 %v1639, %v1801
      %v1908 = vadd.f32 %v1640, %v1797
      %v1909 = vadd.f32 %v1641, %v1801
      %v1910 = vadd.f32 %v1642, %v1797
      %v1911 = vadd.f32 %v1643, %v1801
      %v1912 = vadd.f32 %v1644, %v1797
      %v1913 = vadd.f32 %v1645, %v1801
      %v1914 = vadd.f32 %v1646, %v1797
      %v1915 = vadd.f32 %v1647, %v1801
      %v1916 = vadd.f32 %v1648, %v1797
      %v1917 = vadd.f32 %v1649, %v1801
      %v1918 = vadd.f32 %v1650, %v1797
      %v1919 = vadd.f32 %v1651, %v1801
      %v1920 = vadd.f32 %v1652, %v1797
      %v1921 = vadd.f32 %v1653, %v1801
      %v1922 = vadd.f32 %v1654, %v1797
      %v1923 = vadd.f32 %v1655, %v1801
      %v1924 = vadd.f32 %v1656, %v1797
      %v1925 = vadd.f32 %v1657, %v1801
      %v1926 = vadd.f32 %v1658, %v1797
      %v1927 = vadd.f32 %v1659, %v1801
      %v1928 = vadd.f32 %v1660, %v1797
      %v1929 = vadd.f32 %v1661, %v1801
      %v1930 = vadd.f32 %v1662, %v1797
      %v1931 = vadd.f32 %v1663, %v1801
      %v1932 = vadd.f32 %v1664, %v1797
      %v1933 = vadd.f32 %v1665, %v1801
      %v1934 = vadd.f32 %v1666, %v1797
      %v1935 = vadd.f32 %v1667, %v1801
      %v1936 = vadd.f32 %v1668, %v1797
      %v1937 = vadd.f32 %v1669, %v1801
      %v1938 = vadd.f32 %v1670, %v1797
      %v1939 = vadd.f32 %v1671, %v1801
      %v1940 = vadd.f32 %v1672, %v1797
      %v1941 = vadd.f32 %v1673, %v1801
      %v1942 = vadd.f32 %v1674, %v1797
      %v1943 = vadd.f32 %v1675, %v1801
      %v1944 = vadd.f32 %v1676, %v1797
      %v1945 = vadd.f32 %v1677, %v1801
      %v1946 = vadd.f32 %v1678, %v1797
      %v1947 = vadd.f32 %v1679, %v1801
      %v1948 = vadd.f32 %v1680, %v1797
      %v1949 = vadd.f32 %v1681, %v1801
      %v1950 = vadd.f32 %v1682, %v1797
      %v1951 = vadd.f32 %v1683, %v1801
      %v1952 = vadd.f32 %v1684, %v1797
      %v1953 = vadd.f32 %v1685, %v1801
      %v1954 = vadd.f32 %v1686, %v1797
      %v1955 = vadd.f32 %v1687, %v1801
      %v1956 = vadd.f32 %v1688, %v1797
      %v1957 = vadd.f32 %v1689, %v1801
      %v1958 = vadd.f32 %v1690, %v1797
      %v1959 = vadd.f32 %v1691, %v1801
      %v1960 = vadd.f32 %v1692, %v1797
      %v1961 = vadd.f32 %v1693, %v1801
      %v1962 = vadd.f32 %v1694, %v1797
      %v1963 = vadd.f32 %v1695, %v1801
      %v1964 = vadd.f32 %v1696, %v1797
      %v1965 = vadd.f32 %v1697, %v1801
      %v1966 = vadd.f32 %v1698, %v1797
      %v1967 = vadd.f32 %v1699, %v1801
      %v1968 = vadd.f32 %v1700, %v1797
      %v1969 = vadd.f32 %v1701, %v1801
      %v1970 = vadd.f32 %v1702, %v1797
      %v1971 = vadd.f32 %v1703, %v1801
      %v1972 = vadd.f32 %v1704, %v1797
      %v1973 = vadd.f32 %v1705, %v1801
      %v1974 = vadd.f32 %v1706, %v1797
      %v1975 = vadd.f32 %v1707, %v1801
      %v1976 = vadd.f32 %v1708, %v1797
      %v1977 = vadd.f32 %v1709, %v1801
      %v1978 = vadd.f32 %v1710, %v1797
      %v1979 = vadd.f32 %v1711, %v1801
      %v1980 = vadd.f32 %v1712, %v1797
      %v1981 = vadd.f32 %v1713, %v1801
      %v1982 = vadd.f32 %v1714, %v1797
      %v1983 = vadd.f32 %v1715, %v1801
      %v1984 = vadd.f32 %v1716, %v1797
      %v1985 = vadd.f32 %v1717, %v1801
      %v1986 = vadd.f32 %v1718, %v1797
      %v1987 = vadd.f32 %v1719, %v1801
      %v1988 = vadd.f32 %v1720, %v1797
      %v1989 = vadd.f32 %v1721, %v1801
      %v1990 = vadd.f32 %v1722, %v1797
      %v1991 = vadd.f32 %v1723, %v1801
      %v1992 = vadd.f32 %v1724, %v1797
      %v1993 = vadd.f32 %v1725, %v1801
      %v1994 = vadd.f32 %v1726, %v1797
      %v1995 = vadd.f32 %v1727, %v1801
      %v1996 = vadd.f32 %v1728, %v1797
      %v1997 = vadd.f32 %v1729, %v1801
      %v1998 = vadd.f32 %v1730, %v1797
      %v1999 = vadd.f32 %v1731, %v1801
      %v2000 = vadd.f32 %v1732, %v1797
      %v2001 = vadd.f32 %v1733, %v1801
      %v2002 = vadd.f32 %v1734, %v1797
      %v2003 = vadd.f32 %v1735, %v1801
      %v2004 = vadd.f32 %v1736, %v1797
      %v2005 = vadd.f32 %v1737, %v1801
      %v2006 = vadd.f32 %v1738, %v1797
      %v2007 = vadd.f32 %v1739, %v1801
      %v2008 = vadd.f32 %v1740, %v1797
      %v2009 = vadd.f32 %v1741, %v1801
      %v2010 = vadd.f32 %v1742, %v1797
      %v2011 = vadd.f32 %v1743, %v1801
      %v2012 = vadd.f32 %v1744, %v1797
      %v2013 = vadd.f32 %v1745, %v1801
      %v2014 = vadd.f32 %v1746, %v1797
      %v2015 = vadd.f32 %v1747, %v1801
      %v2016 = vadd.f32 %v1748, %v1797
      %v2017 = vadd.f32 %v1749, %v1801
      %v2018 = vadd.f32 %v1750, %v1797
      %v2019 = vadd.f32 %v1751, %v1801
      %v2020 = vadd.f32 %v1752, %v1797
      %v2021 = vadd.f32 %v1753, %v1801
      %v2022 = vadd.f32 %v1754, %v1797
      %v2023 = vadd.f32 %v1755, %v1801
      %v2024 = vadd.f32 %v1756, %v1797
      %v2025 = vadd.f32 %v1757, %v1801
      %v2026 = vadd.f32 %v1758, %v1797
      %v2027 = vadd.f32 %v1759, %v1801
      %v2028 = vadd.f32 %v1760, %v1797
      %v2029 = vadd.f32 %v1761, %v1801
      %v2030 = vadd.f32 %v1762, %v1797
      %v2031 = vadd.f32 %v1763, %v1801
      %v2032 = vadd.f32 %v1764, %v1797
      %v2033 = vadd.f32 %v1765, %v1801
      %v2034 = vadd.f32 %v1766, %v1797
      %v2035 = vadd.f32 %v1767, %v1801
      %v2036 = vadd.f32 %v1768, %v1797
      %v2037 = vadd.f32 %v1769, %v1801
      %v2038 = vadd.f32 %v1770, %v1797
      %v2039 = vadd.f32 %v1771, %v1801
      %v2040 = vadd.f32 %v1772, %v1797
      %v2041 = vadd.f32 %v1773, %v1801
      %v2042 = vadd.f32 %v1774, %v1797
      %v2043 = vadd.f32 %v1775, %v1801
      %v2044 = vadd.f32 %v1776, %v1797
      %v2045 = vadd.f32 %v1777, %v1801
      %v2046 = vadd.f32 %v1778, %v1797
      %v2047 = vadd.f32 %v1779, %v1801
      %v2048 = vadd.f32 %v1780, %v1797
      %v2049 = vadd.f32 %v1781, %v1801
      %v2050 = vadd.f32 %v1782, %v1797
      %v2051 = vadd.f32 %v1783, %v1801
      %v2052 = vadd.f32 %v1784, %v1797
      %v2053 = vadd.f32 %v1785, %v1801
      %v2054 = vadd.f32 %v1786, %v1797
      %v2055 = vadd.f32 %v1787, %v1801
      %v2056 = vadd.f32 %v1788, %v1797
      %v2057 = vadd.f32 %v1789, %v1801
      %v2058 = vadd.f32 %v1790, %v1797
      %v2059 = vadd.f32 %v1791, %v1801
      %v2060 = vmax.f32 %v1804, 0.0
      %v2061 = vmax.f32 %v1806, 0.0
      %v2062 = vmax.f32 %v1808, 0.0
      %v2063 = vmax.f32 %v1810, 0.0
      %v2064 = vmax.f32 %v1812, 0.0
      %v2065 = vmax.f32 %v1814, 0.0
      %v2066 = vmax.f32 %v1816, 0.0
      %v2067 = vmax.f32 %v1818, 0.0
      %v2068 = vmax.f32 %v1820, 0.0
      %v2069 = vmax.f32 %v1822, 0.0
      %v2070 = vmax.f32 %v1824, 0.0
      %v2071 = vmax.f32 %v1826, 0.0
      %v2072 = vmax.f32 %v1828, 0.0
      %v2073 = vmax.f32 %v1830, 0.0
      %v2074 = vmax.f32 %v1832, 0.0
      %v2075 = vmax.f32 %v1834, 0.0
      %v2076 = vmax.f32 %v1836, 0.0
      %v2077 = vmax.f32 %v1838, 0.0
      %v2078 = vmax.f32 %v1840, 0.0
      %v2079 = vmax.f32 %v1842, 0.0
      %v2080 = vmax.f32 %v1844, 0.0
      %v2081 = vmax.f32 %v1846, 0.0
      %v2082 = vmax.f32 %v1848, 0.0
      %v2083 = vmax.f32 %v1850, 0.0
      %v2084 = vmax.f32 %v1852, 0.0
      %v2085 = vmax.f32 %v1854, 0.0
      %v2086 = vmax.f32 %v1856, 0.0
      %v2087 = vmax.f32 %v1858, 0.0
      %v2088 = vmax.f32 %v1860, 0.0
      %v2089 = vmax.f32 %v1862, 0.0
      %v2090 = vmax.f32 %v1864, 0.0
      %v2091 = vmax.f32 %v1866, 0.0
      %v2092 = vmax.f32 %v1868, 0.0
      %v2093 = vmax.f32 %v1870, 0.0
      %v2094 = vmax.f32 %v1872, 0.0
      %v2095 = vmax.f32 %v1874, 0.0
      %v2096 = vmax.f32 %v1876, 0.0
      %v2097 = vmax.f32 %v1878, 0.0
      %v2098 = vmax.f32 %v1880, 0.0
      %v2099 = vmax.f32 %v1882, 0.0
      %v2100 = vmax.f32 %v1884, 0.0
      %v2101 = vmax.f32 %v1886, 0.0
      %v2102 = vmax.f32 %v1888, 0.0
      %v2103 = vmax.f32 %v1890, 0.0
      %v2104 = vmax.f32 %v1892, 0.0
      %v2105 = vmax.f32 %v1894, 0.0
      %v2106 = vmax.f32 %v1896, 0.0
      %v2107 = vmax.f32 %v1898, 0.0
      %v2108 = vmax.f32 %v1900, 0.0
      %v2109 = vmax.f32 %v1902, 0.0
      %v2110 = vmax.f32 %v1904, 0.0
      %v2111 = vmax.f32 %v1906, 0.0
      %v2112 = vmax.f32 %v1908, 0.0
      %v2113 = vmax.f32 %v1910, 0.0
      %v2114 = vmax.f32 %v1912, 0.0
      %v2115 = vmax.f32 %v1914, 0.0
      %v2116 = vmax.f32 %v1916, 0.0
      %v2117 = vmax.f32 %v1918, 0.0
      %v2118 = vmax.f32 %v1920, 0.0
      %v2119 = vmax.f32 %v1922, 0.0
      %v2120 = vmax.f32 %v1924, 0.0
      %v2121 = vmax.f32 %v1926, 0.0
      %v2122 = vmax.f32 %v1928, 0.0
      %v2123 = vmax.f32 %v1930, 0.0
      %v2124 = vmax.f32 %v1932, 0.0
      %v2125 = vmax.f32 %v1934, 0.0
      %v2126 = vmax.f32 %v1936, 0.0
      %v2127 = vmax.f32 %v1938, 0.0
      %v2128 = vmax.f32 %v1940, 0.0
      %v2129 = vmax.f32 %v1942, 0.0
      %v2130 = vmax.f32 %v1944, 0.0
      %v2131 = vmax.f32 %v1946, 0.0
      %v2132 = vmax.f32 %v1948, 0.0
      %v2133 = vmax.f32 %v1950, 0.0
      %v2134 = vmax.f32 %v1952, 0.0
      %v2135 = vmax.f32 %v1954, 0.0
      %v2136 = vmax.f32 %v1956, 0.0
      %v2137 = vmax.f32 %v1958, 0.0
      %v2138 = vmax.f32 %v1960, 0.0
      %v2139 = vmax.f32 %v1962, 0.0
      %v2140 = vmax.f32 %v1964, 0.0
      %v2141 = vmax.f32 %v1966, 0.0
      %v2142 = vmax.f32 %v1968, 0.0
      %v2143 = vmax.f32 %v1970, 0.0
      %v2144 = vmax.f32 %v1972, 0.0
      %v2145 = vmax.f32 %v1974, 0.0
      %v2146 = vmax.f32 %v1976, 0.0
      %v2147 = vmax.f32 %v1978, 0.0
      %v2148 = vmax.f32 %v1980, 0.0
      %v2149 = vmax.f32 %v1982, 0.0
      %v2150 = vmax.f32 %v1984, 0.0
      %v2151 = vmax.f32 %v1986, 0.0
      %v2152 = vmax.f32 %v1988, 0.0
      %v2153 = vmax.f32 %v1990, 0.0
      %v2154 = vmax.f32 %v1992, 0.0
      %v2155 = vmax.f32 %v1994, 0.0
      %v2156 = vmax.f32 %v1996, 0.0
      %v2157 = vmax.f32 %v1998, 0.0
      %v2158 = vmax.f32 %v2000, 0.0
      %v2159 = vmax.f32 %v2002, 0.0
      %v2160 = vmax.f32 %v2004, 0.0
      %v2161 = vmax.f32 %v2006, 0.0
      %v2162 = vmax.f32 %v2008, 0.0
      %v2163 = vmax.f32 %v2010, 0.0
      %v2164 = vmax.f32 %v2012, 0.0
      %v2165 = vmax.f32 %v2014, 0.0
      %v2166 = vmax.f32 %v2016, 0.0
      %v2167 = vmax.f32 %v2018, 0.0
      %v2168 = vmax.f32 %v2020, 0.0
      %v2169 = vmax.f32 %v2022, 0.0
      %v2170 = vmax.f32 %v2024, 0.0
      %v2171 = vmax.f32 %v2026, 0.0
      %v2172 = vmax.f32 %v2028, 0.0
      %v2173 = vmax.f32 %v2030, 0.0
      %v2174 = vmax.f32 %v2032, 0.0
      %v2175 = vmax.f32 %v2034, 0.0
      %v2176 = vmax.f32 %v2036, 0.0
      %v2177 = vmax.f32 %v2038, 0.0
      %v2178 = vmax.f32 %v2040, 0.0
      %v2179 = vmax.f32 %v2042, 0.0
      %v2180 = vmax.f32 %v2044, 0.0
      %v2181 = vmax.f32 %v2046, 0.0
      %v2182 = vmax.f32 %v2048, 0.0
      %v2183 = vmax.f32 %v2050, 0.0
      %v2184 = vmax.f32 %v2052, 0.0
      %v2185 = vmax.f32 %v2054, 0.0
      %v2186 = vmax.f32 %v2056, 0.0
      %v2187 = vmax.f32 %v2058, 0.0
      %v2188 = vpack.c.bf16 %v2061, %v2060
      %v2189 = vpack.c.bf16 %v2063, %v2062
      %v2190 = vpack.c.bf16 %v2065, %v2064
      %v2191 = vpack.c.bf16 %v2067, %v2066
      %v2192 = vpack.c.bf16 %v2069, %v2068
      %v2193 = vpack.c.bf16 %v2071, %v2070
      %v2194 = vpack.c.bf16 %v2073, %v2072
      %v2195 = vpack.c.bf16 %v2075, %v2074
      %v2196 = vpack.c.bf16 %v2077, %v2076
      %v2197 = vpack.c.bf16 %v2079, %v2078
      %v2198 = vpack.c.bf16 %v2081, %v2080
      %v2199 = vpack.c.bf16 %v2083, %v2082
      %v2200 = vpack.c.bf16 %v2085, %v2084
      %v2201 = vpack.c.bf16 %v2087, %v2086
      %v2202 = vpack.c.bf16 %v2089, %v2088
      %v2203 = vpack.c.bf16 %v2091, %v2090
      %v2204 = vpack.c.bf16 %v2093, %v2092
      %v2205 = vpack.c.bf16 %v2095, %v2094
      %v2206 = vpack.c.bf16 %v2097, %v2096
      %v2207 = vpack.c.bf16 %v2099, %v2098
      %v2208 = vpack.c.bf16 %v2101, %v2100
      %v2209 = vpack.c.bf16 %v2103, %v2102
      %v2210 = vpack.c.bf16 %v2105, %v2104
      %v2211 = vpack.c.bf16 %v2107, %v2106
      %v2212 = vpack.c.bf16 %v2109, %v2108
      %v2213 = vpack.c.bf16 %v2111, %v2110
      %v2214 = vpack.c.bf16 %v2113, %v2112
      %v2215 = vpack.c.bf16 %v2115, %v2114
      %v2216 = vpack.c.bf16 %v2117, %v2116
      %v2217 = vpack.c.bf16 %v2119, %v2118
      %v2218 = vpack.c.bf16 %v2121, %v2120
      %v2219 = vpack.c.bf16 %v2123, %v2122
      %v2220 = vpack.c.bf16 %v2125, %v2124
      %v2221 = vpack.c.bf16 %v2127, %v2126
      %v2222 = vpack.c.bf16 %v2129, %v2128
      %v2223 = vpack.c.bf16 %v2131, %v2130
      %v2224 = vpack.c.bf16 %v2133, %v2132
      %v2225 = vpack.c.bf16 %v2135, %v2134
      %v2226 = vpack.c.bf16 %v2137, %v2136
      %v2227 = vpack.c.bf16 %v2139, %v2138
      %v2228 = vpack.c.bf16 %v2141, %v2140
      %v2229 = vpack.c.bf16 %v2143, %v2142
      %v2230 = vpack.c.bf16 %v2145, %v2144
      %v2231 = vpack.c.bf16 %v2147, %v2146
      %v2232 = vpack.c.bf16 %v2149, %v2148
      %v2233 = vpack.c.bf16 %v2151, %v2150
      %v2234 = vpack.c.bf16 %v2153, %v2152
      %v2235 = vpack.c.bf16 %v2155, %v2154
      %v2236 = vpack.c.bf16 %v2157, %v2156
      %v2237 = vpack.c.bf16 %v2159, %v2158
      %v2238 = vpack.c.bf16 %v2161, %v2160
      %v2239 = vpack.c.bf16 %v2163, %v2162
      %v2240 = vpack.c.bf16 %v2165, %v2164
      %v2241 = vpack.c.bf16 %v2167, %v2166
      %v2242 = vpack.c.bf16 %v2169, %v2168
      %v2243 = vpack.c.bf16 %v2171, %v2170
      %v2244 = vpack.c.bf16 %v2173, %v2172
      %v2245 = vpack.c.bf16 %v2175, %v2174
      %v2246 = vpack.c.bf16 %v2177, %v2176
      %v2247 = vpack.c.bf16 %v2179, %v2178
      %v2248 = vpack.c.bf16 %v2181, %v2180
      %v2249 = vpack.c.bf16 %v2183, %v2182
      %v2250 = vpack.c.bf16 %v2185, %v2184
      %v2251 = vpack.c.bf16 %v2187, %v2186
      %v2316 = vunpack.c.l.b16 %v2188
      %v2317 = vunpack.c.h.b16 %v2188
      %v2318 = vunpack.c.l.b16 %v2189
      %v2319 = vunpack.c.h.b16 %v2189
      %v2320 = vunpack.c.l.b16 %v2190
      %v2321 = vunpack.c.h.b16 %v2190
      %v2322 = vunpack.c.l.b16 %v2191
      %v2323 = vunpack.c.h.b16 %v2191
      %v2324 = vunpack.c.l.b16 %v2192
      %v2325 = vunpack.c.h.b16 %v2192
      %v2326 = vunpack.c.l.b16 %v2193
      %v2327 = vunpack.c.h.b16 %v2193
      %v2328 = vunpack.c.l.b16 %v2194
      %v2329 = vunpack.c.h.b16 %v2194
      %v2330 = vunpack.c.l.b16 %v2195
      %v2331 = vunpack.c.h.b16 %v2195
      %v2332 = vunpack.c.l.b16 %v2196
      %v2333 = vunpack.c.h.b16 %v2196
      %v2334 = vunpack.c.l.b16 %v2197
      %v2335 = vunpack.c.h.b16 %v2197
      %v2336 = vunpack.c.l.b16 %v2198
      %v2337 = vunpack.c.h.b16 %v2198
      %v2338 = vunpack.c.l.b16 %v2199
      %v2339 = vunpack.c.h.b16 %v2199
      %v2340 = vunpack.c.l.b16 %v2200
      %v2341 = vunpack.c.h.b16 %v2200
      %v2342 = vunpack.c.l.b16 %v2201
      %v2343 = vunpack.c.h.b16 %v2201
      %v2344 = vunpack.c.l.b16 %v2202
      %v2345 = vunpack.c.h.b16 %v2202
      %v2346 = vunpack.c.l.b16 %v2203
      %v2347 = vunpack.c.h.b16 %v2203
      %v2348 = vunpack.c.l.b16 %v2204
      %v2349 = vunpack.c.h.b16 %v2204
      %v2350 = vunpack.c.l.b16 %v2205
      %v2351 = vunpack.c.h.b16 %v2205
      %v2352 = vunpack.c.l.b16 %v2206
      %v2353 = vunpack.c.h.b16 %v2206
      %v2354 = vunpack.c.l.b16 %v2207
      %v2355 = vunpack.c.h.b16 %v2207
      %v2356 = vunpack.c.l.b16 %v2208
      %v2357 = vunpack.c.h.b16 %v2208
      %v2358 = vunpack.c.l.b16 %v2209
      %v2359 = vunpack.c.h.b16 %v2209
      %v2360 = vunpack.c.l.b16 %v2210
      %v2361 = vunpack.c.h.b16 %v2210
      %v2362 = vunpack.c.l.b16 %v2211
      %v2363 = vunpack.c.h.b16 %v2211
      %v2364 = vunpack.c.l.b16 %v2212
      %v2365 = vunpack.c.h.b16 %v2212
      %v2366 = vunpack.c.l.b16 %v2213
      %v2367 = vunpack.c.h.b16 %v2213
      %v2368 = vunpack.c.l.b16 %v2214
      %v2369 = vunpack.c.h.b16 %v2214
      %v2370 = vunpack.c.l.b16 %v2215
      %v2371 = vunpack.c.h.b16 %v2215
      %v2372 = vunpack.c.l.b16 %v2216
      %v2373 = vunpack.c.h.b16 %v2216
      %v2374 = vunpack.c.l.b16 %v2217
      %v2375 = vunpack.c.h.b16 %v2217
      %v2376 = vunpack.c.l.b16 %v2218
      %v2377 = vunpack.c.h.b16 %v2218
      %v2378 = vunpack.c.l.b16 %v2219
      %v2379 = vunpack.c.h.b16 %v2219
      %v2380 = vunpack.c.l.b16 %v2220
      %v2381 = vunpack.c.h.b16 %v2220
      %v2382 = vunpack.c.l.b16 %v2221
      %v2383 = vunpack.c.h.b16 %v2221
      %v2384 = vunpack.c.l.b16 %v2222
      %v2385 = vunpack.c.h.b16 %v2222
      %v2386 = vunpack.c.l.b16 %v2223
      %v2387 = vunpack.c.h.b16 %v2223
      %v2388 = vunpack.c.l.b16 %v2224
      %v2389 = vunpack.c.h.b16 %v2224
      %v2390 = vunpack.c.l.b16 %v2225
      %v2391 = vunpack.c.h.b16 %v2225
      %v2392 = vunpack.c.l.b16 %v2226
      %v2393 = vunpack.c.h.b16 %v2226
      %v2394 = vunpack.c.l.b16 %v2227
      %v2395 = vunpack.c.h.b16 %v2227
      %v2396 = vunpack.c.l.b16 %v2228
      %v2397 = vunpack.c.h.b16 %v2228
      %v2398 = vunpack.c.l.b16 %v2229
      %v2399 = vunpack.c.h.b16 %v2229
      %v2400 = vunpack.c.l.b16 %v2230
      %v2401 = vunpack.c.h.b16 %v2230
      %v2402 = vunpack.c.l.b16 %v2231
      %v2403 = vunpack.c.h.b16 %v2231
      %v2404 = vunpack.c.l.b16 %v2232
      %v2405 = vunpack.c.h.b16 %v2232
      %v2406 = vunpack.c.l.b16 %v2233
      %v2407 = vunpack.c.h.b16 %v2233
      %v2408 = vunpack.c.l.b16 %v2234
      %v2409 = vunpack.c.h.b16 %v2234
      %v2410 = vunpack.c.l.b16 %v2235
      %v2411 = vunpack.c.h.b16 %v2235
      %v2412 = vunpack.c.l.b16 %v2236
      %v2413 = vunpack.c.h.b16 %v2236
      %v2414 = vunpack.c.l.b16 %v2237
      %v2415 = vunpack.c.h.b16 %v2237
      %v2416 = vunpack.c.l.b16 %v2238
      %v2417 = vunpack.c.h.b16 %v2238
      %v2418 = vunpack.c.l.b16 %v2239
      %v2419 = vunpack.c.h.b16 %v2239
      %v2420 = vunpack.c.l.b16 %v2240
      %v2421 = vunpack.c.h.b16 %v2240
      %v2422 = vunpack.c.l.b16 %v2241
      %v2423 = vunpack.c.h.b16 %v2241
      %v2424 = vunpack.c.l.b16 %v2242
      %v2425 = vunpack.c.h.b16 %v2242
      %v2426 = vunpack.c.l.b16 %v2243
      %v2427 = vunpack.c.h.b16 %v2243
      %v2428 = vunpack.c.l.b16 %v2244
      %v2429 = vunpack.c.h.b16 %v2244
      %v2430 = vunpack.c.l.b16 %v2245
      %v2431 = vunpack.c.h.b16 %v2245
      %v2432 = vunpack.c.l.b16 %v2246
      %v2433 = vunpack.c.h.b16 %v2246
      %v2434 = vunpack.c.l.b16 %v2247
      %v2435 = vunpack.c.h.b16 %v2247
      %v2436 = vunpack.c.l.b16 %v2248
      %v2437 = vunpack.c.h.b16 %v2248
      %v2438 = vunpack.c.l.b16 %v2249
      %v2439 = vunpack.c.h.b16 %v2249
      %v2440 = vunpack.c.l.b16 %v2250
      %v2441 = vunpack.c.h.b16 %v2250
      %v2442 = vunpack.c.l.b16 %v2251
      %v2443 = vunpack.c.h.b16 %v2251
      %v2444 = vpack.c.b16 %v2316, %v2316
      %v2445 = vpack.c.b16 %v2317, %v2317
      %v2446 = vpack.c.b16 %v2318, %v2318
      %v2447 = vpack.c.b16 %v2319, %v2319
      %v2448 = vpack.c.b16 %v2320, %v2320
      %v2449 = vpack.c.b16 %v2321, %v2321
      %v2450 = vpack.c.b16 %v2322, %v2322
      %v2451 = vpack.c.b16 %v2323, %v2323
      %v2452 = vpack.c.b16 %v2324, %v2324
      %v2453 = vpack.c.b16 %v2325, %v2325
      %v2454 = vpack.c.b16 %v2326, %v2326
      %v2455 = vpack.c.b16 %v2327, %v2327
      %v2456 = vpack.c.b16 %v2328, %v2328
      %v2457 = vpack.c.b16 %v2329, %v2329
      %v2458 = vpack.c.b16 %v2330, %v2330
      %v2459 = vpack.c.b16 %v2331, %v2331
      %v2460 = vpack.c.b16 %v2332, %v2332
      %v2461 = vpack.c.b16 %v2333, %v2333
      %v2462 = vpack.c.b16 %v2334, %v2334
      %v2463 = vpack.c.b16 %v2335, %v2335
      %v2464 = vpack.c.b16 %v2336, %v2336
      %v2465 = vpack.c.b16 %v2337, %v2337
      %v2466 = vpack.c.b16 %v2338, %v2338
      %v2467 = vpack.c.b16 %v2339, %v2339
      %v2468 = vpack.c.b16 %v2340, %v2340
      %v2469 = vpack.c.b16 %v2341, %v2341
      %v2470 = vpack.c.b16 %v2342, %v2342
      %v2471 = vpack.c.b16 %v2343, %v2343
      %v2472 = vpack.c.b16 %v2344, %v2344
      %v2473 = vpack.c.b16 %v2345, %v2345
      %v2474 = vpack.c.b16 %v2346, %v2346
      %v2475 = vpack.c.b16 %v2347, %v2347
      %v2476 = vpack.c.b16 %v2348, %v2348
      %v2477 = vpack.c.b16 %v2349, %v2349
      %v2478 = vpack.c.b16 %v2350, %v2350
      %v2479 = vpack.c.b16 %v2351, %v2351
      %v2480 = vpack.c.b16 %v2352, %v2352
      %v2481 = vpack.c.b16 %v2353, %v2353
      %v2482 = vpack.c.b16 %v2354, %v2354
      %v2483 = vpack.c.b16 %v2355, %v2355
      %v2484 = vpack.c.b16 %v2356, %v2356
      %v2485 = vpack.c.b16 %v2357, %v2357
      %v2486 = vpack.c.b16 %v2358, %v2358
      %v2487 = vpack.c.b16 %v2359, %v2359
      %v2488 = vpack.c.b16 %v2360, %v2360
      %v2489 = vpack.c.b16 %v2361, %v2361
      %v2490 = vpack.c.b16 %v2362, %v2362
      %v2491 = vpack.c.b16 %v2363, %v2363
      %v2492 = vpack.c.b16 %v2364, %v2364
      %v2493 = vpack.c.b16 %v2365, %v2365
      %v2494 = vpack.c.b16 %v2366, %v2366
      %v2495 = vpack.c.b16 %v2367, %v2367
      %v2496 = vpack.c.b16 %v2368, %v2368
      %v2497 = vpack.c.b16 %v2369, %v2369
      %v2498 = vpack.c.b16 %v2370, %v2370
      %v2499 = vpack.c.b16 %v2371, %v2371
      %v2500 = vpack.c.b16 %v2372, %v2372
      %v2501 = vpack.c.b16 %v2373, %v2373
      %v2502 = vpack.c.b16 %v2374, %v2374
      %v2503 = vpack.c.b16 %v2375, %v2375
      %v2504 = vpack.c.b16 %v2376, %v2376
      %v2505 = vpack.c.b16 %v2377, %v2377
      %v2506 = vpack.c.b16 %v2378, %v2378
      %v2507 = vpack.c.b16 %v2379, %v2379
      %v2508 = vpack.c.b16 %v2380, %v2380
      %v2509 = vpack.c.b16 %v2381, %v2381
      %v2510 = vpack.c.b16 %v2382, %v2382
      %v2511 = vpack.c.b16 %v2383, %v2383
      %v2512 = vpack.c.b16 %v2384, %v2384
      %v2513 = vpack.c.b16 %v2385, %v2385
      %v2514 = vpack.c.b16 %v2386, %v2386
      %v2515 = vpack.c.b16 %v2387, %v2387
      %v2516 = vpack.c.b16 %v2388, %v2388
      %v2517 = vpack.c.b16 %v2389, %v2389
      %v2518 = vpack.c.b16 %v2390, %v2390
      %v2519 = vpack.c.b16 %v2391, %v2391
      %v2520 = vpack.c.b16 %v2392, %v2392
      %v2521 = vpack.c.b16 %v2393, %v2393
      %v2522 = vpack.c.b16 %v2394, %v2394
      %v2523 = vpack.c.b16 %v2395, %v2395
      %v2524 = vpack.c.b16 %v2396, %v2396
      %v2525 = vpack.c.b16 %v2397, %v2397
      %v2526 = vpack.c.b16 %v2398, %v2398
      %v2527 = vpack.c.b16 %v2399, %v2399
      %v2528 = vpack.c.b16 %v2400, %v2400
      %v2529 = vpack.c.b16 %v2401, %v2401
      %v2530 = vpack.c.b16 %v2402, %v2402
      %v2531 = vpack.c.b16 %v2403, %v2403
      %v2532 = vpack.c.b16 %v2404, %v2404
      %v2533 = vpack.c.b16 %v2405, %v2405
      %v2534 = vpack.c.b16 %v2406, %v2406
      %v2535 = vpack.c.b16 %v2407, %v2407
      %v2536 = vpack.c.b16 %v2408, %v2408
      %v2537 = vpack.c.b16 %v2409, %v2409
      %v2538 = vpack.c.b16 %v2410, %v2410
      %v2539 = vpack.c.b16 %v2411, %v2411
      %v2540 = vpack.c.b16 %v2412, %v2412
      %v2541 = vpack.c.b16 %v2413, %v2413
      %v2542 = vpack.c.b16 %v2414, %v2414
      %v2543 = vpack.c.b16 %v2415, %v2415
      %v2544 = vpack.c.b16 %v2416, %v2416
      %v2545 = vpack.c.b16 %v2417, %v2417
      %v2546 = vpack.c.b16 %v2418, %v2418
      %v2547 = vpack.c.b16 %v2419, %v2419
      %v2548 = vpack.c.b16 %v2420, %v2420
      %v2549 = vpack.c.b16 %v2421, %v2421
      %v2550 = vpack.c.b16 %v2422, %v2422
      %v2551 = vpack.c.b16 %v2423, %v2423
      %v2552 = vpack.c.b16 %v2424, %v2424
      %v2553 = vpack.c.b16 %v2425, %v2425
      %v2554 = vpack.c.b16 %v2426, %v2426
      %v2555 = vpack.c.b16 %v2427, %v2427
      %v2556 = vpack.c.b16 %v2428, %v2428
      %v2557 = vpack.c.b16 %v2429, %v2429
      %v2558 = vpack.c.b16 %v2430, %v2430
      %v2559 = vpack.c.b16 %v2431, %v2431
      %v2560 = vpack.c.b16 %v2432, %v2432
      %v2561 = vpack.c.b16 %v2433, %v2433
      %v2562 = vpack.c.b16 %v2434, %v2434
      %v2563 = vpack.c.b16 %v2435, %v2435
      %v2564 = vpack.c.b16 %v2436, %v2436
      %v2565 = vpack.c.b16 %v2437, %v2437
      %v2566 = vpack.c.b16 %v2438, %v2438
      %v2567 = vpack.c.b16 %v2439, %v2439
      %v2568 = vpack.c.b16 %v2440, %v2440
      %v2569 = vpack.c.b16 %v2441, %v2441
      %v2570 = vpack.c.b16 %v2442, %v2442
      %v2571 = vpack.c.b16 %v2443, %v2443
      %2700 = vst [vmem:[%s234] sm:$0xf] %v2444
      %2701 = vst [vmem:[%s234 + $0x4] sm:$0xf] %v2445
      %2702 = vst [vmem:[%s234 + $0x8] sm:$0xf] %v2446
      %2703 = vst [vmem:[%s234 + $0xc] sm:$0xf] %v2447
      %2704 = vst [vmem:[%s234 + $0x10] sm:$0xf] %v2448
      %2705 = vst [vmem:[%s234 + $0x14] sm:$0xf] %v2449
      %2706 = vst [vmem:[%s234 + $0x18] sm:$0xf] %v2450
      %2707 = vst [vmem:[%s234 + $0x1c] sm:$0xf] %v2451
      %2708 = vst [vmem:[%s234 + $0x20] sm:$0xf] %v2452
      %2709 = vst [vmem:[%s234 + $0x24] sm:$0xf] %v2453
      %2710 = vst [vmem:[%s234 + $0x28] sm:$0xf] %v2454
      %2711 = vst [vmem:[%s234 + $0x2c] sm:$0xf] %v2455
      %2712 = vst [vmem:[%s234 + $0x30] sm:$0xf] %v2456
      %2713 = vst [vmem:[%s234 + $0x34] sm:$0xf] %v2457
      %2714 = vst [vmem:[%s234 + $0x38] sm:$0xf] %v2458
      %2715 = vst [vmem:[%s234 + $0x3c] sm:$0xf] %v2459
      %2716 = vst [vmem:[%s234 + $0x40] sm:$0xf] %v2460
      %2717 = vst [vmem:[%s234 + $0x44] sm:$0xf] %v2461
      %2718 = vst [vmem:[%s234 + $0x48] sm:$0xf] %v2462
      %2719 = vst [vmem:[%s234 + $0x4c] sm:$0xf] %v2463
      %2720 = vst [vmem:[%s234 + $0x50] sm:$0xf] %v2464
      %2721 = vst [vmem:[%s234 + $0x54] sm:$0xf] %v2465
      %2722 = vst [vmem:[%s234 + $0x58] sm:$0xf] %v2466
      %2723 = vst [vmem:[%s234 + $0x5c] sm:$0xf] %v2467
      %2724 = vst [vmem:[%s234 + $0x60] sm:$0xf] %v2468
      %2725 = vst [vmem:[%s234 + $0x64] sm:$0xf] %v2469
      %2726 = vst [vmem:[%s234 + $0x68] sm:$0xf] %v2470
      %2727 = vst [vmem:[%s234 + $0x6c] sm:$0xf] %v2471
      %2728 = vst [vmem:[%s234 + $0x70] sm:$0xf] %v2472
      %2729 = vst [vmem:[%s234 + $0x74] sm:$0xf] %v2473
      %2730 = vst [vmem:[%s234 + $0x78] sm:$0xf] %v2474
      %2731 = vst [vmem:[%s234 + $0x7c] sm:$0xf] %v2475
      %2732 = vst [vmem:[%s234 + $0x80] sm:$0xf] %v2476
      %2733 = vst [vmem:[%s234 + $0x84] sm:$0xf] %v2477
      %2734 = vst [vmem:[%s234 + $0x88] sm:$0xf] %v2478
      %2735 = vst [vmem:[%s234 + $0x8c] sm:$0xf] %v2479
      %2736 = vst [vmem:[%s234 + $0x90] sm:$0xf] %v2480
      %2737 = vst [vmem:[%s234 + $0x94] sm:$0xf] %v2481
      %2738 = vst [vmem:[%s234 + $0x98] sm:$0xf] %v2482
      %2739 = vst [vmem:[%s234 + $0x9c] sm:$0xf] %v2483
      %2740 = vst [vmem:[%s234 + $0xa0] sm:$0xf] %v2484
      %2741 = vst [vmem:[%s234 + $0xa4] sm:$0xf] %v2485
      %2742 = vst [vmem:[%s234 + $0xa8] sm:$0xf] %v2486
      %2743 = vst [vmem:[%s234 + $0xac] sm:$0xf] %v2487
      %2744 = vst [vmem:[%s234 + $0xb0] sm:$0xf] %v2488
      %2745 = vst [vmem:[%s234 + $0xb4] sm:$0xf] %v2489
      %2746 = vst [vmem:[%s234 + $0xb8] sm:$0xf] %v2490
      %2747 = vst [vmem:[%s234 + $0xbc] sm:$0xf] %v2491
      %2748 = vst [vmem:[%s234 + $0xc0] sm:$0xf] %v2492
      %2749 = vst [vmem:[%s234 + $0xc4] sm:$0xf] %v2493
      %2750 = vst [vmem:[%s234 + $0xc8] sm:$0xf] %v2494
      %2751 = vst [vmem:[%s234 + $0xcc] sm:$0xf] %v2495
      %2752 = vst [vmem:[%s234 + $0xd0] sm:$0xf] %v2496
      %2753 = vst [vmem:[%s234 + $0xd4] sm:$0xf] %v2497
      %2754 = vst [vmem:[%s234 + $0xd8] sm:$0xf] %v2498
      %2755 = vst [vmem:[%s234 + $0xdc] sm:$0xf] %v2499
      %2756 = vst [vmem:[%s234 + $0xe0] sm:$0xf] %v2500
      %2757 = vst [vmem:[%s234 + $0xe4] sm:$0xf] %v2501
      %2758 = vst [vmem:[%s234 + $0xe8] sm:$0xf] %v2502
      %2759 = vst [vmem:[%s234 + $0xec] sm:$0xf] %v2503
      %2760 = vst [vmem:[%s234 + $0xf0] sm:$0xf] %v2504
      %2761 = vst [vmem:[%s234 + $0xf4] sm:$0xf] %v2505
      %2762 = vst [vmem:[%s234 + $0xf8] sm:$0xf] %v2506
      %2763 = vst [vmem:[%s234 + $0xfc] sm:$0xf] %v2507
      %2764 = vst [vmem:[%s234 + $0x100] sm:$0xf] %v2508
      %2765 = vst [vmem:[%s234 + $0x104] sm:$0xf] %v2509
      %2766 = vst [vmem:[%s234 + $0x108] sm:$0xf] %v2510
      %2767 = vst [vmem:[%s234 + $0x10c] sm:$0xf] %v2511
      %2768 = vst [vmem:[%s234 + $0x110] sm:$0xf] %v2512
      %2769 = vst [vmem:[%s234 + $0x114] sm:$0xf] %v2513
      %2770 = vst [vmem:[%s234 + $0x118] sm:$0xf] %v2514
      %2771 = vst [vmem:[%s234 + $0x11c] sm:$0xf] %v2515
      %2772 = vst [vmem:[%s234 + $0x120] sm:$0xf] %v2516
      %2773 = vst [vmem:[%s234 + $0x124] sm:$0xf] %v2517
      %2774 = vst [vmem:[%s234 + $0x128] sm:$0xf] %v2518
      %2775 = vst [vmem:[%s234 + $0x12c] sm:$0xf] %v2519
      %2776 = vst [vmem:[%s234 + $0x130] sm:$0xf] %v2520
      %2777 = vst [vmem:[%s234 + $0x134] sm:$0xf] %v2521
      %2778 = vst [vmem:[%s234 + $0x138] sm:$0xf] %v2522
      %2779 = vst [vmem:[%s234 + $0x13c] sm:$0xf] %v2523
      %2780 = vst [vmem:[%s234 + $0x140] sm:$0xf] %v2524
      %2781 = vst [vmem:[%s234 + $0x144] sm:$0xf] %v2525
      %2782 = vst [vmem:[%s234 + $0x148] sm:$0xf] %v2526
      %2783 = vst [vmem:[%s234 + $0x14c] sm:$0xf] %v2527
      %2784 = vst [vmem:[%s234 + $0x150] sm:$0xf] %v2528
      %2785 = vst [vmem:[%s234 + $0x154] sm:$0xf] %v2529
      %2786 = vst [vmem:[%s234 + $0x158] sm:$0xf] %v2530
      %2787 = vst [vmem:[%s234 + $0x15c] sm:$0xf] %v2531
      %2788 = vst [vmem:[%s234 + $0x160] sm:$0xf] %v2532
      %2789 = vst [vmem:[%s234 + $0x164] sm:$0xf] %v2533
      %2790 = vst [vmem:[%s234 + $0x168] sm:$0xf] %v2534
      %2791 = vst [vmem:[%s234 + $0x16c] sm:$0xf] %v2535
      %2792 = vst [vmem:[%s234 + $0x170] sm:$0xf] %v2536
      %2793 = vst [vmem:[%s234 + $0x174] sm:$0xf] %v2537
      %2794 = vst [vmem:[%s234 + $0x178] sm:$0xf] %v2538
      %2795 = vst [vmem:[%s234 + $0x17c] sm:$0xf] %v2539
      %2796 = vst [vmem:[%s234 + $0x180] sm:$0xf] %v2540
      %2797 = vst [vmem:[%s234 + $0x184] sm:$0xf] %v2541
      %2798 = vst [vmem:[%s234 + $0x188] sm:$0xf] %v2542
      %2799 = vst [vmem:[%s234 + $0x18c] sm:$0xf] %v2543
      %2800 = vst [vmem:[%s234 + $0x190] sm:$0xf] %v2544
      %2801 = vst [vmem:[%s234 + $0x194] sm:$0xf] %v2545
      %2802 = vst [vmem:[%s234 + $0x198] sm:$0xf] %v2546
      %2803 = vst [vmem:[%s234 + $0x19c] sm:$0xf] %v2547
      %2804 = vst [vmem:[%s234 + $0x1a0] sm:$0xf] %v2548
      %2805 = vst [vmem:[%s234 + $0x1a4] sm:$0xf] %v2549
      %2806 = vst [vmem:[%s234 + $0x1a8] sm:$0xf] %v2550
      %2807 = vst [vmem:[%s234 + $0x1ac] sm:$0xf] %v2551
      %2808 = vst [vmem:[%s234 + $0x1b0] sm:$0xf] %v2552
      %2809 = vst [vmem:[%s234 + $0x1b4] sm:$0xf] %v2553
      %2810 = vst [vmem:[%s234 + $0x1b8] sm:$0xf] %v2554
      %2811 = vst [vmem:[%s234 + $0x1bc] sm:$0xf] %v2555
      %2812 = vst [vmem:[%s234 + $0x1c0] sm:$0xf] %v2556
      %2813 = vst [vmem:[%s234 + $0x1c4] sm:$0xf] %v2557
      %2814 = vst [vmem:[%s234 + $0x1c8] sm:$0xf] %v2558
      %2815 = vst [vmem:[%s234 + $0x1cc] sm:$0xf] %v2559
      %2816 = vst [vmem:[%s234 + $0x1d0] sm:$0xf] %v2560
      %2817 = vst [vmem:[%s234 + $0x1d4] sm:$0xf] %v2561
      %2818 = vst [vmem:[%s234 + $0x1d8] sm:$0xf] %v2562
      %2819 = vst [vmem:[%s234 + $0x1dc] sm:$0xf] %v2563
      %2820 = vst [vmem:[%s234 + $0x1e0] sm:$0xf] %v2564
      %2821 = vst [vmem:[%s234 + $0x1e4] sm:$0xf] %v2565
      %2822 = vst [vmem:[%s234 + $0x1e8] sm:$0xf] %v2566
      %2823 = vst [vmem:[%s234 + $0x1ec] sm:$0xf] %v2567
      %2824 = vst [vmem:[%s234 + $0x1f0] sm:$0xf] %v2568
      %2825 = vst [vmem:[%s234 + $0x1f4] sm:$0xf] %v2569
      %2826 = vst [vmem:[%s234 + $0x1f8] sm:$0xf] %v2570
      %2827 = vst [vmem:[%s234 + $0x1fc] sm:$0xf] %v2571
      %v2828 = vpack.c.bf16 %v1807, %v1805
      %v2829 = vpack.c.bf16 %v1811, %v1809
      %v2830 = vpack.c.bf16 %v1815, %v1813
      %v2831 = vpack.c.bf16 %v1819, %v1817
      %v2832 = vpack.c.bf16 %v1823, %v1821
      %v2833 = vpack.c.bf16 %v1827, %v1825
      %v2834 = vpack.c.bf16 %v1831, %v1829
      %v2835 = vpack.c.bf16 %v1835, %v1833
      %v2836 = vpack.c.bf16 %v1839, %v1837
      %v2837 = vpack.c.bf16 %v1843, %v1841
      %v2838 = vpack.c.bf16 %v1847, %v1845
      %v2839 = vpack.c.bf16 %v1851, %v1849
      %v2840 = vpack.c.bf16 %v1855, %v1853
      %v2841 = vpack.c.bf16 %v1859, %v1857
      %v2842 = vpack.c.bf16 %v1863, %v1861
      %v2843 = vpack.c.bf16 %v1867, %v1865
      %v2844 = vpack.c.bf16 %v1871, %v1869
      %v2845 = vpack.c.bf16 %v1875, %v1873
      %v2846 = vpack.c.bf16 %v1879, %v1877
      %v2847 = vpack.c.bf16 %v1883, %v1881
      %v2848 = vpack.c.bf16 %v1887, %v1885
      %v2849 = vpack.c.bf16 %v1891, %v1889
      %v2850 = vpack.c.bf16 %v1895, %v1893
      %v2851 = vpack.c.bf16 %v1899, %v1897
      %v2852 = vpack.c.bf16 %v1903, %v1901
      %v2853 = vpack.c.bf16 %v1907, %v1905
      %v2854 = vpack.c.bf16 %v1911, %v1909
      %v2855 = vpack.c.bf16 %v1915, %v1913
      %v2856 = vpack.c.bf16 %v1919, %v1917
      %v2857 = vpack.c.bf16 %v1923, %v1921
      %v2858 = vpack.c.bf16 %v1927, %v1925
      %v2859 = vpack.c.bf16 %v1931, %v1929
      %v2860 = vpack.c.bf16 %v1935, %v1933
      %v2861 = vpack.c.bf16 %v1939, %v1937
      %v2862 = vpack.c.bf16 %v1943, %v1941
      %v2863 = vpack.c.bf16 %v1947, %v1945
      %v2864 = vpack.c.bf16 %v1951, %v1949
      %v2865 = vpack.c.bf16 %v1955, %v1953
      %v2866 = vpack.c.bf16 %v1959, %v1957
      %v2867 = vpack.c.bf16 %v1963, %v1961
      %v2868 = vpack.c.bf16 %v1967, %v1965
      %v2869 = vpack.c.bf16 %v1971, %v1969
      %v2870 = vpack.c.bf16 %v1975, %v1973
      %v2871 = vpack.c.bf16 %v1979, %v1977
      %v2872 = vpack.c.bf16 %v1983, %v1981
      %v2873 = vpack.c.bf16 %v1987, %v1985
      %v2874 = vpack.c.bf16 %v1991, %v1989
      %v2875 = vpack.c.bf16 %v1995, %v1993
      %v2876 = vpack.c.bf16 %v1999, %v1997
      %v2877 = vpack.c.bf16 %v2003, %v2001
      %v2878 = vpack.c.bf16 %v2007, %v2005
      %v2879 = vpack.c.bf16 %v2011, %v2009
      %v2880 = vpack.c.bf16 %v2015, %v2013
      %v2881 = vpack.c.bf16 %v2019, %v2017
      %v2882 = vpack.c.bf16 %v2023, %v2021
      %v2883 = vpack.c.bf16 %v2027, %v2025
      %v2884 = vpack.c.bf16 %v2031, %v2029
      %v2885 = vpack.c.bf16 %v2035, %v2033
      %v2886 = vpack.c.bf16 %v2039, %v2037
      %v2887 = vpack.c.bf16 %v2043, %v2041
      %v2888 = vpack.c.bf16 %v2047, %v2045
      %v2889 = vpack.c.bf16 %v2051, %v2049
      %v2890 = vpack.c.bf16 %v2055, %v2053
      %v2891 = vpack.c.bf16 %v2059, %v2057
      %v2956 = vunpack.c.l.b16 %v2828
      %v2957 = vunpack.c.h.b16 %v2828
      %v2958 = vunpack.c.l.b16 %v2829
      %v2959 = vunpack.c.h.b16 %v2829
      %v2960 = vunpack.c.l.b16 %v2830
      %v2961 = vunpack.c.h.b16 %v2830
      %v2962 = vunpack.c.l.b16 %v2831
      %v2963 = vunpack.c.h.b16 %v2831
      %v2964 = vunpack.c.l.b16 %v2832
      %v2965 = vunpack.c.h.b16 %v2832
      %v2966 = vunpack.c.l.b16 %v2833
      %v2967 = vunpack.c.h.b16 %v2833
      %v2968 = vunpack.c.l.b16 %v2834
      %v2969 = vunpack.c.h.b16 %v2834
      %v2970 = vunpack.c.l.b16 %v2835
      %v2971 = vunpack.c.h.b16 %v2835
      %v2972 = vunpack.c.l.b16 %v2836
      %v2973 = vunpack.c.h.b16 %v2836
      %v2974 = vunpack.c.l.b16 %v2837
      %v2975 = vunpack.c.h.b16 %v2837
      %v2976 = vunpack.c.l.b16 %v2838
      %v2977 = vunpack.c.h.b16 %v2838
      %v2978 = vunpack.c.l.b16 %v2839
      %v2979 = vunpack.c.h.b16 %v2839
      %v2980 = vunpack.c.l.b16 %v2840
      %v2981 = vunpack.c.h.b16 %v2840
      %v2982 = vunpack.c.l.b16 %v2841
      %v2983 = vunpack.c.h.b16 %v2841
      %v2984 = vunpack.c.l.b16 %v2842
      %v2985 = vunpack.c.h.b16 %v2842
      %v2986 = vunpack.c.l.b16 %v2843
      %v2987 = vunpack.c.h.b16 %v2843
      %v2988 = vunpack.c.l.b16 %v2844
      %v2989 = vunpack.c.h.b16 %v2844
      %v2990 = vunpack.c.l.b16 %v2845
      %v2991 = vunpack.c.h.b16 %v2845
      %v2992 = vunpack.c.l.b16 %v2846
      %v2993 = vunpack.c.h.b16 %v2846
      %v2994 = vunpack.c.l.b16 %v2847
      %v2995 = vunpack.c.h.b16 %v2847
      %v2996 = vunpack.c.l.b16 %v2848
      %v2997 = vunpack.c.h.b16 %v2848
      %v2998 = vunpack.c.l.b16 %v2849
      %v2999 = vunpack.c.h.b16 %v2849
      %v3000 = vunpack.c.l.b16 %v2850
      %v3001 = vunpack.c.h.b16 %v2850
      %v3002 = vunpack.c.l.b16 %v2851
      %v3003 = vunpack.c.h.b16 %v2851
      %v3004 = vunpack.c.l.b16 %v2852
      %v3005 = vunpack.c.h.b16 %v2852
      %v3006 = vunpack.c.l.b16 %v2853
      %v3007 = vunpack.c.h.b16 %v2853
      %v3008 = vunpack.c.l.b16 %v2854
      %v3009 = vunpack.c.h.b16 %v2854
      %v3010 = vunpack.c.l.b16 %v2855
      %v3011 = vunpack.c.h.b16 %v2855
      %v3012 = vunpack.c.l.b16 %v2856
      %v3013 = vunpack.c.h.b16 %v2856
      %v3014 = vunpack.c.l.b16 %v2857
      %v3015 = vunpack.c.h.b16 %v2857
      %v3016 = vunpack.c.l.b16 %v2858
      %v3017 = vunpack.c.h.b16 %v2858
      %v3018 = vunpack.c.l.b16 %v2859
      %v3019 = vunpack.c.h.b16 %v2859
      %v3020 = vunpack.c.l.b16 %v2860
      %v3021 = vunpack.c.h.b16 %v2860
      %v3022 = vunpack.c.l.b16 %v2861
      %v3023 = vunpack.c.h.b16 %v2861
      %v3024 = vunpack.c.l.b16 %v2862
      %v3025 = vunpack.c.h.b16 %v2862
      %v3026 = vunpack.c.l.b16 %v2863
      %v3027 = vunpack.c.h.b16 %v2863
      %v3028 = vunpack.c.l.b16 %v2864
      %v3029 = vunpack.c.h.b16 %v2864
      %v3030 = vunpack.c.l.b16 %v2865
      %v3031 = vunpack.c.h.b16 %v2865
      %v3032 = vunpack.c.l.b16 %v2866
      %v3033 = vunpack.c.h.b16 %v2866
      %v3034 = vunpack.c.l.b16 %v2867
      %v3035 = vunpack.c.h.b16 %v2867
      %v3036 = vunpack.c.l.b16 %v2868
      %v3037 = vunpack.c.h.b16 %v2868
      %v3038 = vunpack.c.l.b16 %v2869
      %v3039 = vunpack.c.h.b16 %v2869
      %v3040 = vunpack.c.l.b16 %v2870
      %v3041 = vunpack.c.h.b16 %v2870
      %v3042 = vunpack.c.l.b16 %v2871
      %v3043 = vunpack.c.h.b16 %v2871
      %v3044 = vunpack.c.l.b16 %v2872
      %v3045 = vunpack.c.h.b16 %v2872
      %v3046 = vunpack.c.l.b16 %v2873
      %v3047 = vunpack.c.h.b16 %v2873
      %v3048 = vunpack.c.l.b16 %v2874
      %v3049 = vunpack.c.h.b16 %v2874
      %v3050 = vunpack.c.l.b16 %v2875
      %v3051 = vunpack.c.h.b16 %v2875
      %v3052 = vunpack.c.l.b16 %v2876
      %v3053 = vunpack.c.h.b16 %v2876
      %v3054 = vunpack.c.l.b16 %v2877
      %v3055 = vunpack.c.h.b16 %v2877
      %v3056 = vunpack.c.l.b16 %v2878
      %v3057 = vunpack.c.h.b16 %v2878
      %v3058 = vunpack.c.l.b16 %v2879
      %v3059 = vunpack.c.h.b16 %v2879
      %v3060 = vunpack.c.l.b16 %v2880
      %v3061 = vunpack.c.h.b16 %v2880
      %v3062 = vunpack.c.l.b16 %v2881
      %v3063 = vunpack.c.h.b16 %v2881
      %v3064 = vunpack.c.l.b16 %v2882
      %v3065 = vunpack.c.h.b16 %v2882
      %v3066 = vunpack.c.l.b16 %v2883
      %v3067 = vunpack.c.h.b16 %v2883
      %v3068 = vunpack.c.l.b16 %v2884
      %v3069 = vunpack.c.h.b16 %v2884
      %v3070 = vunpack.c.l.b16 %v2885
      %v3071 = vunpack.c.h.b16 %v2885
      %v3072 = vunpack.c.l.b16 %v2886
      %v3073 = vunpack.c.h.b16 %v2886
      %v3074 = vunpack.c.l.b16 %v2887
      %v3075 = vunpack.c.h.b16 %v2887
      %v3076 = vunpack.c.l.b16 %v2888
      %v3077 = vunpack.c.h.b16 %v2888
      %v3078 = vunpack.c.l.b16 %v2889
      %v3079 = vunpack.c.h.b16 %v2889
      %v3080 = vunpack.c.l.b16 %v2890
      %v3081 = vunpack.c.h.b16 %v2890
      %v3082 = vunpack.c.l.b16 %v2891
      %v3083 = vunpack.c.h.b16 %v2891
      %v3084 = vpack.c.b16 %v2956, %v2956
      %v3085 = vpack.c.b16 %v2957, %v2957
      %v3086 = vpack.c.b16 %v2958, %v2958
      %v3087 = vpack.c.b16 %v2959, %v2959
      %v3088 = vpack.c.b16 %v2960, %v2960
      %v3089 = vpack.c.b16 %v2961, %v2961
      %v3090 = vpack.c.b16 %v2962, %v2962
      %v3091 = vpack.c.b16 %v2963, %v2963
      %v3092 = vpack.c.b16 %v2964, %v2964
      %v3093 = vpack.c.b16 %v2965, %v2965
      %v3094 = vpack.c.b16 %v2966, %v2966
      %v3095 = vpack.c.b16 %v2967, %v2967
      %v3096 = vpack.c.b16 %v2968, %v2968
      %v3097 = vpack.c.b16 %v2969, %v2969
      %v3098 = vpack.c.b16 %v2970, %v2970
      %v3099 = vpack.c.b16 %v2971, %v2971
      %v3100 = vpack.c.b16 %v2972, %v2972
      %v3101 = vpack.c.b16 %v2973, %v2973
      %v3102 = vpack.c.b16 %v2974, %v2974
      %v3103 = vpack.c.b16 %v2975, %v2975
      %v3104 = vpack.c.b16 %v2976, %v2976
      %v3105 = vpack.c.b16 %v2977, %v2977
      %v3106 = vpack.c.b16 %v2978, %v2978
      %v3107 = vpack.c.b16 %v2979, %v2979
      %v3108 = vpack.c.b16 %v2980, %v2980
      %v3109 = vpack.c.b16 %v2981, %v2981
      %v3110 = vpack.c.b16 %v2982, %v2982
      %v3111 = vpack.c.b16 %v2983, %v2983
      %v3112 = vpack.c.b16 %v2984, %v2984
      %v3113 = vpack.c.b16 %v2985, %v2985
      %v3114 = vpack.c.b16 %v2986, %v2986
      %v3115 = vpack.c.b16 %v2987, %v2987
      %v3116 = vpack.c.b16 %v2988, %v2988
      %v3117 = vpack.c.b16 %v2989, %v2989
      %v3118 = vpack.c.b16 %v2990, %v2990
      %v3119 = vpack.c.b16 %v2991, %v2991
      %v3120 = vpack.c.b16 %v2992, %v2992
      %v3121 = vpack.c.b16 %v2993, %v2993
      %v3122 = vpack.c.b16 %v2994, %v2994
      %v3123 = vpack.c.b16 %v2995, %v2995
      %v3124 = vpack.c.b16 %v2996, %v2996
      %v3125 = vpack.c.b16 %v2997, %v2997
      %v3126 = vpack.c.b16 %v2998, %v2998
      %v3127 = vpack.c.b16 %v2999, %v2999
      %v3128 = vpack.c.b16 %v3000, %v3000
      %v3129 = vpack.c.b16 %v3001, %v3001
      %v3130 = vpack.c.b16 %v3002, %v3002
      %v3131 = vpack.c.b16 %v3003, %v3003
      %v3132 = vpack.c.b16 %v3004, %v3004
      %v3133 = vpack.c.b16 %v3005, %v3005
      %v3134 = vpack.c.b16 %v3006, %v3006
      %v3135 = vpack.c.b16 %v3007, %v3007
      %v3136 = vpack.c.b16 %v3008, %v3008
      %v3137 = vpack.c.b16 %v3009, %v3009
      %v3138 = vpack.c.b16 %v3010, %v3010
      %v3139 = vpack.c.b16 %v3011, %v3011
      %v3140 = vpack.c.b16 %v3012, %v3012
      %v3141 = vpack.c.b16 %v3013, %v3013
      %v3142 = vpack.c.b16 %v3014, %v3014
      %v3143 = vpack.c.b16 %v3015, %v3015
      %v3144 = vpack.c.b16 %v3016, %v3016
      %v3145 = vpack.c.b16 %v3017, %v3017
      %v3146 = vpack.c.b16 %v3018, %v3018
      %v3147 = vpack.c.b16 %v3019, %v3019
      %v3148 = vpack.c.b16 %v3020, %v3020
      %v3149 = vpack.c.b16 %v3021, %v3021
      %v3150 = vpack.c.b16 %v3022, %v3022
      %v3151 = vpack.c.b16 %v3023, %v3023
      %v3152 = vpack.c.b16 %v3024, %v3024
      %v3153 = vpack.c.b16 %v3025, %v3025
      %v3154 = vpack.c.b16 %v3026, %v3026
      %v3155 = vpack.c.b16 %v3027, %v3027
      %v3156 = vpack.c.b16 %v3028, %v3028
      %v3157 = vpack.c.b16 %v3029, %v3029
      %v3158 = vpack.c.b16 %v3030, %v3030
      %v3159 = vpack.c.b16 %v3031, %v3031
      %v3160 = vpack.c.b16 %v3032, %v3032
      %v3161 = vpack.c.b16 %v3033, %v3033
      %v3162 = vpack.c.b16 %v3034, %v3034
      %v3163 = vpack.c.b16 %v3035, %v3035
      %v3164 = vpack.c.b16 %v3036, %v3036
      %v3165 = vpack.c.b16 %v3037, %v3037
      %v3166 = vpack.c.b16 %v3038, %v3038
      %v3167 = vpack.c.b16 %v3039, %v3039
      %v3168 = vpack.c.b16 %v3040, %v3040
      %v3169 = vpack.c.b16 %v3041, %v3041
      %v3170 = vpack.c.b16 %v3042, %v3042
      %v3171 = vpack.c.b16 %v3043, %v3043
      %v3172 = vpack.c.b16 %v3044, %v3044
      %v3173 = vpack.c.b16 %v3045, %v3045
      %v3174 = vpack.c.b16 %v3046, %v3046
      %v3175 = vpack.c.b16 %v3047, %v3047
      %v3176 = vpack.c.b16 %v3048, %v3048
      %v3177 = vpack.c.b16 %v3049, %v3049
      %v3178 = vpack.c.b16 %v3050, %v3050
      %v3179 = vpack.c.b16 %v3051, %v3051
      %v3180 = vpack.c.b16 %v3052, %v3052
      %v3181 = vpack.c.b16 %v3053, %v3053
      %v3182 = vpack.c.b16 %v3054, %v3054
      %v3183 = vpack.c.b16 %v3055, %v3055
      %v3184 = vpack.c.b16 %v3056, %v3056
      %v3185 = vpack.c.b16 %v3057, %v3057
      %v3186 = vpack.c.b16 %v3058, %v3058
      %v3187 = vpack.c.b16 %v3059, %v3059
      %v3188 = vpack.c.b16 %v3060, %v3060
      %v3189 = vpack.c.b16 %v3061, %v3061
      %v3190 = vpack.c.b16 %v3062, %v3062
      %v3191 = vpack.c.b16 %v3063, %v3063
      %v3192 = vpack.c.b16 %v3064, %v3064
      %v3193 = vpack.c.b16 %v3065, %v3065
      %v3194 = vpack.c.b16 %v3066, %v3066
      %v3195 = vpack.c.b16 %v3067, %v3067
      %v3196 = vpack.c.b16 %v3068, %v3068
      %v3197 = vpack.c.b16 %v3069, %v3069
      %v3198 = vpack.c.b16 %v3070, %v3070
      %v3199 = vpack.c.b16 %v3071, %v3071
      %v3200 = vpack.c.b16 %v3072, %v3072
      %v3201 = vpack.c.b16 %v3073, %v3073
      %v3202 = vpack.c.b16 %v3074, %v3074
      %v3203 = vpack.c.b16 %v3075, %v3075
      %v3204 = vpack.c.b16 %v3076, %v3076
      %v3205 = vpack.c.b16 %v3077, %v3077
      %v3206 = vpack.c.b16 %v3078, %v3078
      %v3207 = vpack.c.b16 %v3079, %v3079
      %v3208 = vpack.c.b16 %v3080, %v3080
      %v3209 = vpack.c.b16 %v3081, %v3081
      %v3210 = vpack.c.b16 %v3082, %v3082
      %v3211 = vpack.c.b16 %v3083, %v3083
      %3340 = vst [vmem:[%s240] sm:$0xf] %v3084
      %3341 = vst [vmem:[%s240 + $0x4] sm:$0xf] %v3085
      %3342 = vst [vmem:[%s240 + $0x8] sm:$0xf] %v3086
      %3343 = vst [vmem:[%s240 + $0xc] sm:$0xf] %v3087
      %3344 = vst [vmem:[%s240 + $0x10] sm:$0xf] %v3088
      %3345 = vst [vmem:[%s240 + $0x14] sm:$0xf] %v3089
      %3346 = vst [vmem:[%s240 + $0x18] sm:$0xf] %v3090
      %3347 = vst [vmem:[%s240 + $0x1c] sm:$0xf] %v3091
      %3348 = vst [vmem:[%s240 + $0x20] sm:$0xf] %v3092
      %3349 = vst [vmem:[%s240 + $0x24] sm:$0xf] %v3093
      %3350 = vst [vmem:[%s240 + $0x28] sm:$0xf] %v3094
      %3351 = vst [vmem:[%s240 + $0x2c] sm:$0xf] %v3095
      %3352 = vst [vmem:[%s240 + $0x30] sm:$0xf] %v3096
      %3353 = vst [vmem:[%s240 + $0x34] sm:$0xf] %v3097
      %3354 = vst [vmem:[%s240 + $0x38] sm:$0xf] %v3098
      %3355 = vst [vmem:[%s240 + $0x3c] sm:$0xf] %v3099
      %3356 = vst [vmem:[%s240 + $0x40] sm:$0xf] %v3100
      %3357 = vst [vmem:[%s240 + $0x44] sm:$0xf] %v3101
      %3358 = vst [vmem:[%s240 + $0x48] sm:$0xf] %v3102
      %3359 = vst [vmem:[%s240 + $0x4c] sm:$0xf] %v3103
      %3360 = vst [vmem:[%s240 + $0x50] sm:$0xf] %v3104
      %3361 = vst [vmem:[%s240 + $0x54] sm:$0xf] %v3105
      %3362 = vst [vmem:[%s240 + $0x58] sm:$0xf] %v3106
      %3363 = vst [vmem:[%s240 + $0x5c] sm:$0xf] %v3107
      %3364 = vst [vmem:[%s240 + $0x60] sm:$0xf] %v3108
      %3365 = vst [vmem:[%s240 + $0x64] sm:$0xf] %v3109
      %3366 = vst [vmem:[%s240 + $0x68] sm:$0xf] %v3110
      %3367 = vst [vmem:[%s240 + $0x6c] sm:$0xf] %v3111
      %3368 = vst [vmem:[%s240 + $0x70] sm:$0xf] %v3112
      %3369 = vst [vmem:[%s240 + $0x74] sm:$0xf] %v3113
      %3370 = vst [vmem:[%s240 + $0x78] sm:$0xf] %v3114
      %3371 = vst [vmem:[%s240 + $0x7c] sm:$0xf] %v3115
      %3372 = vst [vmem:[%s240 + $0x80] sm:$0xf] %v3116
      %3373 = vst [vmem:[%s240 + $0x84] sm:$0xf] %v3117
      %3374 = vst [vmem:[%s240 + $0x88] sm:$0xf] %v3118
      %3375 = vst [vmem:[%s240 + $0x8c] sm:$0xf] %v3119
      %3376 = vst [vmem:[%s240 + $0x90] sm:$0xf] %v3120
      %3377 = vst [vmem:[%s240 + $0x94] sm:$0xf] %v3121
      %3378 = vst [vmem:[%s240 + $0x98] sm:$0xf] %v3122
      %3379 = vst [vmem:[%s240 + $0x9c] sm:$0xf] %v3123
      %3380 = vst [vmem:[%s240 + $0xa0] sm:$0xf] %v3124
      %3381 = vst [vmem:[%s240 + $0xa4] sm:$0xf] %v3125
      %3382 = vst [vmem:[%s240 + $0xa8] sm:$0xf] %v3126
      %3383 = vst [vmem:[%s240 + $0xac] sm:$0xf] %v3127
      %3384 = vst [vmem:[%s240 + $0xb0] sm:$0xf] %v3128
      %3385 = vst [vmem:[%s240 + $0xb4] sm:$0xf] %v3129
      %3386 = vst [vmem:[%s240 + $0xb8] sm:$0xf] %v3130
      %3387 = vst [vmem:[%s240 + $0xbc] sm:$0xf] %v3131
      %3388 = vst [vmem:[%s240 + $0xc0] sm:$0xf] %v3132
      %3389 = vst [vmem:[%s240 + $0xc4] sm:$0xf] %v3133
      %3390 = vst [vmem:[%s240 + $0xc8] sm:$0xf] %v3134
      %3391 = vst [vmem:[%s240 + $0xcc] sm:$0xf] %v3135
      %3392 = vst [vmem:[%s240 + $0xd0] sm:$0xf] %v3136
      %3393 = vst [vmem:[%s240 + $0xd4] sm:$0xf] %v3137
      %3394 = vst [vmem:[%s240 + $0xd8] sm:$0xf] %v3138
      %3395 = vst [vmem:[%s240 + $0xdc] sm:$0xf] %v3139
      %3396 = vst [vmem:[%s240 + $0xe0] sm:$0xf] %v3140
      %3397 = vst [vmem:[%s240 + $0xe4] sm:$0xf] %v3141
      %3398 = vst [vmem:[%s240 + $0xe8] sm:$0xf] %v3142
      %3399 = vst [vmem:[%s240 + $0xec] sm:$0xf] %v3143
      %3400 = vst [vmem:[%s240 + $0xf0] sm:$0xf] %v3144
      %3401 = vst [vmem:[%s240 + $0xf4] sm:$0xf] %v3145
      %3402 = vst [vmem:[%s240 + $0xf8] sm:$0xf] %v3146
      %3403 = vst [vmem:[%s240 + $0xfc] sm:$0xf] %v3147
      %3404 = vst [vmem:[%s240 + $0x100] sm:$0xf] %v3148
      %3405 = vst [vmem:[%s240 + $0x104] sm:$0xf] %v3149
      %3406 = vst [vmem:[%s240 + $0x108] sm:$0xf] %v3150
      %3407 = vst [vmem:[%s240 + $0x10c] sm:$0xf] %v3151
      %3408 = vst [vmem:[%s240 + $0x110] sm:$0xf] %v3152
      %3409 = vst [vmem:[%s240 + $0x114] sm:$0xf] %v3153
      %3410 = vst [vmem:[%s240 + $0x118] sm:$0xf] %v3154
      %3411 = vst [vmem:[%s240 + $0x11c] sm:$0xf] %v3155
      %3412 = vst [vmem:[%s240 + $0x120] sm:$0xf] %v3156
      %3413 = vst [vmem:[%s240 + $0x124] sm:$0xf] %v3157
      %3414 = vst [vmem:[%s240 + $0x128] sm:$0xf] %v3158
      %3415 = vst [vmem:[%s240 + $0x12c] sm:$0xf] %v3159
      %3416 = vst [vmem:[%s240 + $0x130] sm:$0xf] %v3160
      %3417 = vst [vmem:[%s240 + $0x134] sm:$0xf] %v3161
      %3418 = vst [vmem:[%s240 + $0x138] sm:$0xf] %v3162
      %3419 = vst [vmem:[%s240 + $0x13c] sm:$0xf] %v3163
      %3420 = vst [vmem:[%s240 + $0x140] sm:$0xf] %v3164
      %3421 = vst [vmem:[%s240 + $0x144] sm:$0xf] %v3165
      %3422 = vst [vmem:[%s240 + $0x148] sm:$0xf] %v3166
      %3423 = vst [vmem:[%s240 + $0x14c] sm:$0xf] %v3167
      %3424 = vst [vmem:[%s240 + $0x150] sm:$0xf] %v3168
      %3425 = vst [vmem:[%s240 + $0x154] sm:$0xf] %v3169
      %3426 = vst [vmem:[%s240 + $0x158] sm:$0xf] %v3170
      %3427 = vst [vmem:[%s240 + $0x15c] sm:$0xf] %v3171
      %3428 = vst [vmem:[%s240 + $0x160] sm:$0xf] %v3172
      %3429 = vst [vmem:[%s240 + $0x164] sm:$0xf] %v3173
      %3430 = vst [vmem:[%s240 + $0x168] sm:$0xf] %v3174
      %3431 = vst [vmem:[%s240 + $0x16c] sm:$0xf] %v3175
      %3432 = vst [vmem:[%s240 + $0x170] sm:$0xf] %v3176
      %3433 = vst [vmem:[%s240 + $0x174] sm:$0xf] %v3177
      %3434 = vst [vmem:[%s240 + $0x178] sm:$0xf] %v3178
      %3435 = vst [vmem:[%s240 + $0x17c] sm:$0xf] %v3179
      %3436 = vst [vmem:[%s240 + $0x180] sm:$0xf] %v3180
      %3437 = vst [vmem:[%s240 + $0x184] sm:$0xf] %v3181
      %3438 = vst [vmem:[%s240 + $0x188] sm:$0xf] %v3182
      %3439 = vst [vmem:[%s240 + $0x18c] sm:$0xf] %v3183
      %3440 = vst [vmem:[%s240 + $0x190] sm:$0xf] %v3184
      %3441 = vst [vmem:[%s240 + $0x194] sm:$0xf] %v3185
      %3442 = vst [vmem:[%s240 + $0x198] sm:$0xf] %v3186
      %3443 = vst [vmem:[%s240 + $0x19c] sm:$0xf] %v3187
      %3444 = vst [vmem:[%s240 + $0x1a0] sm:$0xf] %v3188
      %3445 = vst [vmem:[%s240 + $0x1a4] sm:$0xf] %v3189
      %3446 = vst [vmem:[%s240 + $0x1a8] sm:$0xf] %v3190
      %3447 = vst [vmem:[%s240 + $0x1ac] sm:$0xf] %v3191
      %3448 = vst [vmem:[%s240 + $0x1b0] sm:$0xf] %v3192
      %3449 = vst [vmem:[%s240 + $0x1b4] sm:$0xf] %v3193
      %3450 = vst [vmem:[%s240 + $0x1b8] sm:$0xf] %v3194
      %3451 = vst [vmem:[%s240 + $0x1bc] sm:$0xf] %v3195
      %3452 = vst [vmem:[%s240 + $0x1c0] sm:$0xf] %v3196
      %3453 = vst [vmem:[%s240 + $0x1c4] sm:$0xf] %v3197
      %3454 = vst [vmem:[%s240 + $0x1c8] sm:$0xf] %v3198
      %3455 = vst [vmem:[%s240 + $0x1cc] sm:$0xf] %v3199
      %3456 = vst [vmem:[%s240 + $0x1d0] sm:$0xf] %v3200
      %3457 = vst [vmem:[%s240 + $0x1d4] sm:$0xf] %v3201
      %3458 = vst [vmem:[%s240 + $0x1d8] sm:$0xf] %v3202
      %3459 = vst [vmem:[%s240 + $0x1dc] sm:$0xf] %v3203
      %3460 = vst [vmem:[%s240 + $0x1e0] sm:$0xf] %v3204
      %3461 = vst [vmem:[%s240 + $0x1e4] sm:$0xf] %v3205
      %3462 = vst [vmem:[%s240 + $0x1e8] sm:$0xf] %v3206
      %3463 = vst [vmem:[%s240 + $0x1ec] sm:$0xf] %v3207
      %3464 = vst [vmem:[%s240 + $0x1f0] sm:$0xf] %v3208
      %3465 = vst [vmem:[%s240 + $0x1f4] sm:$0xf] %v3209
      %3466 = vst [vmem:[%s240 + $0x1f8] sm:$0xf] %v3210
      %3467 = vst [vmem:[%s240 + $0x1fc] sm:$0xf] %v3211
      %s3468 = smul.u32 128, %s17
      %p3469 = scmp.lt.s32.totalorder %s3468, 255
      %s3470 = scalar_select %p3469, %s3468, 255
      %s3471 = smul.addr %s3470, 4
      %s3472 = scalar_lea.vmem %s4, %s3471
      %s3473 = smul.u32 128, %s17
      %p3474 = scmp.lt.s32.totalorder %s3473, 255
      %s3475 = scalar_select %p3474, %s3473, 255
      %s3476 = smul.addr %s3475, 4
      %s3477 = scalar_lea.vmem %s5, %s3476
      // Predicated region
      $region37: #{_lambda_.9} parent=35 // pred_check
        %p3478 = pneg %p124
      $region38: #{_lambda_.9} parent=35 // pred_check_branch
        %3480 = sbr.rel (%p3478) target = $region40
      $region39: #{_lambda_.9} parent=35 // pred_region
        %s3481 = smul.u32 128, %s17
      $region40: #{_lambda_.9} parent=35 // pred_fallthru
        _
      // Predicated region
      $region41: #{_lambda_.9} parent=35 // pred_check
        %p3482 = pneg %p150
      $region42: #{_lambda_.9} parent=35 // pred_check_branch
        %3484 = sbr.rel (%p3482) target = $region44
      $region43: #{_lambda_.9} parent=35 // pred_region
        %s3485 = smul.u32 128, %s17
      $region44: #{_lambda_.9} parent=35 // pred_fallthru
        _
    $region36: #{_lambda_.9} parent=5 // pred_fallthru
      _
    %p3486 = scmp.le.s32.totalorder 2, %s12
    // Predicated region
    $region45: #{_lambda_.9} parent=5 // pred_check
      %p3487 = pneg %p3486
    $region46: #{_lambda_.9} parent=5 // pred_check_branch
      %3489 = sbr.rel (%p3487) target = $region48
    $region47: #{_lambda_.9} parent=5 // pred_region
      %s3490 = ssub.s32 %s12, 2
      // Predicated region
      $region49: #{_lambda_.9} parent=47 // pred_check
        %p3491 = pneg %p130
      $region50: #{_lambda_.9} parent=47 // pred_check_branch
        %3493 = sbr.rel (%p3491) target = $region52
      $region51: #{_lambda_.9} parent=47 // pred_region
        %s3494 = smul.u32 128, %s18
        %p3495 = scmp.lt.s32.totalorder %s3494, 255
        %s3496 = scalar_select %p3495, %s3494, 255
        %s3497 = smul.addr %s3496, 4
        %s3498 = scalar_lea.vmem %s4, %s3497
      $region52: #{_lambda_.9} parent=47 // pred_fallthru
        _
      // Predicated region
      $region53: #{_lambda_.9} parent=47 // pred_check
        %p3499 = pneg %p156
      $region54: #{_lambda_.9} parent=47 // pred_check_branch
        %3501 = sbr.rel (%p3499) target = $region56
      $region55: #{_lambda_.9} parent=47 // pred_region
        %s3502 = smul.u32 128, %s18
        %p3503 = scmp.lt.s32.totalorder %s3502, 255
        %s3504 = scalar_select %p3503, %s3502, 255
        %s3505 = smul.addr %s3504, 4
        %s3506 = scalar_lea.vmem %s5, %s3505
      $region56: #{_lambda_.9} parent=47 // pred_fallthru
        _
    $region48: #{_lambda_.9} parent=5 // pred_fallthru
      _
  $region6: #{_lambda_.9} parent=0 // loop_footer
    %s16 = sadd.s32 1, %s12
  $region7: #{_lambda_.9} parent=0 // loop_footer_branch
    %11 = sbr.rel target = $region3
  $region8: #{_lambda_.9} parent=0 // loop_exit
    _

// kernel: _lambda_.10
$region0: #{_lambda_.10}
  #allocation0 [shape = 'u32[]', space=smem, size = 0x4, offset = 0x4, fixed_abs, tag = 'smem constant byte address 0x4 - core index']
  #allocation1 [shape = 'u32[144,128]{1,0:T(1,128)}', space=vmem, size = 0x12000, scoped, tag = 'internal scratch']
  %s0 = inlined_call_operand.vmem [shape: bf16[2048,128], index: 0, kind: input, shape index: {}]
  %s1 = inlined_call_operand.vmem [shape: bf16[128,128], index: 1, kind: input, shape index: {}]
  %s2 = inlined_call_operand.vmem [shape: f32[2,2,128], index: 2, kind: output, shape index: {}]
  %s3 = sld [smem:[#allocation0]]
  $region45: #{_lambda_.10} parent=0
    _
  %s5 = ssub.s32 1, %s3
  %s6 = scalar_select 0, %s5, %s3
  loop: start=0, step=1, limit=4
  $region2: #{_lambda_.10} parent=0 // loop_pre_header
    _
  $region3: #{_lambda_.10} parent=0 // loop_header
    %s8 = sphi 0, %s12
    %p9 = scmp.ge.s32.totalorder %s8, 4
    %s15 = sphi 0, %s27
    %s16 = sphi 0, %s23
    %s17 = sphi 0, %s15
    %s18 = sphi 0, %s16
    %s19 = sphi 0, %s17
    %s20 = sphi 0, %s18
    %s32 = sphi 0, %s34
    %s35 = sphi 0, %s32
    %s36 = sphi 0, %s35
    %s52 = sphi 0, %s36
    %s56 = sphi 0, %s56
    %s58 = sphi 0, %s56
    %s59 = sphi 0, %s58
    %s73 = sphi 0, %s59
    %s79 = sphi 0, %s81
    %s82 = sphi 0, %s79
    %s83 = sphi 0, %s82
    %s99 = sphi 0, %s83
  $region4: #{_lambda_.10} parent=0 // loop_header_branch
    %11 = sbr.rel (%p9) target = $region8
  $region5: #{_lambda_.10} parent=0 // loop_body
    %s13 = ssub.s32 %s8, 1
    %s14 = ssub.s32 %s8, 2
    %s21 = sadd.s32 1, %s16
    %p22 = scmp.ge.s32.totalorder %s21, 1
    %s23 = scalar_select %p22, 0, %s21
    %s24 = sadd.s32 1, %s15
    %s25 = scalar_select %p22, %s24, %s15
    %p26 = scmp.ge.s32.totalorder %s25, 2
    %s27 = scalar_select %p26, 0, %s25
    %s28 = sadd.s32 %s15, %s16
    %s29 = sadd.s32 %s27, %s23
    %s30 = ssub.s32 %s28, %s29
    %p31 = scmp.eq.s32.totalorder %s30, 0
    %s33 = sadd.s32 %s32, 1
    %s34 = scalar_select %p31, %s32, %s33
    %p37 = pneg %p31
    %p38 = scmp.eq.s32.totalorder %s8, 1
    %p39 = por %p37, %p38
    %p40 = scmp.ne.s32.totalorder %s32, %s35
    %p41 = scmp.eq.s32.totalorder %s8, 0
    %p42 = por %p40, %p41
    %p43 = scmp.ne.s32.totalorder %s32, %s35
    %p44 = scmp.eq.s32.totalorder %s13, 1
    %p45 = por %p43, %p44
    %p46 = scmp.ne.s32.totalorder %s35, %s36
    %p47 = scmp.eq.s32.totalorder %s13, 0
    %p48 = por %p46, %p47
    %p49 = scmp.ne.s32.totalorder %s35, %s36
    %p50 = scmp.eq.s32.totalorder %s14, 1
    %p51 = por %p49, %p50
    %p53 = scmp.ne.s32.totalorder %s36, %s52
    %p54 = scmp.eq.s32.totalorder %s14, 0
    %p55 = por %p53, %p54
    %s57 = sadd.s32 %s56, 1
    %p60 = scmp.eq.s32.totalorder %s8, 1
    %p61 = scmp.ne.s32.totalorder %s56, %s58
    %p62 = scmp.eq.s32.totalorder %s8, 0
    %p63 = por %p61, %p62
    %p64 = scmp.ne.s32.totalorder %s56, %s58
    %p65 = scmp.eq.s32.totalorder %s13, 1
    %p66 = por %p64, %p65
    %p67 = scmp.ne.s32.totalorder %s58, %s59
    %p68 = scmp.eq.s32.totalorder %s13, 0
    %p69 = por %p67, %p68
    %p70 = scmp.ne.s32.totalorder %s58, %s59
    %p71 = scmp.eq.s32.totalorder %s14, 1
    %p72 = por %p70, %p71
    %p74 = scmp.ne.s32.totalorder %s59, %s73
    %p75 = scmp.eq.s32.totalorder %s14, 0
    %p76 = por %p74, %p75
    %s77 = ssub.s32 %s15, %s27
    %p78 = scmp.eq.s32.totalorder %s77, 0
    %s80 = sadd.s32 %s79, 1
    %s81 = scalar_select %p78, %s79, %s80
    %p84 = pneg %p78
    %p85 = scmp.eq.s32.totalorder %s8, 1
    %p86 = por %p84, %p85
    %p87 = scmp.ne.s32.totalorder %s79, %s82
    %p88 = scmp.eq.s32.totalorder %s8, 0
    %p89 = por %p87, %p88
    %p90 = scmp.ne.s32.totalorder %s79, %s82
    %p91 = scmp.eq.s32.totalorder %s13, 1
    %p92 = por %p90, %p91
    %p93 = scmp.ne.s32.totalorder %s82, %s83
    %p94 = scmp.eq.s32.totalorder %s13, 0
    %p95 = por %p93, %p94
    %p96 = scmp.ne.s32.totalorder %s82, %s83
    %p97 = scmp.eq.s32.totalorder %s14, 1
    %p98 = por %p96, %p97
    %p100 = scmp.ne.s32.totalorder %s83, %s99
    %p101 = scmp.eq.s32.totalorder %s14, 0
    %p102 = por %p100, %p101
    %p103 = scmp.le.s32.totalorder 1, %s8
    %p104 = scmp.lt.s32.totalorder %s8, 3
    %p105 = pnand %p103, %p104
    %p106 = pneg %p105
    // Predicated region
    $region9: #{_lambda_.10} parent=5 // pred_check
      _
    $region10: #{_lambda_.10} parent=5 // pred_check_branch
      %108 = sbr.rel (%p105) target = $region12
    $region11: #{_lambda_.10} parent=5 // pred_region
      %s109 = ssub.s32 %s8, 1
      // Predicated region
      $region13: #{_lambda_.10} parent=11 // pred_check
        %p110 = pneg %p69
      $region14: #{_lambda_.10} parent=11 // pred_check_branch
        %112 = sbr.rel (%p110) target = $region16
      $region15: #{_lambda_.10} parent=11 // pred_region
        _
      $region16: #{_lambda_.10} parent=11 // pred_fallthru
        _
    $region12: #{_lambda_.10} parent=5 // pred_fallthru
      _
    %p113 = scmp.lt.s32.totalorder %s8, 2
    // Predicated region
    $region17: #{_lambda_.10} parent=5 // pred_check
      %p114 = pneg %p113
    $region18: #{_lambda_.10} parent=5 // pred_check_branch
      %116 = sbr.rel (%p114) target = $region20
    $region19: #{_lambda_.10} parent=5 // pred_region
      // Predicated region
      $region21: #{_lambda_.10} parent=19 // pred_check
        %p117 = pneg %p42
      $region22: #{_lambda_.10} parent=19 // pred_check_branch
        %119 = sbr.rel (%p117) target = $region24
      $region23: #{_lambda_.10} parent=19 // pred_region
        %s120 = sadd.s32 %s15, %s16
        %s121 = smul.u32 128, %s120
        %p122 = scmp.lt.s32.totalorder %s121, 255
        %s123 = scalar_select %p122, %s121, 255
        %s124 = smul.addr %s123, 4
        %s125 = scalar_lea.vmem %s0, %s124
        %s126 = sadd.s32 %s15, %s16
        %s127 = smul.u32 128, %s126
      $region24: #{_lambda_.10} parent=19 // pred_fallthru
        _
    $region20: #{_lambda_.10} parent=5 // pred_fallthru
      _
    %p128 = scmp.le.s32.totalorder 1, %s8
    %p129 = scmp.lt.s32.totalorder %s8, 3
    %p130 = pnand %p128, %p129
    %p131 = pneg %p130
    // Predicated region
    $region25: #{_lambda_.10} parent=5 // pred_check
      _
    $region26: #{_lambda_.10} parent=5 // pred_check_branch
      %133 = sbr.rel (%p130) target = $region28
    $region27: #{_lambda_.10} parent=5 // pred_region
      %s134 = ssub.s32 %s8, 1
      %s135 = sadd.s32 %s17, %s18
      %s136 = smul.u32 128, %s135
      %p137 = scmp.lt.s32.totalorder %s136, 255
      %s138 = scalar_select %p137, %s136, 255
      %s139 = smul.addr %s138, 4
      %s140 = scalar_lea.vmem %s0, %s139
      %p141 = pneg %p48
      %p142 = pneg %p45
      %p143 = pneg %p69
      %p144 = pneg %p66
      %p145 = pneg %p95
      %p146 = pneg %p92
      %p147 = scmp.lt.s32.totalorder %s17, 1
      %s148 = scalar_select %p147, %s17, 1
      %s149 = smul.addr %s148, 2
      %s150 = scalar_lea.vmem %s2, %s149
      %s151 = sadd.s32 %s17, %s18
      %s152 = smul.u32 128, %s151
      %p153 = scmp.lt.s32.totalorder %s152, 255
      %s154 = scalar_select %p153, %s152, 255
      %s155 = smul.addr %s154, 4
      %s156 = scalar_lea.vmem %s0, %s155
      %s157 = sadd.s32 %s17, %s18
      %s158 = smul.u32 128, %s157
      %p159 = scmp.lt.s32.totalorder %s17, 1
      %s160 = scalar_select %p159, %s17, 1
      %s161 = smul.addr %s160, 2
      %s162 = scalar_lea.vmem %s2, %s161
      %p164 = scmp.eq.s32.totalorder %s18, 0
      // Predicated region
      $region29: #{_lambda_.10} parent=27 // pred_check
        %p165 = pneg %p164
      $region30: #{_lambda_.10} parent=27 // pred_check_branch
        %167 = sbr.rel (%p165) target = $region32
      $region31: #{_lambda_.10} parent=27 // pred_region
        %168 = vst [vmem:[%s162] sm:$0x3] 0.0
      $region32: #{_lambda_.10} parent=27 // pred_fallthru
        _
      %v169 = vld [vmem:[%s156] sm:$0xf]
      %v170 = vld [vmem:[%s156 + $0x4] sm:$0xf]
      %v171 = vld [vmem:[%s156 + $0x8] sm:$0xf]
      %v172 = vld [vmem:[%s156 + $0xc] sm:$0xf]
      %v173 = vld [vmem:[%s156 + $0x10] sm:$0xf]
      %v174 = vld [vmem:[%s156 + $0x14] sm:$0xf]
      %v175 = vld [vmem:[%s156 + $0x18] sm:$0xf]
      %v176 = vld [vmem:[%s156 + $0x1c] sm:$0xf]
      %v177 = vld [vmem:[%s156 + $0x20] sm:$0xf]
      %v178 = vld [vmem:[%s156 + $0x24] sm:$0xf]
      %v179 = vld [vmem:[%s156 + $0x28] sm:$0xf]
      %v180 = vld [vmem:[%s156 + $0x2c] sm:$0xf]
      %v181 = vld [vmem:[%s156 + $0x30] sm:$0xf]
      %v182 = vld [vmem:[%s156 + $0x34] sm:$0xf]
      %v183 = vld [vmem:[%s156 + $0x38] sm:$0xf]
      %v184 = vld [vmem:[%s156 + $0x3c] sm:$0xf]
      %v185 = vld [vmem:[%s156 + $0x40] sm:$0xf]
      %v186 = vld [vmem:[%s156 + $0x44] sm:$0xf]
      %v187 = vld [vmem:[%s156 + $0x48] sm:$0xf]
      %v188 = vld [vmem:[%s156 + $0x4c] sm:$0xf]
      %v189 = vld [vmem:[%s156 + $0x50] sm:$0xf]
      %v190 = vld [vmem:[%s156 + $0x54] sm:$0xf]
      %v191 = vld [vmem:[%s156 + $0x58] sm:$0xf]
      %v192 = vld [vmem:[%s156 + $0x5c] sm:$0xf]
      %v193 = vld [vmem:[%s156 + $0x60] sm:$0xf]
      %v194 = vld [vmem:[%s156 + $0x64] sm:$0xf]
      %v195 = vld [vmem:[%s156 + $0x68] sm:$0xf]
      %v196 = vld [vmem:[%s156 + $0x6c] sm:$0xf]
      %v197 = vld [vmem:[%s156 + $0x70] sm:$0xf]
      %v198 = vld [vmem:[%s156 + $0x74] sm:$0xf]
      %v199 = vld [vmem:[%s156 + $0x78] sm:$0xf]
      %v200 = vld [vmem:[%s156 + $0x7c] sm:$0xf]
      %v201 = vld [vmem:[%s156 + $0x80] sm:$0xf]
      %v202 = vld [vmem:[%s156 + $0x84] sm:$0xf]
      %v203 = vld [vmem:[%s156 + $0x88] sm:$0xf]
      %v204 = vld [vmem:[%s156 + $0x8c] sm:$0xf]
      %v205 = vld [vmem:[%s156 + $0x90] sm:$0xf]
      %v206 = vld [vmem:[%s156 + $0x94] sm:$0xf]
      %v207 = vld [vmem:[%s156 + $0x98] sm:$0xf]
      %v208 = vld [vmem:[%s156 + $0x9c] sm:$0xf]
      %v209 = vld [vmem:[%s156 + $0xa0] sm:$0xf]
      %v210 = vld [vmem:[%s156 + $0xa4] sm:$0xf]
      %v211 = vld [vmem:[%s156 + $0xa8] sm:$0xf]
      %v212 = vld [vmem:[%s156 + $0xac] sm:$0xf]
      %v213 = vld [vmem:[%s156 + $0xb0] sm:$0xf]
      %v214 = vld [vmem:[%s156 + $0xb4] sm:$0xf]
      %v215 = vld [vmem:[%s156 + $0xb8] sm:$0xf]
      %v216 = vld [vmem:[%s156 + $0xbc] sm:$0xf]
      %v217 = vld [vmem:[%s156 + $0xc0] sm:$0xf]
      %v218 = vld [vmem:[%s156 + $0xc4] sm:$0xf]
      %v219 = vld [vmem:[%s156 + $0xc8] sm:$0xf]
      %v220 = vld [vmem:[%s156 + $0xcc] sm:$0xf]
      %v221 = vld [vmem:[%s156 + $0xd0] sm:$0xf]
      %v222 = vld [vmem:[%s156 + $0xd4] sm:$0xf]
      %v223 = vld [vmem:[%s156 + $0xd8] sm:$0xf]
      %v224 = vld [vmem:[%s156 + $0xdc] sm:$0xf]
      %v225 = vld [vmem:[%s156 + $0xe0] sm:$0xf]
      %v226 = vld [vmem:[%s156 + $0xe4] sm:$0xf]
      %v227 = vld [vmem:[%s156 + $0xe8] sm:$0xf]
      %v228 = vld [vmem:[%s156 + $0xec] sm:$0xf]
      %v229 = vld [vmem:[%s156 + $0xf0] sm:$0xf]
      %v230 = vld [vmem:[%s156 + $0xf4] sm:$0xf]
      %v231 = vld [vmem:[%s156 + $0xf8] sm:$0xf]
      %v232 = vld [vmem:[%s156 + $0xfc] sm:$0xf]
      %v233 = vld [vmem:[%s156 + $0x100] sm:$0xf]
      %v234 = vld [vmem:[%s156 + $0x104] sm:$0xf]
      %v235 = vld [vmem:[%s156 + $0x108] sm:$0xf]
      %v236 = vld [vmem:[%s156 + $0x10c] sm:$0xf]
      %v237 = vld [vmem:[%s156 + $0x110] sm:$0xf]
      %v238 = vld [vmem:[%s156 + $0x114] sm:$0xf]
      %v239 = vld [vmem:[%s156 + $0x118] sm:$0xf]
      %v240 = vld [vmem:[%s156 + $0x11c] sm:$0xf]
      %v241 = vld [vmem:[%s156 + $0x120] sm:$0xf]
      %v242 = vld [vmem:[%s156 + $0x124] sm:$0xf]
      %v243 = vld [vmem:[%s156 + $0x128] sm:$0xf]
      %v244 = vld [vmem:[%s156 + $0x12c] sm:$0xf]
      %v245 = vld [vmem:[%s156 + $0x130] sm:$0xf]
      %v246 = vld [vmem:[%s156 + $0x134] sm:$0xf]
      %v247 = vld [vmem:[%s156 + $0x138] sm:$0xf]
      %v248 = vld [vmem:[%s156 + $0x13c] sm:$0xf]
      %v249 = vld [vmem:[%s156 + $0x140] sm:$0xf]
      %v250 = vld [vmem:[%s156 + $0x144] sm:$0xf]
      %v251 = vld [vmem:[%s156 + $0x148] sm:$0xf]
      %v252 = vld [vmem:[%s156 + $0x14c] sm:$0xf]
      %v253 = vld [vmem:[%s156 + $0x150] sm:$0xf]
      %v254 = vld [vmem:[%s156 + $0x154] sm:$0xf]
      %v255 = vld [vmem:[%s156 + $0x158] sm:$0xf]
      %v256 = vld [vmem:[%s156 + $0x15c] sm:$0xf]
      %v257 = vld [vmem:[%s156 + $0x160] sm:$0xf]
      %v258 = vld [vmem:[%s156 + $0x164] sm:$0xf]
      %v259 = vld [vmem:[%s156 + $0x168] sm:$0xf]
      %v260 = vld [vmem:[%s156 + $0x16c] sm:$0xf]
      %v261 = vld [vmem:[%s156 + $0x170] sm:$0xf]
      %v262 = vld [vmem:[%s156 + $0x174] sm:$0xf]
      %v263 = vld [vmem:[%s156 + $0x178] sm:$0xf]
      %v264 = vld [vmem:[%s156 + $0x17c] sm:$0xf]
      %v265 = vld [vmem:[%s156 + $0x180] sm:$0xf]
      %v266 = vld [vmem:[%s156 + $0x184] sm:$0xf]
      %v267 = vld [vmem:[%s156 + $0x188] sm:$0xf]
      %v268 = vld [vmem:[%s156 + $0x18c] sm:$0xf]
      %v269 = vld [vmem:[%s156 + $0x190] sm:$0xf]
      %v270 = vld [vmem:[%s156 + $0x194] sm:$0xf]
      %v271 = vld [vmem:[%s156 + $0x198] sm:$0xf]
      %v272 = vld [vmem:[%s156 + $0x19c] sm:$0xf]
      %v273 = vld [vmem:[%s156 + $0x1a0] sm:$0xf]
      %v274 = vld [vmem:[%s156 + $0x1a4] sm:$0xf]
      %v275 = vld [vmem:[%s156 + $0x1a8] sm:$0xf]
      %v276 = vld [vmem:[%s156 + $0x1ac] sm:$0xf]
      %v277 = vld [vmem:[%s156 + $0x1b0] sm:$0xf]
      %v278 = vld [vmem:[%s156 + $0x1b4] sm:$0xf]
      %v279 = vld [vmem:[%s156 + $0x1b8] sm:$0xf]
      %v280 = vld [vmem:[%s156 + $0x1bc] sm:$0xf]
      %v281 = vld [vmem:[%s156 + $0x1c0] sm:$0xf]
      %v282 = vld [vmem:[%s156 + $0x1c4] sm:$0xf]
      %v283 = vld [vmem:[%s156 + $0x1c8] sm:$0xf]
      %v284 = vld [vmem:[%s156 + $0x1cc] sm:$0xf]
      %v285 = vld [vmem:[%s156 + $0x1d0] sm:$0xf]
      %v286 = vld [vmem:[%s156 + $0x1d4] sm:$0xf]
      %v287 = vld [vmem:[%s156 + $0x1d8] sm:$0xf]
      %v288 = vld [vmem:[%s156 + $0x1dc] sm:$0xf]
      %v289 = vld [vmem:[%s156 + $0x1e0] sm:$0xf]
      %v290 = vld [vmem:[%s156 + $0x1e4] sm:$0xf]
      %v291 = vld [vmem:[%s156 + $0x1e8] sm:$0xf]
      %v292 = vld [vmem:[%s156 + $0x1ec] sm:$0xf]
      %v293 = vld [vmem:[%s156 + $0x1f0] sm:$0xf]
      %v294 = vld [vmem:[%s156 + $0x1f4] sm:$0xf]
      %v295 = vld [vmem:[%s156 + $0x1f8] sm:$0xf]
      %v296 = vld [vmem:[%s156 + $0x1fc] sm:$0xf]
      %v297 = vld [vmem:[%s1] sm:$0xf]
      %v298 = vld [vmem:[%s1 + $0x4] sm:$0xf]
      %v299 = vld [vmem:[%s1 + $0x8] sm:$0xf]
      %v300 = vld [vmem:[%s1 + $0xc] sm:$0xf]
      %v301 = vld [vmem:[%s1 + $0x10] sm:$0xf]
      %v302 = vld [vmem:[%s1 + $0x14] sm:$0xf]
      %v303 = vld [vmem:[%s1 + $0x18] sm:$0xf]
      %v304 = vld [vmem:[%s1 + $0x1c] sm:$0xf]
      %v305 = vld [vmem:[%s1 + $0x20] sm:$0xf]
      %v306 = vld [vmem:[%s1 + $0x24] sm:$0xf]
      %v307 = vld [vmem:[%s1 + $0x28] sm:$0xf]
      %v308 = vld [vmem:[%s1 + $0x2c] sm:$0xf]
      %v309 = vld [vmem:[%s1 + $0x30] sm:$0xf]
      %v310 = vld [vmem:[%s1 + $0x34] sm:$0xf]
      %v311 = vld [vmem:[%s1 + $0x38] sm:$0xf]
      %v312 = vld [vmem:[%s1 + $0x3c] sm:$0xf]
      %v441 = vunpack.c.l.b16 %v169
      %v442 = vunpack.c.l.b16 %v170
      %v443 = vunpack.c.l.b16 %v171
      %v444 = vunpack.c.l.b16 %v172
      %v445 = vunpack.c.l.b16 %v173
      %v446 = vunpack.c.l.b16 %v174
      %v447 = vunpack.c.l.b16 %v175
      %v448 = vunpack.c.l.b16 %v176
      %v449 = vunpack.c.l.b16 %v177
      %v450 = vunpack.c.l.b16 %v178
      %v451 = vunpack.c.l.b16 %v179
      %v452 = vunpack.c.l.b16 %v180
      %v453 = vunpack.c.l.b16 %v181
      %v454 = vunpack.c.l.b16 %v182
      %v455 = vunpack.c.l.b16 %v183
      %v456 = vunpack.c.l.b16 %v184
      %v457 = vunpack.c.l.b16 %v185
      %v458 = vunpack.c.l.b16 %v186
      %v459 = vunpack.c.l.b16 %v187
      %v460 = vunpack.c.l.b16 %v188
      %v461 = vunpack.c.l.b16 %v189
      %v462 = vunpack.c.l.b16 %v190
      %v463 = vunpack.c.l.b16 %v191
      %v464 = vunpack.c.l.b16 %v192
      %v465 = vunpack.c.l.b16 %v193
      %v466 = vunpack.c.l.b16 %v194
      %v467 = vunpack.c.l.b16 %v195
      %v468 = vunpack.c.l.b16 %v196
      %v469 = vunpack.c.l.b16 %v197
      %v470 = vunpack.c.l.b16 %v198
      %v471 = vunpack.c.l.b16 %v199
      %v472 = vunpack.c.l.b16 %v200
      %v473 = vunpack.c.l.b16 %v201
      %v474 = vunpack.c.l.b16 %v202
      %v475 = vunpack.c.l.b16 %v203
      %v476 = vunpack.c.l.b16 %v204
      %v477 = vunpack.c.l.b16 %v205
      %v478 = vunpack.c.l.b16 %v206
      %v479 = vunpack.c.l.b16 %v207
      %v480 = vunpack.c.l.b16 %v208
      %v481 = vunpack.c.l.b16 %v209
      %v482 = vunpack.c.l.b16 %v210
      %v483 = vunpack.c.l.b16 %v211
      %v484 = vunpack.c.l.b16 %v212
      %v485 = vunpack.c.l.b16 %v213
      %v486 = vunpack.c.l.b16 %v214
      %v487 = vunpack.c.l.b16 %v215
      %v488 = vunpack.c.l.b16 %v216
      %v489 = vunpack.c.l.b16 %v217
      %v490 = vunpack.c.l.b16 %v218
      %v491 = vunpack.c.l.b16 %v219
      %v492 = vunpack.c.l.b16 %v220
      %v493 = vunpack.c.l.b16 %v221
      %v494 = vunpack.c.l.b16 %v222
      %v495 = vunpack.c.l.b16 %v223
      %v496 = vunpack.c.l.b16 %v224
      %v497 = vunpack.c.l.b16 %v225
      %v498 = vunpack.c.l.b16 %v226
      %v499 = vunpack.c.l.b16 %v227
      %v500 = vunpack.c.l.b16 %v228
      %v501 = vunpack.c.l.b16 %v229
      %v502 = vunpack.c.l.b16 %v230
      %v503 = vunpack.c.l.b16 %v231
      %v504 = vunpack.c.l.b16 %v232
      %v505 = vunpack.c.l.b16 %v233
      %v506 = vunpack.c.l.b16 %v234
      %v507 = vunpack.c.l.b16 %v235
      %v508 = vunpack.c.l.b16 %v236
      %v509 = vunpack.c.l.b16 %v237
      %v510 = vunpack.c.l.b16 %v238
      %v511 = vunpack.c.l.b16 %v239
      %v512 = vunpack.c.l.b16 %v240
      %v513 = vunpack.c.l.b16 %v241
      %v514 = vunpack.c.l.b16 %v242
      %v515 = vunpack.c.l.b16 %v243
      %v516 = vunpack.c.l.b16 %v244
      %v517 = vunpack.c.l.b16 %v245
      %v518 = vunpack.c.l.b16 %v246
      %v519 = vunpack.c.l.b16 %v247
      %v520 = vunpack.c.l.b16 %v248
      %v521 = vunpack.c.l.b16 %v249
      %v522 = vunpack.c.l.b16 %v250
      %v523 = vunpack.c.l.b16 %v251
      %v524 = vunpack.c.l.b16 %v252
      %v525 = vunpack.c.l.b16 %v253
      %v526 = vunpack.c.l.b16 %v254
      %v527 = vunpack.c.l.b16 %v255
      %v528 = vunpack.c.l.b16 %v256
      %v529 = vunpack.c.l.b16 %v257
      %v530 = vunpack.c.l.b16 %v258
      %v531 = vunpack.c.l.b16 %v259
      %v532 = vunpack.c.l.b16 %v260
      %v533 = vunpack.c.l.b16 %v261
      %v534 = vunpack.c.l.b16 %v262
      %v535 = vunpack.c.l.b16 %v263
      %v536 = vunpack.c.l.b16 %v264
      %v537 = vunpack.c.l.b16 %v265
      %v538 = vunpack.c.l.b16 %v266
      %v539 = vunpack.c.l.b16 %v267
      %v540 = vunpack.c.l.b16 %v268
      %v541 = vunpack.c.l.b16 %v269
      %v542 = vunpack.c.l.b16 %v270
      %v543 = vunpack.c.l.b16 %v271
      %v544 = vunpack.c.l.b16 %v272
      %v545 = vunpack.c.l.b16 %v273
      %v546 = vunpack.c.l.b16 %v274
      %v547 = vunpack.c.l.b16 %v275
      %v548 = vunpack.c.l.b16 %v276
      %v549 = vunpack.c.l.b16 %v277
      %v550 = vunpack.c.l.b16 %v278
      %v551 = vunpack.c.l.b16 %v279
      %v552 = vunpack.c.l.b16 %v280
      %v553 = vunpack.c.l.b16 %v281
      %v554 = vunpack.c.l.b16 %v282
      %v555 = vunpack.c.l.b16 %v283
      %v556 = vunpack.c.l.b16 %v284
      %v557 = vunpack.c.l.b16 %v285
      %v558 = vunpack.c.l.b16 %v286
      %v559 = vunpack.c.l.b16 %v287
      %v560 = vunpack.c.l.b16 %v288
      %v561 = vunpack.c.l.b16 %v289
      %v562 = vunpack.c.l.b16 %v290
      %v563 = vunpack.c.l.b16 %v291
      %v564 = vunpack.c.l.b16 %v292
      %v565 = vunpack.c.l.b16 %v293
      %v566 = vunpack.c.l.b16 %v294
      %v567 = vunpack.c.l.b16 %v295
      %v568 = vunpack.c.l.b16 %v296
      %v569 = vpack.c.b16 %v442, %v441
      %v570 = vpack.c.b16 %v444, %v443
      %v571 = vpack.c.b16 %v446, %v445
      %v572 = vpack.c.b16 %v448, %v447
      %v573 = vpack.c.b16 %v450, %v449
      %v574 = vpack.c.b16 %v452, %v451
      %v575 = vpack.c.b16 %v454, %v453
      %v576 = vpack.c.b16 %v456, %v455
      %v577 = vpack.c.b16 %v458, %v457
      %v578 = vpack.c.b16 %v460, %v459
      %v579 = vpack.c.b16 %v462, %v461
      %v580 = vpack.c.b16 %v464, %v463
      %v581 = vpack.c.b16 %v466, %v465
      %v582 = vpack.c.b16 %v468, %v467
      %v583 = vpack.c.b16 %v470, %v469
      %v584 = vpack.c.b16 %v472, %v471
      %v585 = vpack.c.b16 %v474, %v473
      %v586 = vpack.c.b16 %v476, %v475
      %v587 = vpack.c.b16 %v478, %v477
      %v588 = vpack.c.b16 %v480, %v479
      %v589 = vpack.c.b16 %v482, %v481
      %v590 = vpack.c.b16 %v484, %v483
      %v591 = vpack.c.b16 %v486, %v485
      %v592 = vpack.c.b16 %v488, %v487
      %v593 = vpack.c.b16 %v490, %v489
      %v594 = vpack.c.b16 %v492, %v491
      %v595 = vpack.c.b16 %v494, %v493
      %v596 = vpack.c.b16 %v496, %v495
      %v597 = vpack.c.b16 %v498, %v497
      %v598 = vpack.c.b16 %v500, %v499
      %v599 = vpack.c.b16 %v502, %v501
      %v600 = vpack.c.b16 %v504, %v503
      %v601 = vpack.c.b16 %v506, %v505
      %v602 = vpack.c.b16 %v508, %v507
      %v603 = vpack.c.b16 %v510, %v509
      %v604 = vpack.c.b16 %v512, %v511
      %v605 = vpack.c.b16 %v514, %v513
      %v606 = vpack.c.b16 %v516, %v515
      %v607 = vpack.c.b16 %v518, %v517
      %v608 = vpack.c.b16 %v520, %v519
      %v609 = vpack.c.b16 %v522, %v521
      %v610 = vpack.c.b16 %v524, %v523
      %v611 = vpack.c.b16 %v526, %v525
      %v612 = vpack.c.b16 %v528, %v527
      %v613 = vpack.c.b16 %v530, %v529
      %v614 = vpack.c.b16 %v532, %v531
      %v615 = vpack.c.b16 %v534, %v533
      %v616 = vpack.c.b16 %v536, %v535
      %v617 = vpack.c.b16 %v538, %v537
      %v618 = vpack.c.b16 %v540, %v539
      %v619 = vpack.c.b16 %v542, %v541
      %v620 = vpack.c.b16 %v544, %v543
      %v621 = vpack.c.b16 %v546, %v545
      %v622 = vpack.c.b16 %v548, %v547
      %v623 = vpack.c.b16 %v550, %v549
      %v624 = vpack.c.b16 %v552, %v551
      %v625 = vpack.c.b16 %v554, %v553
      %v626 = vpack.c.b16 %v556, %v555
      %v627 = vpack.c.b16 %v558, %v557
      %v628 = vpack.c.b16 %v560, %v559
      %v629 = vpack.c.b16 %v562, %v561
      %v630 = vpack.c.b16 %v564, %v563
      %v631 = vpack.c.b16 %v566, %v565
      %v632 = vpack.c.b16 %v568, %v567
      %v713 = vunpack.c.l.b16 %v297
      %v714 = vunpack.c.l.b16 %v298
      %v715 = vunpack.c.l.b16 %v299
      %v716 = vunpack.c.l.b16 %v300
      %v717 = vunpack.c.l.b16 %v301
      %v718 = vunpack.c.l.b16 %v302
      %v719 = vunpack.c.l.b16 %v303
      %v720 = vunpack.c.l.b16 %v304
      %v721 = vunpack.c.l.b16 %v305
      %v722 = vunpack.c.l.b16 %v306
      %v723 = vunpack.c.l.b16 %v307
      %v724 = vunpack.c.l.b16 %v308
      %v725 = vunpack.c.l.b16 %v309
      %v726 = vunpack.c.l.b16 %v310
      %v727 = vunpack.c.l.b16 %v311
      %v728 = vunpack.c.l.b16 %v312
      %v729 = vpack.c.b16 %v714, %v713
      %v730 = vpack.c.b16 %v716, %v715
      %v731 = vpack.c.b16 %v718, %v717
      %v732 = vpack.c.b16 %v720, %v719
      %v733 = vpack.c.b16 %v722, %v721
      %v734 = vpack.c.b16 %v724, %v723
      %v735 = vpack.c.b16 %v726, %v725
      %v736 = vpack.c.b16 %v728, %v727
      %745 = vmatprep.subr.bf16.mxu0 0
      %746 = vmatpush1.bf16.msra.mxu0 %v729
      %747 = vmatprep.subr.bf16.mxu0 0
      %748 = vmatpush1.bf16.msra.mxu0 %v730
      %749 = vmatprep.subr.bf16.mxu0 0
      %750 = vmatpush1.bf16.msra.mxu0 %v731
      %751 = vmatprep.subr.bf16.mxu0 0
      %752 = vmatpush1.bf16.msra.mxu0 %v732
      %753 = vmatprep.subr.bf16.mxu0 0
      %754 = vmatpush1.bf16.msra.mxu0 %v733
      %755 = vmatprep.subr.bf16.mxu0 0
      %756 = vmatpush1.bf16.msra.mxu0 %v734
      %757 = vmatprep.subr.bf16.mxu0 0
      %758 = vmatpush1.bf16.msra.mxu0 %v735
      %759 = vmatprep.subr.bf16.mxu0 0
      %760 = vmatpush1.bf16.msra.mxu0 %v736
      %761 = vmatprep.subr.bf16.mxu0 0
      %762 = vmatpush1.bf16.msra.mxu0 0
      %763 = vmatprep.subr.bf16.mxu0 0
      %764 = vmatpush1.bf16.msra.mxu0 0
      %765 = vmatprep.subr.bf16.mxu0 0
      %766 = vmatpush1.bf16.msra.mxu0 0
      %767 = vmatprep.subr.bf16.mxu0 0
      %768 = vmatpush1.bf16.msra.mxu0 0
      %769 = vmatprep.subr.bf16.mxu0 0
      %770 = vmatpush1.bf16.msra.mxu0 0
      %771 = vmatprep.subr.bf16.mxu0 0
      %772 = vmatpush1.bf16.msra.mxu0 0
      %773 = vmatprep.subr.bf16.mxu0 0
      %774 = vmatpush1.bf16.msra.mxu0 0
      %775 = vmatprep.subr.bf16.mxu0 0
      %776 = vmatpush1.bf16.msra.mxu0 0
      %777 = vmatprep.mubr.bf16.mxu0 0
      %778 = vmatmul.mubr.bf16.gmra.mrb[0].mxu0 %v569
      %v779 = vpop.f32.mrb[0].mxu0
      %v780 = vadd.f32 0.0, %v779
      %v781 = vpop.f32.mrb[0].mxu0
      %v782 = vpop.f32.mrb[0].mxu0
      %v783 = vadd.f32 0.0, %v782
      %v784 = vpop.f32.mrb[0].mxu0
      %785 = vmatprep.mubr.bf16.mxu0 0
      %786 = vmatmul.mubr.bf16.gmra.mrb[0].mxu0 %v570
      %v787 = vpop.f32.mrb[0].mxu0
      %v788 = vadd.f32 0.0, %v787
      %v789 = vpop.f32.mrb[0].mxu0
      %v790 = vpop.f32.mrb[0].mxu0
      %v791 = vadd.f32 0.0, %v790
      %v792 = vpop.f32.mrb[0].mxu0
      %793 = vmatprep.mubr.bf16.mxu0 0
      %794 = vmatmul.mubr.bf16.gmra.mrb[0].mxu0 %v571
      %v795 = vpop.f32.mrb[0].mxu0
      %v796 = vadd.f32 0.0, %v795
      %v797 = vpop.f32.mrb[0].mxu0
      %v798 = vpop.f32.mrb[0].mxu0
      %v799 = vadd.f32 0.0, %v798
      %v800 = vpop.f32.mrb[0].mxu0
      %801 = vmatprep.mubr.bf16.mxu0 0
      %802 = vmatmul.mubr.bf16.gmra.mrb[0].mxu0 %v572
      %v803 = vpop.f32.mrb[0].mxu0
      %v804 = vadd.f32 0.0, %v803
      %v805 = vpop.f32.mrb[0].mxu0
      %v806 = vpop.f32.mrb[0].mxu0
      %v807 = vadd.f32 0.0, %v806
      %v808 = vpop.f32.mrb[0].mxu0
      %809 = vmatprep.mubr.bf16.mxu0 0
      %810 = vmatmul.mubr.bf16.gmra.mrb[0].mxu0 %v573
      %v811 = vpop.f32.mrb[0].mxu0
      %v812 = vadd.f32 0.0, %v811
      %v813 = vpop.f32.mrb[0].mxu0
      %v814 = vpop.f32.mrb[0].mxu0
      %v815 = vadd.f32 0.0, %v814
      %v816 = vpop.f32.mrb[0].mxu0
      %817 = vmatprep.mubr.bf16.mxu0 0
      %818 = vmatmul.mubr.bf16.gmra.mrb[0].mxu0 %v574
      %v819 = vpop.f32.mrb[0].mxu0
      %v820 = vadd.f32 0.0, %v819
      %v821 = vpop.f32.mrb[0].mxu0
      %v822 = vpop.f32.mrb[0].mxu0
      %v823 = vadd.f32 0.0, %v822
      %v824 = vpop.f32.mrb[0].mxu0
      %825 = vmatprep.mubr.bf16.mxu0 0
      %826 = vmatmul.mubr.bf16.gmra.mrb[0].mxu0 %v575
      %v827 = vpop.f32.mrb[0].mxu0
      %v828 = vadd.f32 0.0, %v827
      %v829 = vpop.f32.mrb[0].mxu0
      %v830 = vpop.f32.mrb[0].mxu0
      %v831 = vadd.f32 0.0, %v830
      %v832 = vpop.f32.mrb[0].mxu0
      %833 = vmatprep.mubr.bf16.mxu0 0
      %834 = vmatmul.mubr.bf16.gmra.mrb[0].mxu0 %v576
      %v835 = vpop.f32.mrb[0].mxu0
      %v836 = vadd.f32 0.0, %v835
      %v837 = vpop.f32.mrb[0].mxu0
      %v838 = vpop.f32.mrb[0].mxu0
      %v839 = vadd.f32 0.0, %v838
      %v840 = vpop.f32.mrb[0].mxu0
      %841 = vmatprep.mubr.bf16.mxu0 0
      %842 = vmatmul.mubr.bf16.gmra.mrb[0].mxu0 %v577
      %v843 = vpop.f32.mrb[0].mxu0
      %v844 = vadd.f32 0.0, %v843
      %v845 = vpop.f32.mrb[0].mxu0
      %v846 = vpop.f32.mrb[0].mxu0
      %v847 = vadd.f32 0.0, %v846
      %v848 = vpop.f32.mrb[0].mxu0
      %849 = vmatprep.mubr.bf16.mxu0 0
      %850 = vmatmul.mubr.bf16.gmra.mrb[0].mxu0 %v578
      %v851 = vpop.f32.mrb[0].mxu0
      %v852 = vadd.f32 0.0, %v851
      %v853 = vpop.f32.mrb[0].mxu0
      %v854 = vpop.f32.mrb[0].mxu0
      %v855 = vadd.f32 0.0, %v854
      %v856 = vpop.f32.mrb[0].mxu0
      %857 = vmatprep.mubr.bf16.mxu0 0
      %858 = vmatmul.mubr.bf16.gmra.mrb[0].mxu0 %v579
      %v859 = vpop.f32.mrb[0].mxu0
      %v860 = vadd.f32 0.0, %v859
      %v861 = vpop.f32.mrb[0].mxu0
      %v862 = vpop.f32.mrb[0].mxu0
      %v863 = vadd.f32 0.0, %v862
      %v864 = vpop.f32.mrb[0].mxu0
      %865 = vmatprep.mubr.bf16.mxu0 0
      %866 = vmatmul.mubr.bf16.gmra.mrb[0].mxu0 %v580
      %v867 = vpop.f32.mrb[0].mxu0
      %v868 = vadd.f32 0.0, %v867
      %v869 = vpop.f32.mrb[0].mxu0
      %v870 = vpop.f32.mrb[0].mxu0
      %v871 = vadd.f32 0.0, %v870
      %v872 = vpop.f32.mrb[0].mxu0
      %873 = vmatprep.mubr.bf16.mxu0 0
      %874 = vmatmul.mubr.bf16.gmra.mrb[0].mxu0 %v581
      %v875 = vpop.f32.mrb[0].mxu0
      %v876 = vadd.f32 0.0, %v875
      %v877 = vpop.f32.mrb[0].mxu0
      %v878 = vpop.f32.mrb[0].mxu0
      %v879 = vadd.f32 0.0, %v878
      %v880 = vpop.f32.mrb[0].mxu0
      %881 = vmatprep.mubr.bf16.mxu0 0
      %882 = vmatmul.mubr.bf16.gmra.mrb[0].mxu0 %v582
      %v883 = vpop.f32.mrb[0].mxu0
      %v884 = vadd.f32 0.0, %v883
      %v885 = vpop.f32.mrb[0].mxu0
      %v886 = vpop.f32.mrb[0].mxu0
      %v887 = vadd.f32 0.0, %v886
      %v888 = vpop.f32.mrb[0].mxu0
      %889 = vmatprep.mubr.bf16.mxu0 0
      %890 = vmatmul.mubr.bf16.gmra.mrb[0].mxu0 %v583
      %v891 = vpop.f32.mrb[0].mxu0
      %v892 = vadd.f32 0.0, %v891
      %v893 = vpop.f32.mrb[0].mxu0
      %v894 = vpop.f32.mrb[0].mxu0
      %v895 = vadd.f32 0.0, %v894
      %v896 = vpop.f32.mrb[0].mxu0
      %897 = vmatprep.mubr.bf16.mxu0 0
      %898 = vmatmul.mubr.bf16.gmra.mrb[0].mxu0 %v584
      %v899 = vpop.f32.mrb[0].mxu0
      %v900 = vadd.f32 0.0, %v899
      %v901 = vpop.f32.mrb[0].mxu0
      %v902 = vpop.f32.mrb[0].mxu0
      %v903 = vadd.f32 0.0, %v902
      %v904 = vpop.f32.mrb[0].mxu0
      %905 = vmatprep.mubr.bf16.mxu0 0
      %906 = vmatmul.mubr.bf16.gmra.mrb[0].mxu0 %v585
      %v907 = vpop.f32.mrb[0].mxu0
      %v908 = vadd.f32 0.0, %v907
      %v909 = vpop.f32.mrb[0].mxu0
      %v910 = vpop.f32.mrb[0].mxu0
      %v911 = vadd.f32 0.0, %v910
      %v912 = vpop.f32.mrb[0].mxu0
      %913 = vmatprep.mubr.bf16.mxu0 0
      %914 = vmatmul.mubr.bf16.gmra.mrb[0].mxu0 %v586
      %v915 = vpop.f32.mrb[0].mxu0
      %v916 = vadd.f32 0.0, %v915
      %v917 = vpop.f32.mrb[0].mxu0
      %v918 = vpop.f32.mrb[0].mxu0
      %v919 = vadd.f32 0.0, %v918
      %v920 = vpop.f32.mrb[0].mxu0
      %921 = vmatprep.mubr.bf16.mxu0 0
      %922 = vmatmul.mubr.bf16.gmra.mrb[0].mxu0 %v587
      %v923 = vpop.f32.mrb[0].mxu0
      %v924 = vadd.f32 0.0, %v923
      %v925 = vpop.f32.mrb[0].mxu0
      %v926 = vpop.f32.mrb[0].mxu0
      %v927 = vadd.f32 0.0, %v926
      %v928 = vpop.f32.mrb[0].mxu0
      %929 = vmatprep.mubr.bf16.mxu0 0
      %930 = vmatmul.mubr.bf16.gmra.mrb[0].mxu0 %v588
      %v931 = vpop.f32.mrb[0].mxu0
      %v932 = vadd.f32 0.0, %v931
      %v933 = vpop.f32.mrb[0].mxu0
      %v934 = vpop.f32.mrb[0].mxu0
      %v935 = vadd.f32 0.0, %v934
      %v936 = vpop.f32.mrb[0].mxu0
      %937 = vmatprep.mubr.bf16.mxu0 0
      %938 = vmatmul.mubr.bf16.gmra.mrb[0].mxu0 %v589
      %v939 = vpop.f32.mrb[0].mxu0
      %v940 = vadd.f32 0.0, %v939
      %v941 = vpop.f32.mrb[0].mxu0
      %v942 = vpop.f32.mrb[0].mxu0
      %v943 = vadd.f32 0.0, %v942
      %v944 = vpop.f32.mrb[0].mxu0
      %945 = vmatprep.mubr.bf16.mxu0 0
      %946 = vmatmul.mubr.bf16.gmra.mrb[0].mxu0 %v590
      %v947 = vpop.f32.mrb[0].mxu0
      %v948 = vadd.f32 0.0, %v947
      %v949 = vpop.f32.mrb[0].mxu0
      %v950 = vpop.f32.mrb[0].mxu0
      %v951 = vadd.f32 0.0, %v950
      %v952 = vpop.f32.mrb[0].mxu0
      %953 = vmatprep.mubr.bf16.mxu0 0
      %954 = vmatmul.mubr.bf16.gmra.mrb[0].mxu0 %v591
      %v955 = vpop.f32.mrb[0].mxu0
      %v956 = vadd.f32 0.0, %v955
      %v957 = vpop.f32.mrb[0].mxu0
      %v958 = vpop.f32.mrb[0].mxu0
      %v959 = vadd.f32 0.0, %v958
      %v960 = vpop.f32.mrb[0].mxu0
      %961 = vmatprep.mubr.bf16.mxu0 0
      %962 = vmatmul.mubr.bf16.gmra.mrb[0].mxu0 %v592
      %v963 = vpop.f32.mrb[0].mxu0
      %v964 = vadd.f32 0.0, %v963
      %v965 = vpop.f32.mrb[0].mxu0
      %v966 = vpop.f32.mrb[0].mxu0
      %v967 = vadd.f32 0.0, %v966
      %v968 = vpop.f32.mrb[0].mxu0
      %969 = vmatprep.mubr.bf16.mxu0 0
      %970 = vmatmul.mubr.bf16.gmra.mrb[0].mxu0 %v593
      %v971 = vpop.f32.mrb[0].mxu0
      %v972 = vadd.f32 0.0, %v971
      %v973 = vpop.f32.mrb[0].mxu0
      %v974 = vpop.f32.mrb[0].mxu0
      %v975 = vadd.f32 0.0, %v974
      %v976 = vpop.f32.mrb[0].mxu0
      %977 = vmatprep.mubr.bf16.mxu0 0
      %978 = vmatmul.mubr.bf16.gmra.mrb[0].mxu0 %v594
      %v979 = vpop.f32.mrb[0].mxu0
      %v980 = vadd.f32 0.0, %v979
      %v981 = vpop.f32.mrb[0].mxu0
      %v982 = vpop.f32.mrb[0].mxu0
      %v983 = vadd.f32 0.0, %v982
      %v984 = vpop.f32.mrb[0].mxu0
      %985 = vmatprep.mubr.bf16.mxu0 0
      %986 = vmatmul.mubr.bf16.gmra.mrb[0].mxu0 %v595
      %v987 = vpop.f32.mrb[0].mxu0
      %v988 = vadd.f32 0.0, %v987
      %v989 = vpop.f32.mrb[0].mxu0
      %v990 = vpop.f32.mrb[0].mxu0
      %v991 = vadd.f32 0.0, %v990
      %v992 = vpop.f32.mrb[0].mxu0
      %993 = vmatprep.mubr.bf16.mxu0 0
      %994 = vmatmul.mubr.bf16.gmra.mrb[0].mxu0 %v596
      %v995 = vpop.f32.mrb[0].mxu0
      %v996 = vadd.f32 0.0, %v995
      %v997 = vpop.f32.mrb[0].mxu0
      %v998 = vpop.f32.mrb[0].mxu0
      %v999 = vadd.f32 0.0, %v998
      %v1000 = vpop.f32.mrb[0].mxu0
      %1001 = vmatprep.mubr.bf16.mxu0 0
      %1002 = vmatmul.mubr.bf16.gmra.mrb[0].mxu0 %v597
      %v1003 = vpop.f32.mrb[0].mxu0
      %v1004 = vadd.f32 0.0, %v1003
      %v1005 = vpop.f32.mrb[0].mxu0
      %v1006 = vpop.f32.mrb[0].mxu0
      %v1007 = vadd.f32 0.0, %v1006
      %v1008 = vpop.f32.mrb[0].mxu0
      %1009 = vmatprep.mubr.bf16.mxu0 0
      %1010 = vmatmul.mubr.bf16.gmra.mrb[0].mxu0 %v598
      %v1011 = vpop.f32.mrb[0].mxu0
      %v1012 = vadd.f32 0.0, %v1011
      %v1013 = vpop.f32.mrb[0].mxu0
      %v1014 = vpop.f32.mrb[0].mxu0
      %v1015 = vadd.f32 0.0, %v1014
      %v1016 = vpop.f32.mrb[0].mxu0
      %1017 = vmatprep.mubr.bf16.mxu0 0
      %1018 = vmatmul.mubr.bf16.gmra.mrb[0].mxu0 %v599
      %v1019 = vpop.f32.mrb[0].mxu0
      %v1020 = vadd.f32 0.0, %v1019
      %v1021 = vpop.f32.mrb[0].mxu0
      %v1022 = vpop.f32.mrb[0].mxu0
      %v1023 = vadd.f32 0.0, %v1022
      %v1024 = vpop.f32.mrb[0].mxu0
      %1025 = vmatprep.mubr.bf16.mxu0 0
      %1026 = vmatmul.mubr.bf16.gmra.mrb[0].mxu0 %v600
      %v1027 = vpop.f32.mrb[0].mxu0
      %v1028 = vadd.f32 0.0, %v1027
      %v1029 = vpop.f32.mrb[0].mxu0
      %v1030 = vpop.f32.mrb[0].mxu0
      %v1031 = vadd.f32 0.0, %v1030
      %v1032 = vpop.f32.mrb[0].mxu0
      %1033 = vmatprep.mubr.bf16.mxu0 0
      %1034 = vmatmul.mubr.bf16.gmra.mrb[0].mxu0 %v601
      %v1035 = vpop.f32.mrb[0].mxu0
      %v1036 = vadd.f32 0.0, %v1035
      %v1037 = vpop.f32.mrb[0].mxu0
      %v1038 = vpop.f32.mrb[0].mxu0
      %v1039 = vadd.f32 0.0, %v1038
      %v1040 = vpop.f32.mrb[0].mxu0
      %1041 = vmatprep.mubr.bf16.mxu0 0
      %1042 = vmatmul.mubr.bf16.gmra.mrb[0].mxu0 %v602
      %v1043 = vpop.f32.mrb[0].mxu0
      %v1044 = vadd.f32 0.0, %v1043
      %v1045 = vpop.f32.mrb[0].mxu0
      %v1046 = vpop.f32.mrb[0].mxu0
      %v1047 = vadd.f32 0.0, %v1046
      %v1048 = vpop.f32.mrb[0].mxu0
      %1049 = vmatprep.mubr.bf16.mxu0 0
      %1050 = vmatmul.mubr.bf16.gmra.mrb[0].mxu0 %v603
      %v1051 = vpop.f32.mrb[0].mxu0
      %v1052 = vadd.f32 0.0, %v1051
      %v1053 = vpop.f32.mrb[0].mxu0
      %v1054 = vpop.f32.mrb[0].mxu0
      %v1055 = vadd.f32 0.0, %v1054
      %v1056 = vpop.f32.mrb[0].mxu0
      %1057 = vmatprep.mubr.bf16.mxu0 0
      %1058 = vmatmul.mubr.bf16.gmra.mrb[0].mxu0 %v604
      %v1059 = vpop.f32.mrb[0].mxu0
      %v1060 = vadd.f32 0.0, %v1059
      %v1061 = vpop.f32.mrb[0].mxu0
      %v1062 = vpop.f32.mrb[0].mxu0
      %v1063 = vadd.f32 0.0, %v1062
      %v1064 = vpop.f32.mrb[0].mxu0
      %1065 = vmatprep.mubr.bf16.mxu0 0
      %1066 = vmatmul.mubr.bf16.gmra.mrb[0].mxu0 %v605
      %v1067 = vpop.f32.mrb[0].mxu0
      %v1068 = vadd.f32 0.0, %v1067
      %v1069 = vpop.f32.mrb[0].mxu0
      %v1070 = vpop.f32.mrb[0].mxu0
      %v1071 = vadd.f32 0.0, %v1070
      %v1072 = vpop.f32.mrb[0].mxu0
      %1073 = vmatprep.mubr.bf16.mxu0 0
      %1074 = vmatmul.mubr.bf16.gmra.mrb[0].mxu0 %v606
      %v1075 = vpop.f32.mrb[0].mxu0
      %v1076 = vadd.f32 0.0, %v1075
      %v1077 = vpop.f32.mrb[0].mxu0
      %v1078 = vpop.f32.mrb[0].mxu0
      %v1079 = vadd.f32 0.0, %v1078
      %v1080 = vpop.f32.mrb[0].mxu0
      %1081 = vmatprep.mubr.bf16.mxu0 0
      %1082 = vmatmul.mubr.bf16.gmra.mrb[0].mxu0 %v607
      %v1083 = vpop.f32.mrb[0].mxu0
      %v1084 = vadd.f32 0.0, %v1083
      %v1085 = vpop.f32.mrb[0].mxu0
      %v1086 = vpop.f32.mrb[0].mxu0
      %v1087 = vadd.f32 0.0, %v1086
      %v1088 = vpop.f32.mrb[0].mxu0
      %1089 = vmatprep.mubr.bf16.mxu0 0
      %1090 = vmatmul.mubr.bf16.gmra.mrb[0].mxu0 %v608
      %v1091 = vpop.f32.mrb[0].mxu0
      %v1092 = vadd.f32 0.0, %v1091
      %v1093 = vpop.f32.mrb[0].mxu0
      %v1094 = vpop.f32.mrb[0].mxu0
      %v1095 = vadd.f32 0.0, %v1094
      %v1096 = vpop.f32.mrb[0].mxu0
      %1097 = vmatprep.mubr.bf16.mxu0 0
      %1098 = vmatmul.mubr.bf16.gmra.mrb[0].mxu0 %v609
      %v1099 = vpop.f32.mrb[0].mxu0
      %v1100 = vadd.f32 0.0, %v1099
      %v1101 = vpop.f32.mrb[0].mxu0
      %v1102 = vpop.f32.mrb[0].mxu0
      %v1103 = vadd.f32 0.0, %v1102
      %v1104 = vpop.f32.mrb[0].mxu0
      %1105 = vmatprep.mubr.bf16.mxu0 0
      %1106 = vmatmul.mubr.bf16.gmra.mrb[0].mxu0 %v610
      %v1107 = vpop.f32.mrb[0].mxu0
      %v1108 = vadd.f32 0.0, %v1107
      %v1109 = vpop.f32.mrb[0].mxu0
      %v1110 = vpop.f32.mrb[0].mxu0
      %v1111 = vadd.f32 0.0, %v1110
      %v1112 = vpop.f32.mrb[0].mxu0
      %1113 = vmatprep.mubr.bf16.mxu0 0
      %1114 = vmatmul.mubr.bf16.gmra.mrb[0].mxu0 %v611
      %v1115 = vpop.f32.mrb[0].mxu0
      %v1116 = vadd.f32 0.0, %v1115
      %v1117 = vpop.f32.mrb[0].mxu0
      %v1118 = vpop.f32.mrb[0].mxu0
      %v1119 = vadd.f32 0.0, %v1118
      %v1120 = vpop.f32.mrb[0].mxu0
      %1121 = vmatprep.mubr.bf16.mxu0 0
      %1122 = vmatmul.mubr.bf16.gmra.mrb[0].mxu0 %v612
      %v1123 = vpop.f32.mrb[0].mxu0
      %v1124 = vadd.f32 0.0, %v1123
      %v1125 = vpop.f32.mrb[0].mxu0
      %v1126 = vpop.f32.mrb[0].mxu0
      %v1127 = vadd.f32 0.0, %v1126
      %v1128 = vpop.f32.mrb[0].mxu0
      %1129 = vmatprep.mubr.bf16.mxu0 0
      %1130 = vmatmul.mubr.bf16.gmra.mrb[0].mxu0 %v613
      %v1131 = vpop.f32.mrb[0].mxu0
      %v1132 = vadd.f32 0.0, %v1131
      %v1133 = vpop.f32.mrb[0].mxu0
      %v1134 = vpop.f32.mrb[0].mxu0
      %v1135 = vadd.f32 0.0, %v1134
      %v1136 = vpop.f32.mrb[0].mxu0
      %1137 = vmatprep.mubr.bf16.mxu0 0
      %1138 = vmatmul.mubr.bf16.gmra.mrb[0].mxu0 %v614
      %v1139 = vpop.f32.mrb[0].mxu0
      %v1140 = vadd.f32 0.0, %v1139
      %v1141 = vpop.f32.mrb[0].mxu0
      %v1142 = vpop.f32.mrb[0].mxu0
      %v1143 = vadd.f32 0.0, %v1142
      %v1144 = vpop.f32.mrb[0].mxu0
      %1145 = vmatprep.mubr.bf16.mxu0 0
      %1146 = vmatmul.mubr.bf16.gmra.mrb[0].mxu0 %v615
      %v1147 = vpop.f32.mrb[0].mxu0
      %v1148 = vadd.f32 0.0, %v1147
      %v1149 = vpop.f32.mrb[0].mxu0
      %v1150 = vpop.f32.mrb[0].mxu0
      %v1151 = vadd.f32 0.0, %v1150
      %v1152 = vpop.f32.mrb[0].mxu0
      %1153 = vmatprep.mubr.bf16.mxu0 0
      %1154 = vmatmul.mubr.bf16.gmra.mrb[0].mxu0 %v616
      %v1155 = vpop.f32.mrb[0].mxu0
      %v1156 = vadd.f32 0.0, %v1155
      %v1157 = vpop.f32.mrb[0].mxu0
      %v1158 = vpop.f32.mrb[0].mxu0
      %v1159 = vadd.f32 0.0, %v1158
      %v1160 = vpop.f32.mrb[0].mxu0
      %1161 = vmatprep.mubr.bf16.mxu0 0
      %1162 = vmatmul.mubr.bf16.gmra.mrb[0].mxu0 %v617
      %v1163 = vpop.f32.mrb[0].mxu0
      %v1164 = vadd.f32 0.0, %v1163
      %v1165 = vpop.f32.mrb[0].mxu0
      %v1166 = vpop.f32.mrb[0].mxu0
      %v1167 = vadd.f32 0.0, %v1166
      %v1168 = vpop.f32.mrb[0].mxu0
      %1169 = vmatprep.mubr.bf16.mxu0 0
      %1170 = vmatmul.mubr.bf16.gmra.mrb[0].mxu0 %v618
      %v1171 = vpop.f32.mrb[0].mxu0
      %v1172 = vadd.f32 0.0, %v1171
      %v1173 = vpop.f32.mrb[0].mxu0
      %v1174 = vpop.f32.mrb[0].mxu0
      %v1175 = vadd.f32 0.0, %v1174
      %v1176 = vpop.f32.mrb[0].mxu0
      %1177 = vmatprep.mubr.bf16.mxu0 0
      %1178 = vmatmul.mubr.bf16.gmra.mrb[0].mxu0 %v619
      %v1179 = vpop.f32.mrb[0].mxu0
      %v1180 = vadd.f32 0.0, %v1179
      %v1181 = vpop.f32.mrb[0].mxu0
      %v1182 = vpop.f32.mrb[0].mxu0
      %v1183 = vadd.f32 0.0, %v1182
      %v1184 = vpop.f32.mrb[0].mxu0
      %1185 = vmatprep.mubr.bf16.mxu0 0
      %1186 = vmatmul.mubr.bf16.gmra.mrb[0].mxu0 %v620
      %v1187 = vpop.f32.mrb[0].mxu0
      %v1188 = vadd.f32 0.0, %v1187
      %v1189 = vpop.f32.mrb[0].mxu0
      %v1190 = vpop.f32.mrb[0].mxu0
      %v1191 = vadd.f32 0.0, %v1190
      %v1192 = vpop.f32.mrb[0].mxu0
      %1193 = vmatprep.mubr.bf16.mxu0 0
      %1194 = vmatmul.mubr.bf16.gmra.mrb[0].mxu0 %v621
      %v1195 = vpop.f32.mrb[0].mxu0
      %v1196 = vadd.f32 0.0, %v1195
      %v1197 = vpop.f32.mrb[0].mxu0
      %v1198 = vpop.f32.mrb[0].mxu0
      %v1199 = vadd.f32 0.0, %v1198
      %v1200 = vpop.f32.mrb[0].mxu0
      %1201 = vmatprep.mubr.bf16.mxu0 0
      %1202 = vmatmul.mubr.bf16.gmra.mrb[0].mxu0 %v622
      %v1203 = vpop.f32.mrb[0].mxu0
      %v1204 = vadd.f32 0.0, %v1203
      %v1205 = vpop.f32.mrb[0].mxu0
      %v1206 = vpop.f32.mrb[0].mxu0
      %v1207 = vadd.f32 0.0, %v1206
      %v1208 = vpop.f32.mrb[0].mxu0
      %1209 = vmatprep.mubr.bf16.mxu0 0
      %1210 = vmatmul.mubr.bf16.gmra.mrb[0].mxu0 %v623
      %v1211 = vpop.f32.mrb[0].mxu0
      %v1212 = vadd.f32 0.0, %v1211
      %v1213 = vpop.f32.mrb[0].mxu0
      %v1214 = vpop.f32.mrb[0].mxu0
      %v1215 = vadd.f32 0.0, %v1214
      %v1216 = vpop.f32.mrb[0].mxu0
      %1217 = vmatprep.mubr.bf16.mxu0 0
      %1218 = vmatmul.mubr.bf16.gmra.mrb[0].mxu0 %v624
      %v1219 = vpop.f32.mrb[0].mxu0
      %v1220 = vadd.f32 0.0, %v1219
      %v1221 = vpop.f32.mrb[0].mxu0
      %v1222 = vpop.f32.mrb[0].mxu0
      %v1223 = vadd.f32 0.0, %v1222
      %v1224 = vpop.f32.mrb[0].mxu0
      %1225 = vmatprep.mubr.bf16.mxu0 0
      %1226 = vmatmul.mubr.bf16.gmra.mrb[0].mxu0 %v625
      %v1227 = vpop.f32.mrb[0].mxu0
      %v1228 = vadd.f32 0.0, %v1227
      %v1229 = vpop.f32.mrb[0].mxu0
      %v1230 = vpop.f32.mrb[0].mxu0
      %v1231 = vadd.f32 0.0, %v1230
      %v1232 = vpop.f32.mrb[0].mxu0
      %1233 = vmatprep.mubr.bf16.mxu0 0
      %1234 = vmatmul.mubr.bf16.gmra.mrb[0].mxu0 %v626
      %v1235 = vpop.f32.mrb[0].mxu0
      %v1236 = vadd.f32 0.0, %v1235
      %v1237 = vpop.f32.mrb[0].mxu0
      %v1238 = vpop.f32.mrb[0].mxu0
      %v1239 = vadd.f32 0.0, %v1238
      %v1240 = vpop.f32.mrb[0].mxu0
      %1241 = vmatprep.mubr.bf16.mxu0 0
      %1242 = vmatmul.mubr.bf16.gmra.mrb[0].mxu0 %v627
      %v1243 = vpop.f32.mrb[0].mxu0
      %v1244 = vadd.f32 0.0, %v1243
      %v1245 = vpop.f32.mrb[0].mxu0
      %v1246 = vpop.f32.mrb[0].mxu0
      %v1247 = vadd.f32 0.0, %v1246
      %v1248 = vpop.f32.mrb[0].mxu0
      %1249 = vmatprep.mubr.bf16.mxu0 0
      %1250 = vmatmul.mubr.bf16.gmra.mrb[0].mxu0 %v628
      %v1251 = vpop.f32.mrb[0].mxu0
      %v1252 = vadd.f32 0.0, %v1251
      %v1253 = vpop.f32.mrb[0].mxu0
      %v1254 = vpop.f32.mrb[0].mxu0
      %v1255 = vadd.f32 0.0, %v1254
      %v1256 = vpop.f32.mrb[0].mxu0
      %1257 = vmatprep.mubr.bf16.mxu0 0
      %1258 = vmatmul.mubr.bf16.gmra.mrb[0].mxu0 %v629
      %v1259 = vpop.f32.mrb[0].mxu0
      %v1260 = vadd.f32 0.0, %v1259
      %v1261 = vpop.f32.mrb[0].mxu0
      %v1262 = vpop.f32.mrb[0].mxu0
      %v1263 = vadd.f32 0.0, %v1262
      %v1264 = vpop.f32.mrb[0].mxu0
      %1265 = vmatprep.mubr.bf16.mxu0 0
      %1266 = vmatmul.mubr.bf16.gmra.mrb[0].mxu0 %v630
      %v1267 = vpop.f32.mrb[0].mxu0
      %v1268 = vadd.f32 0.0, %v1267
      %v1269 = vpop.f32.mrb[0].mxu0
      %v1270 = vpop.f32.mrb[0].mxu0
      %v1271 = vadd.f32 0.0, %v1270
      %v1272 = vpop.f32.mrb[0].mxu0
      %1273 = vmatprep.mubr.bf16.mxu0 0
      %1274 = vmatmul.mubr.bf16.gmra.mrb[0].mxu0 %v631
      %v1275 = vpop.f32.mrb[0].mxu0
      %v1276 = vadd.f32 0.0, %v1275
      %v1277 = vpop.f32.mrb[0].mxu0
      %v1278 = vpop.f32.mrb[0].mxu0
      %v1279 = vadd.f32 0.0, %v1278
      %v1280 = vpop.f32.mrb[0].mxu0
      %1281 = vmatprep.mubr.bf16.mxu0 0
      %1282 = vmatmul.mubr.bf16.gmra.mrb[0].mxu0 %v632
      %v1283 = vpop.f32.mrb[0].mxu0
      %v1284 = vadd.f32 0.0, %v1283
      %v1285 = vpop.f32.mrb[0].mxu0
      %v1286 = vpop.f32.mrb[0].mxu0
      %v1287 = vadd.f32 0.0, %v1286
      %v1288 = vpop.f32.mrb[0].mxu0
      %1289 = vdwg.mxu0
      %v1290 = vadd.f32 %v780, %v783
      %v1291 = vadd.f32 %v1290, %v788
      %v1292 = vadd.f32 %v1291, %v791
      %v1293 = vadd.f32 %v1292, %v796
      %v1294 = vadd.f32 %v1293, %v799
      %v1295 = vadd.f32 %v1294, %v804
      %v1296 = vadd.f32 %v1295, %v807
      %v1297 = vadd.f32 %v1296, %v812
      %v1298 = vadd.f32 %v1297, %v815
      %v1299 = vadd.f32 %v1298, %v820
      %v1300 = vadd.f32 %v1299, %v823
      %v1301 = vadd.f32 %v1300, %v828
      %v1302 = vadd.f32 %v1301, %v831
      %v1303 = vadd.f32 %v1302, %v836
      %v1304 = vadd.f32 %v1303, %v839
      %v1305 = vadd.f32 %v1304, %v844
      %v1306 = vadd.f32 %v1305, %v847
      %v1307 = vadd.f32 %v1306, %v852
      %v1308 = vadd.f32 %v1307, %v855
      %v1309 = vadd.f32 %v1308, %v860
      %v1310 = vadd.f32 %v1309, %v863
      %v1311 = vadd.f32 %v1310, %v868
      %v1312 = vadd.f32 %v1311, %v871
      %v1313 = vadd.f32 %v1312, %v876
      %v1314 = vadd.f32 %v1313, %v879
      %v1315 = vadd.f32 %v1314, %v884
      %v1316 = vadd.f32 %v1315, %v887
      %v1317 = vadd.f32 %v1316, %v892
      %v1318 = vadd.f32 %v1317, %v895
      %v1319 = vadd.f32 %v1318, %v900
      %v1320 = vadd.f32 %v1319, %v903
      %v1321 = vadd.f32 %v1320, %v908
      %v1322 = vadd.f32 %v1321, %v911
      %v1323 = vadd.f32 %v1322, %v916
      %v1324 = vadd.f32 %v1323, %v919
      %v1325 = vadd.f32 %v1324, %v924
      %v1326 = vadd.f32 %v1325, %v927
      %v1327 = vadd.f32 %v1326, %v932
      %v1328 = vadd.f32 %v1327, %v935
      %v1329 = vadd.f32 %v1328, %v940
      %v1330 = vadd.f32 %v1329, %v943
      %v1331 = vadd.f32 %v1330, %v948
      %v1332 = vadd.f32 %v1331, %v951
      %v1333 = vadd.f32 %v1332, %v956
      %v1334 = vadd.f32 %v1333, %v959
      %v1335 = vadd.f32 %v1334, %v964
      %v1336 = vadd.f32 %v1335, %v967
      %v1337 = vadd.f32 %v1336, %v972
      %v1338 = vadd.f32 %v1337, %v975
      %v1339 = vadd.f32 %v1338, %v980
      %v1340 = vadd.f32 %v1339, %v983
      %v1341 = vadd.f32 %v1340, %v988
      %v1342 = vadd.f32 %v1341, %v991
      %v1343 = vadd.f32 %v1342, %v996
      %v1344 = vadd.f32 %v1343, %v999
      %v1345 = vadd.f32 %v1344, %v1004
      %v1346 = vadd.f32 %v1345, %v1007
      %v1347 = vadd.f32 %v1346, %v1012
      %v1348 = vadd.f32 %v1347, %v1015
      %v1349 = vadd.f32 %v1348, %v1020
      %v1350 = vadd.f32 %v1349, %v1023
      %v1351 = vadd.f32 %v1350, %v1028
      %v1352 = vadd.f32 %v1351, %v1031
      %v1353 = vadd.f32 %v1352, %v1036
      %v1354 = vadd.f32 %v1353, %v1039
      %v1355 = vadd.f32 %v1354, %v1044
      %v1356 = vadd.f32 %v1355, %v1047
      %v1357 = vadd.f32 %v1356, %v1052
      %v1358 = vadd.f32 %v1357, %v1055
      %v1359 = vadd.f32 %v1358, %v1060
      %v1360 = vadd.f32 %v1359, %v1063
      %v1361 = vadd.f32 %v1360, %v1068
      %v1362 = vadd.f32 %v1361, %v1071
      %v1363 = vadd.f32 %v1362, %v1076
      %v1364 = vadd.f32 %v1363, %v1079
      %v1365 = vadd.f32 %v1364, %v1084
      %v1366 = vadd.f32 %v1365, %v1087
      %v1367 = vadd.f32 %v1366, %v1092
      %v1368 = vadd.f32 %v1367, %v1095
      %v1369 = vadd.f32 %v1368, %v1100
      %v1370 = vadd.f32 %v1369, %v1103
      %v1371 = vadd.f32 %v1370, %v1108
      %v1372 = vadd.f32 %v1371, %v1111
      %v1373 = vadd.f32 %v1372, %v1116
      %v1374 = vadd.f32 %v1373, %v1119
      %v1375 = vadd.f32 %v1374, %v1124
      %v1376 = vadd.f32 %v1375, %v1127
      %v1377 = vadd.f32 %v1376, %v1132
      %v1378 = vadd.f32 %v1377, %v1135
      %v1379 = vadd.f32 %v1378, %v1140
      %v1380 = vadd.f32 %v1379, %v1143
      %v1381 = vadd.f32 %v1380, %v1148
      %v1382 = vadd.f32 %v1381, %v1151
      %v1383 = vadd.f32 %v1382, %v1156
      %v1384 = vadd.f32 %v1383, %v1159
      %v1385 = vadd.f32 %v1384, %v1164
      %v1386 = vadd.f32 %v1385, %v1167
      %v1387 = vadd.f32 %v1386, %v1172
      %v1388 = vadd.f32 %v1387, %v1175
      %v1389 = vadd.f32 %v1388, %v1180
      %v1390 = vadd.f32 %v1389, %v1183
      %v1391 = vadd.f32 %v1390, %v1188
      %v1392 = vadd.f32 %v1391, %v1191
      %v1393 = vadd.f32 %v1392, %v1196
      %v1394 = vadd.f32 %v1393, %v1199
      %v1395 = vadd.f32 %v1394, %v1204
      %v1396 = vadd.f32 %v1395, %v1207
      %v1397 = vadd.f32 %v1396, %v1212
      %v1398 = vadd.f32 %v1397, %v1215
      %v1399 = vadd.f32 %v1398, %v1220
      %v1400 = vadd.f32 %v1399, %v1223
      %v1401 = vadd.f32 %v1400, %v1228
      %v1402 = vadd.f32 %v1401, %v1231
      %v1403 = vadd.f32 %v1402, %v1236
      %v1404 = vadd.f32 %v1403, %v1239
      %v1405 = vadd.f32 %v1404, %v1244
      %v1406 = vadd.f32 %v1405, %v1247
      %v1407 = vadd.f32 %v1406, %v1252
      %v1408 = vadd.f32 %v1407, %v1255
      %v1409 = vadd.f32 %v1408, %v1260
      %v1410 = vadd.f32 %v1409, %v1263
      %v1411 = vadd.f32 %v1410, %v1268
      %v1412 = vadd.f32 %v1411, %v1271
      %v1413 = vadd.f32 %v1412, %v1276
      %v1414 = vadd.f32 %v1413, %v1279
      %v1415 = vadd.f32 %v1414, %v1284
      %v1416 = vadd.f32 %v1415, %v1287
      %v1417 = vrot.slane %v1416, 4
      %v1418 = vadd.f32 %v1416, %v1417
      %v1419 = vrot.slane %v1418, 2
      %v1420 = vadd.f32 %v1418, %v1419
      %v1421 = vrot.slane %v1420, 1
      %v1422 = vadd.f32 %v1420, %v1421
      %v1423 = vmul.f32 %v780, %v780
      %v1424 = vmul.f32 %v783, %v783
      %v1425 = vmul.f32 %v788, %v788
      %v1426 = vmul.f32 %v791, %v791
      %v1427 = vmul.f32 %v796, %v796
      %v1428 = vmul.f32 %v799, %v799
      %v1429 = vmul.f32 %v804, %v804
      %v1430 = vmul.f32 %v807, %v807
      %v1431 = vmul.f32 %v812, %v812
      %v1432 = vmul.f32 %v815, %v815
      %v1433 = vmul.f32 %v820, %v820
      %v1434 = vmul.f32 %v823, %v823
      %v1435 = vmul.f32 %v828, %v828
      %v1436 = vmul.f32 %v831, %v831
      %v1437 = vmul.f32 %v836, %v836
      %v1438 = vmul.f32 %v839, %v839
      %v1439 = vmul.f32 %v844, %v844
      %v1440 = vmul.f32 %v847, %v847
      %v1441 = vmul.f32 %v852, %v852
      %v1442 = vmul.f32 %v855, %v855
      %v1443 = vmul.f32 %v860, %v860
      %v1444 = vmul.f32 %v863, %v863
      %v1445 = vmul.f32 %v868, %v868
      %v1446 = vmul.f32 %v871, %v871
      %v1447 = vmul.f32 %v876, %v876
      %v1448 = vmul.f32 %v879, %v879
      %v1449 = vmul.f32 %v884, %v884
      %v1450 = vmul.f32 %v887, %v887
      %v1451 = vmul.f32 %v892, %v892
      %v1452 = vmul.f32 %v895, %v895
      %v1453 = vmul.f32 %v900, %v900
      %v1454 = vmul.f32 %v903, %v903
      %v1455 = vmul.f32 %v908, %v908
      %v1456 = vmul.f32 %v911, %v911
      %v1457 = vmul.f32 %v916, %v916
      %v1458 = vmul.f32 %v919, %v919
      %v1459 = vmul.f32 %v924, %v924
      %v1460 = vmul.f32 %v927, %v927
      %v1461 = vmul.f32 %v932, %v932
      %v1462 = vmul.f32 %v935, %v935
      %v1463 = vmul.f32 %v940, %v940
      %v1464 = vmul.f32 %v943, %v943
      %v1465 = vmul.f32 %v948, %v948
      %v1466 = vmul.f32 %v951, %v951
      %v1467 = vmul.f32 %v956, %v956
      %v1468 = vmul.f32 %v959, %v959
      %v1469 = vmul.f32 %v964, %v964
      %v1470 = vmul.f32 %v967, %v967
      %v1471 = vmul.f32 %v972, %v972
      %v1472 = vmul.f32 %v975, %v975
      %v1473 = vmul.f32 %v980, %v980
      %v1474 = vmul.f32 %v983, %v983
      %v1475 = vmul.f32 %v988, %v988
      %v1476 = vmul.f32 %v991, %v991
      %v1477 = vmul.f32 %v996, %v996
      %v1478 = vmul.f32 %v999, %v999
      %v1479 = vmul.f32 %v1004, %v1004
      %v1480 = vmul.f32 %v1007, %v1007
      %v1481 = vmul.f32 %v1012, %v1012
      %v1482 = vmul.f32 %v1015, %v1015
      %v1483 = vmul.f32 %v1020, %v1020
      %v1484 = vmul.f32 %v1023, %v1023
      %v1485 = vmul.f32 %v1028, %v1028
      %v1486 = vmul.f32 %v1031, %v1031
      %v1487 = vmul.f32 %v1036, %v1036
      %v1488 = vmul.f32 %v1039, %v1039
      %v1489 = vmul.f32 %v1044, %v1044
      %v1490 = vmul.f32 %v1047, %v1047
      %v1491 = vmul.f32 %v1052, %v1052
      %v1492 = vmul.f32 %v1055, %v1055
      %v1493 = vmul.f32 %v1060, %v1060
      %v1494 = vmul.f32 %v1063, %v1063
      %v1495 = vmul.f32 %v1068, %v1068
      %v1496 = vmul.f32 %v1071, %v1071
      %v1497 = vmul.f32 %v1076, %v1076
      %v1498 = vmul.f32 %v1079, %v1079
      %v1499 = vmul.f32 %v1084, %v1084
      %v1500 = vmul.f32 %v1087, %v1087
      %v1501 = vmul.f32 %v1092, %v1092
      %v1502 = vmul.f32 %v1095, %v1095
      %v1503 = vmul.f32 %v1100, %v1100
      %v1504 = vmul.f32 %v1103, %v1103
      %v1505 = vmul.f32 %v1108, %v1108
      %v1506 = vmul.f32 %v1111, %v1111
      %v1507 = vmul.f32 %v1116, %v1116
      %v1508 = vmul.f32 %v1119, %v1119
      %v1509 = vmul.f32 %v1124, %v1124
      %v1510 = vmul.f32 %v1127, %v1127
      %v1511 = vmul.f32 %v1132, %v1132
      %v1512 = vmul.f32 %v1135, %v1135
      %v1513 = vmul.f32 %v1140, %v1140
      %v1514 = vmul.f32 %v1143, %v1143
      %v1515 = vmul.f32 %v1148, %v1148
      %v1516 = vmul.f32 %v1151, %v1151
      %v1517 = vmul.f32 %v1156, %v1156
      %v1518 = vmul.f32 %v1159, %v1159
      %v1519 = vmul.f32 %v1164, %v1164
      %v1520 = vmul.f32 %v1167, %v1167
      %v1521 = vmul.f32 %v1172, %v1172
      %v1522 = vmul.f32 %v1175, %v1175
      %v1523 = vmul.f32 %v1180, %v1180
      %v1524 = vmul.f32 %v1183, %v1183
      %v1525 = vmul.f32 %v1188, %v1188
      %v1526 = vmul.f32 %v1191, %v1191
      %v1527 = vmul.f32 %v1196, %v1196
      %v1528 = vmul.f32 %v1199, %v1199
      %v1529 = vmul.f32 %v1204, %v1204
      %v1530 = vmul.f32 %v1207, %v1207
      %v1531 = vmul.f32 %v1212, %v1212
      %v1532 = vmul.f32 %v1215, %v1215
      %v1533 = vmul.f32 %v1220, %v1220
      %v1534 = vmul.f32 %v1223, %v1223
      %v1535 = vmul.f32 %v1228, %v1228
      %v1536 = vmul.f32 %v1231, %v1231
      %v1537 = vmul.f32 %v1236, %v1236
      %v1538 = vmul.f32 %v1239, %v1239
      %v1539 = vmul.f32 %v1244, %v1244
      %v1540 = vmul.f32 %v1247, %v1247
      %v1541 = vmul.f32 %v1252, %v1252
      %v1542 = vmul.f32 %v1255, %v1255
      %v1543 = vmul.f32 %v1260, %v1260
      %v1544 = vmul.f32 %v1263, %v1263
      %v1545 = vmul.f32 %v1268, %v1268
      %v1546 = vmul.f32 %v1271, %v1271
      %v1547 = vmul.f32 %v1276, %v1276
      %v1548 = vmul.f32 %v1279, %v1279
      %v1549 = vmul.f32 %v1284, %v1284
      %v1550 = vmul.f32 %v1287, %v1287
      %v1551 = vadd.f32 %v1423, %v1424
      %v1552 = vadd.f32 %v1551, %v1425
      %v1553 = vadd.f32 %v1552, %v1426
      %v1554 = vadd.f32 %v1553, %v1427
      %v1555 = vadd.f32 %v1554, %v1428
      %v1556 = vadd.f32 %v1555, %v1429
      %v1557 = vadd.f32 %v1556, %v1430
      %v1558 = vadd.f32 %v1557, %v1431
      %v1559 = vadd.f32 %v1558, %v1432
      %v1560 = vadd.f32 %v1559, %v1433
      %v1561 = vadd.f32 %v1560, %v1434
      %v1562 = vadd.f32 %v1561, %v1435
      %v1563 = vadd.f32 %v1562, %v1436
      %v1564 = vadd.f32 %v1563, %v1437
      %v1565 = vadd.f32 %v1564, %v1438
      %v1566 = vadd.f32 %v1565, %v1439
      %v1567 = vadd.f32 %v1566, %v1440
      %v1568 = vadd.f32 %v1567, %v1441
      %v1569 = vadd.f32 %v1568, %v1442
      %v1570 = vadd.f32 %v1569, %v1443
      %v1571 = vadd.f32 %v1570, %v1444
      %v1572 = vadd.f32 %v1571, %v1445
      %v1573 = vadd.f32 %v1572, %v1446
      %v1574 = vadd.f32 %v1573, %v1447
      %v1575 = vadd.f32 %v1574, %v1448
      %v1576 = vadd.f32 %v1575, %v1449
      %v1577 = vadd.f32 %v1576, %v1450
      %v1578 = vadd.f32 %v1577, %v1451
      %v1579 = vadd.f32 %v1578, %v1452
      %v1580 = vadd.f32 %v1579, %v1453
      %v1581 = vadd.f32 %v1580, %v1454
      %v1582 = vadd.f32 %v1581, %v1455
      %v1583 = vadd.f32 %v1582, %v1456
      %v1584 = vadd.f32 %v1583, %v1457
      %v1585 = vadd.f32 %v1584, %v1458
      %v1586 = vadd.f32 %v1585, %v1459
      %v1587 = vadd.f32 %v1586, %v1460
      %v1588 = vadd.f32 %v1587, %v1461
      %v1589 = vadd.f32 %v1588, %v1462
      %v1590 = vadd.f32 %v1589, %v1463
      %v1591 = vadd.f32 %v1590, %v1464
      %v1592 = vadd.f32 %v1591, %v1465
      %v1593 = vadd.f32 %v1592, %v1466
      %v1594 = vadd.f32 %v1593, %v1467
      %v1595 = vadd.f32 %v1594, %v1468
      %v1596 = vadd.f32 %v1595, %v1469
      %v1597 = vadd.f32 %v1596, %v1470
      %v1598 = vadd.f32 %v1597, %v1471
      %v1599 = vadd.f32 %v1598, %v1472
      %v1600 = vadd.f32 %v1599, %v1473
      %v1601 = vadd.f32 %v1600, %v1474
      %v1602 = vadd.f32 %v1601, %v1475
      %v1603 = vadd.f32 %v1602, %v1476
      %v1604 = vadd.f32 %v1603, %v1477
      %v1605 = vadd.f32 %v1604, %v1478
      %v1606 = vadd.f32 %v1605, %v1479
      %v1607 = vadd.f32 %v1606, %v1480
      %v1608 = vadd.f32 %v1607, %v1481
      %v1609 = vadd.f32 %v1608, %v1482
      %v1610 = vadd.f32 %v1609, %v1483
      %v1611 = vadd.f32 %v1610, %v1484
      %v1612 = vadd.f32 %v1611, %v1485
      %v1613 = vadd.f32 %v1612, %v1486
      %v1614 = vadd.f32 %v1613, %v1487
      %v1615 = vadd.f32 %v1614, %v1488
      %v1616 = vadd.f32 %v1615, %v1489
      %v1617 = vadd.f32 %v1616, %v1490
      %v1618 = vadd.f32 %v1617, %v1491
      %v1619 = vadd.f32 %v1618, %v1492
      %v1620 = vadd.f32 %v1619, %v1493
      %v1621 = vadd.f32 %v1620, %v1494
      %v1622 = vadd.f32 %v1621, %v1495
      %v1623 = vadd.f32 %v1622, %v1496
      %v1624 = vadd.f32 %v1623, %v1497
      %v1625 = vadd.f32 %v1624, %v1498
      %v1626 = vadd.f32 %v1625, %v1499
      %v1627 = vadd.f32 %v1626, %v1500
      %v1628 = vadd.f32 %v1627, %v1501
      %v1629 = vadd.f32 %v1628, %v1502
      %v1630 = vadd.f32 %v1629, %v1503
      %v1631 = vadd.f32 %v1630, %v1504
      %v1632 = vadd.f32 %v1631, %v1505
      %v1633 = vadd.f32 %v1632, %v1506
      %v1634 = vadd.f32 %v1633, %v1507
      %v1635 = vadd.f32 %v1634, %v1508
      %v1636 = vadd.f32 %v1635, %v1509
      %v1637 = vadd.f32 %v1636, %v1510
      %v1638 = vadd.f32 %v1637, %v1511
      %v1639 = vadd.f32 %v1638, %v1512
      %v1640 = vadd.f32 %v1639, %v1513
      %v1641 = vadd.f32 %v1640, %v1514
      %v1642 = vadd.f32 %v1641, %v1515
      %v1643 = vadd.f32 %v1642, %v1516
      %v1644 = vadd.f32 %v1643, %v1517
      %v1645 = vadd.f32 %v1644, %v1518
      %v1646 = vadd.f32 %v1645, %v1519
      %v1647 = vadd.f32 %v1646, %v1520
      %v1648 = vadd.f32 %v1647, %v1521
      %v1649 = vadd.f32 %v1648, %v1522
      %v1650 = vadd.f32 %v1649, %v1523
      %v1651 = vadd.f32 %v1650, %v1524
      %v1652 = vadd.f32 %v1651, %v1525
      %v1653 = vadd.f32 %v1652, %v1526
      %v1654 = vadd.f32 %v1653, %v1527
      %v1655 = vadd.f32 %v1654, %v1528
      %v1656 = vadd.f32 %v1655, %v1529
      %v1657 = vadd.f32 %v1656, %v1530
      %v1658 = vadd.f32 %v1657, %v1531
      %v1659 = vadd.f32 %v1658, %v1532
      %v1660 = vadd.f32 %v1659, %v1533
      %v1661 = vadd.f32 %v1660, %v1534
      %v1662 = vadd.f32 %v1661, %v1535
      %v1663 = vadd.f32 %v1662, %v1536
      %v1664 = vadd.f32 %v1663, %v1537
      %v1665 = vadd.f32 %v1664, %v1538
      %v1666 = vadd.f32 %v1665, %v1539
      %v1667 = vadd.f32 %v1666, %v1540
      %v1668 = vadd.f32 %v1667, %v1541
      %v1669 = vadd.f32 %v1668, %v1542
      %v1670 = vadd.f32 %v1669, %v1543
      %v1671 = vadd.f32 %v1670, %v1544
      %v1672 = vadd.f32 %v1671, %v1545
      %v1673 = vadd.f32 %v1672, %v1546
      %v1674 = vadd.f32 %v1673, %v1547
      %v1675 = vadd.f32 %v1674, %v1548
      %v1676 = vadd.f32 %v1675, %v1549
      %v1677 = vadd.f32 %v1676, %v1550
      %v1678 = vrot.slane %v1677, 4
      %v1679 = vadd.f32 %v1677, %v1678
      %v1680 = vrot.slane %v1679, 2
      %v1681 = vadd.f32 %v1679, %v1680
      %v1682 = vrot.slane %v1681, 1
      %v1683 = vadd.f32 %v1681, %v1682
      %v1684 = vld [vmem:[%s162] sm:$0x3]
      %vm1685 = vcmask 1040384
      %v1686 = vsel %vm1685, %v1422, %v1683
      %v1687 = vadd.f32 %v1684, %v1686
      %1688 = vst [vmem:[%s162] sm:$0x3] %v1687
      %p1689 = scmp.lt.s32.totalorder %s17, 1
      %s1690 = scalar_select %p1689, %s17, 1
      %s1691 = smul.addr %s1690, 2
      %s1692 = scalar_lea.vmem %s2, %s1691
      // Predicated region
      $region33: #{_lambda_.10} parent=27 // pred_check
        %p1693 = pneg %p92
      $region34: #{_lambda_.10} parent=27 // pred_check_branch
        %1695 = sbr.rel (%p1693) target = $region36
      $region35: #{_lambda_.10} parent=27 // pred_region
        _
      $region36: #{_lambda_.10} parent=27 // pred_fallthru
        _
    $region28: #{_lambda_.10} parent=5 // pred_fallthru
      _
    %p1696 = scmp.le.s32.totalorder 2, %s8
    // Predicated region
    $region37: #{_lambda_.10} parent=5 // pred_check
      %p1697 = pneg %p1696
    $region38: #{_lambda_.10} parent=5 // pred_check_branch
      %1699 = sbr.rel (%p1697) target = $region40
    $region39: #{_lambda_.10} parent=5 // pred_region
      %s1700 = ssub.s32 %s8, 2
      // Predicated region
      $region41: #{_lambda_.10} parent=39 // pred_check
        %p1701 = pneg %p98
      $region42: #{_lambda_.10} parent=39 // pred_check_branch
        %1703 = sbr.rel (%p1701) target = $region44
      $region43: #{_lambda_.10} parent=39 // pred_region
        %p1704 = scmp.lt.s32.totalorder %s19, 1
        %s1705 = scalar_select %p1704, %s19, 1
        %s1706 = smul.addr %s1705, 2
        %s1707 = scalar_lea.vmem %s2, %s1706
      $region44: #{_lambda_.10} parent=39 // pred_fallthru
        _
    $region40: #{_lambda_.10} parent=5 // pred_fallthru
      _
  $region6: #{_lambda_.10} parent=0 // loop_footer
    %s12 = sadd.s32 1, %s8
  $region7: #{_lambda_.10} parent=0 // loop_footer_branch
    %7 = sbr.rel target = $region3
  $region8: #{_lambda_.10} parent=0 // loop_exit
    _

// kernel: _lambda_.13
$region0: #{_lambda_.13}
  #allocation0 [shape = 'u32[]', space=smem, size = 0x4, offset = 0x4, fixed_abs, tag = 'smem constant byte address 0x4 - core index']
  #allocation1 [shape = 'u32[144,128]{1,0:T(1,128)}', space=vmem, size = 0x12000, scoped, tag = 'internal scratch']
  %s0 = inlined_call_operand.vmem [shape: bf16[2048,128], index: 0, kind: input, shape index: {}]
  %s1 = inlined_call_operand.vmem [shape: bf16[128,128], index: 1, kind: input, shape index: {}]
  %s2 = inlined_call_operand.vmem [shape: f32[1,128], index: 2, kind: input, shape index: {}]
  %s3 = inlined_call_operand.vmem [shape: f32[1,128], index: 3, kind: input, shape index: {}]
  %s4 = inlined_call_operand.vmem [shape: bf16[2048,128], index: 4, kind: output, shape index: {}]
  %s5 = sld [smem:[#allocation0]]
  $region49: #{_lambda_.13} parent=0
    _
  %s7 = ssub.s32 1, %s5
  %s8 = scalar_select 0, %s7, %s5
  loop: start=0, step=1, limit=4
  $region2: #{_lambda_.13} parent=0 // loop_pre_header
    _
  $region3: #{_lambda_.13} parent=0 // loop_header
    %s10 = sphi 0, %s14
    %p11 = scmp.ge.s32.totalorder %s10, 4
    %s20 = sphi 0, %s22
    %s23 = sphi 0, %s20
    %s24 = sphi 0, %s23
    %s40 = sphi 0, %s24
    %s44 = sphi 0, %s44
    %s46 = sphi 0, %s44
    %s47 = sphi 0, %s46
    %s61 = sphi 0, %s47
    %s65 = sphi 0, %s65
    %s67 = sphi 0, %s65
    %s68 = sphi 0, %s67
    %s82 = sphi 0, %s68
    %s86 = sphi 0, %s86
    %s88 = sphi 0, %s86
    %s89 = sphi 0, %s88
    %s103 = sphi 0, %s89
    %s109 = sphi 0, %s111
    %s112 = sphi 0, %s109
    %s113 = sphi 0, %s112
    %s129 = sphi 0, %s113
  $region4: #{_lambda_.13} parent=0 // loop_header_branch
    %13 = sbr.rel (%p11) target = $region8
  $region5: #{_lambda_.13} parent=0 // loop_body
    %s15 = ssub.s32 %s10, 1
    %s16 = ssub.s32 %s10, 2
    %s17 = sadd.s32 %s10, 1
    %s18 = ssub.s32 %s10, %s17
    %p19 = scmp.eq.s32.totalorder %s18, 0
    %s21 = sadd.s32 %s20, 1
    %s22 = scalar_select %p19, %s20, %s21
    %p25 = pneg %p19
    %p26 = scmp.eq.s32.totalorder %s10, 1
    %p27 = por %p25, %p26
    %p28 = scmp.ne.s32.totalorder %s20, %s23
    %p29 = scmp.eq.s32.totalorder %s10, 0
    %p30 = por %p28, %p29
    %p31 = scmp.ne.s32.totalorder %s20, %s23
    %p32 = scmp.eq.s32.totalorder %s15, 1
    %p33 = por %p31, %p32
    %p34 = scmp.ne.s32.totalorder %s23, %s24
    %p35 = scmp.eq.s32.totalorder %s15, 0
    %p36 = por %p34, %p35
    %p37 = scmp.ne.s32.totalorder %s23, %s24
    %p38 = scmp.eq.s32.totalorder %s16, 1
    %p39 = por %p37, %p38
    %p41 = scmp.ne.s32.totalorder %s24, %s40
    %p42 = scmp.eq.s32.totalorder %s16, 0
    %p43 = por %p41, %p42
    %s45 = sadd.s32 %s44, 1
    %p48 = scmp.eq.s32.totalorder %s10, 1
    %p49 = scmp.ne.s32.totalorder %s44, %s46
    %p50 = scmp.eq.s32.totalorder %s10, 0
    %p51 = por %p49, %p50
    %p52 = scmp.ne.s32.totalorder %s44, %s46
    %p53 = scmp.eq.s32.totalorder %s15, 1
    %p54 = por %p52, %p53
    %p55 = scmp.ne.s32.totalorder %s46, %s47
    %p56 = scmp.eq.s32.totalorder %s15, 0
    %p57 = por %p55, %p56
    %p58 = scmp.ne.s32.totalorder %s46, %s47
    %p59 = scmp.eq.s32.totalorder %s16, 1
    %p60 = por %p58, %p59
    %p62 = scmp.ne.s32.totalorder %s47, %s61
    %p63 = scmp.eq.s32.totalorder %s16, 0
    %p64 = por %p62, %p63
    %s66 = sadd.s32 %s65, 1
    %p69 = scmp.eq.s32.totalorder %s10, 1
    %p70 = scmp.ne.s32.totalorder %s65, %s67
    %p71 = scmp.eq.s32.totalorder %s10, 0
    %p72 = por %p70, %p71
    %p73 = scmp.ne.s32.totalorder %s65, %s67
    %p74 = scmp.eq.s32.totalorder %s15, 1
    %p75 = por %p73, %p74
    %p76 = scmp.ne.s32.totalorder %s67, %s68
    %p77 = scmp.eq.s32.totalorder %s15, 0
    %p78 = por %p76, %p77
    %p79 = scmp.ne.s32.totalorder %s67, %s68
    %p80 = scmp.eq.s32.totalorder %s16, 1
    %p81 = por %p79, %p80
    %p83 = scmp.ne.s32.totalorder %s68, %s82
    %p84 = scmp.eq.s32.totalorder %s16, 0
    %p85 = por %p83, %p84
    %s87 = sadd.s32 %s86, 1
    %p90 = scmp.eq.s32.totalorder %s10, 1
    %p91 = scmp.ne.s32.totalorder %s86, %s88
    %p92 = scmp.eq.s32.totalorder %s10, 0
    %p93 = por %p91, %p92
    %p94 = scmp.ne.s32.totalorder %s86, %s88
    %p95 = scmp.eq.s32.totalorder %s15, 1
    %p96 = por %p94, %p95
    %p97 = scmp.ne.s32.totalorder %s88, %s89
    %p98 = scmp.eq.s32.totalorder %s15, 0
    %p99 = por %p97, %p98
    %p100 = scmp.ne.s32.totalorder %s88, %s89
    %p101 = scmp.eq.s32.totalorder %s16, 1
    %p102 = por %p100, %p101
    %p104 = scmp.ne.s32.totalorder %s89, %s103
    %p105 = scmp.eq.s32.totalorder %s16, 0
    %p106 = por %p104, %p105
    %s107 = ssub.s32 %s10, %s17
    %p108 = scmp.eq.s32.totalorder %s107, 0
    %s110 = sadd.s32 %s109, 1
    %s111 = scalar_select %p108, %s109, %s110
    %p114 = pneg %p108
    %p115 = scmp.eq.s32.totalorder %s10, 1
    %p116 = por %p114, %p115
    %p117 = scmp.ne.s32.totalorder %s109, %s112
    %p118 = scmp.eq.s32.totalorder %s10, 0
    %p119 = por %p117, %p118
    %p120 = scmp.ne.s32.totalorder %s109, %s112
    %p121 = scmp.eq.s32.totalorder %s15, 1
    %p122 = por %p120, %p121
    %p123 = scmp.ne.s32.totalorder %s112, %s113
    %p124 = scmp.eq.s32.totalorder %s15, 0
    %p125 = por %p123, %p124
    %p126 = scmp.ne.s32.totalorder %s112, %s113
    %p127 = scmp.eq.s32.totalorder %s16, 1
    %p128 = por %p126, %p127
    %p130 = scmp.ne.s32.totalorder %s113, %s129
    %p131 = scmp.eq.s32.totalorder %s16, 0
    %p132 = por %p130, %p131
    %p133 = scmp.le.s32.totalorder 1, %s10
    %p134 = scmp.lt.s32.totalorder %s10, 3
    %p135 = pnand %p133, %p134
    %p136 = pneg %p135
    // Predicated region
    $region9: #{_lambda_.13} parent=5 // pred_check
      _
    $region10: #{_lambda_.13} parent=5 // pred_check_branch
      %138 = sbr.rel (%p135) target = $region12
    $region11: #{_lambda_.13} parent=5 // pred_region
      %s139 = ssub.s32 %s10, 1
      // Predicated region
      $region13: #{_lambda_.13} parent=11 // pred_check
        %p140 = pneg %p57
      $region14: #{_lambda_.13} parent=11 // pred_check_branch
        %142 = sbr.rel (%p140) target = $region16
      $region15: #{_lambda_.13} parent=11 // pred_region
        _
      $region16: #{_lambda_.13} parent=11 // pred_fallthru
        _
      // Predicated region
      $region17: #{_lambda_.13} parent=11 // pred_check
        %p143 = pneg %p78
      $region18: #{_lambda_.13} parent=11 // pred_check_branch
        %145 = sbr.rel (%p143) target = $region20
      $region19: #{_lambda_.13} parent=11 // pred_region
        _
      $region20: #{_lambda_.13} parent=11 // pred_fallthru
        _
      // Predicated region
      $region21: #{_lambda_.13} parent=11 // pred_check
        %p146 = pneg %p99
      $region22: #{_lambda_.13} parent=11 // pred_check_branch
        %148 = sbr.rel (%p146) target = $region24
      $region23: #{_lambda_.13} parent=11 // pred_region
        _
      $region24: #{_lambda_.13} parent=11 // pred_fallthru
        _
    $region12: #{_lambda_.13} parent=5 // pred_fallthru
      _
    %p149 = scmp.lt.s32.totalorder %s10, 2
    // Predicated region
    $region25: #{_lambda_.13} parent=5 // pred_check
      %p150 = pneg %p149
    $region26: #{_lambda_.13} parent=5 // pred_check_branch
      %152 = sbr.rel (%p150) target = $region28
    $region27: #{_lambda_.13} parent=5 // pred_region
      // Predicated region
      $region29: #{_lambda_.13} parent=27 // pred_check
        %p153 = pneg %p30
      $region30: #{_lambda_.13} parent=27 // pred_check_branch
        %155 = sbr.rel (%p153) target = $region32
      $region31: #{_lambda_.13} parent=27 // pred_region
        %s156 = smul.u32 128, %s10
        %p157 = scmp.lt.s32.totalorder %s156, 255
        %s158 = scalar_select %p157, %s156, 255
        %s159 = smul.addr %s158, 4
        %s160 = scalar_lea.vmem %s0, %s159
        %s161 = smul.u32 128, %s10
      $region32: #{_lambda_.13} parent=27 // pred_fallthru
        _
    $region28: #{_lambda_.13} parent=5 // pred_fallthru
      _
    %p162 = scmp.le.s32.totalorder 1, %s10
    %p163 = scmp.lt.s32.totalorder %s10, 3
    %p164 = pnand %p162, %p163
    %p165 = pneg %p164
    // Predicated region
    $region33: #{_lambda_.13} parent=5 // pred_check
      _
    $region34: #{_lambda_.13} parent=5 // pred_check_branch
      %167 = sbr.rel (%p164) target = $region36
    $region35: #{_lambda_.13} parent=5 // pred_region
      %s168 = ssub.s32 %s10, 1
      %s169 = smul.u32 128, %s15
      %p170 = scmp.lt.s32.totalorder %s169, 255
      %s171 = scalar_select %p170, %s169, 255
      %s172 = smul.addr %s171, 4
      %s173 = scalar_lea.vmem %s0, %s172
      %p174 = pneg %p36
      %p175 = pneg %p33
      %p176 = pneg %p57
      %p177 = pneg %p54
      %p178 = pneg %p78
      %p179 = pneg %p75
      %p180 = pneg %p99
      %p181 = pneg %p96
      %p182 = pneg %p125
      %p183 = pneg %p122
      %s184 = smul.u32 128, %s15
      %p185 = scmp.lt.s32.totalorder %s184, 255
      %s186 = scalar_select %p185, %s184, 255
      %s187 = smul.addr %s186, 4
      %s188 = scalar_lea.vmem %s4, %s187
      %s189 = smul.u32 128, %s15
      %p190 = scmp.lt.s32.totalorder %s189, 255
      %s191 = scalar_select %p190, %s189, 255
      %s192 = smul.addr %s191, 4
      %s193 = scalar_lea.vmem %s0, %s192
      %s194 = smul.u32 128, %s15
      %s195 = smul.u32 128, %s15
      %p196 = scmp.lt.s32.totalorder %s195, 255
      %s197 = scalar_select %p196, %s195, 255
      %s198 = smul.addr %s197, 4
      %s199 = scalar_lea.vmem %s4, %s198
      %s200 = smul.u32 128, %s15
      %v202 = vld [vmem:[%s193] sm:$0xf]
      %v203 = vld [vmem:[%s193 + $0x4] sm:$0xf]
      %v204 = vld [vmem:[%s193 + $0x8] sm:$0xf]
      %v205 = vld [vmem:[%s193 + $0xc] sm:$0xf]
      %v206 = vld [vmem:[%s193 + $0x10] sm:$0xf]
      %v207 = vld [vmem:[%s193 + $0x14] sm:$0xf]
      %v208 = vld [vmem:[%s193 + $0x18] sm:$0xf]
      %v209 = vld [vmem:[%s193 + $0x1c] sm:$0xf]
      %v210 = vld [vmem:[%s193 + $0x20] sm:$0xf]
      %v211 = vld [vmem:[%s193 + $0x24] sm:$0xf]
      %v212 = vld [vmem:[%s193 + $0x28] sm:$0xf]
      %v213 = vld [vmem:[%s193 + $0x2c] sm:$0xf]
      %v214 = vld [vmem:[%s193 + $0x30] sm:$0xf]
      %v215 = vld [vmem:[%s193 + $0x34] sm:$0xf]
      %v216 = vld [vmem:[%s193 + $0x38] sm:$0xf]
      %v217 = vld [vmem:[%s193 + $0x3c] sm:$0xf]
      %v218 = vld [vmem:[%s193 + $0x40] sm:$0xf]
      %v219 = vld [vmem:[%s193 + $0x44] sm:$0xf]
      %v220 = vld [vmem:[%s193 + $0x48] sm:$0xf]
      %v221 = vld [vmem:[%s193 + $0x4c] sm:$0xf]
      %v222 = vld [vmem:[%s193 + $0x50] sm:$0xf]
      %v223 = vld [vmem:[%s193 + $0x54] sm:$0xf]
      %v224 = vld [vmem:[%s193 + $0x58] sm:$0xf]
      %v225 = vld [vmem:[%s193 + $0x5c] sm:$0xf]
      %v226 = vld [vmem:[%s193 + $0x60] sm:$0xf]
      %v227 = vld [vmem:[%s193 + $0x64] sm:$0xf]
      %v228 = vld [vmem:[%s193 + $0x68] sm:$0xf]
      %v229 = vld [vmem:[%s193 + $0x6c] sm:$0xf]
      %v230 = vld [vmem:[%s193 + $0x70] sm:$0xf]
      %v231 = vld [vmem:[%s193 + $0x74] sm:$0xf]
      %v232 = vld [vmem:[%s193 + $0x78] sm:$0xf]
      %v233 = vld [vmem:[%s193 + $0x7c] sm:$0xf]
      %v234 = vld [vmem:[%s193 + $0x80] sm:$0xf]
      %v235 = vld [vmem:[%s193 + $0x84] sm:$0xf]
      %v236 = vld [vmem:[%s193 + $0x88] sm:$0xf]
      %v237 = vld [vmem:[%s193 + $0x8c] sm:$0xf]
      %v238 = vld [vmem:[%s193 + $0x90] sm:$0xf]
      %v239 = vld [vmem:[%s193 + $0x94] sm:$0xf]
      %v240 = vld [vmem:[%s193 + $0x98] sm:$0xf]
      %v241 = vld [vmem:[%s193 + $0x9c] sm:$0xf]
      %v242 = vld [vmem:[%s193 + $0xa0] sm:$0xf]
      %v243 = vld [vmem:[%s193 + $0xa4] sm:$0xf]
      %v244 = vld [vmem:[%s193 + $0xa8] sm:$0xf]
      %v245 = vld [vmem:[%s193 + $0xac] sm:$0xf]
      %v246 = vld [vmem:[%s193 + $0xb0] sm:$0xf]
      %v247 = vld [vmem:[%s193 + $0xb4] sm:$0xf]
      %v248 = vld [vmem:[%s193 + $0xb8] sm:$0xf]
      %v249 = vld [vmem:[%s193 + $0xbc] sm:$0xf]
      %v250 = vld [vmem:[%s193 + $0xc0] sm:$0xf]
      %v251 = vld [vmem:[%s193 + $0xc4] sm:$0xf]
      %v252 = vld [vmem:[%s193 + $0xc8] sm:$0xf]
      %v253 = vld [vmem:[%s193 + $0xcc] sm:$0xf]
      %v254 = vld [vmem:[%s193 + $0xd0] sm:$0xf]
      %v255 = vld [vmem:[%s193 + $0xd4] sm:$0xf]
      %v256 = vld [vmem:[%s193 + $0xd8] sm:$0xf]
      %v257 = vld [vmem:[%s193 + $0xdc] sm:$0xf]
      %v258 = vld [vmem:[%s193 + $0xe0] sm:$0xf]
      %v259 = vld [vmem:[%s193 + $0xe4] sm:$0xf]
      %v260 = vld [vmem:[%s193 + $0xe8] sm:$0xf]
      %v261 = vld [vmem:[%s193 + $0xec] sm:$0xf]
      %v262 = vld [vmem:[%s193 + $0xf0] sm:$0xf]
      %v263 = vld [vmem:[%s193 + $0xf4] sm:$0xf]
      %v264 = vld [vmem:[%s193 + $0xf8] sm:$0xf]
      %v265 = vld [vmem:[%s193 + $0xfc] sm:$0xf]
      %v266 = vld [vmem:[%s193 + $0x100] sm:$0xf]
      %v267 = vld [vmem:[%s193 + $0x104] sm:$0xf]
      %v268 = vld [vmem:[%s193 + $0x108] sm:$0xf]
      %v269 = vld [vmem:[%s193 + $0x10c] sm:$0xf]
      %v270 = vld [vmem:[%s193 + $0x110] sm:$0xf]
      %v271 = vld [vmem:[%s193 + $0x114] sm:$0xf]
      %v272 = vld [vmem:[%s193 + $0x118] sm:$0xf]
      %v273 = vld [vmem:[%s193 + $0x11c] sm:$0xf]
      %v274 = vld [vmem:[%s193 + $0x120] sm:$0xf]
      %v275 = vld [vmem:[%s193 + $0x124] sm:$0xf]
      %v276 = vld [vmem:[%s193 + $0x128] sm:$0xf]
      %v277 = vld [vmem:[%s193 + $0x12c] sm:$0xf]
      %v278 = vld [vmem:[%s193 + $0x130] sm:$0xf]
      %v279 = vld [vmem:[%s193 + $0x134] sm:$0xf]
      %v280 = vld [vmem:[%s193 + $0x138] sm:$0xf]
      %v281 = vld [vmem:[%s193 + $0x13c] sm:$0xf]
      %v282 = vld [vmem:[%s193 + $0x140] sm:$0xf]
      %v283 = vld [vmem:[%s193 + $0x144] sm:$0xf]
      %v284 = vld [vmem:[%s193 + $0x148] sm:$0xf]
      %v285 = vld [vmem:[%s193 + $0x14c] sm:$0xf]
      %v286 = vld [vmem:[%s193 + $0x150] sm:$0xf]
      %v287 = vld [vmem:[%s193 + $0x154] sm:$0xf]
      %v288 = vld [vmem:[%s193 + $0x158] sm:$0xf]
      %v289 = vld [vmem:[%s193 + $0x15c] sm:$0xf]
      %v290 = vld [vmem:[%s193 + $0x160] sm:$0xf]
      %v291 = vld [vmem:[%s193 + $0x164] sm:$0xf]
      %v292 = vld [vmem:[%s193 + $0x168] sm:$0xf]
      %v293 = vld [vmem:[%s193 + $0x16c] sm:$0xf]
      %v294 = vld [vmem:[%s193 + $0x170] sm:$0xf]
      %v295 = vld [vmem:[%s193 + $0x174] sm:$0xf]
      %v296 = vld [vmem:[%s193 + $0x178] sm:$0xf]
      %v297 = vld [vmem:[%s193 + $0x17c] sm:$0xf]
      %v298 = vld [vmem:[%s193 + $0x180] sm:$0xf]
      %v299 = vld [vmem:[%s193 + $0x184] sm:$0xf]
      %v300 = vld [vmem:[%s193 + $0x188] sm:$0xf]
      %v301 = vld [vmem:[%s193 + $0x18c] sm:$0xf]
      %v302 = vld [vmem:[%s193 + $0x190] sm:$0xf]
      %v303 = vld [vmem:[%s193 + $0x194] sm:$0xf]
      %v304 = vld [vmem:[%s193 + $0x198] sm:$0xf]
      %v305 = vld [vmem:[%s193 + $0x19c] sm:$0xf]
      %v306 = vld [vmem:[%s193 + $0x1a0] sm:$0xf]
      %v307 = vld [vmem:[%s193 + $0x1a4] sm:$0xf]
      %v308 = vld [vmem:[%s193 + $0x1a8] sm:$0xf]
      %v309 = vld [vmem:[%s193 + $0x1ac] sm:$0xf]
      %v310 = vld [vmem:[%s193 + $0x1b0] sm:$0xf]
      %v311 = vld [vmem:[%s193 + $0x1b4] sm:$0xf]
      %v312 = vld [vmem:[%s193 + $0x1b8] sm:$0xf]
      %v313 = vld [vmem:[%s193 + $0x1bc] sm:$0xf]
      %v314 = vld [vmem:[%s193 + $0x1c0] sm:$0xf]
      %v315 = vld [vmem:[%s193 + $0x1c4] sm:$0xf]
      %v316 = vld [vmem:[%s193 + $0x1c8] sm:$0xf]
      %v317 = vld [vmem:[%s193 + $0x1cc] sm:$0xf]
      %v318 = vld [vmem:[%s193 + $0x1d0] sm:$0xf]
      %v319 = vld [vmem:[%s193 + $0x1d4] sm:$0xf]
      %v320 = vld [vmem:[%s193 + $0x1d8] sm:$0xf]
      %v321 = vld [vmem:[%s193 + $0x1dc] sm:$0xf]
      %v322 = vld [vmem:[%s193 + $0x1e0] sm:$0xf]
      %v323 = vld [vmem:[%s193 + $0x1e4] sm:$0xf]
      %v324 = vld [vmem:[%s193 + $0x1e8] sm:$0xf]
      %v325 = vld [vmem:[%s193 + $0x1ec] sm:$0xf]
      %v326 = vld [vmem:[%s193 + $0x1f0] sm:$0xf]
      %v327 = vld [vmem:[%s193 + $0x1f4] sm:$0xf]
      %v328 = vld [vmem:[%s193 + $0x1f8] sm:$0xf]
      %v329 = vld [vmem:[%s193 + $0x1fc] sm:$0xf]
      %v330 = vld [vmem:[%s1] sm:$0xf]
      %v331 = vld [vmem:[%s1 + $0x4] sm:$0xf]
      %v332 = vld [vmem:[%s1 + $0x8] sm:$0xf]
      %v333 = vld [vmem:[%s1 + $0xc] sm:$0xf]
      %v334 = vld [vmem:[%s1 + $0x10] sm:$0xf]
      %v335 = vld [vmem:[%s1 + $0x14] sm:$0xf]
      %v336 = vld [vmem:[%s1 + $0x18] sm:$0xf]
      %v337 = vld [vmem:[%s1 + $0x1c] sm:$0xf]
      %v338 = vld [vmem:[%s1 + $0x20] sm:$0xf]
      %v339 = vld [vmem:[%s1 + $0x24] sm:$0xf]
      %v340 = vld [vmem:[%s1 + $0x28] sm:$0xf]
      %v341 = vld [vmem:[%s1 + $0x2c] sm:$0xf]
      %v342 = vld [vmem:[%s1 + $0x30] sm:$0xf]
      %v343 = vld [vmem:[%s1 + $0x34] sm:$0xf]
      %v344 = vld [vmem:[%s1 + $0x38] sm:$0xf]
      %v345 = vld [vmem:[%s1 + $0x3c] sm:$0xf]
      %v474 = vunpack.c.l.b16 %v202
      %v475 = vunpack.c.l.b16 %v203
      %v476 = vunpack.c.l.b16 %v204
      %v477 = vunpack.c.l.b16 %v205
      %v478 = vunpack.c.l.b16 %v206
      %v479 = vunpack.c.l.b16 %v207
      %v480 = vunpack.c.l.b16 %v208
      %v481 = vunpack.c.l.b16 %v209
      %v482 = vunpack.c.l.b16 %v210
      %v483 = vunpack.c.l.b16 %v211
      %v484 = vunpack.c.l.b16 %v212
      %v485 = vunpack.c.l.b16 %v213
      %v486 = vunpack.c.l.b16 %v214
      %v487 = vunpack.c.l.b16 %v215
      %v488 = vunpack.c.l.b16 %v216
      %v489 = vunpack.c.l.b16 %v217
      %v490 = vunpack.c.l.b16 %v218
      %v491 = vunpack.c.l.b16 %v219
      %v492 = vunpack.c.l.b16 %v220
      %v493 = vunpack.c.l.b16 %v221
      %v494 = vunpack.c.l.b16 %v222
      %v495 = vunpack.c.l.b16 %v223
      %v496 = vunpack.c.l.b16 %v224
      %v497 = vunpack.c.l.b16 %v225
      %v498 = vunpack.c.l.b16 %v226
      %v499 = vunpack.c.l.b16 %v227
      %v500 = vunpack.c.l.b16 %v228
      %v501 = vunpack.c.l.b16 %v229
      %v502 = vunpack.c.l.b16 %v230
      %v503 = vunpack.c.l.b16 %v231
      %v504 = vunpack.c.l.b16 %v232
      %v505 = vunpack.c.l.b16 %v233
      %v506 = vunpack.c.l.b16 %v234
      %v507 = vunpack.c.l.b16 %v235
      %v508 = vunpack.c.l.b16 %v236
      %v509 = vunpack.c.l.b16 %v237
      %v510 = vunpack.c.l.b16 %v238
      %v511 = vunpack.c.l.b16 %v239
      %v512 = vunpack.c.l.b16 %v240
      %v513 = vunpack.c.l.b16 %v241
      %v514 = vunpack.c.l.b16 %v242
      %v515 = vunpack.c.l.b16 %v243
      %v516 = vunpack.c.l.b16 %v244
      %v517 = vunpack.c.l.b16 %v245
      %v518 = vunpack.c.l.b16 %v246
      %v519 = vunpack.c.l.b16 %v247
      %v520 = vunpack.c.l.b16 %v248
      %v521 = vunpack.c.l.b16 %v249
      %v522 = vunpack.c.l.b16 %v250
      %v523 = vunpack.c.l.b16 %v251
      %v524 = vunpack.c.l.b16 %v252
      %v525 = vunpack.c.l.b16 %v253
      %v526 = vunpack.c.l.b16 %v254
      %v527 = vunpack.c.l.b16 %v255
      %v528 = vunpack.c.l.b16 %v256
      %v529 = vunpack.c.l.b16 %v257
      %v530 = vunpack.c.l.b16 %v258
      %v531 = vunpack.c.l.b16 %v259
      %v532 = vunpack.c.l.b16 %v260
      %v533 = vunpack.c.l.b16 %v261
      %v534 = vunpack.c.l.b16 %v262
      %v535 = vunpack.c.l.b16 %v263
      %v536 = vunpack.c.l.b16 %v264
      %v537 = vunpack.c.l.b16 %v265
      %v538 = vunpack.c.l.b16 %v266
      %v539 = vunpack.c.l.b16 %v267
      %v540 = vunpack.c.l.b16 %v268
      %v541 = vunpack.c.l.b16 %v269
      %v542 = vunpack.c.l.b16 %v270
      %v543 = vunpack.c.l.b16 %v271
      %v544 = vunpack.c.l.b16 %v272
      %v545 = vunpack.c.l.b16 %v273
      %v546 = vunpack.c.l.b16 %v274
      %v547 = vunpack.c.l.b16 %v275
      %v548 = vunpack.c.l.b16 %v276
      %v549 = vunpack.c.l.b16 %v277
      %v550 = vunpack.c.l.b16 %v278
      %v551 = vunpack.c.l.b16 %v279
      %v552 = vunpack.c.l.b16 %v280
      %v553 = vunpack.c.l.b16 %v281
      %v554 = vunpack.c.l.b16 %v282
      %v555 = vunpack.c.l.b16 %v283
      %v556 = vunpack.c.l.b16 %v284
      %v557 = vunpack.c.l.b16 %v285
      %v558 = vunpack.c.l.b16 %v286
      %v559 = vunpack.c.l.b16 %v287
      %v560 = vunpack.c.l.b16 %v288
      %v561 = vunpack.c.l.b16 %v289
      %v562 = vunpack.c.l.b16 %v290
      %v563 = vunpack.c.l.b16 %v291
      %v564 = vunpack.c.l.b16 %v292
      %v565 = vunpack.c.l.b16 %v293
      %v566 = vunpack.c.l.b16 %v294
      %v567 = vunpack.c.l.b16 %v295
      %v568 = vunpack.c.l.b16 %v296
      %v569 = vunpack.c.l.b16 %v297
      %v570 = vunpack.c.l.b16 %v298
      %v571 = vunpack.c.l.b16 %v299
      %v572 = vunpack.c.l.b16 %v300
      %v573 = vunpack.c.l.b16 %v301
      %v574 = vunpack.c.l.b16 %v302
      %v575 = vunpack.c.l.b16 %v303
      %v576 = vunpack.c.l.b16 %v304
      %v577 = vunpack.c.l.b16 %v305
      %v578 = vunpack.c.l.b16 %v306
      %v579 = vunpack.c.l.b16 %v307
      %v580 = vunpack.c.l.b16 %v308
      %v581 = vunpack.c.l.b16 %v309
      %v582 = vunpack.c.l.b16 %v310
      %v583 = vunpack.c.l.b16 %v311
      %v584 = vunpack.c.l.b16 %v312
      %v585 = vunpack.c.l.b16 %v313
      %v586 = vunpack.c.l.b16 %v314
      %v587 = vunpack.c.l.b16 %v315
      %v588 = vunpack.c.l.b16 %v316
      %v589 = vunpack.c.l.b16 %v317
      %v590 = vunpack.c.l.b16 %v318
      %v591 = vunpack.c.l.b16 %v319
      %v592 = vunpack.c.l.b16 %v320
      %v593 = vunpack.c.l.b16 %v321
      %v594 = vunpack.c.l.b16 %v322
      %v595 = vunpack.c.l.b16 %v323
      %v596 = vunpack.c.l.b16 %v324
      %v597 = vunpack.c.l.b16 %v325
      %v598 = vunpack.c.l.b16 %v326
      %v599 = vunpack.c.l.b16 %v327
      %v600 = vunpack.c.l.b16 %v328
      %v601 = vunpack.c.l.b16 %v329
      %v602 = vpack.c.b16 %v475, %v474
      %v603 = vpack.c.b16 %v477, %v476
      %v604 = vpack.c.b16 %v479, %v478
      %v605 = vpack.c.b16 %v481, %v480
      %v606 = vpack.c.b16 %v483, %v482
      %v607 = vpack.c.b16 %v485, %v484
      %v608 = vpack.c.b16 %v487, %v486
      %v609 = vpack.c.b16 %v489, %v488
      %v610 = vpack.c.b16 %v491, %v490
      %v611 = vpack.c.b16 %v493, %v492
      %v612 = vpack.c.b16 %v495, %v494
      %v613 = vpack.c.b16 %v497, %v496
      %v614 = vpack.c.b16 %v499, %v498
      %v615 = vpack.c.b16 %v501, %v500
      %v616 = vpack.c.b16 %v503, %v502
      %v617 = vpack.c.b16 %v505, %v504
      %v618 = vpack.c.b16 %v507, %v506
      %v619 = vpack.c.b16 %v509, %v508
      %v620 = vpack.c.b16 %v511, %v510
      %v621 = vpack.c.b16 %v513, %v512
      %v622 = vpack.c.b16 %v515, %v514
      %v623 = vpack.c.b16 %v517, %v516
      %v624 = vpack.c.b16 %v519, %v518
      %v625 = vpack.c.b16 %v521, %v520
      %v626 = vpack.c.b16 %v523, %v522
      %v627 = vpack.c.b16 %v525, %v524
      %v628 = vpack.c.b16 %v527, %v526
      %v629 = vpack.c.b16 %v529, %v528
      %v630 = vpack.c.b16 %v531, %v530
      %v631 = vpack.c.b16 %v533, %v532
      %v632 = vpack.c.b16 %v535, %v534
      %v633 = vpack.c.b16 %v537, %v536
      %v634 = vpack.c.b16 %v539, %v538
      %v635 = vpack.c.b16 %v541, %v540
      %v636 = vpack.c.b16 %v543, %v542
      %v637 = vpack.c.b16 %v545, %v544
      %v638 = vpack.c.b16 %v547, %v546
      %v639 = vpack.c.b16 %v549, %v548
      %v640 = vpack.c.b16 %v551, %v550
      %v641 = vpack.c.b16 %v553, %v552
      %v642 = vpack.c.b16 %v555, %v554
      %v643 = vpack.c.b16 %v557, %v556
      %v644 = vpack.c.b16 %v559, %v558
      %v645 = vpack.c.b16 %v561, %v560
      %v646 = vpack.c.b16 %v563, %v562
      %v647 = vpack.c.b16 %v565, %v564
      %v648 = vpack.c.b16 %v567, %v566
      %v649 = vpack.c.b16 %v569, %v568
      %v650 = vpack.c.b16 %v571, %v570
      %v651 = vpack.c.b16 %v573, %v572
      %v652 = vpack.c.b16 %v575, %v574
      %v653 = vpack.c.b16 %v577, %v576
      %v654 = vpack.c.b16 %v579, %v578
      %v655 = vpack.c.b16 %v581, %v580
      %v656 = vpack.c.b16 %v583, %v582
      %v657 = vpack.c.b16 %v585, %v584
      %v658 = vpack.c.b16 %v587, %v586
      %v659 = vpack.c.b16 %v589, %v588
      %v660 = vpack.c.b16 %v591, %v590
      %v661 = vpack.c.b16 %v593, %v592
      %v662 = vpack.c.b16 %v595, %v594
      %v663 = vpack.c.b16 %v597, %v596
      %v664 = vpack.c.b16 %v599, %v598
      %v665 = vpack.c.b16 %v601, %v600
      %v746 = vunpack.c.l.b16 %v330
      %v747 = vunpack.c.l.b16 %v331
      %v748 = vunpack.c.l.b16 %v332
      %v749 = vunpack.c.l.b16 %v333
      %v750 = vunpack.c.l.b16 %v334
      %v751 = vunpack.c.l.b16 %v335
      %v752 = vunpack.c.l.b16 %v336
      %v753 = vunpack.c.l.b16 %v337
      %v754 = vunpack.c.l.b16 %v338
      %v755 = vunpack.c.l.b16 %v339
      %v756 = vunpack.c.l.b16 %v340
      %v757 = vunpack.c.l.b16 %v341
      %v758 = vunpack.c.l.b16 %v342
      %v759 = vunpack.c.l.b16 %v343
      %v760 = vunpack.c.l.b16 %v344
      %v761 = vunpack.c.l.b16 %v345
      %v762 = vpack.c.b16 %v747, %v746
      %v763 = vpack.c.b16 %v749, %v748
      %v764 = vpack.c.b16 %v751, %v750
      %v765 = vpack.c.b16 %v753, %v752
      %v766 = vpack.c.b16 %v755, %v754
      %v767 = vpack.c.b16 %v757, %v756
      %v768 = vpack.c.b16 %v759, %v758
      %v769 = vpack.c.b16 %v761, %v760
      %778 = vmatprep.subr.bf16.mxu0 0
      %779 = vmatpush1.bf16.msra.mxu0 %v762
      %780 = vmatprep.subr.bf16.mxu0 0
      %781 = vmatpush1.bf16.msra.mxu0 %v763
      %782 = vmatprep.subr.bf16.mxu0 0
      %783 = vmatpush1.bf16.msra.mxu0 %v764
      %784 = vmatprep.subr.bf16.mxu0 0
      %785 = vmatpush1.bf16.msra.mxu0 %v765
      %786 = vmatprep.subr.bf16.mxu0 0
      %787 = vmatpush1.bf16.msra.mxu0 %v766
      %788 = vmatprep.subr.bf16.mxu0 0
      %789 = vmatpush1.bf16.msra.mxu0 %v767
      %790 = vmatprep.subr.bf16.mxu0 0
      %791 = vmatpush1.bf16.msra.mxu0 %v768
      %792 = vmatprep.subr.bf16.mxu0 0
      %793 = vmatpush1.bf16.msra.mxu0 %v769
      %794 = vmatprep.subr.bf16.mxu0 0
      %795 = vmatpush1.bf16.msra.mxu0 0
      %796 = vmatprep.subr.bf16.mxu0 0
      %797 = vmatpush1.bf16.msra.mxu0 0
      %798 = vmatprep.subr.bf16.mxu0 0
      %799 = vmatpush1.bf16.msra.mxu0 0
      %800 = vmatprep.subr.bf16.mxu0 0
      %801 = vmatpush1.bf16.msra.mxu0 0
      %802 = vmatprep.subr.bf16.mxu0 0
      %803 = vmatpush1.bf16.msra.mxu0 0
      %804 = vmatprep.subr.bf16.mxu0 0
      %805 = vmatpush1.bf16.msra.mxu0 0
      %806 = vmatprep.subr.bf16.mxu0 0
      %807 = vmatpush1.bf16.msra.mxu0 0
      %808 = vmatprep.subr.bf16.mxu0 0
      %809 = vmatpush1.bf16.msra.mxu0 0
      %810 = vmatprep.mubr.bf16.mxu0 0
      %811 = vmatmul.mubr.bf16.gmra.mrb[0].mxu0 %v602
      %v812 = vpop.f32.mrb[0].mxu0
      %v813 = vadd.f32 0.0, %v812
      %v814 = vpop.f32.mrb[0].mxu0
      %v815 = vpop.f32.mrb[0].mxu0
      %v816 = vadd.f32 0.0, %v815
      %v817 = vpop.f32.mrb[0].mxu0
      %818 = vmatprep.mubr.bf16.mxu0 0
      %819 = vmatmul.mubr.bf16.gmra.mrb[0].mxu0 %v603
      %v820 = vpop.f32.mrb[0].mxu0
      %v821 = vadd.f32 0.0, %v820
      %v822 = vpop.f32.mrb[0].mxu0
      %v823 = vpop.f32.mrb[0].mxu0
      %v824 = vadd.f32 0.0, %v823
      %v825 = vpop.f32.mrb[0].mxu0
      %826 = vmatprep.mubr.bf16.mxu0 0
      %827 = vmatmul.mubr.bf16.gmra.mrb[0].mxu0 %v604
      %v828 = vpop.f32.mrb[0].mxu0
      %v829 = vadd.f32 0.0, %v828
      %v830 = vpop.f32.mrb[0].mxu0
      %v831 = vpop.f32.mrb[0].mxu0
      %v832 = vadd.f32 0.0, %v831
      %v833 = vpop.f32.mrb[0].mxu0
      %834 = vmatprep.mubr.bf16.mxu0 0
      %835 = vmatmul.mubr.bf16.gmra.mrb[0].mxu0 %v605
      %v836 = vpop.f32.mrb[0].mxu0
      %v837 = vadd.f32 0.0, %v836
      %v838 = vpop.f32.mrb[0].mxu0
      %v839 = vpop.f32.mrb[0].mxu0
      %v840 = vadd.f32 0.0, %v839
      %v841 = vpop.f32.mrb[0].mxu0
      %842 = vmatprep.mubr.bf16.mxu0 0
      %843 = vmatmul.mubr.bf16.gmra.mrb[0].mxu0 %v606
      %v844 = vpop.f32.mrb[0].mxu0
      %v845 = vadd.f32 0.0, %v844
      %v846 = vpop.f32.mrb[0].mxu0
      %v847 = vpop.f32.mrb[0].mxu0
      %v848 = vadd.f32 0.0, %v847
      %v849 = vpop.f32.mrb[0].mxu0
      %850 = vmatprep.mubr.bf16.mxu0 0
      %851 = vmatmul.mubr.bf16.gmra.mrb[0].mxu0 %v607
      %v852 = vpop.f32.mrb[0].mxu0
      %v853 = vadd.f32 0.0, %v852
      %v854 = vpop.f32.mrb[0].mxu0
      %v855 = vpop.f32.mrb[0].mxu0
      %v856 = vadd.f32 0.0, %v855
      %v857 = vpop.f32.mrb[0].mxu0
      %858 = vmatprep.mubr.bf16.mxu0 0
      %859 = vmatmul.mubr.bf16.gmra.mrb[0].mxu0 %v608
      %v860 = vpop.f32.mrb[0].mxu0
      %v861 = vadd.f32 0.0, %v860
      %v862 = vpop.f32.mrb[0].mxu0
      %v863 = vpop.f32.mrb[0].mxu0
      %v864 = vadd.f32 0.0, %v863
      %v865 = vpop.f32.mrb[0].mxu0
      %866 = vmatprep.mubr.bf16.mxu0 0
      %867 = vmatmul.mubr.bf16.gmra.mrb[0].mxu0 %v609
      %v868 = vpop.f32.mrb[0].mxu0
      %v869 = vadd.f32 0.0, %v868
      %v870 = vpop.f32.mrb[0].mxu0
      %v871 = vpop.f32.mrb[0].mxu0
      %v872 = vadd.f32 0.0, %v871
      %v873 = vpop.f32.mrb[0].mxu0
      %874 = vmatprep.mubr.bf16.mxu0 0
      %875 = vmatmul.mubr.bf16.gmra.mrb[0].mxu0 %v610
      %v876 = vpop.f32.mrb[0].mxu0
      %v877 = vadd.f32 0.0, %v876
      %v878 = vpop.f32.mrb[0].mxu0
      %v879 = vpop.f32.mrb[0].mxu0
      %v880 = vadd.f32 0.0, %v879
      %v881 = vpop.f32.mrb[0].mxu0
      %882 = vmatprep.mubr.bf16.mxu0 0
      %883 = vmatmul.mubr.bf16.gmra.mrb[0].mxu0 %v611
      %v884 = vpop.f32.mrb[0].mxu0
      %v885 = vadd.f32 0.0, %v884
      %v886 = vpop.f32.mrb[0].mxu0
      %v887 = vpop.f32.mrb[0].mxu0
      %v888 = vadd.f32 0.0, %v887
      %v889 = vpop.f32.mrb[0].mxu0
      %890 = vmatprep.mubr.bf16.mxu0 0
      %891 = vmatmul.mubr.bf16.gmra.mrb[0].mxu0 %v612
      %v892 = vpop.f32.mrb[0].mxu0
      %v893 = vadd.f32 0.0, %v892
      %v894 = vpop.f32.mrb[0].mxu0
      %v895 = vpop.f32.mrb[0].mxu0
      %v896 = vadd.f32 0.0, %v895
      %v897 = vpop.f32.mrb[0].mxu0
      %898 = vmatprep.mubr.bf16.mxu0 0
      %899 = vmatmul.mubr.bf16.gmra.mrb[0].mxu0 %v613
      %v900 = vpop.f32.mrb[0].mxu0
      %v901 = vadd.f32 0.0, %v900
      %v902 = vpop.f32.mrb[0].mxu0
      %v903 = vpop.f32.mrb[0].mxu0
      %v904 = vadd.f32 0.0, %v903
      %v905 = vpop.f32.mrb[0].mxu0
      %906 = vmatprep.mubr.bf16.mxu0 0
      %907 = vmatmul.mubr.bf16.gmra.mrb[0].mxu0 %v614
      %v908 = vpop.f32.mrb[0].mxu0
      %v909 = vadd.f32 0.0, %v908
      %v910 = vpop.f32.mrb[0].mxu0
      %v911 = vpop.f32.mrb[0].mxu0
      %v912 = vadd.f32 0.0, %v911
      %v913 = vpop.f32.mrb[0].mxu0
      %914 = vmatprep.mubr.bf16.mxu0 0
      %915 = vmatmul.mubr.bf16.gmra.mrb[0].mxu0 %v615
      %v916 = vpop.f32.mrb[0].mxu0
      %v917 = vadd.f32 0.0, %v916
      %v918 = vpop.f32.mrb[0].mxu0
      %v919 = vpop.f32.mrb[0].mxu0
      %v920 = vadd.f32 0.0, %v919
      %v921 = vpop.f32.mrb[0].mxu0
      %922 = vmatprep.mubr.bf16.mxu0 0
      %923 = vmatmul.mubr.bf16.gmra.mrb[0].mxu0 %v616
      %v924 = vpop.f32.mrb[0].mxu0
      %v925 = vadd.f32 0.0, %v924
      %v926 = vpop.f32.mrb[0].mxu0
      %v927 = vpop.f32.mrb[0].mxu0
      %v928 = vadd.f32 0.0, %v927
      %v929 = vpop.f32.mrb[0].mxu0
      %930 = vmatprep.mubr.bf16.mxu0 0
      %931 = vmatmul.mubr.bf16.gmra.mrb[0].mxu0 %v617
      %v932 = vpop.f32.mrb[0].mxu0
      %v933 = vadd.f32 0.0, %v932
      %v934 = vpop.f32.mrb[0].mxu0
      %v935 = vpop.f32.mrb[0].mxu0
      %v936 = vadd.f32 0.0, %v935
      %v937 = vpop.f32.mrb[0].mxu0
      %938 = vmatprep.mubr.bf16.mxu0 0
      %939 = vmatmul.mubr.bf16.gmra.mrb[0].mxu0 %v618
      %v940 = vpop.f32.mrb[0].mxu0
      %v941 = vadd.f32 0.0, %v940
      %v942 = vpop.f32.mrb[0].mxu0
      %v943 = vpop.f32.mrb[0].mxu0
      %v944 = vadd.f32 0.0, %v943
      %v945 = vpop.f32.mrb[0].mxu0
      %946 = vmatprep.mubr.bf16.mxu0 0
      %947 = vmatmul.mubr.bf16.gmra.mrb[0].mxu0 %v619
      %v948 = vpop.f32.mrb[0].mxu0
      %v949 = vadd.f32 0.0, %v948
      %v950 = vpop.f32.mrb[0].mxu0
      %v951 = vpop.f32.mrb[0].mxu0
      %v952 = vadd.f32 0.0, %v951
      %v953 = vpop.f32.mrb[0].mxu0
      %954 = vmatprep.mubr.bf16.mxu0 0
      %955 = vmatmul.mubr.bf16.gmra.mrb[0].mxu0 %v620
      %v956 = vpop.f32.mrb[0].mxu0
      %v957 = vadd.f32 0.0, %v956
      %v958 = vpop.f32.mrb[0].mxu0
      %v959 = vpop.f32.mrb[0].mxu0
      %v960 = vadd.f32 0.0, %v959
      %v961 = vpop.f32.mrb[0].mxu0
      %962 = vmatprep.mubr.bf16.mxu0 0
      %963 = vmatmul.mubr.bf16.gmra.mrb[0].mxu0 %v621
      %v964 = vpop.f32.mrb[0].mxu0
      %v965 = vadd.f32 0.0, %v964
      %v966 = vpop.f32.mrb[0].mxu0
      %v967 = vpop.f32.mrb[0].mxu0
      %v968 = vadd.f32 0.0, %v967
      %v969 = vpop.f32.mrb[0].mxu0
      %970 = vmatprep.mubr.bf16.mxu0 0
      %971 = vmatmul.mubr.bf16.gmra.mrb[0].mxu0 %v622
      %v972 = vpop.f32.mrb[0].mxu0
      %v973 = vadd.f32 0.0, %v972
      %v974 = vpop.f32.mrb[0].mxu0
      %v975 = vpop.f32.mrb[0].mxu0
      %v976 = vadd.f32 0.0, %v975
      %v977 = vpop.f32.mrb[0].mxu0
      %978 = vmatprep.mubr.bf16.mxu0 0
      %979 = vmatmul.mubr.bf16.gmra.mrb[0].mxu0 %v623
      %v980 = vpop.f32.mrb[0].mxu0
      %v981 = vadd.f32 0.0, %v980
      %v982 = vpop.f32.mrb[0].mxu0
      %v983 = vpop.f32.mrb[0].mxu0
      %v984 = vadd.f32 0.0, %v983
      %v985 = vpop.f32.mrb[0].mxu0
      %986 = vmatprep.mubr.bf16.mxu0 0
      %987 = vmatmul.mubr.bf16.gmra.mrb[0].mxu0 %v624
      %v988 = vpop.f32.mrb[0].mxu0
      %v989 = vadd.f32 0.0, %v988
      %v990 = vpop.f32.mrb[0].mxu0
      %v991 = vpop.f32.mrb[0].mxu0
      %v992 = vadd.f32 0.0, %v991
      %v993 = vpop.f32.mrb[0].mxu0
      %994 = vmatprep.mubr.bf16.mxu0 0
      %995 = vmatmul.mubr.bf16.gmra.mrb[0].mxu0 %v625
      %v996 = vpop.f32.mrb[0].mxu0
      %v997 = vadd.f32 0.0, %v996
      %v998 = vpop.f32.mrb[0].mxu0
      %v999 = vpop.f32.mrb[0].mxu0
      %v1000 = vadd.f32 0.0, %v999
      %v1001 = vpop.f32.mrb[0].mxu0
      %1002 = vmatprep.mubr.bf16.mxu0 0
      %1003 = vmatmul.mubr.bf16.gmra.mrb[0].mxu0 %v626
      %v1004 = vpop.f32.mrb[0].mxu0
      %v1005 = vadd.f32 0.0, %v1004
      %v1006 = vpop.f32.mrb[0].mxu0
      %v1007 = vpop.f32.mrb[0].mxu0
      %v1008 = vadd.f32 0.0, %v1007
      %v1009 = vpop.f32.mrb[0].mxu0
      %1010 = vmatprep.mubr.bf16.mxu0 0
      %1011 = vmatmul.mubr.bf16.gmra.mrb[0].mxu0 %v627
      %v1012 = vpop.f32.mrb[0].mxu0
      %v1013 = vadd.f32 0.0, %v1012
      %v1014 = vpop.f32.mrb[0].mxu0
      %v1015 = vpop.f32.mrb[0].mxu0
      %v1016 = vadd.f32 0.0, %v1015
      %v1017 = vpop.f32.mrb[0].mxu0
      %1018 = vmatprep.mubr.bf16.mxu0 0
      %1019 = vmatmul.mubr.bf16.gmra.mrb[0].mxu0 %v628
      %v1020 = vpop.f32.mrb[0].mxu0
      %v1021 = vadd.f32 0.0, %v1020
      %v1022 = vpop.f32.mrb[0].mxu0
      %v1023 = vpop.f32.mrb[0].mxu0
      %v1024 = vadd.f32 0.0, %v1023
      %v1025 = vpop.f32.mrb[0].mxu0
      %1026 = vmatprep.mubr.bf16.mxu0 0
      %1027 = vmatmul.mubr.bf16.gmra.mrb[0].mxu0 %v629
      %v1028 = vpop.f32.mrb[0].mxu0
      %v1029 = vadd.f32 0.0, %v1028
      %v1030 = vpop.f32.mrb[0].mxu0
      %v1031 = vpop.f32.mrb[0].mxu0
      %v1032 = vadd.f32 0.0, %v1031
      %v1033 = vpop.f32.mrb[0].mxu0
      %1034 = vmatprep.mubr.bf16.mxu0 0
      %1035 = vmatmul.mubr.bf16.gmra.mrb[0].mxu0 %v630
      %v1036 = vpop.f32.mrb[0].mxu0
      %v1037 = vadd.f32 0.0, %v1036
      %v1038 = vpop.f32.mrb[0].mxu0
      %v1039 = vpop.f32.mrb[0].mxu0
      %v1040 = vadd.f32 0.0, %v1039
      %v1041 = vpop.f32.mrb[0].mxu0
      %1042 = vmatprep.mubr.bf16.mxu0 0
      %1043 = vmatmul.mubr.bf16.gmra.mrb[0].mxu0 %v631
      %v1044 = vpop.f32.mrb[0].mxu0
      %v1045 = vadd.f32 0.0, %v1044
      %v1046 = vpop.f32.mrb[0].mxu0
      %v1047 = vpop.f32.mrb[0].mxu0
      %v1048 = vadd.f32 0.0, %v1047
      %v1049 = vpop.f32.mrb[0].mxu0
      %1050 = vmatprep.mubr.bf16.mxu0 0
      %1051 = vmatmul.mubr.bf16.gmra.mrb[0].mxu0 %v632
      %v1052 = vpop.f32.mrb[0].mxu0
      %v1053 = vadd.f32 0.0, %v1052
      %v1054 = vpop.f32.mrb[0].mxu0
      %v1055 = vpop.f32.mrb[0].mxu0
      %v1056 = vadd.f32 0.0, %v1055
      %v1057 = vpop.f32.mrb[0].mxu0
      %1058 = vmatprep.mubr.bf16.mxu0 0
      %1059 = vmatmul.mubr.bf16.gmra.mrb[0].mxu0 %v633
      %v1060 = vpop.f32.mrb[0].mxu0
      %v1061 = vadd.f32 0.0, %v1060
      %v1062 = vpop.f32.mrb[0].mxu0
      %v1063 = vpop.f32.mrb[0].mxu0
      %v1064 = vadd.f32 0.0, %v1063
      %v1065 = vpop.f32.mrb[0].mxu0
      %1066 = vmatprep.mubr.bf16.mxu0 0
      %1067 = vmatmul.mubr.bf16.gmra.mrb[0].mxu0 %v634
      %v1068 = vpop.f32.mrb[0].mxu0
      %v1069 = vadd.f32 0.0, %v1068
      %v1070 = vpop.f32.mrb[0].mxu0
      %v1071 = vpop.f32.mrb[0].mxu0
      %v1072 = vadd.f32 0.0, %v1071
      %v1073 = vpop.f32.mrb[0].mxu0
      %1074 = vmatprep.mubr.bf16.mxu0 0
      %1075 = vmatmul.mubr.bf16.gmra.mrb[0].mxu0 %v635
      %v1076 = vpop.f32.mrb[0].mxu0
      %v1077 = vadd.f32 0.0, %v1076
      %v1078 = vpop.f32.mrb[0].mxu0
      %v1079 = vpop.f32.mrb[0].mxu0
      %v1080 = vadd.f32 0.0, %v1079
      %v1081 = vpop.f32.mrb[0].mxu0
      %1082 = vmatprep.mubr.bf16.mxu0 0
      %1083 = vmatmul.mubr.bf16.gmra.mrb[0].mxu0 %v636
      %v1084 = vpop.f32.mrb[0].mxu0
      %v1085 = vadd.f32 0.0, %v1084
      %v1086 = vpop.f32.mrb[0].mxu0
      %v1087 = vpop.f32.mrb[0].mxu0
      %v1088 = vadd.f32 0.0, %v1087
      %v1089 = vpop.f32.mrb[0].mxu0
      %1090 = vmatprep.mubr.bf16.mxu0 0
      %1091 = vmatmul.mubr.bf16.gmra.mrb[0].mxu0 %v637
      %v1092 = vpop.f32.mrb[0].mxu0
      %v1093 = vadd.f32 0.0, %v1092
      %v1094 = vpop.f32.mrb[0].mxu0
      %v1095 = vpop.f32.mrb[0].mxu0
      %v1096 = vadd.f32 0.0, %v1095
      %v1097 = vpop.f32.mrb[0].mxu0
      %1098 = vmatprep.mubr.bf16.mxu0 0
      %1099 = vmatmul.mubr.bf16.gmra.mrb[0].mxu0 %v638
      %v1100 = vpop.f32.mrb[0].mxu0
      %v1101 = vadd.f32 0.0, %v1100
      %v1102 = vpop.f32.mrb[0].mxu0
      %v1103 = vpop.f32.mrb[0].mxu0
      %v1104 = vadd.f32 0.0, %v1103
      %v1105 = vpop.f32.mrb[0].mxu0
      %1106 = vmatprep.mubr.bf16.mxu0 0
      %1107 = vmatmul.mubr.bf16.gmra.mrb[0].mxu0 %v639
      %v1108 = vpop.f32.mrb[0].mxu0
      %v1109 = vadd.f32 0.0, %v1108
      %v1110 = vpop.f32.mrb[0].mxu0
      %v1111 = vpop.f32.mrb[0].mxu0
      %v1112 = vadd.f32 0.0, %v1111
      %v1113 = vpop.f32.mrb[0].mxu0
      %1114 = vmatprep.mubr.bf16.mxu0 0
      %1115 = vmatmul.mubr.bf16.gmra.mrb[0].mxu0 %v640
      %v1116 = vpop.f32.mrb[0].mxu0
      %v1117 = vadd.f32 0.0, %v1116
      %v1118 = vpop.f32.mrb[0].mxu0
      %v1119 = vpop.f32.mrb[0].mxu0
      %v1120 = vadd.f32 0.0, %v1119
      %v1121 = vpop.f32.mrb[0].mxu0
      %1122 = vmatprep.mubr.bf16.mxu0 0
      %1123 = vmatmul.mubr.bf16.gmra.mrb[0].mxu0 %v641
      %v1124 = vpop.f32.mrb[0].mxu0
      %v1125 = vadd.f32 0.0, %v1124
      %v1126 = vpop.f32.mrb[0].mxu0
      %v1127 = vpop.f32.mrb[0].mxu0
      %v1128 = vadd.f32 0.0, %v1127
      %v1129 = vpop.f32.mrb[0].mxu0
      %1130 = vmatprep.mubr.bf16.mxu0 0
      %1131 = vmatmul.mubr.bf16.gmra.mrb[0].mxu0 %v642
      %v1132 = vpop.f32.mrb[0].mxu0
      %v1133 = vadd.f32 0.0, %v1132
      %v1134 = vpop.f32.mrb[0].mxu0
      %v1135 = vpop.f32.mrb[0].mxu0
      %v1136 = vadd.f32 0.0, %v1135
      %v1137 = vpop.f32.mrb[0].mxu0
      %1138 = vmatprep.mubr.bf16.mxu0 0
      %1139 = vmatmul.mubr.bf16.gmra.mrb[0].mxu0 %v643
      %v1140 = vpop.f32.mrb[0].mxu0
      %v1141 = vadd.f32 0.0, %v1140
      %v1142 = vpop.f32.mrb[0].mxu0
      %v1143 = vpop.f32.mrb[0].mxu0
      %v1144 = vadd.f32 0.0, %v1143
      %v1145 = vpop.f32.mrb[0].mxu0
      %1146 = vmatprep.mubr.bf16.mxu0 0
      %1147 = vmatmul.mubr.bf16.gmra.mrb[0].mxu0 %v644
      %v1148 = vpop.f32.mrb[0].mxu0
      %v1149 = vadd.f32 0.0, %v1148
      %v1150 = vpop.f32.mrb[0].mxu0
      %v1151 = vpop.f32.mrb[0].mxu0
      %v1152 = vadd.f32 0.0, %v1151
      %v1153 = vpop.f32.mrb[0].mxu0
      %1154 = vmatprep.mubr.bf16.mxu0 0
      %1155 = vmatmul.mubr.bf16.gmra.mrb[0].mxu0 %v645
      %v1156 = vpop.f32.mrb[0].mxu0
      %v1157 = vadd.f32 0.0, %v1156
      %v1158 = vpop.f32.mrb[0].mxu0
      %v1159 = vpop.f32.mrb[0].mxu0
      %v1160 = vadd.f32 0.0, %v1159
      %v1161 = vpop.f32.mrb[0].mxu0
      %1162 = vmatprep.mubr.bf16.mxu0 0
      %1163 = vmatmul.mubr.bf16.gmra.mrb[0].mxu0 %v646
      %v1164 = vpop.f32.mrb[0].mxu0
      %v1165 = vadd.f32 0.0, %v1164
      %v1166 = vpop.f32.mrb[0].mxu0
      %v1167 = vpop.f32.mrb[0].mxu0
      %v1168 = vadd.f32 0.0, %v1167
      %v1169 = vpop.f32.mrb[0].mxu0
      %1170 = vmatprep.mubr.bf16.mxu0 0
      %1171 = vmatmul.mubr.bf16.gmra.mrb[0].mxu0 %v647
      %v1172 = vpop.f32.mrb[0].mxu0
      %v1173 = vadd.f32 0.0, %v1172
      %v1174 = vpop.f32.mrb[0].mxu0
      %v1175 = vpop.f32.mrb[0].mxu0
      %v1176 = vadd.f32 0.0, %v1175
      %v1177 = vpop.f32.mrb[0].mxu0
      %1178 = vmatprep.mubr.bf16.mxu0 0
      %1179 = vmatmul.mubr.bf16.gmra.mrb[0].mxu0 %v648
      %v1180 = vpop.f32.mrb[0].mxu0
      %v1181 = vadd.f32 0.0, %v1180
      %v1182 = vpop.f32.mrb[0].mxu0
      %v1183 = vpop.f32.mrb[0].mxu0
      %v1184 = vadd.f32 0.0, %v1183
      %v1185 = vpop.f32.mrb[0].mxu0
      %1186 = vmatprep.mubr.bf16.mxu0 0
      %1187 = vmatmul.mubr.bf16.gmra.mrb[0].mxu0 %v649
      %v1188 = vpop.f32.mrb[0].mxu0
      %v1189 = vadd.f32 0.0, %v1188
      %v1190 = vpop.f32.mrb[0].mxu0
      %v1191 = vpop.f32.mrb[0].mxu0
      %v1192 = vadd.f32 0.0, %v1191
      %v1193 = vpop.f32.mrb[0].mxu0
      %1194 = vmatprep.mubr.bf16.mxu0 0
      %1195 = vmatmul.mubr.bf16.gmra.mrb[0].mxu0 %v650
      %v1196 = vpop.f32.mrb[0].mxu0
      %v1197 = vadd.f32 0.0, %v1196
      %v1198 = vpop.f32.mrb[0].mxu0
      %v1199 = vpop.f32.mrb[0].mxu0
      %v1200 = vadd.f32 0.0, %v1199
      %v1201 = vpop.f32.mrb[0].mxu0
      %1202 = vmatprep.mubr.bf16.mxu0 0
      %1203 = vmatmul.mubr.bf16.gmra.mrb[0].mxu0 %v651
      %v1204 = vpop.f32.mrb[0].mxu0
      %v1205 = vadd.f32 0.0, %v1204
      %v1206 = vpop.f32.mrb[0].mxu0
      %v1207 = vpop.f32.mrb[0].mxu0
      %v1208 = vadd.f32 0.0, %v1207
      %v1209 = vpop.f32.mrb[0].mxu0
      %1210 = vmatprep.mubr.bf16.mxu0 0
      %1211 = vmatmul.mubr.bf16.gmra.mrb[0].mxu0 %v652
      %v1212 = vpop.f32.mrb[0].mxu0
      %v1213 = vadd.f32 0.0, %v1212
      %v1214 = vpop.f32.mrb[0].mxu0
      %v1215 = vpop.f32.mrb[0].mxu0
      %v1216 = vadd.f32 0.0, %v1215
      %v1217 = vpop.f32.mrb[0].mxu0
      %1218 = vmatprep.mubr.bf16.mxu0 0
      %1219 = vmatmul.mubr.bf16.gmra.mrb[0].mxu0 %v653
      %v1220 = vpop.f32.mrb[0].mxu0
      %v1221 = vadd.f32 0.0, %v1220
      %v1222 = vpop.f32.mrb[0].mxu0
      %v1223 = vpop.f32.mrb[0].mxu0
      %v1224 = vadd.f32 0.0, %v1223
      %v1225 = vpop.f32.mrb[0].mxu0
      %1226 = vmatprep.mubr.bf16.mxu0 0
      %1227 = vmatmul.mubr.bf16.gmra.mrb[0].mxu0 %v654
      %v1228 = vpop.f32.mrb[0].mxu0
      %v1229 = vadd.f32 0.0, %v1228
      %v1230 = vpop.f32.mrb[0].mxu0
      %v1231 = vpop.f32.mrb[0].mxu0
      %v1232 = vadd.f32 0.0, %v1231
      %v1233 = vpop.f32.mrb[0].mxu0
      %1234 = vmatprep.mubr.bf16.mxu0 0
      %1235 = vmatmul.mubr.bf16.gmra.mrb[0].mxu0 %v655
      %v1236 = vpop.f32.mrb[0].mxu0
      %v1237 = vadd.f32 0.0, %v1236
      %v1238 = vpop.f32.mrb[0].mxu0
      %v1239 = vpop.f32.mrb[0].mxu0
      %v1240 = vadd.f32 0.0, %v1239
      %v1241 = vpop.f32.mrb[0].mxu0
      %1242 = vmatprep.mubr.bf16.mxu0 0
      %1243 = vmatmul.mubr.bf16.gmra.mrb[0].mxu0 %v656
      %v1244 = vpop.f32.mrb[0].mxu0
      %v1245 = vadd.f32 0.0, %v1244
      %v1246 = vpop.f32.mrb[0].mxu0
      %v1247 = vpop.f32.mrb[0].mxu0
      %v1248 = vadd.f32 0.0, %v1247
      %v1249 = vpop.f32.mrb[0].mxu0
      %1250 = vmatprep.mubr.bf16.mxu0 0
      %1251 = vmatmul.mubr.bf16.gmra.mrb[0].mxu0 %v657
      %v1252 = vpop.f32.mrb[0].mxu0
      %v1253 = vadd.f32 0.0, %v1252
      %v1254 = vpop.f32.mrb[0].mxu0
      %v1255 = vpop.f32.mrb[0].mxu0
      %v1256 = vadd.f32 0.0, %v1255
      %v1257 = vpop.f32.mrb[0].mxu0
      %1258 = vmatprep.mubr.bf16.mxu0 0
      %1259 = vmatmul.mubr.bf16.gmra.mrb[0].mxu0 %v658
      %v1260 = vpop.f32.mrb[0].mxu0
      %v1261 = vadd.f32 0.0, %v1260
      %v1262 = vpop.f32.mrb[0].mxu0
      %v1263 = vpop.f32.mrb[0].mxu0
      %v1264 = vadd.f32 0.0, %v1263
      %v1265 = vpop.f32.mrb[0].mxu0
      %1266 = vmatprep.mubr.bf16.mxu0 0
      %1267 = vmatmul.mubr.bf16.gmra.mrb[0].mxu0 %v659
      %v1268 = vpop.f32.mrb[0].mxu0
      %v1269 = vadd.f32 0.0, %v1268
      %v1270 = vpop.f32.mrb[0].mxu0
      %v1271 = vpop.f32.mrb[0].mxu0
      %v1272 = vadd.f32 0.0, %v1271
      %v1273 = vpop.f32.mrb[0].mxu0
      %1274 = vmatprep.mubr.bf16.mxu0 0
      %1275 = vmatmul.mubr.bf16.gmra.mrb[0].mxu0 %v660
      %v1276 = vpop.f32.mrb[0].mxu0
      %v1277 = vadd.f32 0.0, %v1276
      %v1278 = vpop.f32.mrb[0].mxu0
      %v1279 = vpop.f32.mrb[0].mxu0
      %v1280 = vadd.f32 0.0, %v1279
      %v1281 = vpop.f32.mrb[0].mxu0
      %1282 = vmatprep.mubr.bf16.mxu0 0
      %1283 = vmatmul.mubr.bf16.gmra.mrb[0].mxu0 %v661
      %v1284 = vpop.f32.mrb[0].mxu0
      %v1285 = vadd.f32 0.0, %v1284
      %v1286 = vpop.f32.mrb[0].mxu0
      %v1287 = vpop.f32.mrb[0].mxu0
      %v1288 = vadd.f32 0.0, %v1287
      %v1289 = vpop.f32.mrb[0].mxu0
      %1290 = vmatprep.mubr.bf16.mxu0 0
      %1291 = vmatmul.mubr.bf16.gmra.mrb[0].mxu0 %v662
      %v1292 = vpop.f32.mrb[0].mxu0
      %v1293 = vadd.f32 0.0, %v1292
      %v1294 = vpop.f32.mrb[0].mxu0
      %v1295 = vpop.f32.mrb[0].mxu0
      %v1296 = vadd.f32 0.0, %v1295
      %v1297 = vpop.f32.mrb[0].mxu0
      %1298 = vmatprep.mubr.bf16.mxu0 0
      %1299 = vmatmul.mubr.bf16.gmra.mrb[0].mxu0 %v663
      %v1300 = vpop.f32.mrb[0].mxu0
      %v1301 = vadd.f32 0.0, %v1300
      %v1302 = vpop.f32.mrb[0].mxu0
      %v1303 = vpop.f32.mrb[0].mxu0
      %v1304 = vadd.f32 0.0, %v1303
      %v1305 = vpop.f32.mrb[0].mxu0
      %1306 = vmatprep.mubr.bf16.mxu0 0
      %1307 = vmatmul.mubr.bf16.gmra.mrb[0].mxu0 %v664
      %v1308 = vpop.f32.mrb[0].mxu0
      %v1309 = vadd.f32 0.0, %v1308
      %v1310 = vpop.f32.mrb[0].mxu0
      %v1311 = vpop.f32.mrb[0].mxu0
      %v1312 = vadd.f32 0.0, %v1311
      %v1313 = vpop.f32.mrb[0].mxu0
      %1314 = vmatprep.mubr.bf16.mxu0 0
      %1315 = vmatmul.mubr.bf16.gmra.mrb[0].mxu0 %v665
      %v1316 = vpop.f32.mrb[0].mxu0
      %v1317 = vadd.f32 0.0, %v1316
      %v1318 = vpop.f32.mrb[0].mxu0
      %v1319 = vpop.f32.mrb[0].mxu0
      %v1320 = vadd.f32 0.0, %v1319
      %v1321 = vpop.f32.mrb[0].mxu0
      %1322 = vdwg.mxu0
      %v1323 = vld [vmem:[%s2] sm:$0x1]
      %v1325 = vlaneseq
      %v1326 = vshrl.u32 %v1325, 7
      %v1327 = vsub.s32 0, %v1326
      %v1328 = vrot.slane %v1323, %v1327
      %v1330 = vmul.f32 %v813, %v1328
      %v1331 = vmul.f32 %v816, %v1328
      %v1332 = vmul.f32 %v821, %v1328
      %v1333 = vmul.f32 %v824, %v1328
      %v1334 = vmul.f32 %v829, %v1328
      %v1335 = vmul.f32 %v832, %v1328
      %v1336 = vmul.f32 %v837, %v1328
      %v1337 = vmul.f32 %v840, %v1328
      %v1338 = vmul.f32 %v845, %v1328
      %v1339 = vmul.f32 %v848, %v1328
      %v1340 = vmul.f32 %v853, %v1328
      %v1341 = vmul.f32 %v856, %v1328
      %v1342 = vmul.f32 %v861, %v1328
      %v1343 = vmul.f32 %v864, %v1328
      %v1344 = vmul.f32 %v869, %v1328
      %v1345 = vmul.f32 %v872, %v1328
      %v1346 = vmul.f32 %v877, %v1328
      %v1347 = vmul.f32 %v880, %v1328
      %v1348 = vmul.f32 %v885, %v1328
      %v1349 = vmul.f32 %v888, %v1328
      %v1350 = vmul.f32 %v893, %v1328
      %v1351 = vmul.f32 %v896, %v1328
      %v1352 = vmul.f32 %v901, %v1328
      %v1353 = vmul.f32 %v904, %v1328
      %v1354 = vmul.f32 %v909, %v1328
      %v1355 = vmul.f32 %v912, %v1328
      %v1356 = vmul.f32 %v917, %v1328
      %v1357 = vmul.f32 %v920, %v1328
      %v1358 = vmul.f32 %v925, %v1328
      %v1359 = vmul.f32 %v928, %v1328
      %v1360 = vmul.f32 %v933, %v1328
      %v1361 = vmul.f32 %v936, %v1328
      %v1362 = vmul.f32 %v941, %v1328
      %v1363 = vmul.f32 %v944, %v1328
      %v1364 = vmul.f32 %v949, %v1328
      %v1365 = vmul.f32 %v952, %v1328
      %v1366 = vmul.f32 %v957, %v1328
      %v1367 = vmul.f32 %v960, %v1328
      %v1368 = vmul.f32 %v965, %v1328
      %v1369 = vmul.f32 %v968, %v1328
      %v1370 = vmul.f32 %v973, %v1328
      %v1371 = vmul.f32 %v976, %v1328
      %v1372 = vmul.f32 %v981, %v1328
      %v1373 = vmul.f32 %v984, %v1328
      %v1374 = vmul.f32 %v989, %v1328
      %v1375 = vmul.f32 %v992, %v1328
      %v1376 = vmul.f32 %v997, %v1328
      %v1377 = vmul.f32 %v1000, %v1328
      %v1378 = vmul.f32 %v1005, %v1328
      %v1379 = vmul.f32 %v1008, %v1328
      %v1380 = vmul.f32 %v1013, %v1328
      %v1381 = vmul.f32 %v1016, %v1328
      %v1382 = vmul.f32 %v1021, %v1328
      %v1383 = vmul.f32 %v1024, %v1328
      %v1384 = vmul.f32 %v1029, %v1328
      %v1385 = vmul.f32 %v1032, %v1328
      %v1386 = vmul.f32 %v1037, %v1328
      %v1387 = vmul.f32 %v1040, %v1328
      %v1388 = vmul.f32 %v1045, %v1328
      %v1389 = vmul.f32 %v1048, %v1328
      %v1390 = vmul.f32 %v1053, %v1328
      %v1391 = vmul.f32 %v1056, %v1328
      %v1392 = vmul.f32 %v1061, %v1328
      %v1393 = vmul.f32 %v1064, %v1328
      %v1394 = vmul.f32 %v1069, %v1328
      %v1395 = vmul.f32 %v1072, %v1328
      %v1396 = vmul.f32 %v1077, %v1328
      %v1397 = vmul.f32 %v1080, %v1328
      %v1398 = vmul.f32 %v1085, %v1328
      %v1399 = vmul.f32 %v1088, %v1328
      %v1400 = vmul.f32 %v1093, %v1328
      %v1401 = vmul.f32 %v1096, %v1328
      %v1402 = vmul.f32 %v1101, %v1328
      %v1403 = vmul.f32 %v1104, %v1328
      %v1404 = vmul.f32 %v1109, %v1328
      %v1405 = vmul.f32 %v1112, %v1328
      %v1406 = vmul.f32 %v1117, %v1328
      %v1407 = vmul.f32 %v1120, %v1328
      %v1408 = vmul.f32 %v1125, %v1328
      %v1409 = vmul.f32 %v1128, %v1328
      %v1410 = vmul.f32 %v1133, %v1328
      %v1411 = vmul.f32 %v1136, %v1328
      %v1412 = vmul.f32 %v1141, %v1328
      %v1413 = vmul.f32 %v1144, %v1328
      %v1414 = vmul.f32 %v1149, %v1328
      %v1415 = vmul.f32 %v1152, %v1328
      %v1416 = vmul.f32 %v1157, %v1328
      %v1417 = vmul.f32 %v1160, %v1328
      %v1418 = vmul.f32 %v1165, %v1328
      %v1419 = vmul.f32 %v1168, %v1328
      %v1420 = vmul.f32 %v1173, %v1328
      %v1421 = vmul.f32 %v1176, %v1328
      %v1422 = vmul.f32 %v1181, %v1328
      %v1423 = vmul.f32 %v1184, %v1328
      %v1424 = vmul.f32 %v1189, %v1328
      %v1425 = vmul.f32 %v1192, %v1328
      %v1426 = vmul.f32 %v1197, %v1328
      %v1427 = vmul.f32 %v1200, %v1328
      %v1428 = vmul.f32 %v1205, %v1328
      %v1429 = vmul.f32 %v1208, %v1328
      %v1430 = vmul.f32 %v1213, %v1328
      %v1431 = vmul.f32 %v1216, %v1328
      %v1432 = vmul.f32 %v1221, %v1328
      %v1433 = vmul.f32 %v1224, %v1328
      %v1434 = vmul.f32 %v1229, %v1328
      %v1435 = vmul.f32 %v1232, %v1328
      %v1436 = vmul.f32 %v1237, %v1328
      %v1437 = vmul.f32 %v1240, %v1328
      %v1438 = vmul.f32 %v1245, %v1328
      %v1439 = vmul.f32 %v1248, %v1328
      %v1440 = vmul.f32 %v1253, %v1328
      %v1441 = vmul.f32 %v1256, %v1328
      %v1442 = vmul.f32 %v1261, %v1328
      %v1443 = vmul.f32 %v1264, %v1328
      %v1444 = vmul.f32 %v1269, %v1328
      %v1445 = vmul.f32 %v1272, %v1328
      %v1446 = vmul.f32 %v1277, %v1328
      %v1447 = vmul.f32 %v1280, %v1328
      %v1448 = vmul.f32 %v1285, %v1328
      %v1449 = vmul.f32 %v1288, %v1328
      %v1450 = vmul.f32 %v1293, %v1328
      %v1451 = vmul.f32 %v1296, %v1328
      %v1452 = vmul.f32 %v1301, %v1328
      %v1453 = vmul.f32 %v1304, %v1328
      %v1454 = vmul.f32 %v1309, %v1328
      %v1455 = vmul.f32 %v1312, %v1328
      %v1456 = vmul.f32 %v1317, %v1328
      %v1457 = vmul.f32 %v1320, %v1328
      %v1458 = vld [vmem:[%s3] sm:$0x1]
      %v1460 = vlaneseq
      %v1461 = vshrl.u32 %v1460, 7
      %v1462 = vsub.s32 0, %v1461
      %v1463 = vrot.slane %v1458, %v1462
      %v1465 = vadd.f32 %v1330, %v1463
      %v1466 = vadd.f32 %v1331, %v1463
      %v1467 = vadd.f32 %v1332, %v1463
      %v1468 = vadd.f32 %v1333, %v1463
      %v1469 = vadd.f32 %v1334, %v1463
      %v1470 = vadd.f32 %v1335, %v1463
      %v1471 = vadd.f32 %v1336, %v1463
      %v1472 = vadd.f32 %v1337, %v1463
      %v1473 = vadd.f32 %v1338, %v1463
      %v1474 = vadd.f32 %v1339, %v1463
      %v1475 = vadd.f32 %v1340, %v1463
      %v1476 = vadd.f32 %v1341, %v1463
      %v1477 = vadd.f32 %v1342, %v1463
      %v1478 = vadd.f32 %v1343, %v1463
      %v1479 = vadd.f32 %v1344, %v1463
      %v1480 = vadd.f32 %v1345, %v1463
      %v1481 = vadd.f32 %v1346, %v1463
      %v1482 = vadd.f32 %v1347, %v1463
      %v1483 = vadd.f32 %v1348, %v1463
      %v1484 = vadd.f32 %v1349, %v1463
      %v1485 = vadd.f32 %v1350, %v1463
      %v1486 = vadd.f32 %v1351, %v1463
      %v1487 = vadd.f32 %v1352, %v1463
      %v1488 = vadd.f32 %v1353, %v1463
      %v1489 = vadd.f32 %v1354, %v1463
      %v1490 = vadd.f32 %v1355, %v1463
      %v1491 = vadd.f32 %v1356, %v1463
      %v1492 = vadd.f32 %v1357, %v1463
      %v1493 = vadd.f32 %v1358, %v1463
      %v1494 = vadd.f32 %v1359, %v1463
      %v1495 = vadd.f32 %v1360, %v1463
      %v1496 = vadd.f32 %v1361, %v1463
      %v1497 = vadd.f32 %v1362, %v1463
      %v1498 = vadd.f32 %v1363, %v1463
      %v1499 = vadd.f32 %v1364, %v1463
      %v1500 = vadd.f32 %v1365, %v1463
      %v1501 = vadd.f32 %v1366, %v1463
      %v1502 = vadd.f32 %v1367, %v1463
      %v1503 = vadd.f32 %v1368, %v1463
      %v1504 = vadd.f32 %v1369, %v1463
      %v1505 = vadd.f32 %v1370, %v1463
      %v1506 = vadd.f32 %v1371, %v1463
      %v1507 = vadd.f32 %v1372, %v1463
      %v1508 = vadd.f32 %v1373, %v1463
      %v1509 = vadd.f32 %v1374, %v1463
      %v1510 = vadd.f32 %v1375, %v1463
      %v1511 = vadd.f32 %v1376, %v1463
      %v1512 = vadd.f32 %v1377, %v1463
      %v1513 = vadd.f32 %v1378, %v1463
      %v1514 = vadd.f32 %v1379, %v1463
      %v1515 = vadd.f32 %v1380, %v1463
      %v1516 = vadd.f32 %v1381, %v1463
      %v1517 = vadd.f32 %v1382, %v1463
      %v1518 = vadd.f32 %v1383, %v1463
      %v1519 = vadd.f32 %v1384, %v1463
      %v1520 = vadd.f32 %v1385, %v1463
      %v1521 = vadd.f32 %v1386, %v1463
      %v1522 = vadd.f32 %v1387, %v1463
      %v1523 = vadd.f32 %v1388, %v1463
      %v1524 = vadd.f32 %v1389, %v1463
      %v1525 = vadd.f32 %v1390, %v1463
      %v1526 = vadd.f32 %v1391, %v1463
      %v1527 = vadd.f32 %v1392, %v1463
      %v1528 = vadd.f32 %v1393, %v1463
      %v1529 = vadd.f32 %v1394, %v1463
      %v1530 = vadd.f32 %v1395, %v1463
      %v1531 = vadd.f32 %v1396, %v1463
      %v1532 = vadd.f32 %v1397, %v1463
      %v1533 = vadd.f32 %v1398, %v1463
      %v1534 = vadd.f32 %v1399, %v1463
      %v1535 = vadd.f32 %v1400, %v1463
      %v1536 = vadd.f32 %v1401, %v1463
      %v1537 = vadd.f32 %v1402, %v1463
      %v1538 = vadd.f32 %v1403, %v1463
      %v1539 = vadd.f32 %v1404, %v1463
      %v1540 = vadd.f32 %v1405, %v1463
      %v1541 = vadd.f32 %v1406, %v1463
      %v1542 = vadd.f32 %v1407, %v1463
      %v1543 = vadd.f32 %v1408, %v1463
      %v1544 = vadd.f32 %v1409, %v1463
      %v1545 = vadd.f32 %v1410, %v1463
      %v1546 = vadd.f32 %v1411, %v1463
      %v1547 = vadd.f32 %v1412, %v1463
      %v1548 = vadd.f32 %v1413, %v1463
      %v1549 = vadd.f32 %v1414, %v1463
      %v1550 = vadd.f32 %v1415, %v1463
      %v1551 = vadd.f32 %v1416, %v1463
      %v1552 = vadd.f32 %v1417, %v1463
      %v1553 = vadd.f32 %v1418, %v1463
      %v1554 = vadd.f32 %v1419, %v1463
      %v1555 = vadd.f32 %v1420, %v1463
      %v1556 = vadd.f32 %v1421, %v1463
      %v1557 = vadd.f32 %v1422, %v1463
      %v1558 = vadd.f32 %v1423, %v1463
      %v1559 = vadd.f32 %v1424, %v1463
      %v1560 = vadd.f32 %v1425, %v1463
      %v1561 = vadd.f32 %v1426, %v1463
      %v1562 = vadd.f32 %v1427, %v1463
      %v1563 = vadd.f32 %v1428, %v1463
      %v1564 = vadd.f32 %v1429, %v1463
      %v1565 = vadd.f32 %v1430, %v1463
      %v1566 = vadd.f32 %v1431, %v1463
      %v1567 = vadd.f32 %v1432, %v1463
      %v1568 = vadd.f32 %v1433, %v1463
      %v1569 = vadd.f32 %v1434, %v1463
      %v1570 = vadd.f32 %v1435, %v1463
      %v1571 = vadd.f32 %v1436, %v1463
      %v1572 = vadd.f32 %v1437, %v1463
      %v1573 = vadd.f32 %v1438, %v1463
      %v1574 = vadd.f32 %v1439, %v1463
      %v1575 = vadd.f32 %v1440, %v1463
      %v1576 = vadd.f32 %v1441, %v1463
      %v1577 = vadd.f32 %v1442, %v1463
      %v1578 = vadd.f32 %v1443, %v1463
      %v1579 = vadd.f32 %v1444, %v1463
      %v1580 = vadd.f32 %v1445, %v1463
      %v1581 = vadd.f32 %v1446, %v1463
      %v1582 = vadd.f32 %v1447, %v1463
      %v1583 = vadd.f32 %v1448, %v1463
      %v1584 = vadd.f32 %v1449, %v1463
      %v1585 = vadd.f32 %v1450, %v1463
      %v1586 = vadd.f32 %v1451, %v1463
      %v1587 = vadd.f32 %v1452, %v1463
      %v1588 = vadd.f32 %v1453, %v1463
      %v1589 = vadd.f32 %v1454, %v1463
      %v1590 = vadd.f32 %v1455, %v1463
      %v1591 = vadd.f32 %v1456, %v1463
      %v1592 = vadd.f32 %v1457, %v1463
      %v1593 = vmax.f32 %v1465, 0.0
      %v1594 = vmax.f32 %v1466, 0.0
      %v1595 = vmax.f32 %v1467, 0.0
      %v1596 = vmax.f32 %v1468, 0.0
      %v1597 = vmax.f32 %v1469, 0.0
      %v1598 = vmax.f32 %v1470, 0.0
      %v1599 = vmax.f32 %v1471, 0.0
      %v1600 = vmax.f32 %v1472, 0.0
      %v1601 = vmax.f32 %v1473, 0.0
      %v1602 = vmax.f32 %v1474, 0.0
      %v1603 = vmax.f32 %v1475, 0.0
      %v1604 = vmax.f32 %v1476, 0.0
      %v1605 = vmax.f32 %v1477, 0.0
      %v1606 = vmax.f32 %v1478, 0.0
      %v1607 = vmax.f32 %v1479, 0.0
      %v1608 = vmax.f32 %v1480, 0.0
      %v1609 = vmax.f32 %v1481, 0.0
      %v1610 = vmax.f32 %v1482, 0.0
      %v1611 = vmax.f32 %v1483, 0.0
      %v1612 = vmax.f32 %v1484, 0.0
      %v1613 = vmax.f32 %v1485, 0.0
      %v1614 = vmax.f32 %v1486, 0.0
      %v1615 = vmax.f32 %v1487, 0.0
      %v1616 = vmax.f32 %v1488, 0.0
      %v1617 = vmax.f32 %v1489, 0.0
      %v1618 = vmax.f32 %v1490, 0.0
      %v1619 = vmax.f32 %v1491, 0.0
      %v1620 = vmax.f32 %v1492, 0.0
      %v1621 = vmax.f32 %v1493, 0.0
      %v1622 = vmax.f32 %v1494, 0.0
      %v1623 = vmax.f32 %v1495, 0.0
      %v1624 = vmax.f32 %v1496, 0.0
      %v1625 = vmax.f32 %v1497, 0.0
      %v1626 = vmax.f32 %v1498, 0.0
      %v1627 = vmax.f32 %v1499, 0.0
      %v1628 = vmax.f32 %v1500, 0.0
      %v1629 = vmax.f32 %v1501, 0.0
      %v1630 = vmax.f32 %v1502, 0.0
      %v1631 = vmax.f32 %v1503, 0.0
      %v1632 = vmax.f32 %v1504, 0.0
      %v1633 = vmax.f32 %v1505, 0.0
      %v1634 = vmax.f32 %v1506, 0.0
      %v1635 = vmax.f32 %v1507, 0.0
      %v1636 = vmax.f32 %v1508, 0.0
      %v1637 = vmax.f32 %v1509, 0.0
      %v1638 = vmax.f32 %v1510, 0.0
      %v1639 = vmax.f32 %v1511, 0.0
      %v1640 = vmax.f32 %v1512, 0.0
      %v1641 = vmax.f32 %v1513, 0.0
      %v1642 = vmax.f32 %v1514, 0.0
      %v1643 = vmax.f32 %v1515, 0.0
      %v1644 = vmax.f32 %v1516, 0.0
      %v1645 = vmax.f32 %v1517, 0.0
      %v1646 = vmax.f32 %v1518, 0.0
      %v1647 = vmax.f32 %v1519, 0.0
      %v1648 = vmax.f32 %v1520, 0.0
      %v1649 = vmax.f32 %v1521, 0.0
      %v1650 = vmax.f32 %v1522, 0.0
      %v1651 = vmax.f32 %v1523, 0.0
      %v1652 = vmax.f32 %v1524, 0.0
      %v1653 = vmax.f32 %v1525, 0.0
      %v1654 = vmax.f32 %v1526, 0.0
      %v1655 = vmax.f32 %v1527, 0.0
      %v1656 = vmax.f32 %v1528, 0.0
      %v1657 = vmax.f32 %v1529, 0.0
      %v1658 = vmax.f32 %v1530, 0.0
      %v1659 = vmax.f32 %v1531, 0.0
      %v1660 = vmax.f32 %v1532, 0.0
      %v1661 = vmax.f32 %v1533, 0.0
      %v1662 = vmax.f32 %v1534, 0.0
      %v1663 = vmax.f32 %v1535, 0.0
      %v1664 = vmax.f32 %v1536, 0.0
      %v1665 = vmax.f32 %v1537, 0.0
      %v1666 = vmax.f32 %v1538, 0.0
      %v1667 = vmax.f32 %v1539, 0.0
      %v1668 = vmax.f32 %v1540, 0.0
      %v1669 = vmax.f32 %v1541, 0.0
      %v1670 = vmax.f32 %v1542, 0.0
      %v1671 = vmax.f32 %v1543, 0.0
      %v1672 = vmax.f32 %v1544, 0.0
      %v1673 = vmax.f32 %v1545, 0.0
      %v1674 = vmax.f32 %v1546, 0.0
      %v1675 = vmax.f32 %v1547, 0.0
      %v1676 = vmax.f32 %v1548, 0.0
      %v1677 = vmax.f32 %v1549, 0.0
      %v1678 = vmax.f32 %v1550, 0.0
      %v1679 = vmax.f32 %v1551, 0.0
      %v1680 = vmax.f32 %v1552, 0.0
      %v1681 = vmax.f32 %v1553, 0.0
      %v1682 = vmax.f32 %v1554, 0.0
      %v1683 = vmax.f32 %v1555, 0.0
      %v1684 = vmax.f32 %v1556, 0.0
      %v1685 = vmax.f32 %v1557, 0.0
      %v1686 = vmax.f32 %v1558, 0.0
      %v1687 = vmax.f32 %v1559, 0.0
      %v1688 = vmax.f32 %v1560, 0.0
      %v1689 = vmax.f32 %v1561, 0.0
      %v1690 = vmax.f32 %v1562, 0.0
      %v1691 = vmax.f32 %v1563, 0.0
      %v1692 = vmax.f32 %v1564, 0.0
      %v1693 = vmax.f32 %v1565, 0.0
      %v1694 = vmax.f32 %v1566, 0.0
      %v1695 = vmax.f32 %v1567, 0.0
      %v1696 = vmax.f32 %v1568, 0.0
      %v1697 = vmax.f32 %v1569, 0.0
      %v1698 = vmax.f32 %v1570, 0.0
      %v1699 = vmax.f32 %v1571, 0.0
      %v1700 = vmax.f32 %v1572, 0.0
      %v1701 = vmax.f32 %v1573, 0.0
      %v1702 = vmax.f32 %v1574, 0.0
      %v1703 = vmax.f32 %v1575, 0.0
      %v1704 = vmax.f32 %v1576, 0.0
      %v1705 = vmax.f32 %v1577, 0.0
      %v1706 = vmax.f32 %v1578, 0.0
      %v1707 = vmax.f32 %v1579, 0.0
      %v1708 = vmax.f32 %v1580, 0.0
      %v1709 = vmax.f32 %v1581, 0.0
      %v1710 = vmax.f32 %v1582, 0.0
      %v1711 = vmax.f32 %v1583, 0.0
      %v1712 = vmax.f32 %v1584, 0.0
      %v1713 = vmax.f32 %v1585, 0.0
      %v1714 = vmax.f32 %v1586, 0.0
      %v1715 = vmax.f32 %v1587, 0.0
      %v1716 = vmax.f32 %v1588, 0.0
      %v1717 = vmax.f32 %v1589, 0.0
      %v1718 = vmax.f32 %v1590, 0.0
      %v1719 = vmax.f32 %v1591, 0.0
      %v1720 = vmax.f32 %v1592, 0.0
      %v1721 = vpack.c.bf16 %v1594, %v1593
      %v1722 = vpack.c.bf16 %v1596, %v1595
      %v1723 = vpack.c.bf16 %v1598, %v1597
      %v1724 = vpack.c.bf16 %v1600, %v1599
      %v1725 = vpack.c.bf16 %v1602, %v1601
      %v1726 = vpack.c.bf16 %v1604, %v1603
      %v1727 = vpack.c.bf16 %v1606, %v1605
      %v1728 = vpack.c.bf16 %v1608, %v1607
      %v1729 = vpack.c.bf16 %v1610, %v1609
      %v1730 = vpack.c.bf16 %v1612, %v1611
      %v1731 = vpack.c.bf16 %v1614, %v1613
      %v1732 = vpack.c.bf16 %v1616, %v1615
      %v1733 = vpack.c.bf16 %v1618, %v1617
      %v1734 = vpack.c.bf16 %v1620, %v1619
      %v1735 = vpack.c.bf16 %v1622, %v1621
      %v1736 = vpack.c.bf16 %v1624, %v1623
      %v1737 = vpack.c.bf16 %v1626, %v1625
      %v1738 = vpack.c.bf16 %v1628, %v1627
      %v1739 = vpack.c.bf16 %v1630, %v1629
      %v1740 = vpack.c.bf16 %v1632, %v1631
      %v1741 = vpack.c.bf16 %v1634, %v1633
      %v1742 = vpack.c.bf16 %v1636, %v1635
      %v1743 = vpack.c.bf16 %v1638, %v1637
      %v1744 = vpack.c.bf16 %v1640, %v1639
      %v1745 = vpack.c.bf16 %v1642, %v1641
      %v1746 = vpack.c.bf16 %v1644, %v1643
      %v1747 = vpack.c.bf16 %v1646, %v1645
      %v1748 = vpack.c.bf16 %v1648, %v1647
      %v1749 = vpack.c.bf16 %v1650, %v1649
      %v1750 = vpack.c.bf16 %v1652, %v1651
      %v1751 = vpack.c.bf16 %v1654, %v1653
      %v1752 = vpack.c.bf16 %v1656, %v1655
      %v1753 = vpack.c.bf16 %v1658, %v1657
      %v1754 = vpack.c.bf16 %v1660, %v1659
      %v1755 = vpack.c.bf16 %v1662, %v1661
      %v1756 = vpack.c.bf16 %v1664, %v1663
      %v1757 = vpack.c.bf16 %v1666, %v1665
      %v1758 = vpack.c.bf16 %v1668, %v1667
      %v1759 = vpack.c.bf16 %v1670, %v1669
      %v1760 = vpack.c.bf16 %v1672, %v1671
      %v1761 = vpack.c.bf16 %v1674, %v1673
      %v1762 = vpack.c.bf16 %v1676, %v1675
      %v1763 = vpack.c.bf16 %v1678, %v1677
      %v1764 = vpack.c.bf16 %v1680, %v1679
      %v1765 = vpack.c.bf16 %v1682, %v1681
      %v1766 = vpack.c.bf16 %v1684, %v1683
      %v1767 = vpack.c.bf16 %v1686, %v1685
      %v1768 = vpack.c.bf16 %v1688, %v1687
      %v1769 = vpack.c.bf16 %v1690, %v1689
      %v1770 = vpack.c.bf16 %v1692, %v1691
      %v1771 = vpack.c.bf16 %v1694, %v1693
      %v1772 = vpack.c.bf16 %v1696, %v1695
      %v1773 = vpack.c.bf16 %v1698, %v1697
      %v1774 = vpack.c.bf16 %v1700, %v1699
      %v1775 = vpack.c.bf16 %v1702, %v1701
      %v1776 = vpack.c.bf16 %v1704, %v1703
      %v1777 = vpack.c.bf16 %v1706, %v1705
      %v1778 = vpack.c.bf16 %v1708, %v1707
      %v1779 = vpack.c.bf16 %v1710, %v1709
      %v1780 = vpack.c.bf16 %v1712, %v1711
      %v1781 = vpack.c.bf16 %v1714, %v1713
      %v1782 = vpack.c.bf16 %v1716, %v1715
      %v1783 = vpack.c.bf16 %v1718, %v1717
      %v1784 = vpack.c.bf16 %v1720, %v1719
      %v1849 = vunpack.c.l.b16 %v1721
      %v1850 = vunpack.c.h.b16 %v1721
      %v1851 = vunpack.c.l.b16 %v1722
      %v1852 = vunpack.c.h.b16 %v1722
      %v1853 = vunpack.c.l.b16 %v1723
      %v1854 = vunpack.c.h.b16 %v1723
      %v1855 = vunpack.c.l.b16 %v1724
      %v1856 = vunpack.c.h.b16 %v1724
      %v1857 = vunpack.c.l.b16 %v1725
      %v1858 = vunpack.c.h.b16 %v1725
      %v1859 = vunpack.c.l.b16 %v1726
      %v1860 = vunpack.c.h.b16 %v1726
      %v1861 = vunpack.c.l.b16 %v1727
      %v1862 = vunpack.c.h.b16 %v1727
      %v1863 = vunpack.c.l.b16 %v1728
      %v1864 = vunpack.c.h.b16 %v1728
      %v1865 = vunpack.c.l.b16 %v1729
      %v1866 = vunpack.c.h.b16 %v1729
      %v1867 = vunpack.c.l.b16 %v1730
      %v1868 = vunpack.c.h.b16 %v1730
      %v1869 = vunpack.c.l.b16 %v1731
      %v1870 = vunpack.c.h.b16 %v1731
      %v1871 = vunpack.c.l.b16 %v1732
      %v1872 = vunpack.c.h.b16 %v1732
      %v1873 = vunpack.c.l.b16 %v1733
      %v1874 = vunpack.c.h.b16 %v1733
      %v1875 = vunpack.c.l.b16 %v1734
      %v1876 = vunpack.c.h.b16 %v1734
      %v1877 = vunpack.c.l.b16 %v1735
      %v1878 = vunpack.c.h.b16 %v1735
      %v1879 = vunpack.c.l.b16 %v1736
      %v1880 = vunpack.c.h.b16 %v1736
      %v1881 = vunpack.c.l.b16 %v1737
      %v1882 = vunpack.c.h.b16 %v1737
      %v1883 = vunpack.c.l.b16 %v1738
      %v1884 = vunpack.c.h.b16 %v1738
      %v1885 = vunpack.c.l.b16 %v1739
      %v1886 = vunpack.c.h.b16 %v1739
      %v1887 = vunpack.c.l.b16 %v1740
      %v1888 = vunpack.c.h.b16 %v1740
      %v1889 = vunpack.c.l.b16 %v1741
      %v1890 = vunpack.c.h.b16 %v1741
      %v1891 = vunpack.c.l.b16 %v1742
      %v1892 = vunpack.c.h.b16 %v1742
      %v1893 = vunpack.c.l.b16 %v1743
      %v1894 = vunpack.c.h.b16 %v1743
      %v1895 = vunpack.c.l.b16 %v1744
      %v1896 = vunpack.c.h.b16 %v1744
      %v1897 = vunpack.c.l.b16 %v1745
      %v1898 = vunpack.c.h.b16 %v1745
      %v1899 = vunpack.c.l.b16 %v1746
      %v1900 = vunpack.c.h.b16 %v1746
      %v1901 = vunpack.c.l.b16 %v1747
      %v1902 = vunpack.c.h.b16 %v1747
      %v1903 = vunpack.c.l.b16 %v1748
      %v1904 = vunpack.c.h.b16 %v1748
      %v1905 = vunpack.c.l.b16 %v1749
      %v1906 = vunpack.c.h.b16 %v1749
      %v1907 = vunpack.c.l.b16 %v1750
      %v1908 = vunpack.c.h.b16 %v1750
      %v1909 = vunpack.c.l.b16 %v1751
      %v1910 = vunpack.c.h.b16 %v1751
      %v1911 = vunpack.c.l.b16 %v1752
      %v1912 = vunpack.c.h.b16 %v1752
      %v1913 = vunpack.c.l.b16 %v1753
      %v1914 = vunpack.c.h.b16 %v1753
      %v1915 = vunpack.c.l.b16 %v1754
      %v1916 = vunpack.c.h.b16 %v1754
      %v1917 = vunpack.c.l.b16 %v1755
      %v1918 = vunpack.c.h.b16 %v1755
      %v1919 = vunpack.c.l.b16 %v1756
      %v1920 = vunpack.c.h.b16 %v1756
      %v1921 = vunpack.c.l.b16 %v1757
      %v1922 = vunpack.c.h.b16 %v1757
      %v1923 = vunpack.c.l.b16 %v1758
      %v1924 = vunpack.c.h.b16 %v1758
      %v1925 = vunpack.c.l.b16 %v1759
      %v1926 = vunpack.c.h.b16 %v1759
      %v1927 = vunpack.c.l.b16 %v1760
      %v1928 = vunpack.c.h.b16 %v1760
      %v1929 = vunpack.c.l.b16 %v1761
      %v1930 = vunpack.c.h.b16 %v1761
      %v1931 = vunpack.c.l.b16 %v1762
      %v1932 = vunpack.c.h.b16 %v1762
      %v1933 = vunpack.c.l.b16 %v1763
      %v1934 = vunpack.c.h.b16 %v1763
      %v1935 = vunpack.c.l.b16 %v1764
      %v1936 = vunpack.c.h.b16 %v1764
      %v1937 = vunpack.c.l.b16 %v1765
      %v1938 = vunpack.c.h.b16 %v1765
      %v1939 = vunpack.c.l.b16 %v1766
      %v1940 = vunpack.c.h.b16 %v1766
      %v1941 = vunpack.c.l.b16 %v1767
      %v1942 = vunpack.c.h.b16 %v1767
      %v1943 = vunpack.c.l.b16 %v1768
      %v1944 = vunpack.c.h.b16 %v1768
      %v1945 = vunpack.c.l.b16 %v1769
      %v1946 = vunpack.c.h.b16 %v1769
      %v1947 = vunpack.c.l.b16 %v1770
      %v1948 = vunpack.c.h.b16 %v1770
      %v1949 = vunpack.c.l.b16 %v1771
      %v1950 = vunpack.c.h.b16 %v1771
      %v1951 = vunpack.c.l.b16 %v1772
      %v1952 = vunpack.c.h.b16 %v1772
      %v1953 = vunpack.c.l.b16 %v1773
      %v1954 = vunpack.c.h.b16 %v1773
      %v1955 = vunpack.c.l.b16 %v1774
      %v1956 = vunpack.c.h.b16 %v1774
      %v1957 = vunpack.c.l.b16 %v1775
      %v1958 = vunpack.c.h.b16 %v1775
      %v1959 = vunpack.c.l.b16 %v1776
      %v1960 = vunpack.c.h.b16 %v1776
      %v1961 = vunpack.c.l.b16 %v1777
      %v1962 = vunpack.c.h.b16 %v1777
      %v1963 = vunpack.c.l.b16 %v1778
      %v1964 = vunpack.c.h.b16 %v1778
      %v1965 = vunpack.c.l.b16 %v1779
      %v1966 = vunpack.c.h.b16 %v1779
      %v1967 = vunpack.c.l.b16 %v1780
      %v1968 = vunpack.c.h.b16 %v1780
      %v1969 = vunpack.c.l.b16 %v1781
      %v1970 = vunpack.c.h.b16 %v1781
      %v1971 = vunpack.c.l.b16 %v1782
      %v1972 = vunpack.c.h.b16 %v1782
      %v1973 = vunpack.c.l.b16 %v1783
      %v1974 = vunpack.c.h.b16 %v1783
      %v1975 = vunpack.c.l.b16 %v1784
      %v1976 = vunpack.c.h.b16 %v1784
      %v1977 = vpack.c.b16 %v1849, %v1849
      %v1978 = vpack.c.b16 %v1850, %v1850
      %v1979 = vpack.c.b16 %v1851, %v1851
      %v1980 = vpack.c.b16 %v1852, %v1852
      %v1981 = vpack.c.b16 %v1853, %v1853
      %v1982 = vpack.c.b16 %v1854, %v1854
      %v1983 = vpack.c.b16 %v1855, %v1855
      %v1984 = vpack.c.b16 %v1856, %v1856
      %v1985 = vpack.c.b16 %v1857, %v1857
      %v1986 = vpack.c.b16 %v1858, %v1858
      %v1987 = vpack.c.b16 %v1859, %v1859
      %v1988 = vpack.c.b16 %v1860, %v1860
      %v1989 = vpack.c.b16 %v1861, %v1861
      %v1990 = vpack.c.b16 %v1862, %v1862
      %v1991 = vpack.c.b16 %v1863, %v1863
      %v1992 = vpack.c.b16 %v1864, %v1864
      %v1993 = vpack.c.b16 %v1865, %v1865
      %v1994 = vpack.c.b16 %v1866, %v1866
      %v1995 = vpack.c.b16 %v1867, %v1867
      %v1996 = vpack.c.b16 %v1868, %v1868
      %v1997 = vpack.c.b16 %v1869, %v1869
      %v1998 = vpack.c.b16 %v1870, %v1870
      %v1999 = vpack.c.b16 %v1871, %v1871
      %v2000 = vpack.c.b16 %v1872, %v1872
      %v2001 = vpack.c.b16 %v1873, %v1873
      %v2002 = vpack.c.b16 %v1874, %v1874
      %v2003 = vpack.c.b16 %v1875, %v1875
      %v2004 = vpack.c.b16 %v1876, %v1876
      %v2005 = vpack.c.b16 %v1877, %v1877
      %v2006 = vpack.c.b16 %v1878, %v1878
      %v2007 = vpack.c.b16 %v1879, %v1879
      %v2008 = vpack.c.b16 %v1880, %v1880
      %v2009 = vpack.c.b16 %v1881, %v1881
      %v2010 = vpack.c.b16 %v1882, %v1882
      %v2011 = vpack.c.b16 %v1883, %v1883
      %v2012 = vpack.c.b16 %v1884, %v1884
      %v2013 = vpack.c.b16 %v1885, %v1885
      %v2014 = vpack.c.b16 %v1886, %v1886
      %v2015 = vpack.c.b16 %v1887, %v1887
      %v2016 = vpack.c.b16 %v1888, %v1888
      %v2017 = vpack.c.b16 %v1889, %v1889
      %v2018 = vpack.c.b16 %v1890, %v1890
      %v2019 = vpack.c.b16 %v1891, %v1891
      %v2020 = vpack.c.b16 %v1892, %v1892
      %v2021 = vpack.c.b16 %v1893, %v1893
      %v2022 = vpack.c.b16 %v1894, %v1894
      %v2023 = vpack.c.b16 %v1895, %v1895
      %v2024 = vpack.c.b16 %v1896, %v1896
      %v2025 = vpack.c.b16 %v1897, %v1897
      %v2026 = vpack.c.b16 %v1898, %v1898
      %v2027 = vpack.c.b16 %v1899, %v1899
      %v2028 = vpack.c.b16 %v1900, %v1900
      %v2029 = vpack.c.b16 %v1901, %v1901
      %v2030 = vpack.c.b16 %v1902, %v1902
      %v2031 = vpack.c.b16 %v1903, %v1903
      %v2032 = vpack.c.b16 %v1904, %v1904
      %v2033 = vpack.c.b16 %v1905, %v1905
      %v2034 = vpack.c.b16 %v1906, %v1906
      %v2035 = vpack.c.b16 %v1907, %v1907
      %v2036 = vpack.c.b16 %v1908, %v1908
      %v2037 = vpack.c.b16 %v1909, %v1909
      %v2038 = vpack.c.b16 %v1910, %v1910
      %v2039 = vpack.c.b16 %v1911, %v1911
      %v2040 = vpack.c.b16 %v1912, %v1912
      %v2041 = vpack.c.b16 %v1913, %v1913
      %v2042 = vpack.c.b16 %v1914, %v1914
      %v2043 = vpack.c.b16 %v1915, %v1915
      %v2044 = vpack.c.b16 %v1916, %v1916
      %v2045 = vpack.c.b16 %v1917, %v1917
      %v2046 = vpack.c.b16 %v1918, %v1918
      %v2047 = vpack.c.b16 %v1919, %v1919
      %v2048 = vpack.c.b16 %v1920, %v1920
      %v2049 = vpack.c.b16 %v1921, %v1921
      %v2050 = vpack.c.b16 %v1922, %v1922
      %v2051 = vpack.c.b16 %v1923, %v1923
      %v2052 = vpack.c.b16 %v1924, %v1924
      %v2053 = vpack.c.b16 %v1925, %v1925
      %v2054 = vpack.c.b16 %v1926, %v1926
      %v2055 = vpack.c.b16 %v1927, %v1927
      %v2056 = vpack.c.b16 %v1928, %v1928
      %v2057 = vpack.c.b16 %v1929, %v1929
      %v2058 = vpack.c.b16 %v1930, %v1930
      %v2059 = vpack.c.b16 %v1931, %v1931
      %v2060 = vpack.c.b16 %v1932, %v1932
      %v2061 = vpack.c.b16 %v1933, %v1933
      %v2062 = vpack.c.b16 %v1934, %v1934
      %v2063 = vpack.c.b16 %v1935, %v1935
      %v2064 = vpack.c.b16 %v1936, %v1936
      %v2065 = vpack.c.b16 %v1937, %v1937
      %v2066 = vpack.c.b16 %v1938, %v1938
      %v2067 = vpack.c.b16 %v1939, %v1939
      %v2068 = vpack.c.b16 %v1940, %v1940
      %v2069 = vpack.c.b16 %v1941, %v1941
      %v2070 = vpack.c.b16 %v1942, %v1942
      %v2071 = vpack.c.b16 %v1943, %v1943
      %v2072 = vpack.c.b16 %v1944, %v1944
      %v2073 = vpack.c.b16 %v1945, %v1945
      %v2074 = vpack.c.b16 %v1946, %v1946
      %v2075 = vpack.c.b16 %v1947, %v1947
      %v2076 = vpack.c.b16 %v1948, %v1948
      %v2077 = vpack.c.b16 %v1949, %v1949
      %v2078 = vpack.c.b16 %v1950, %v1950
      %v2079 = vpack.c.b16 %v1951, %v1951
      %v2080 = vpack.c.b16 %v1952, %v1952
      %v2081 = vpack.c.b16 %v1953, %v1953
      %v2082 = vpack.c.b16 %v1954, %v1954
      %v2083 = vpack.c.b16 %v1955, %v1955
      %v2084 = vpack.c.b16 %v1956, %v1956
      %v2085 = vpack.c.b16 %v1957, %v1957
      %v2086 = vpack.c.b16 %v1958, %v1958
      %v2087 = vpack.c.b16 %v1959, %v1959
      %v2088 = vpack.c.b16 %v1960, %v1960
      %v2089 = vpack.c.b16 %v1961, %v1961
      %v2090 = vpack.c.b16 %v1962, %v1962
      %v2091 = vpack.c.b16 %v1963, %v1963
      %v2092 = vpack.c.b16 %v1964, %v1964
      %v2093 = vpack.c.b16 %v1965, %v1965
      %v2094 = vpack.c.b16 %v1966, %v1966
      %v2095 = vpack.c.b16 %v1967, %v1967
      %v2096 = vpack.c.b16 %v1968, %v1968
      %v2097 = vpack.c.b16 %v1969, %v1969
      %v2098 = vpack.c.b16 %v1970, %v1970
      %v2099 = vpack.c.b16 %v1971, %v1971
      %v2100 = vpack.c.b16 %v1972, %v1972
      %v2101 = vpack.c.b16 %v1973, %v1973
      %v2102 = vpack.c.b16 %v1974, %v1974
      %v2103 = vpack.c.b16 %v1975, %v1975
      %v2104 = vpack.c.b16 %v1976, %v1976
      %2233 = vst [vmem:[%s199] sm:$0xf] %v1977
      %2234 = vst [vmem:[%s199 + $0x4] sm:$0xf] %v1978
      %2235 = vst [vmem:[%s199 + $0x8] sm:$0xf] %v1979
      %2236 = vst [vmem:[%s199 + $0xc] sm:$0xf] %v1980
      %2237 = vst [vmem:[%s199 + $0x10] sm:$0xf] %v1981
      %2238 = vst [vmem:[%s199 + $0x14] sm:$0xf] %v1982
      %2239 = vst [vmem:[%s199 + $0x18] sm:$0xf] %v1983
      %2240 = vst [vmem:[%s199 + $0x1c] sm:$0xf] %v1984
      %2241 = vst [vmem:[%s199 + $0x20] sm:$0xf] %v1985
      %2242 = vst [vmem:[%s199 + $0x24] sm:$0xf] %v1986
      %2243 = vst [vmem:[%s199 + $0x28] sm:$0xf] %v1987
      %2244 = vst [vmem:[%s199 + $0x2c] sm:$0xf] %v1988
      %2245 = vst [vmem:[%s199 + $0x30] sm:$0xf] %v1989
      %2246 = vst [vmem:[%s199 + $0x34] sm:$0xf] %v1990
      %2247 = vst [vmem:[%s199 + $0x38] sm:$0xf] %v1991
      %2248 = vst [vmem:[%s199 + $0x3c] sm:$0xf] %v1992
      %2249 = vst [vmem:[%s199 + $0x40] sm:$0xf] %v1993
      %2250 = vst [vmem:[%s199 + $0x44] sm:$0xf] %v1994
      %2251 = vst [vmem:[%s199 + $0x48] sm:$0xf] %v1995
      %2252 = vst [vmem:[%s199 + $0x4c] sm:$0xf] %v1996
      %2253 = vst [vmem:[%s199 + $0x50] sm:$0xf] %v1997
      %2254 = vst [vmem:[%s199 + $0x54] sm:$0xf] %v1998
      %2255 = vst [vmem:[%s199 + $0x58] sm:$0xf] %v1999
      %2256 = vst [vmem:[%s199 + $0x5c] sm:$0xf] %v2000
      %2257 = vst [vmem:[%s199 + $0x60] sm:$0xf] %v2001
      %2258 = vst [vmem:[%s199 + $0x64] sm:$0xf] %v2002
      %2259 = vst [vmem:[%s199 + $0x68] sm:$0xf] %v2003
      %2260 = vst [vmem:[%s199 + $0x6c] sm:$0xf] %v2004
      %2261 = vst [vmem:[%s199 + $0x70] sm:$0xf] %v2005
      %2262 = vst [vmem:[%s199 + $0x74] sm:$0xf] %v2006
      %2263 = vst [vmem:[%s199 + $0x78] sm:$0xf] %v2007
      %2264 = vst [vmem:[%s199 + $0x7c] sm:$0xf] %v2008
      %2265 = vst [vmem:[%s199 + $0x80] sm:$0xf] %v2009
      %2266 = vst [vmem:[%s199 + $0x84] sm:$0xf] %v2010
      %2267 = vst [vmem:[%s199 + $0x88] sm:$0xf] %v2011
      %2268 = vst [vmem:[%s199 + $0x8c] sm:$0xf] %v2012
      %2269 = vst [vmem:[%s199 + $0x90] sm:$0xf] %v2013
      %2270 = vst [vmem:[%s199 + $0x94] sm:$0xf] %v2014
      %2271 = vst [vmem:[%s199 + $0x98] sm:$0xf] %v2015
      %2272 = vst [vmem:[%s199 + $0x9c] sm:$0xf] %v2016
      %2273 = vst [vmem:[%s199 + $0xa0] sm:$0xf] %v2017
      %2274 = vst [vmem:[%s199 + $0xa4] sm:$0xf] %v2018
      %2275 = vst [vmem:[%s199 + $0xa8] sm:$0xf] %v2019
      %2276 = vst [vmem:[%s199 + $0xac] sm:$0xf] %v2020
      %2277 = vst [vmem:[%s199 + $0xb0] sm:$0xf] %v2021
      %2278 = vst [vmem:[%s199 + $0xb4] sm:$0xf] %v2022
      %2279 = vst [vmem:[%s199 + $0xb8] sm:$0xf] %v2023
      %2280 = vst [vmem:[%s199 + $0xbc] sm:$0xf] %v2024
      %2281 = vst [vmem:[%s199 + $0xc0] sm:$0xf] %v2025
      %2282 = vst [vmem:[%s199 + $0xc4] sm:$0xf] %v2026
      %2283 = vst [vmem:[%s199 + $0xc8] sm:$0xf] %v2027
      %2284 = vst [vmem:[%s199 + $0xcc] sm:$0xf] %v2028
      %2285 = vst [vmem:[%s199 + $0xd0] sm:$0xf] %v2029
      %2286 = vst [vmem:[%s199 + $0xd4] sm:$0xf] %v2030
      %2287 = vst [vmem:[%s199 + $0xd8] sm:$0xf] %v2031
      %2288 = vst [vmem:[%s199 + $0xdc] sm:$0xf] %v2032
      %2289 = vst [vmem:[%s199 + $0xe0] sm:$0xf] %v2033
      %2290 = vst [vmem:[%s199 + $0xe4] sm:$0xf] %v2034
      %2291 = vst [vmem:[%s199 + $0xe8] sm:$0xf] %v2035
      %2292 = vst [vmem:[%s199 + $0xec] sm:$0xf] %v2036
      %2293 = vst [vmem:[%s199 + $0xf0] sm:$0xf] %v2037
      %2294 = vst [vmem:[%s199 + $0xf4] sm:$0xf] %v2038
      %2295 = vst [vmem:[%s199 + $0xf8] sm:$0xf] %v2039
      %2296 = vst [vmem:[%s199 + $0xfc] sm:$0xf] %v2040
      %2297 = vst [vmem:[%s199 + $0x100] sm:$0xf] %v2041
      %2298 = vst [vmem:[%s199 + $0x104] sm:$0xf] %v2042
      %2299 = vst [vmem:[%s199 + $0x108] sm:$0xf] %v2043
      %2300 = vst [vmem:[%s199 + $0x10c] sm:$0xf] %v2044
      %2301 = vst [vmem:[%s199 + $0x110] sm:$0xf] %v2045
      %2302 = vst [vmem:[%s199 + $0x114] sm:$0xf] %v2046
      %2303 = vst [vmem:[%s199 + $0x118] sm:$0xf] %v2047
      %2304 = vst [vmem:[%s199 + $0x11c] sm:$0xf] %v2048
      %2305 = vst [vmem:[%s199 + $0x120] sm:$0xf] %v2049
      %2306 = vst [vmem:[%s199 + $0x124] sm:$0xf] %v2050
      %2307 = vst [vmem:[%s199 + $0x128] sm:$0xf] %v2051
      %2308 = vst [vmem:[%s199 + $0x12c] sm:$0xf] %v2052
      %2309 = vst [vmem:[%s199 + $0x130] sm:$0xf] %v2053
      %2310 = vst [vmem:[%s199 + $0x134] sm:$0xf] %v2054
      %2311 = vst [vmem:[%s199 + $0x138] sm:$0xf] %v2055
      %2312 = vst [vmem:[%s199 + $0x13c] sm:$0xf] %v2056
      %2313 = vst [vmem:[%s199 + $0x140] sm:$0xf] %v2057
      %2314 = vst [vmem:[%s199 + $0x144] sm:$0xf] %v2058
      %2315 = vst [vmem:[%s199 + $0x148] sm:$0xf] %v2059
      %2316 = vst [vmem:[%s199 + $0x14c] sm:$0xf] %v2060
      %2317 = vst [vmem:[%s199 + $0x150] sm:$0xf] %v2061
      %2318 = vst [vmem:[%s199 + $0x154] sm:$0xf] %v2062
      %2319 = vst [vmem:[%s199 + $0x158] sm:$0xf] %v2063
      %2320 = vst [vmem:[%s199 + $0x15c] sm:$0xf] %v2064
      %2321 = vst [vmem:[%s199 + $0x160] sm:$0xf] %v2065
      %2322 = vst [vmem:[%s199 + $0x164] sm:$0xf] %v2066
      %2323 = vst [vmem:[%s199 + $0x168] sm:$0xf] %v2067
      %2324 = vst [vmem:[%s199 + $0x16c] sm:$0xf] %v2068
      %2325 = vst [vmem:[%s199 + $0x170] sm:$0xf] %v2069
      %2326 = vst [vmem:[%s199 + $0x174] sm:$0xf] %v2070
      %2327 = vst [vmem:[%s199 + $0x178] sm:$0xf] %v2071
      %2328 = vst [vmem:[%s199 + $0x17c] sm:$0xf] %v2072
      %2329 = vst [vmem:[%s199 + $0x180] sm:$0xf] %v2073
      %2330 = vst [vmem:[%s199 + $0x184] sm:$0xf] %v2074
      %2331 = vst [vmem:[%s199 + $0x188] sm:$0xf] %v2075
      %2332 = vst [vmem:[%s199 + $0x18c] sm:$0xf] %v2076
      %2333 = vst [vmem:[%s199 + $0x190] sm:$0xf] %v2077
      %2334 = vst [vmem:[%s199 + $0x194] sm:$0xf] %v2078
      %2335 = vst [vmem:[%s199 + $0x198] sm:$0xf] %v2079
      %2336 = vst [vmem:[%s199 + $0x19c] sm:$0xf] %v2080
      %2337 = vst [vmem:[%s199 + $0x1a0] sm:$0xf] %v2081
      %2338 = vst [vmem:[%s199 + $0x1a4] sm:$0xf] %v2082
      %2339 = vst [vmem:[%s199 + $0x1a8] sm:$0xf] %v2083
      %2340 = vst [vmem:[%s199 + $0x1ac] sm:$0xf] %v2084
      %2341 = vst [vmem:[%s199 + $0x1b0] sm:$0xf] %v2085
      %2342 = vst [vmem:[%s199 + $0x1b4] sm:$0xf] %v2086
      %2343 = vst [vmem:[%s199 + $0x1b8] sm:$0xf] %v2087
      %2344 = vst [vmem:[%s199 + $0x1bc] sm:$0xf] %v2088
      %2345 = vst [vmem:[%s199 + $0x1c0] sm:$0xf] %v2089
      %2346 = vst [vmem:[%s199 + $0x1c4] sm:$0xf] %v2090
      %2347 = vst [vmem:[%s199 + $0x1c8] sm:$0xf] %v2091
      %2348 = vst [vmem:[%s199 + $0x1cc] sm:$0xf] %v2092
      %2349 = vst [vmem:[%s199 + $0x1d0] sm:$0xf] %v2093
      %2350 = vst [vmem:[%s199 + $0x1d4] sm:$0xf] %v2094
      %2351 = vst [vmem:[%s199 + $0x1d8] sm:$0xf] %v2095
      %2352 = vst [vmem:[%s199 + $0x1dc] sm:$0xf] %v2096
      %2353 = vst [vmem:[%s199 + $0x1e0] sm:$0xf] %v2097
      %2354 = vst [vmem:[%s199 + $0x1e4] sm:$0xf] %v2098
      %2355 = vst [vmem:[%s199 + $0x1e8] sm:$0xf] %v2099
      %2356 = vst [vmem:[%s199 + $0x1ec] sm:$0xf] %v2100
      %2357 = vst [vmem:[%s199 + $0x1f0] sm:$0xf] %v2101
      %2358 = vst [vmem:[%s199 + $0x1f4] sm:$0xf] %v2102
      %2359 = vst [vmem:[%s199 + $0x1f8] sm:$0xf] %v2103
      %2360 = vst [vmem:[%s199 + $0x1fc] sm:$0xf] %v2104
      %s2361 = smul.u32 128, %s15
      %p2362 = scmp.lt.s32.totalorder %s2361, 255
      %s2363 = scalar_select %p2362, %s2361, 255
      %s2364 = smul.addr %s2363, 4
      %s2365 = scalar_lea.vmem %s4, %s2364
      // Predicated region
      $region37: #{_lambda_.13} parent=35 // pred_check
        %p2366 = pneg %p122
      $region38: #{_lambda_.13} parent=35 // pred_check_branch
        %2368 = sbr.rel (%p2366) target = $region40
      $region39: #{_lambda_.13} parent=35 // pred_region
        %s2369 = smul.u32 128, %s15
      $region40: #{_lambda_.13} parent=35 // pred_fallthru
        _
    $region36: #{_lambda_.13} parent=5 // pred_fallthru
      _
    %p2370 = scmp.le.s32.totalorder 2, %s10
    // Predicated region
    $region41: #{_lambda_.13} parent=5 // pred_check
      %p2371 = pneg %p2370
    $region42: #{_lambda_.13} parent=5 // pred_check_branch
      %2373 = sbr.rel (%p2371) target = $region44
    $region43: #{_lambda_.13} parent=5 // pred_region
      %s2374 = ssub.s32 %s10, 2
      // Predicated region
      $region45: #{_lambda_.13} parent=43 // pred_check
        %p2375 = pneg %p128
      $region46: #{_lambda_.13} parent=43 // pred_check_branch
        %2377 = sbr.rel (%p2375) target = $region48
      $region47: #{_lambda_.13} parent=43 // pred_region
        %s2378 = smul.u32 128, %s16
        %p2379 = scmp.lt.s32.totalorder %s2378, 255
        %s2380 = scalar_select %p2379, %s2378, 255
        %s2381 = smul.addr %s2380, 4
        %s2382 = scalar_lea.vmem %s4, %s2381
      $region48: #{_lambda_.13} parent=43 // pred_fallthru
        _
    $region44: #{_lambda_.13} parent=5 // pred_fallthru
      _
  $region6: #{_lambda_.13} parent=0 // loop_footer
    %s14 = sadd.s32 1, %s10
  $region7: #{_lambda_.13} parent=0 // loop_footer_branch
    %9 = sbr.rel target = $region3
  $region8: #{_lambda_.13} parent=0 // loop_exit
    _

// kernel: _lambda_.11
$region0: #{_lambda_.11}
  #allocation0 [shape = 'u32[]', space=smem, size = 0x4, offset = 0x4, fixed_abs, tag = 'smem constant byte address 0x4 - core index']
  #allocation1 [shape = 'u32[144,128]{1,0:T(1,128)}', space=vmem, size = 0x12000, scoped, tag = 'internal scratch']
  %s0 = inlined_call_operand.vmem [shape: bf16[2048,128], index: 0, kind: input, shape index: {}]
  %s1 = inlined_call_operand.vmem [shape: bf16[128,128], index: 1, kind: input, shape index: {}]
  %s2 = inlined_call_operand.vmem [shape: f32[1,128], index: 2, kind: input, shape index: {}]
  %s3 = inlined_call_operand.vmem [shape: f32[1,128], index: 3, kind: input, shape index: {}]
  %s4 = inlined_call_operand.vmem [shape: bf16[2048,128], index: 4, kind: input, shape index: {}]
  %s5 = inlined_call_operand.vmem [shape: bf16[2048,128], index: 5, kind: output, shape index: {}]
  %s6 = sld [smem:[#allocation0]]
  $region53: #{_lambda_.11} parent=0
    _
  %s8 = ssub.s32 1, %s6
  %s9 = scalar_select 0, %s8, %s6
  loop: start=0, step=1, limit=4
  $region2: #{_lambda_.11} parent=0 // loop_pre_header
    _
  $region3: #{_lambda_.11} parent=0 // loop_header
    %s11 = sphi 0, %s15
    %p12 = scmp.ge.s32.totalorder %s11, 4
    %s21 = sphi 0, %s23
    %s24 = sphi 0, %s21
    %s25 = sphi 0, %s24
    %s41 = sphi 0, %s25
    %s45 = sphi 0, %s45
    %s47 = sphi 0, %s45
    %s48 = sphi 0, %s47
    %s62 = sphi 0, %s48
    %s66 = sphi 0, %s66
    %s68 = sphi 0, %s66
    %s69 = sphi 0, %s68
    %s83 = sphi 0, %s69
    %s87 = sphi 0, %s87
    %s89 = sphi 0, %s87
    %s90 = sphi 0, %s89
    %s104 = sphi 0, %s90
    %s110 = sphi 0, %s112
    %s113 = sphi 0, %s110
    %s114 = sphi 0, %s113
    %s130 = sphi 0, %s114
    %s136 = sphi 0, %s138
    %s139 = sphi 0, %s136
    %s140 = sphi 0, %s139
    %s156 = sphi 0, %s140
  $region4: #{_lambda_.11} parent=0 // loop_header_branch
    %14 = sbr.rel (%p12) target = $region8
  $region5: #{_lambda_.11} parent=0 // loop_body
    %s16 = ssub.s32 %s11, 1
    %s17 = ssub.s32 %s11, 2
    %s18 = sadd.s32 %s11, 1
    %s19 = ssub.s32 %s11, %s18
    %p20 = scmp.eq.s32.totalorder %s19, 0
    %s22 = sadd.s32 %s21, 1
    %s23 = scalar_select %p20, %s21, %s22
    %p26 = pneg %p20
    %p27 = scmp.eq.s32.totalorder %s11, 1
    %p28 = por %p26, %p27
    %p29 = scmp.ne.s32.totalorder %s21, %s24
    %p30 = scmp.eq.s32.totalorder %s11, 0
    %p31 = por %p29, %p30
    %p32 = scmp.ne.s32.totalorder %s21, %s24
    %p33 = scmp.eq.s32.totalorder %s16, 1
    %p34 = por %p32, %p33
    %p35 = scmp.ne.s32.totalorder %s24, %s25
    %p36 = scmp.eq.s32.totalorder %s16, 0
    %p37 = por %p35, %p36
    %p38 = scmp.ne.s32.totalorder %s24, %s25
    %p39 = scmp.eq.s32.totalorder %s17, 1
    %p40 = por %p38, %p39
    %p42 = scmp.ne.s32.totalorder %s25, %s41
    %p43 = scmp.eq.s32.totalorder %s17, 0
    %p44 = por %p42, %p43
    %s46 = sadd.s32 %s45, 1
    %p49 = scmp.eq.s32.totalorder %s11, 1
    %p50 = scmp.ne.s32.totalorder %s45, %s47
    %p51 = scmp.eq.s32.totalorder %s11, 0
    %p52 = por %p50, %p51
    %p53 = scmp.ne.s32.totalorder %s45, %s47
    %p54 = scmp.eq.s32.totalorder %s16, 1
    %p55 = por %p53, %p54
    %p56 = scmp.ne.s32.totalorder %s47, %s48
    %p57 = scmp.eq.s32.totalorder %s16, 0
    %p58 = por %p56, %p57
    %p59 = scmp.ne.s32.totalorder %s47, %s48
    %p60 = scmp.eq.s32.totalorder %s17, 1
    %p61 = por %p59, %p60
    %p63 = scmp.ne.s32.totalorder %s48, %s62
    %p64 = scmp.eq.s32.totalorder %s17, 0
    %p65 = por %p63, %p64
    %s67 = sadd.s32 %s66, 1
    %p70 = scmp.eq.s32.totalorder %s11, 1
    %p71 = scmp.ne.s32.totalorder %s66, %s68
    %p72 = scmp.eq.s32.totalorder %s11, 0
    %p73 = por %p71, %p72
    %p74 = scmp.ne.s32.totalorder %s66, %s68
    %p75 = scmp.eq.s32.totalorder %s16, 1
    %p76 = por %p74, %p75
    %p77 = scmp.ne.s32.totalorder %s68, %s69
    %p78 = scmp.eq.s32.totalorder %s16, 0
    %p79 = por %p77, %p78
    %p80 = scmp.ne.s32.totalorder %s68, %s69
    %p81 = scmp.eq.s32.totalorder %s17, 1
    %p82 = por %p80, %p81
    %p84 = scmp.ne.s32.totalorder %s69, %s83
    %p85 = scmp.eq.s32.totalorder %s17, 0
    %p86 = por %p84, %p85
    %s88 = sadd.s32 %s87, 1
    %p91 = scmp.eq.s32.totalorder %s11, 1
    %p92 = scmp.ne.s32.totalorder %s87, %s89
    %p93 = scmp.eq.s32.totalorder %s11, 0
    %p94 = por %p92, %p93
    %p95 = scmp.ne.s32.totalorder %s87, %s89
    %p96 = scmp.eq.s32.totalorder %s16, 1
    %p97 = por %p95, %p96
    %p98 = scmp.ne.s32.totalorder %s89, %s90
    %p99 = scmp.eq.s32.totalorder %s16, 0
    %p100 = por %p98, %p99
    %p101 = scmp.ne.s32.totalorder %s89, %s90
    %p102 = scmp.eq.s32.totalorder %s17, 1
    %p103 = por %p101, %p102
    %p105 = scmp.ne.s32.totalorder %s90, %s104
    %p106 = scmp.eq.s32.totalorder %s17, 0
    %p107 = por %p105, %p106
    %s108 = ssub.s32 %s11, %s18
    %p109 = scmp.eq.s32.totalorder %s108, 0
    %s111 = sadd.s32 %s110, 1
    %s112 = scalar_select %p109, %s110, %s111
    %p115 = pneg %p109
    %p116 = scmp.eq.s32.totalorder %s11, 1
    %p117 = por %p115, %p116
    %p118 = scmp.ne.s32.totalorder %s110, %s113
    %p119 = scmp.eq.s32.totalorder %s11, 0
    %p120 = por %p118, %p119
    %p121 = scmp.ne.s32.totalorder %s110, %s113
    %p122 = scmp.eq.s32.totalorder %s16, 1
    %p123 = por %p121, %p122
    %p124 = scmp.ne.s32.totalorder %s113, %s114
    %p125 = scmp.eq.s32.totalorder %s16, 0
    %p126 = por %p124, %p125
    %p127 = scmp.ne.s32.totalorder %s113, %s114
    %p128 = scmp.eq.s32.totalorder %s17, 1
    %p129 = por %p127, %p128
    %p131 = scmp.ne.s32.totalorder %s114, %s130
    %p132 = scmp.eq.s32.totalorder %s17, 0
    %p133 = por %p131, %p132
    %s134 = ssub.s32 %s11, %s18
    %p135 = scmp.eq.s32.totalorder %s134, 0
    %s137 = sadd.s32 %s136, 1
    %s138 = scalar_select %p135, %s136, %s137
    %p141 = pneg %p135
    %p142 = scmp.eq.s32.totalorder %s11, 1
    %p143 = por %p141, %p142
    %p144 = scmp.ne.s32.totalorder %s136, %s139
    %p145 = scmp.eq.s32.totalorder %s11, 0
    %p146 = por %p144, %p145
    %p147 = scmp.ne.s32.totalorder %s136, %s139
    %p148 = scmp.eq.s32.totalorder %s16, 1
    %p149 = por %p147, %p148
    %p150 = scmp.ne.s32.totalorder %s139, %s140
    %p151 = scmp.eq.s32.totalorder %s16, 0
    %p152 = por %p150, %p151
    %p153 = scmp.ne.s32.totalorder %s139, %s140
    %p154 = scmp.eq.s32.totalorder %s17, 1
    %p155 = por %p153, %p154
    %p157 = scmp.ne.s32.totalorder %s140, %s156
    %p158 = scmp.eq.s32.totalorder %s17, 0
    %p159 = por %p157, %p158
    %p160 = scmp.le.s32.totalorder 1, %s11
    %p161 = scmp.lt.s32.totalorder %s11, 3
    %p162 = pnand %p160, %p161
    %p163 = pneg %p162
    // Predicated region
    $region9: #{_lambda_.11} parent=5 // pred_check
      _
    $region10: #{_lambda_.11} parent=5 // pred_check_branch
      %165 = sbr.rel (%p162) target = $region12
    $region11: #{_lambda_.11} parent=5 // pred_region
      %s166 = ssub.s32 %s11, 1
      // Predicated region
      $region13: #{_lambda_.11} parent=11 // pred_check
        %p167 = pneg %p58
      $region14: #{_lambda_.11} parent=11 // pred_check_branch
        %169 = sbr.rel (%p167) target = $region16
      $region15: #{_lambda_.11} parent=11 // pred_region
        _
      $region16: #{_lambda_.11} parent=11 // pred_fallthru
        _
      // Predicated region
      $region17: #{_lambda_.11} parent=11 // pred_check
        %p170 = pneg %p79
      $region18: #{_lambda_.11} parent=11 // pred_check_branch
        %172 = sbr.rel (%p170) target = $region20
      $region19: #{_lambda_.11} parent=11 // pred_region
        _
      $region20: #{_lambda_.11} parent=11 // pred_fallthru
        _
      // Predicated region
      $region21: #{_lambda_.11} parent=11 // pred_check
        %p173 = pneg %p100
      $region22: #{_lambda_.11} parent=11 // pred_check_branch
        %175 = sbr.rel (%p173) target = $region24
      $region23: #{_lambda_.11} parent=11 // pred_region
        _
      $region24: #{_lambda_.11} parent=11 // pred_fallthru
        _
    $region12: #{_lambda_.11} parent=5 // pred_fallthru
      _
    %p176 = scmp.lt.s32.totalorder %s11, 2
    // Predicated region
    $region25: #{_lambda_.11} parent=5 // pred_check
      %p177 = pneg %p176
    $region26: #{_lambda_.11} parent=5 // pred_check_branch
      %179 = sbr.rel (%p177) target = $region28
    $region27: #{_lambda_.11} parent=5 // pred_region
      // Predicated region
      $region29: #{_lambda_.11} parent=27 // pred_check
        %p180 = pneg %p31
      $region30: #{_lambda_.11} parent=27 // pred_check_branch
        %182 = sbr.rel (%p180) target = $region32
      $region31: #{_lambda_.11} parent=27 // pred_region
        %s183 = smul.u32 128, %s11
        %p184 = scmp.lt.s32.totalorder %s183, 255
        %s185 = scalar_select %p184, %s183, 255
        %s186 = smul.addr %s185, 4
        %s187 = scalar_lea.vmem %s0, %s186
        %s188 = smul.u32 128, %s11
      $region32: #{_lambda_.11} parent=27 // pred_fallthru
        _
      // Predicated region
      $region33: #{_lambda_.11} parent=27 // pred_check
        %p189 = pneg %p120
      $region34: #{_lambda_.11} parent=27 // pred_check_branch
        %191 = sbr.rel (%p189) target = $region36
      $region35: #{_lambda_.11} parent=27 // pred_region
        %s192 = smul.u32 128, %s11
        %p193 = scmp.lt.s32.totalorder %s192, 255
        %s194 = scalar_select %p193, %s192, 255
        %s195 = smul.addr %s194, 4
        %s196 = scalar_lea.vmem %s4, %s195
        %s197 = smul.u32 128, %s11
      $region36: #{_lambda_.11} parent=27 // pred_fallthru
        _
    $region28: #{_lambda_.11} parent=5 // pred_fallthru
      _
    %p198 = scmp.le.s32.totalorder 1, %s11
    %p199 = scmp.lt.s32.totalorder %s11, 3
    %p200 = pnand %p198, %p199
    %p201 = pneg %p200
    // Predicated region
    $region37: #{_lambda_.11} parent=5 // pred_check
      _
    $region38: #{_lambda_.11} parent=5 // pred_check_branch
      %203 = sbr.rel (%p200) target = $region40
    $region39: #{_lambda_.11} parent=5 // pred_region
      %s204 = ssub.s32 %s11, 1
      %s205 = smul.u32 128, %s16
      %p206 = scmp.lt.s32.totalorder %s205, 255
      %s207 = scalar_select %p206, %s205, 255
      %s208 = smul.addr %s207, 4
      %s209 = scalar_lea.vmem %s0, %s208
      %p210 = pneg %p37
      %p211 = pneg %p34
      %p212 = pneg %p58
      %p213 = pneg %p55
      %p214 = pneg %p79
      %p215 = pneg %p76
      %p216 = pneg %p100
      %p217 = pneg %p97
      %s218 = smul.u32 128, %s16
      %p219 = scmp.lt.s32.totalorder %s218, 255
      %s220 = scalar_select %p219, %s218, 255
      %s221 = smul.addr %s220, 4
      %s222 = scalar_lea.vmem %s4, %s221
      %p223 = pneg %p126
      %p224 = pneg %p123
      %p225 = pneg %p152
      %p226 = pneg %p149
      %s227 = smul.u32 128, %s16
      %p228 = scmp.lt.s32.totalorder %s227, 255
      %s229 = scalar_select %p228, %s227, 255
      %s230 = smul.addr %s229, 4
      %s231 = scalar_lea.vmem %s5, %s230
      %s232 = smul.u32 128, %s16
      %p233 = scmp.lt.s32.totalorder %s232, 255
      %s234 = scalar_select %p233, %s232, 255
      %s235 = smul.addr %s234, 4
      %s236 = scalar_lea.vmem %s0, %s235
      %s237 = smul.u32 128, %s16
      %s238 = smul.u32 128, %s16
      %p239 = scmp.lt.s32.totalorder %s238, 255
      %s240 = scalar_select %p239, %s238, 255
      %s241 = smul.addr %s240, 4
      %s242 = scalar_lea.vmem %s4, %s241
      %s243 = smul.u32 128, %s16
      %s244 = smul.u32 128, %s16
      %p245 = scmp.lt.s32.totalorder %s244, 255
      %s246 = scalar_select %p245, %s244, 255
      %s247 = smul.addr %s246, 4
      %s248 = scalar_lea.vmem %s5, %s247
      %s249 = smul.u32 128, %s16
      %v251 = vld [vmem:[%s236] sm:$0xf]
      %v252 = vld [vmem:[%s236 + $0x4] sm:$0xf]
      %v253 = vld [vmem:[%s236 + $0x8] sm:$0xf]
      %v254 = vld [vmem:[%s236 + $0xc] sm:$0xf]
      %v255 = vld [vmem:[%s236 + $0x10] sm:$0xf]
      %v256 = vld [vmem:[%s236 + $0x14] sm:$0xf]
      %v257 = vld [vmem:[%s236 + $0x18] sm:$0xf]
      %v258 = vld [vmem:[%s236 + $0x1c] sm:$0xf]
      %v259 = vld [vmem:[%s236 + $0x20] sm:$0xf]
      %v260 = vld [vmem:[%s236 + $0x24] sm:$0xf]
      %v261 = vld [vmem:[%s236 + $0x28] sm:$0xf]
      %v262 = vld [vmem:[%s236 + $0x2c] sm:$0xf]
      %v263 = vld [vmem:[%s236 + $0x30] sm:$0xf]
      %v264 = vld [vmem:[%s236 + $0x34] sm:$0xf]
      %v265 = vld [vmem:[%s236 + $0x38] sm:$0xf]
      %v266 = vld [vmem:[%s236 + $0x3c] sm:$0xf]
      %v267 = vld [vmem:[%s236 + $0x40] sm:$0xf]
      %v268 = vld [vmem:[%s236 + $0x44] sm:$0xf]
      %v269 = vld [vmem:[%s236 + $0x48] sm:$0xf]
      %v270 = vld [vmem:[%s236 + $0x4c] sm:$0xf]
      %v271 = vld [vmem:[%s236 + $0x50] sm:$0xf]
      %v272 = vld [vmem:[%s236 + $0x54] sm:$0xf]
      %v273 = vld [vmem:[%s236 + $0x58] sm:$0xf]
      %v274 = vld [vmem:[%s236 + $0x5c] sm:$0xf]
      %v275 = vld [vmem:[%s236 + $0x60] sm:$0xf]
      %v276 = vld [vmem:[%s236 + $0x64] sm:$0xf]
      %v277 = vld [vmem:[%s236 + $0x68] sm:$0xf]
      %v278 = vld [vmem:[%s236 + $0x6c] sm:$0xf]
      %v279 = vld [vmem:[%s236 + $0x70] sm:$0xf]
      %v280 = vld [vmem:[%s236 + $0x74] sm:$0xf]
      %v281 = vld [vmem:[%s236 + $0x78] sm:$0xf]
      %v282 = vld [vmem:[%s236 + $0x7c] sm:$0xf]
      %v283 = vld [vmem:[%s236 + $0x80] sm:$0xf]
      %v284 = vld [vmem:[%s236 + $0x84] sm:$0xf]
      %v285 = vld [vmem:[%s236 + $0x88] sm:$0xf]
      %v286 = vld [vmem:[%s236 + $0x8c] sm:$0xf]
      %v287 = vld [vmem:[%s236 + $0x90] sm:$0xf]
      %v288 = vld [vmem:[%s236 + $0x94] sm:$0xf]
      %v289 = vld [vmem:[%s236 + $0x98] sm:$0xf]
      %v290 = vld [vmem:[%s236 + $0x9c] sm:$0xf]
      %v291 = vld [vmem:[%s236 + $0xa0] sm:$0xf]
      %v292 = vld [vmem:[%s236 + $0xa4] sm:$0xf]
      %v293 = vld [vmem:[%s236 + $0xa8] sm:$0xf]
      %v294 = vld [vmem:[%s236 + $0xac] sm:$0xf]
      %v295 = vld [vmem:[%s236 + $0xb0] sm:$0xf]
      %v296 = vld [vmem:[%s236 + $0xb4] sm:$0xf]
      %v297 = vld [vmem:[%s236 + $0xb8] sm:$0xf]
      %v298 = vld [vmem:[%s236 + $0xbc] sm:$0xf]
      %v299 = vld [vmem:[%s236 + $0xc0] sm:$0xf]
      %v300 = vld [vmem:[%s236 + $0xc4] sm:$0xf]
      %v301 = vld [vmem:[%s236 + $0xc8] sm:$0xf]
      %v302 = vld [vmem:[%s236 + $0xcc] sm:$0xf]
      %v303 = vld [vmem:[%s236 + $0xd0] sm:$0xf]
      %v304 = vld [vmem:[%s236 + $0xd4] sm:$0xf]
      %v305 = vld [vmem:[%s236 + $0xd8] sm:$0xf]
      %v306 = vld [vmem:[%s236 + $0xdc] sm:$0xf]
      %v307 = vld [vmem:[%s236 + $0xe0] sm:$0xf]
      %v308 = vld [vmem:[%s236 + $0xe4] sm:$0xf]
      %v309 = vld [vmem:[%s236 + $0xe8] sm:$0xf]
      %v310 = vld [vmem:[%s236 + $0xec] sm:$0xf]
      %v311 = vld [vmem:[%s236 + $0xf0] sm:$0xf]
      %v312 = vld [vmem:[%s236 + $0xf4] sm:$0xf]
      %v313 = vld [vmem:[%s236 + $0xf8] sm:$0xf]
      %v314 = vld [vmem:[%s236 + $0xfc] sm:$0xf]
      %v315 = vld [vmem:[%s236 + $0x100] sm:$0xf]
      %v316 = vld [vmem:[%s236 + $0x104] sm:$0xf]
      %v317 = vld [vmem:[%s236 + $0x108] sm:$0xf]
      %v318 = vld [vmem:[%s236 + $0x10c] sm:$0xf]
      %v319 = vld [vmem:[%s236 + $0x110] sm:$0xf]
      %v320 = vld [vmem:[%s236 + $0x114] sm:$0xf]
      %v321 = vld [vmem:[%s236 + $0x118] sm:$0xf]
      %v322 = vld [vmem:[%s236 + $0x11c] sm:$0xf]
      %v323 = vld [vmem:[%s236 + $0x120] sm:$0xf]
      %v324 = vld [vmem:[%s236 + $0x124] sm:$0xf]
      %v325 = vld [vmem:[%s236 + $0x128] sm:$0xf]
      %v326 = vld [vmem:[%s236 + $0x12c] sm:$0xf]
      %v327 = vld [vmem:[%s236 + $0x130] sm:$0xf]
      %v328 = vld [vmem:[%s236 + $0x134] sm:$0xf]
      %v329 = vld [vmem:[%s236 + $0x138] sm:$0xf]
      %v330 = vld [vmem:[%s236 + $0x13c] sm:$0xf]
      %v331 = vld [vmem:[%s236 + $0x140] sm:$0xf]
      %v332 = vld [vmem:[%s236 + $0x144] sm:$0xf]
      %v333 = vld [vmem:[%s236 + $0x148] sm:$0xf]
      %v334 = vld [vmem:[%s236 + $0x14c] sm:$0xf]
      %v335 = vld [vmem:[%s236 + $0x150] sm:$0xf]
      %v336 = vld [vmem:[%s236 + $0x154] sm:$0xf]
      %v337 = vld [vmem:[%s236 + $0x158] sm:$0xf]
      %v338 = vld [vmem:[%s236 + $0x15c] sm:$0xf]
      %v339 = vld [vmem:[%s236 + $0x160] sm:$0xf]
      %v340 = vld [vmem:[%s236 + $0x164] sm:$0xf]
      %v341 = vld [vmem:[%s236 + $0x168] sm:$0xf]
      %v342 = vld [vmem:[%s236 + $0x16c] sm:$0xf]
      %v343 = vld [vmem:[%s236 + $0x170] sm:$0xf]
      %v344 = vld [vmem:[%s236 + $0x174] sm:$0xf]
      %v345 = vld [vmem:[%s236 + $0x178] sm:$0xf]
      %v346 = vld [vmem:[%s236 + $0x17c] sm:$0xf]
      %v347 = vld [vmem:[%s236 + $0x180] sm:$0xf]
      %v348 = vld [vmem:[%s236 + $0x184] sm:$0xf]
      %v349 = vld [vmem:[%s236 + $0x188] sm:$0xf]
      %v350 = vld [vmem:[%s236 + $0x18c] sm:$0xf]
      %v351 = vld [vmem:[%s236 + $0x190] sm:$0xf]
      %v352 = vld [vmem:[%s236 + $0x194] sm:$0xf]
      %v353 = vld [vmem:[%s236 + $0x198] sm:$0xf]
      %v354 = vld [vmem:[%s236 + $0x19c] sm:$0xf]
      %v355 = vld [vmem:[%s236 + $0x1a0] sm:$0xf]
      %v356 = vld [vmem:[%s236 + $0x1a4] sm:$0xf]
      %v357 = vld [vmem:[%s236 + $0x1a8] sm:$0xf]
      %v358 = vld [vmem:[%s236 + $0x1ac] sm:$0xf]
      %v359 = vld [vmem:[%s236 + $0x1b0] sm:$0xf]
      %v360 = vld [vmem:[%s236 + $0x1b4] sm:$0xf]
      %v361 = vld [vmem:[%s236 + $0x1b8] sm:$0xf]
      %v362 = vld [vmem:[%s236 + $0x1bc] sm:$0xf]
      %v363 = vld [vmem:[%s236 + $0x1c0] sm:$0xf]
      %v364 = vld [vmem:[%s236 + $0x1c4] sm:$0xf]
      %v365 = vld [vmem:[%s236 + $0x1c8] sm:$0xf]
      %v366 = vld [vmem:[%s236 + $0x1cc] sm:$0xf]
      %v367 = vld [vmem:[%s236 + $0x1d0] sm:$0xf]
      %v368 = vld [vmem:[%s236 + $0x1d4] sm:$0xf]
      %v369 = vld [vmem:[%s236 + $0x1d8] sm:$0xf]
      %v370 = vld [vmem:[%s236 + $0x1dc] sm:$0xf]
      %v371 = vld [vmem:[%s236 + $0x1e0] sm:$0xf]
      %v372 = vld [vmem:[%s236 + $0x1e4] sm:$0xf]
      %v373 = vld [vmem:[%s236 + $0x1e8] sm:$0xf]
      %v374 = vld [vmem:[%s236 + $0x1ec] sm:$0xf]
      %v375 = vld [vmem:[%s236 + $0x1f0] sm:$0xf]
      %v376 = vld [vmem:[%s236 + $0x1f4] sm:$0xf]
      %v377 = vld [vmem:[%s236 + $0x1f8] sm:$0xf]
      %v378 = vld [vmem:[%s236 + $0x1fc] sm:$0xf]
      %v379 = vld [vmem:[%s1] sm:$0xf]
      %v380 = vld [vmem:[%s1 + $0x4] sm:$0xf]
      %v381 = vld [vmem:[%s1 + $0x8] sm:$0xf]
      %v382 = vld [vmem:[%s1 + $0xc] sm:$0xf]
      %v383 = vld [vmem:[%s1 + $0x10] sm:$0xf]
      %v384 = vld [vmem:[%s1 + $0x14] sm:$0xf]
      %v385 = vld [vmem:[%s1 + $0x18] sm:$0xf]
      %v386 = vld [vmem:[%s1 + $0x1c] sm:$0xf]
      %v387 = vld [vmem:[%s1 + $0x20] sm:$0xf]
      %v388 = vld [vmem:[%s1 + $0x24] sm:$0xf]
      %v389 = vld [vmem:[%s1 + $0x28] sm:$0xf]
      %v390 = vld [vmem:[%s1 + $0x2c] sm:$0xf]
      %v391 = vld [vmem:[%s1 + $0x30] sm:$0xf]
      %v392 = vld [vmem:[%s1 + $0x34] sm:$0xf]
      %v393 = vld [vmem:[%s1 + $0x38] sm:$0xf]
      %v394 = vld [vmem:[%s1 + $0x3c] sm:$0xf]
      %v523 = vunpack.c.l.b16 %v251
      %v524 = vunpack.c.l.b16 %v252
      %v525 = vunpack.c.l.b16 %v253
      %v526 = vunpack.c.l.b16 %v254
      %v527 = vunpack.c.l.b16 %v255
      %v528 = vunpack.c.l.b16 %v256
      %v529 = vunpack.c.l.b16 %v257
      %v530 = vunpack.c.l.b16 %v258
      %v531 = vunpack.c.l.b16 %v259
      %v532 = vunpack.c.l.b16 %v260
      %v533 = vunpack.c.l.b16 %v261
      %v534 = vunpack.c.l.b16 %v262
      %v535 = vunpack.c.l.b16 %v263
      %v536 = vunpack.c.l.b16 %v264
      %v537 = vunpack.c.l.b16 %v265
      %v538 = vunpack.c.l.b16 %v266
      %v539 = vunpack.c.l.b16 %v267
      %v540 = vunpack.c.l.b16 %v268
      %v541 = vunpack.c.l.b16 %v269
      %v542 = vunpack.c.l.b16 %v270
      %v543 = vunpack.c.l.b16 %v271
      %v544 = vunpack.c.l.b16 %v272
      %v545 = vunpack.c.l.b16 %v273
      %v546 = vunpack.c.l.b16 %v274
      %v547 = vunpack.c.l.b16 %v275
      %v548 = vunpack.c.l.b16 %v276
      %v549 = vunpack.c.l.b16 %v277
      %v550 = vunpack.c.l.b16 %v278
      %v551 = vunpack.c.l.b16 %v279
      %v552 = vunpack.c.l.b16 %v280
      %v553 = vunpack.c.l.b16 %v281
      %v554 = vunpack.c.l.b16 %v282
      %v555 = vunpack.c.l.b16 %v283
      %v556 = vunpack.c.l.b16 %v284
      %v557 = vunpack.c.l.b16 %v285
      %v558 = vunpack.c.l.b16 %v286
      %v559 = vunpack.c.l.b16 %v287
      %v560 = vunpack.c.l.b16 %v288
      %v561 = vunpack.c.l.b16 %v289
      %v562 = vunpack.c.l.b16 %v290
      %v563 = vunpack.c.l.b16 %v291
      %v564 = vunpack.c.l.b16 %v292
      %v565 = vunpack.c.l.b16 %v293
      %v566 = vunpack.c.l.b16 %v294
      %v567 = vunpack.c.l.b16 %v295
      %v568 = vunpack.c.l.b16 %v296
      %v569 = vunpack.c.l.b16 %v297
      %v570 = vunpack.c.l.b16 %v298
      %v571 = vunpack.c.l.b16 %v299
      %v572 = vunpack.c.l.b16 %v300
      %v573 = vunpack.c.l.b16 %v301
      %v574 = vunpack.c.l.b16 %v302
      %v575 = vunpack.c.l.b16 %v303
      %v576 = vunpack.c.l.b16 %v304
      %v577 = vunpack.c.l.b16 %v305
      %v578 = vunpack.c.l.b16 %v306
      %v579 = vunpack.c.l.b16 %v307
      %v580 = vunpack.c.l.b16 %v308
      %v581 = vunpack.c.l.b16 %v309
      %v582 = vunpack.c.l.b16 %v310
      %v583 = vunpack.c.l.b16 %v311
      %v584 = vunpack.c.l.b16 %v312
      %v585 = vunpack.c.l.b16 %v313
      %v586 = vunpack.c.l.b16 %v314
      %v587 = vunpack.c.l.b16 %v315
      %v588 = vunpack.c.l.b16 %v316
      %v589 = vunpack.c.l.b16 %v317
      %v590 = vunpack.c.l.b16 %v318
      %v591 = vunpack.c.l.b16 %v319
      %v592 = vunpack.c.l.b16 %v320
      %v593 = vunpack.c.l.b16 %v321
      %v594 = vunpack.c.l.b16 %v322
      %v595 = vunpack.c.l.b16 %v323
      %v596 = vunpack.c.l.b16 %v324
      %v597 = vunpack.c.l.b16 %v325
      %v598 = vunpack.c.l.b16 %v326
      %v599 = vunpack.c.l.b16 %v327
      %v600 = vunpack.c.l.b16 %v328
      %v601 = vunpack.c.l.b16 %v329
      %v602 = vunpack.c.l.b16 %v330
      %v603 = vunpack.c.l.b16 %v331
      %v604 = vunpack.c.l.b16 %v332
      %v605 = vunpack.c.l.b16 %v333
      %v606 = vunpack.c.l.b16 %v334
      %v607 = vunpack.c.l.b16 %v335
      %v608 = vunpack.c.l.b16 %v336
      %v609 = vunpack.c.l.b16 %v337
      %v610 = vunpack.c.l.b16 %v338
      %v611 = vunpack.c.l.b16 %v339
      %v612 = vunpack.c.l.b16 %v340
      %v613 = vunpack.c.l.b16 %v341
      %v614 = vunpack.c.l.b16 %v342
      %v615 = vunpack.c.l.b16 %v343
      %v616 = vunpack.c.l.b16 %v344
      %v617 = vunpack.c.l.b16 %v345
      %v618 = vunpack.c.l.b16 %v346
      %v619 = vunpack.c.l.b16 %v347
      %v620 = vunpack.c.l.b16 %v348
      %v621 = vunpack.c.l.b16 %v349
      %v622 = vunpack.c.l.b16 %v350
      %v623 = vunpack.c.l.b16 %v351
      %v624 = vunpack.c.l.b16 %v352
      %v625 = vunpack.c.l.b16 %v353
      %v626 = vunpack.c.l.b16 %v354
      %v627 = vunpack.c.l.b16 %v355
      %v628 = vunpack.c.l.b16 %v356
      %v629 = vunpack.c.l.b16 %v357
      %v630 = vunpack.c.l.b16 %v358
      %v631 = vunpack.c.l.b16 %v359
      %v632 = vunpack.c.l.b16 %v360
      %v633 = vunpack.c.l.b16 %v361
      %v634 = vunpack.c.l.b16 %v362
      %v635 = vunpack.c.l.b16 %v363
      %v636 = vunpack.c.l.b16 %v364
      %v637 = vunpack.c.l.b16 %v365
      %v638 = vunpack.c.l.b16 %v366
      %v639 = vunpack.c.l.b16 %v367
      %v640 = vunpack.c.l.b16 %v368
      %v641 = vunpack.c.l.b16 %v369
      %v642 = vunpack.c.l.b16 %v370
      %v643 = vunpack.c.l.b16 %v371
      %v644 = vunpack.c.l.b16 %v372
      %v645 = vunpack.c.l.b16 %v373
      %v646 = vunpack.c.l.b16 %v374
      %v647 = vunpack.c.l.b16 %v375
      %v648 = vunpack.c.l.b16 %v376
      %v649 = vunpack.c.l.b16 %v377
      %v650 = vunpack.c.l.b16 %v378
      %v651 = vpack.c.b16 %v524, %v523
      %v652 = vpack.c.b16 %v526, %v525
      %v653 = vpack.c.b16 %v528, %v527
      %v654 = vpack.c.b16 %v530, %v529
      %v655 = vpack.c.b16 %v532, %v531
      %v656 = vpack.c.b16 %v534, %v533
      %v657 = vpack.c.b16 %v536, %v535
      %v658 = vpack.c.b16 %v538, %v537
      %v659 = vpack.c.b16 %v540, %v539
      %v660 = vpack.c.b16 %v542, %v541
      %v661 = vpack.c.b16 %v544, %v543
      %v662 = vpack.c.b16 %v546, %v545
      %v663 = vpack.c.b16 %v548, %v547
      %v664 = vpack.c.b16 %v550, %v549
      %v665 = vpack.c.b16 %v552, %v551
      %v666 = vpack.c.b16 %v554, %v553
      %v667 = vpack.c.b16 %v556, %v555
      %v668 = vpack.c.b16 %v558, %v557
      %v669 = vpack.c.b16 %v560, %v559
      %v670 = vpack.c.b16 %v562, %v561
      %v671 = vpack.c.b16 %v564, %v563
      %v672 = vpack.c.b16 %v566, %v565
      %v673 = vpack.c.b16 %v568, %v567
      %v674 = vpack.c.b16 %v570, %v569
      %v675 = vpack.c.b16 %v572, %v571
      %v676 = vpack.c.b16 %v574, %v573
      %v677 = vpack.c.b16 %v576, %v575
      %v678 = vpack.c.b16 %v578, %v577
      %v679 = vpack.c.b16 %v580, %v579
      %v680 = vpack.c.b16 %v582, %v581
      %v681 = vpack.c.b16 %v584, %v583
      %v682 = vpack.c.b16 %v586, %v585
      %v683 = vpack.c.b16 %v588, %v587
      %v684 = vpack.c.b16 %v590, %v589
      %v685 = vpack.c.b16 %v592, %v591
      %v686 = vpack.c.b16 %v594, %v593
      %v687 = vpack.c.b16 %v596, %v595
      %v688 = vpack.c.b16 %v598, %v597
      %v689 = vpack.c.b16 %v600, %v599
      %v690 = vpack.c.b16 %v602, %v601
      %v691 = vpack.c.b16 %v604, %v603
      %v692 = vpack.c.b16 %v606, %v605
      %v693 = vpack.c.b16 %v608, %v607
      %v694 = vpack.c.b16 %v610, %v609
      %v695 = vpack.c.b16 %v612, %v611
      %v696 = vpack.c.b16 %v614, %v613
      %v697 = vpack.c.b16 %v616, %v615
      %v698 = vpack.c.b16 %v618, %v617
      %v699 = vpack.c.b16 %v620, %v619
      %v700 = vpack.c.b16 %v622, %v621
      %v701 = vpack.c.b16 %v624, %v623
      %v702 = vpack.c.b16 %v626, %v625
      %v703 = vpack.c.b16 %v628, %v627
      %v704 = vpack.c.b16 %v630, %v629
      %v705 = vpack.c.b16 %v632, %v631
      %v706 = vpack.c.b16 %v634, %v633
      %v707 = vpack.c.b16 %v636, %v635
      %v708 = vpack.c.b16 %v638, %v637
      %v709 = vpack.c.b16 %v640, %v639
      %v710 = vpack.c.b16 %v642, %v641
      %v711 = vpack.c.b16 %v644, %v643
      %v712 = vpack.c.b16 %v646, %v645
      %v713 = vpack.c.b16 %v648, %v647
      %v714 = vpack.c.b16 %v650, %v649
      %v795 = vunpack.c.l.b16 %v379
      %v796 = vunpack.c.l.b16 %v380
      %v797 = vunpack.c.l.b16 %v381
      %v798 = vunpack.c.l.b16 %v382
      %v799 = vunpack.c.l.b16 %v383
      %v800 = vunpack.c.l.b16 %v384
      %v801 = vunpack.c.l.b16 %v385
      %v802 = vunpack.c.l.b16 %v386
      %v803 = vunpack.c.l.b16 %v387
      %v804 = vunpack.c.l.b16 %v388
      %v805 = vunpack.c.l.b16 %v389
      %v806 = vunpack.c.l.b16 %v390
      %v807 = vunpack.c.l.b16 %v391
      %v808 = vunpack.c.l.b16 %v392
      %v809 = vunpack.c.l.b16 %v393
      %v810 = vunpack.c.l.b16 %v394
      %v811 = vpack.c.b16 %v796, %v795
      %v812 = vpack.c.b16 %v798, %v797
      %v813 = vpack.c.b16 %v800, %v799
      %v814 = vpack.c.b16 %v802, %v801
      %v815 = vpack.c.b16 %v804, %v803
      %v816 = vpack.c.b16 %v806, %v805
      %v817 = vpack.c.b16 %v808, %v807
      %v818 = vpack.c.b16 %v810, %v809
      %827 = vmatprep.subr.bf16.mxu0 0
      %828 = vmatpush1.bf16.msra.mxu0 %v811
      %829 = vmatprep.subr.bf16.mxu0 0
      %830 = vmatpush1.bf16.msra.mxu0 %v812
      %831 = vmatprep.subr.bf16.mxu0 0
      %832 = vmatpush1.bf16.msra.mxu0 %v813
      %833 = vmatprep.subr.bf16.mxu0 0
      %834 = vmatpush1.bf16.msra.mxu0 %v814
      %835 = vmatprep.subr.bf16.mxu0 0
      %836 = vmatpush1.bf16.msra.mxu0 %v815
      %837 = vmatprep.subr.bf16.mxu0 0
      %838 = vmatpush1.bf16.msra.mxu0 %v816
      %839 = vmatprep.subr.bf16.mxu0 0
      %840 = vmatpush1.bf16.msra.mxu0 %v817
      %841 = vmatprep.subr.bf16.mxu0 0
      %842 = vmatpush1.bf16.msra.mxu0 %v818
      %843 = vmatprep.subr.bf16.mxu0 0
      %844 = vmatpush1.bf16.msra.mxu0 0
      %845 = vmatprep.subr.bf16.mxu0 0
      %846 = vmatpush1.bf16.msra.mxu0 0
      %847 = vmatprep.subr.bf16.mxu0 0
      %848 = vmatpush1.bf16.msra.mxu0 0
      %849 = vmatprep.subr.bf16.mxu0 0
      %850 = vmatpush1.bf16.msra.mxu0 0
      %851 = vmatprep.subr.bf16.mxu0 0
      %852 = vmatpush1.bf16.msra.mxu0 0
      %853 = vmatprep.subr.bf16.mxu0 0
      %854 = vmatpush1.bf16.msra.mxu0 0
      %855 = vmatprep.subr.bf16.mxu0 0
      %856 = vmatpush1.bf16.msra.mxu0 0
      %857 = vmatprep.subr.bf16.mxu0 0
      %858 = vmatpush1.bf16.msra.mxu0 0
      %859 = vmatprep.mubr.bf16.mxu0 0
      %860 = vmatmul.mubr.bf16.gmra.mrb[0].mxu0 %v651
      %v861 = vpop.f32.mrb[0].mxu0
      %v862 = vadd.f32 0.0, %v861
      %v863 = vpop.f32.mrb[0].mxu0
      %v864 = vpop.f32.mrb[0].mxu0
      %v865 = vadd.f32 0.0, %v864
      %v866 = vpop.f32.mrb[0].mxu0
      %867 = vmatprep.mubr.bf16.mxu0 0
      %868 = vmatmul.mubr.bf16.gmra.mrb[0].mxu0 %v652
      %v869 = vpop.f32.mrb[0].mxu0
      %v870 = vadd.f32 0.0, %v869
      %v871 = vpop.f32.mrb[0].mxu0
      %v872 = vpop.f32.mrb[0].mxu0
      %v873 = vadd.f32 0.0, %v872
      %v874 = vpop.f32.mrb[0].mxu0
      %875 = vmatprep.mubr.bf16.mxu0 0
      %876 = vmatmul.mubr.bf16.gmra.mrb[0].mxu0 %v653
      %v877 = vpop.f32.mrb[0].mxu0
      %v878 = vadd.f32 0.0, %v877
      %v879 = vpop.f32.mrb[0].mxu0
      %v880 = vpop.f32.mrb[0].mxu0
      %v881 = vadd.f32 0.0, %v880
      %v882 = vpop.f32.mrb[0].mxu0
      %883 = vmatprep.mubr.bf16.mxu0 0
      %884 = vmatmul.mubr.bf16.gmra.mrb[0].mxu0 %v654
      %v885 = vpop.f32.mrb[0].mxu0
      %v886 = vadd.f32 0.0, %v885
      %v887 = vpop.f32.mrb[0].mxu0
      %v888 = vpop.f32.mrb[0].mxu0
      %v889 = vadd.f32 0.0, %v888
      %v890 = vpop.f32.mrb[0].mxu0
      %891 = vmatprep.mubr.bf16.mxu0 0
      %892 = vmatmul.mubr.bf16.gmra.mrb[0].mxu0 %v655
      %v893 = vpop.f32.mrb[0].mxu0
      %v894 = vadd.f32 0.0, %v893
      %v895 = vpop.f32.mrb[0].mxu0
      %v896 = vpop.f32.mrb[0].mxu0
      %v897 = vadd.f32 0.0, %v896
      %v898 = vpop.f32.mrb[0].mxu0
      %899 = vmatprep.mubr.bf16.mxu0 0
      %900 = vmatmul.mubr.bf16.gmra.mrb[0].mxu0 %v656
      %v901 = vpop.f32.mrb[0].mxu0
      %v902 = vadd.f32 0.0, %v901
      %v903 = vpop.f32.mrb[0].mxu0
      %v904 = vpop.f32.mrb[0].mxu0
      %v905 = vadd.f32 0.0, %v904
      %v906 = vpop.f32.mrb[0].mxu0
      %907 = vmatprep.mubr.bf16.mxu0 0
      %908 = vmatmul.mubr.bf16.gmra.mrb[0].mxu0 %v657
      %v909 = vpop.f32.mrb[0].mxu0
      %v910 = vadd.f32 0.0, %v909
      %v911 = vpop.f32.mrb[0].mxu0
      %v912 = vpop.f32.mrb[0].mxu0
      %v913 = vadd.f32 0.0, %v912
      %v914 = vpop.f32.mrb[0].mxu0
      %915 = vmatprep.mubr.bf16.mxu0 0
      %916 = vmatmul.mubr.bf16.gmra.mrb[0].mxu0 %v658
      %v917 = vpop.f32.mrb[0].mxu0
      %v918 = vadd.f32 0.0, %v917
      %v919 = vpop.f32.mrb[0].mxu0
      %v920 = vpop.f32.mrb[0].mxu0
      %v921 = vadd.f32 0.0, %v920
      %v922 = vpop.f32.mrb[0].mxu0
      %923 = vmatprep.mubr.bf16.mxu0 0
      %924 = vmatmul.mubr.bf16.gmra.mrb[0].mxu0 %v659
      %v925 = vpop.f32.mrb[0].mxu0
      %v926 = vadd.f32 0.0, %v925
      %v927 = vpop.f32.mrb[0].mxu0
      %v928 = vpop.f32.mrb[0].mxu0
      %v929 = vadd.f32 0.0, %v928
      %v930 = vpop.f32.mrb[0].mxu0
      %931 = vmatprep.mubr.bf16.mxu0 0
      %932 = vmatmul.mubr.bf16.gmra.mrb[0].mxu0 %v660
      %v933 = vpop.f32.mrb[0].mxu0
      %v934 = vadd.f32 0.0, %v933
      %v935 = vpop.f32.mrb[0].mxu0
      %v936 = vpop.f32.mrb[0].mxu0
      %v937 = vadd.f32 0.0, %v936
      %v938 = vpop.f32.mrb[0].mxu0
      %939 = vmatprep.mubr.bf16.mxu0 0
      %940 = vmatmul.mubr.bf16.gmra.mrb[0].mxu0 %v661
      %v941 = vpop.f32.mrb[0].mxu0
      %v942 = vadd.f32 0.0, %v941
      %v943 = vpop.f32.mrb[0].mxu0
      %v944 = vpop.f32.mrb[0].mxu0
      %v945 = vadd.f32 0.0, %v944
      %v946 = vpop.f32.mrb[0].mxu0
      %947 = vmatprep.mubr.bf16.mxu0 0
      %948 = vmatmul.mubr.bf16.gmra.mrb[0].mxu0 %v662
      %v949 = vpop.f32.mrb[0].mxu0
      %v950 = vadd.f32 0.0, %v949
      %v951 = vpop.f32.mrb[0].mxu0
      %v952 = vpop.f32.mrb[0].mxu0
      %v953 = vadd.f32 0.0, %v952
      %v954 = vpop.f32.mrb[0].mxu0
      %955 = vmatprep.mubr.bf16.mxu0 0
      %956 = vmatmul.mubr.bf16.gmra.mrb[0].mxu0 %v663
      %v957 = vpop.f32.mrb[0].mxu0
      %v958 = vadd.f32 0.0, %v957
      %v959 = vpop.f32.mrb[0].mxu0
      %v960 = vpop.f32.mrb[0].mxu0
      %v961 = vadd.f32 0.0, %v960
      %v962 = vpop.f32.mrb[0].mxu0
      %963 = vmatprep.mubr.bf16.mxu0 0
      %964 = vmatmul.mubr.bf16.gmra.mrb[0].mxu0 %v664
      %v965 = vpop.f32.mrb[0].mxu0
      %v966 = vadd.f32 0.0, %v965
      %v967 = vpop.f32.mrb[0].mxu0
      %v968 = vpop.f32.mrb[0].mxu0
      %v969 = vadd.f32 0.0, %v968
      %v970 = vpop.f32.mrb[0].mxu0
      %971 = vmatprep.mubr.bf16.mxu0 0
      %972 = vmatmul.mubr.bf16.gmra.mrb[0].mxu0 %v665
      %v973 = vpop.f32.mrb[0].mxu0
      %v974 = vadd.f32 0.0, %v973
      %v975 = vpop.f32.mrb[0].mxu0
      %v976 = vpop.f32.mrb[0].mxu0
      %v977 = vadd.f32 0.0, %v976
      %v978 = vpop.f32.mrb[0].mxu0
      %979 = vmatprep.mubr.bf16.mxu0 0
      %980 = vmatmul.mubr.bf16.gmra.mrb[0].mxu0 %v666
      %v981 = vpop.f32.mrb[0].mxu0
      %v982 = vadd.f32 0.0, %v981
      %v983 = vpop.f32.mrb[0].mxu0
      %v984 = vpop.f32.mrb[0].mxu0
      %v985 = vadd.f32 0.0, %v984
      %v986 = vpop.f32.mrb[0].mxu0
      %987 = vmatprep.mubr.bf16.mxu0 0
      %988 = vmatmul.mubr.bf16.gmra.mrb[0].mxu0 %v667
      %v989 = vpop.f32.mrb[0].mxu0
      %v990 = vadd.f32 0.0, %v989
      %v991 = vpop.f32.mrb[0].mxu0
      %v992 = vpop.f32.mrb[0].mxu0
      %v993 = vadd.f32 0.0, %v992
      %v994 = vpop.f32.mrb[0].mxu0
      %995 = vmatprep.mubr.bf16.mxu0 0
      %996 = vmatmul.mubr.bf16.gmra.mrb[0].mxu0 %v668
      %v997 = vpop.f32.mrb[0].mxu0
      %v998 = vadd.f32 0.0, %v997
      %v999 = vpop.f32.mrb[0].mxu0
      %v1000 = vpop.f32.mrb[0].mxu0
      %v1001 = vadd.f32 0.0, %v1000
      %v1002 = vpop.f32.mrb[0].mxu0
      %1003 = vmatprep.mubr.bf16.mxu0 0
      %1004 = vmatmul.mubr.bf16.gmra.mrb[0].mxu0 %v669
      %v1005 = vpop.f32.mrb[0].mxu0
      %v1006 = vadd.f32 0.0, %v1005
      %v1007 = vpop.f32.mrb[0].mxu0
      %v1008 = vpop.f32.mrb[0].mxu0
      %v1009 = vadd.f32 0.0, %v1008
      %v1010 = vpop.f32.mrb[0].mxu0
      %1011 = vmatprep.mubr.bf16.mxu0 0
      %1012 = vmatmul.mubr.bf16.gmra.mrb[0].mxu0 %v670
      %v1013 = vpop.f32.mrb[0].mxu0
      %v1014 = vadd.f32 0.0, %v1013
      %v1015 = vpop.f32.mrb[0].mxu0
      %v1016 = vpop.f32.mrb[0].mxu0
      %v1017 = vadd.f32 0.0, %v1016
      %v1018 = vpop.f32.mrb[0].mxu0
      %1019 = vmatprep.mubr.bf16.mxu0 0
      %1020 = vmatmul.mubr.bf16.gmra.mrb[0].mxu0 %v671
      %v1021 = vpop.f32.mrb[0].mxu0
      %v1022 = vadd.f32 0.0, %v1021
      %v1023 = vpop.f32.mrb[0].mxu0
      %v1024 = vpop.f32.mrb[0].mxu0
      %v1025 = vadd.f32 0.0, %v1024
      %v1026 = vpop.f32.mrb[0].mxu0
      %1027 = vmatprep.mubr.bf16.mxu0 0
      %1028 = vmatmul.mubr.bf16.gmra.mrb[0].mxu0 %v672
      %v1029 = vpop.f32.mrb[0].mxu0
      %v1030 = vadd.f32 0.0, %v1029
      %v1031 = vpop.f32.mrb[0].mxu0
      %v1032 = vpop.f32.mrb[0].mxu0
      %v1033 = vadd.f32 0.0, %v1032
      %v1034 = vpop.f32.mrb[0].mxu0
      %1035 = vmatprep.mubr.bf16.mxu0 0
      %1036 = vmatmul.mubr.bf16.gmra.mrb[0].mxu0 %v673
      %v1037 = vpop.f32.mrb[0].mxu0
      %v1038 = vadd.f32 0.0, %v1037
      %v1039 = vpop.f32.mrb[0].mxu0
      %v1040 = vpop.f32.mrb[0].mxu0
      %v1041 = vadd.f32 0.0, %v1040
      %v1042 = vpop.f32.mrb[0].mxu0
      %1043 = vmatprep.mubr.bf16.mxu0 0
      %1044 = vmatmul.mubr.bf16.gmra.mrb[0].mxu0 %v674
      %v1045 = vpop.f32.mrb[0].mxu0
      %v1046 = vadd.f32 0.0, %v1045
      %v1047 = vpop.f32.mrb[0].mxu0
      %v1048 = vpop.f32.mrb[0].mxu0
      %v1049 = vadd.f32 0.0, %v1048
      %v1050 = vpop.f32.mrb[0].mxu0
      %1051 = vmatprep.mubr.bf16.mxu0 0
      %1052 = vmatmul.mubr.bf16.gmra.mrb[0].mxu0 %v675
      %v1053 = vpop.f32.mrb[0].mxu0
      %v1054 = vadd.f32 0.0, %v1053
      %v1055 = vpop.f32.mrb[0].mxu0
      %v1056 = vpop.f32.mrb[0].mxu0
      %v1057 = vadd.f32 0.0, %v1056
      %v1058 = vpop.f32.mrb[0].mxu0
      %1059 = vmatprep.mubr.bf16.mxu0 0
      %1060 = vmatmul.mubr.bf16.gmra.mrb[0].mxu0 %v676
      %v1061 = vpop.f32.mrb[0].mxu0
      %v1062 = vadd.f32 0.0, %v1061
      %v1063 = vpop.f32.mrb[0].mxu0
      %v1064 = vpop.f32.mrb[0].mxu0
      %v1065 = vadd.f32 0.0, %v1064
      %v1066 = vpop.f32.mrb[0].mxu0
      %1067 = vmatprep.mubr.bf16.mxu0 0
      %1068 = vmatmul.mubr.bf16.gmra.mrb[0].mxu0 %v677
      %v1069 = vpop.f32.mrb[0].mxu0
      %v1070 = vadd.f32 0.0, %v1069
      %v1071 = vpop.f32.mrb[0].mxu0
      %v1072 = vpop.f32.mrb[0].mxu0
      %v1073 = vadd.f32 0.0, %v1072
      %v1074 = vpop.f32.mrb[0].mxu0
      %1075 = vmatprep.mubr.bf16.mxu0 0
      %1076 = vmatmul.mubr.bf16.gmra.mrb[0].mxu0 %v678
      %v1077 = vpop.f32.mrb[0].mxu0
      %v1078 = vadd.f32 0.0, %v1077
      %v1079 = vpop.f32.mrb[0].mxu0
      %v1080 = vpop.f32.mrb[0].mxu0
      %v1081 = vadd.f32 0.0, %v1080
      %v1082 = vpop.f32.mrb[0].mxu0
      %1083 = vmatprep.mubr.bf16.mxu0 0
      %1084 = vmatmul.mubr.bf16.gmra.mrb[0].mxu0 %v679
      %v1085 = vpop.f32.mrb[0].mxu0
      %v1086 = vadd.f32 0.0, %v1085
      %v1087 = vpop.f32.mrb[0].mxu0
      %v1088 = vpop.f32.mrb[0].mxu0
      %v1089 = vadd.f32 0.0, %v1088
      %v1090 = vpop.f32.mrb[0].mxu0
      %1091 = vmatprep.mubr.bf16.mxu0 0
      %1092 = vmatmul.mubr.bf16.gmra.mrb[0].mxu0 %v680
      %v1093 = vpop.f32.mrb[0].mxu0
      %v1094 = vadd.f32 0.0, %v1093
      %v1095 = vpop.f32.mrb[0].mxu0
      %v1096 = vpop.f32.mrb[0].mxu0
      %v1097 = vadd.f32 0.0, %v1096
      %v1098 = vpop.f32.mrb[0].mxu0
      %1099 = vmatprep.mubr.bf16.mxu0 0
      %1100 = vmatmul.mubr.bf16.gmra.mrb[0].mxu0 %v681
      %v1101 = vpop.f32.mrb[0].mxu0
      %v1102 = vadd.f32 0.0, %v1101
      %v1103 = vpop.f32.mrb[0].mxu0
      %v1104 = vpop.f32.mrb[0].mxu0
      %v1105 = vadd.f32 0.0, %v1104
      %v1106 = vpop.f32.mrb[0].mxu0
      %1107 = vmatprep.mubr.bf16.mxu0 0
      %1108 = vmatmul.mubr.bf16.gmra.mrb[0].mxu0 %v682
      %v1109 = vpop.f32.mrb[0].mxu0
      %v1110 = vadd.f32 0.0, %v1109
      %v1111 = vpop.f32.mrb[0].mxu0
      %v1112 = vpop.f32.mrb[0].mxu0
      %v1113 = vadd.f32 0.0, %v1112
      %v1114 = vpop.f32.mrb[0].mxu0
      %1115 = vmatprep.mubr.bf16.mxu0 0
      %1116 = vmatmul.mubr.bf16.gmra.mrb[0].mxu0 %v683
      %v1117 = vpop.f32.mrb[0].mxu0
      %v1118 = vadd.f32 0.0, %v1117
      %v1119 = vpop.f32.mrb[0].mxu0
      %v1120 = vpop.f32.mrb[0].mxu0
      %v1121 = vadd.f32 0.0, %v1120
      %v1122 = vpop.f32.mrb[0].mxu0
      %1123 = vmatprep.mubr.bf16.mxu0 0
      %1124 = vmatmul.mubr.bf16.gmra.mrb[0].mxu0 %v684
      %v1125 = vpop.f32.mrb[0].mxu0
      %v1126 = vadd.f32 0.0, %v1125
      %v1127 = vpop.f32.mrb[0].mxu0
      %v1128 = vpop.f32.mrb[0].mxu0
      %v1129 = vadd.f32 0.0, %v1128
      %v1130 = vpop.f32.mrb[0].mxu0
      %1131 = vmatprep.mubr.bf16.mxu0 0
      %1132 = vmatmul.mubr.bf16.gmra.mrb[0].mxu0 %v685
      %v1133 = vpop.f32.mrb[0].mxu0
      %v1134 = vadd.f32 0.0, %v1133
      %v1135 = vpop.f32.mrb[0].mxu0
      %v1136 = vpop.f32.mrb[0].mxu0
      %v1137 = vadd.f32 0.0, %v1136
      %v1138 = vpop.f32.mrb[0].mxu0
      %1139 = vmatprep.mubr.bf16.mxu0 0
      %1140 = vmatmul.mubr.bf16.gmra.mrb[0].mxu0 %v686
      %v1141 = vpop.f32.mrb[0].mxu0
      %v1142 = vadd.f32 0.0, %v1141
      %v1143 = vpop.f32.mrb[0].mxu0
      %v1144 = vpop.f32.mrb[0].mxu0
      %v1145 = vadd.f32 0.0, %v1144
      %v1146 = vpop.f32.mrb[0].mxu0
      %1147 = vmatprep.mubr.bf16.mxu0 0
      %1148 = vmatmul.mubr.bf16.gmra.mrb[0].mxu0 %v687
      %v1149 = vpop.f32.mrb[0].mxu0
      %v1150 = vadd.f32 0.0, %v1149
      %v1151 = vpop.f32.mrb[0].mxu0
      %v1152 = vpop.f32.mrb[0].mxu0
      %v1153 = vadd.f32 0.0, %v1152
      %v1154 = vpop.f32.mrb[0].mxu0
      %1155 = vmatprep.mubr.bf16.mxu0 0
      %1156 = vmatmul.mubr.bf16.gmra.mrb[0].mxu0 %v688
      %v1157 = vpop.f32.mrb[0].mxu0
      %v1158 = vadd.f32 0.0, %v1157
      %v1159 = vpop.f32.mrb[0].mxu0
      %v1160 = vpop.f32.mrb[0].mxu0
      %v1161 = vadd.f32 0.0, %v1160
      %v1162 = vpop.f32.mrb[0].mxu0
      %1163 = vmatprep.mubr.bf16.mxu0 0
      %1164 = vmatmul.mubr.bf16.gmra.mrb[0].mxu0 %v689
      %v1165 = vpop.f32.mrb[0].mxu0
      %v1166 = vadd.f32 0.0, %v1165
      %v1167 = vpop.f32.mrb[0].mxu0
      %v1168 = vpop.f32.mrb[0].mxu0
      %v1169 = vadd.f32 0.0, %v1168
      %v1170 = vpop.f32.mrb[0].mxu0
      %1171 = vmatprep.mubr.bf16.mxu0 0
      %1172 = vmatmul.mubr.bf16.gmra.mrb[0].mxu0 %v690
      %v1173 = vpop.f32.mrb[0].mxu0
      %v1174 = vadd.f32 0.0, %v1173
      %v1175 = vpop.f32.mrb[0].mxu0
      %v1176 = vpop.f32.mrb[0].mxu0
      %v1177 = vadd.f32 0.0, %v1176
      %v1178 = vpop.f32.mrb[0].mxu0
      %1179 = vmatprep.mubr.bf16.mxu0 0
      %1180 = vmatmul.mubr.bf16.gmra.mrb[0].mxu0 %v691
      %v1181 = vpop.f32.mrb[0].mxu0
      %v1182 = vadd.f32 0.0, %v1181
      %v1183 = vpop.f32.mrb[0].mxu0
      %v1184 = vpop.f32.mrb[0].mxu0
      %v1185 = vadd.f32 0.0, %v1184
      %v1186 = vpop.f32.mrb[0].mxu0
      %1187 = vmatprep.mubr.bf16.mxu0 0
      %1188 = vmatmul.mubr.bf16.gmra.mrb[0].mxu0 %v692
      %v1189 = vpop.f32.mrb[0].mxu0
      %v1190 = vadd.f32 0.0, %v1189
      %v1191 = vpop.f32.mrb[0].mxu0
      %v1192 = vpop.f32.mrb[0].mxu0
      %v1193 = vadd.f32 0.0, %v1192
      %v1194 = vpop.f32.mrb[0].mxu0
      %1195 = vmatprep.mubr.bf16.mxu0 0
      %1196 = vmatmul.mubr.bf16.gmra.mrb[0].mxu0 %v693
      %v1197 = vpop.f32.mrb[0].mxu0
      %v1198 = vadd.f32 0.0, %v1197
      %v1199 = vpop.f32.mrb[0].mxu0
      %v1200 = vpop.f32.mrb[0].mxu0
      %v1201 = vadd.f32 0.0, %v1200
      %v1202 = vpop.f32.mrb[0].mxu0
      %1203 = vmatprep.mubr.bf16.mxu0 0
      %1204 = vmatmul.mubr.bf16.gmra.mrb[0].mxu0 %v694
      %v1205 = vpop.f32.mrb[0].mxu0
      %v1206 = vadd.f32 0.0, %v1205
      %v1207 = vpop.f32.mrb[0].mxu0
      %v1208 = vpop.f32.mrb[0].mxu0
      %v1209 = vadd.f32 0.0, %v1208
      %v1210 = vpop.f32.mrb[0].mxu0
      %1211 = vmatprep.mubr.bf16.mxu0 0
      %1212 = vmatmul.mubr.bf16.gmra.mrb[0].mxu0 %v695
      %v1213 = vpop.f32.mrb[0].mxu0
      %v1214 = vadd.f32 0.0, %v1213
      %v1215 = vpop.f32.mrb[0].mxu0
      %v1216 = vpop.f32.mrb[0].mxu0
      %v1217 = vadd.f32 0.0, %v1216
      %v1218 = vpop.f32.mrb[0].mxu0
      %1219 = vmatprep.mubr.bf16.mxu0 0
      %1220 = vmatmul.mubr.bf16.gmra.mrb[0].mxu0 %v696
      %v1221 = vpop.f32.mrb[0].mxu0
      %v1222 = vadd.f32 0.0, %v1221
      %v1223 = vpop.f32.mrb[0].mxu0
      %v1224 = vpop.f32.mrb[0].mxu0
      %v1225 = vadd.f32 0.0, %v1224
      %v1226 = vpop.f32.mrb[0].mxu0
      %1227 = vmatprep.mubr.bf16.mxu0 0
      %1228 = vmatmul.mubr.bf16.gmra.mrb[0].mxu0 %v697
      %v1229 = vpop.f32.mrb[0].mxu0
      %v1230 = vadd.f32 0.0, %v1229
      %v1231 = vpop.f32.mrb[0].mxu0
      %v1232 = vpop.f32.mrb[0].mxu0
      %v1233 = vadd.f32 0.0, %v1232
      %v1234 = vpop.f32.mrb[0].mxu0
      %1235 = vmatprep.mubr.bf16.mxu0 0
      %1236 = vmatmul.mubr.bf16.gmra.mrb[0].mxu0 %v698
      %v1237 = vpop.f32.mrb[0].mxu0
      %v1238 = vadd.f32 0.0, %v1237
      %v1239 = vpop.f32.mrb[0].mxu0
      %v1240 = vpop.f32.mrb[0].mxu0
      %v1241 = vadd.f32 0.0, %v1240
      %v1242 = vpop.f32.mrb[0].mxu0
      %1243 = vmatprep.mubr.bf16.mxu0 0
      %1244 = vmatmul.mubr.bf16.gmra.mrb[0].mxu0 %v699
      %v1245 = vpop.f32.mrb[0].mxu0
      %v1246 = vadd.f32 0.0, %v1245
      %v1247 = vpop.f32.mrb[0].mxu0
      %v1248 = vpop.f32.mrb[0].mxu0
      %v1249 = vadd.f32 0.0, %v1248
      %v1250 = vpop.f32.mrb[0].mxu0
      %1251 = vmatprep.mubr.bf16.mxu0 0
      %1252 = vmatmul.mubr.bf16.gmra.mrb[0].mxu0 %v700
      %v1253 = vpop.f32.mrb[0].mxu0
      %v1254 = vadd.f32 0.0, %v1253
      %v1255 = vpop.f32.mrb[0].mxu0
      %v1256 = vpop.f32.mrb[0].mxu0
      %v1257 = vadd.f32 0.0, %v1256
      %v1258 = vpop.f32.mrb[0].mxu0
      %1259 = vmatprep.mubr.bf16.mxu0 0
      %1260 = vmatmul.mubr.bf16.gmra.mrb[0].mxu0 %v701
      %v1261 = vpop.f32.mrb[0].mxu0
      %v1262 = vadd.f32 0.0, %v1261
      %v1263 = vpop.f32.mrb[0].mxu0
      %v1264 = vpop.f32.mrb[0].mxu0
      %v1265 = vadd.f32 0.0, %v1264
      %v1266 = vpop.f32.mrb[0].mxu0
      %1267 = vmatprep.mubr.bf16.mxu0 0
      %1268 = vmatmul.mubr.bf16.gmra.mrb[0].mxu0 %v702
      %v1269 = vpop.f32.mrb[0].mxu0
      %v1270 = vadd.f32 0.0, %v1269
      %v1271 = vpop.f32.mrb[0].mxu0
      %v1272 = vpop.f32.mrb[0].mxu0
      %v1273 = vadd.f32 0.0, %v1272
      %v1274 = vpop.f32.mrb[0].mxu0
      %1275 = vmatprep.mubr.bf16.mxu0 0
      %1276 = vmatmul.mubr.bf16.gmra.mrb[0].mxu0 %v703
      %v1277 = vpop.f32.mrb[0].mxu0
      %v1278 = vadd.f32 0.0, %v1277
      %v1279 = vpop.f32.mrb[0].mxu0
      %v1280 = vpop.f32.mrb[0].mxu0
      %v1281 = vadd.f32 0.0, %v1280
      %v1282 = vpop.f32.mrb[0].mxu0
      %1283 = vmatprep.mubr.bf16.mxu0 0
      %1284 = vmatmul.mubr.bf16.gmra.mrb[0].mxu0 %v704
      %v1285 = vpop.f32.mrb[0].mxu0
      %v1286 = vadd.f32 0.0, %v1285
      %v1287 = vpop.f32.mrb[0].mxu0
      %v1288 = vpop.f32.mrb[0].mxu0
      %v1289 = vadd.f32 0.0, %v1288
      %v1290 = vpop.f32.mrb[0].mxu0
      %1291 = vmatprep.mubr.bf16.mxu0 0
      %1292 = vmatmul.mubr.bf16.gmra.mrb[0].mxu0 %v705
      %v1293 = vpop.f32.mrb[0].mxu0
      %v1294 = vadd.f32 0.0, %v1293
      %v1295 = vpop.f32.mrb[0].mxu0
      %v1296 = vpop.f32.mrb[0].mxu0
      %v1297 = vadd.f32 0.0, %v1296
      %v1298 = vpop.f32.mrb[0].mxu0
      %1299 = vmatprep.mubr.bf16.mxu0 0
      %1300 = vmatmul.mubr.bf16.gmra.mrb[0].mxu0 %v706
      %v1301 = vpop.f32.mrb[0].mxu0
      %v1302 = vadd.f32 0.0, %v1301
      %v1303 = vpop.f32.mrb[0].mxu0
      %v1304 = vpop.f32.mrb[0].mxu0
      %v1305 = vadd.f32 0.0, %v1304
      %v1306 = vpop.f32.mrb[0].mxu0
      %1307 = vmatprep.mubr.bf16.mxu0 0
      %1308 = vmatmul.mubr.bf16.gmra.mrb[0].mxu0 %v707
      %v1309 = vpop.f32.mrb[0].mxu0
      %v1310 = vadd.f32 0.0, %v1309
      %v1311 = vpop.f32.mrb[0].mxu0
      %v1312 = vpop.f32.mrb[0].mxu0
      %v1313 = vadd.f32 0.0, %v1312
      %v1314 = vpop.f32.mrb[0].mxu0
      %1315 = vmatprep.mubr.bf16.mxu0 0
      %1316 = vmatmul.mubr.bf16.gmra.mrb[0].mxu0 %v708
      %v1317 = vpop.f32.mrb[0].mxu0
      %v1318 = vadd.f32 0.0, %v1317
      %v1319 = vpop.f32.mrb[0].mxu0
      %v1320 = vpop.f32.mrb[0].mxu0
      %v1321 = vadd.f32 0.0, %v1320
      %v1322 = vpop.f32.mrb[0].mxu0
      %1323 = vmatprep.mubr.bf16.mxu0 0
      %1324 = vmatmul.mubr.bf16.gmra.mrb[0].mxu0 %v709
      %v1325 = vpop.f32.mrb[0].mxu0
      %v1326 = vadd.f32 0.0, %v1325
      %v1327 = vpop.f32.mrb[0].mxu0
      %v1328 = vpop.f32.mrb[0].mxu0
      %v1329 = vadd.f32 0.0, %v1328
      %v1330 = vpop.f32.mrb[0].mxu0
      %1331 = vmatprep.mubr.bf16.mxu0 0
      %1332 = vmatmul.mubr.bf16.gmra.mrb[0].mxu0 %v710
      %v1333 = vpop.f32.mrb[0].mxu0
      %v1334 = vadd.f32 0.0, %v1333
      %v1335 = vpop.f32.mrb[0].mxu0
      %v1336 = vpop.f32.mrb[0].mxu0
      %v1337 = vadd.f32 0.0, %v1336
      %v1338 = vpop.f32.mrb[0].mxu0
      %1339 = vmatprep.mubr.bf16.mxu0 0
      %1340 = vmatmul.mubr.bf16.gmra.mrb[0].mxu0 %v711
      %v1341 = vpop.f32.mrb[0].mxu0
      %v1342 = vadd.f32 0.0, %v1341
      %v1343 = vpop.f32.mrb[0].mxu0
      %v1344 = vpop.f32.mrb[0].mxu0
      %v1345 = vadd.f32 0.0, %v1344
      %v1346 = vpop.f32.mrb[0].mxu0
      %1347 = vmatprep.mubr.bf16.mxu0 0
      %1348 = vmatmul.mubr.bf16.gmra.mrb[0].mxu0 %v712
      %v1349 = vpop.f32.mrb[0].mxu0
      %v1350 = vadd.f32 0.0, %v1349
      %v1351 = vpop.f32.mrb[0].mxu0
      %v1352 = vpop.f32.mrb[0].mxu0
      %v1353 = vadd.f32 0.0, %v1352
      %v1354 = vpop.f32.mrb[0].mxu0
      %1355 = vmatprep.mubr.bf16.mxu0 0
      %1356 = vmatmul.mubr.bf16.gmra.mrb[0].mxu0 %v713
      %v1357 = vpop.f32.mrb[0].mxu0
      %v1358 = vadd.f32 0.0, %v1357
      %v1359 = vpop.f32.mrb[0].mxu0
      %v1360 = vpop.f32.mrb[0].mxu0
      %v1361 = vadd.f32 0.0, %v1360
      %v1362 = vpop.f32.mrb[0].mxu0
      %1363 = vmatprep.mubr.bf16.mxu0 0
      %1364 = vmatmul.mubr.bf16.gmra.mrb[0].mxu0 %v714
      %v1365 = vpop.f32.mrb[0].mxu0
      %v1366 = vadd.f32 0.0, %v1365
      %v1367 = vpop.f32.mrb[0].mxu0
      %v1368 = vpop.f32.mrb[0].mxu0
      %v1369 = vadd.f32 0.0, %v1368
      %v1370 = vpop.f32.mrb[0].mxu0
      %1371 = vdwg.mxu0
      %v1372 = vld [vmem:[%s2] sm:$0x1]
      %v1374 = vlaneseq
      %v1375 = vshrl.u32 %v1374, 7
      %v1376 = vsub.s32 0, %v1375
      %v1377 = vrot.slane %v1372, %v1376
      %v1379 = vmul.f32 %v862, %v1377
      %v1380 = vmul.f32 %v865, %v1377
      %v1381 = vmul.f32 %v870, %v1377
      %v1382 = vmul.f32 %v873, %v1377
      %v1383 = vmul.f32 %v878, %v1377
      %v1384 = vmul.f32 %v881, %v1377
      %v1385 = vmul.f32 %v886, %v1377
      %v1386 = vmul.f32 %v889, %v1377
      %v1387 = vmul.f32 %v894, %v1377
      %v1388 = vmul.f32 %v897, %v1377
      %v1389 = vmul.f32 %v902, %v1377
      %v1390 = vmul.f32 %v905, %v1377
      %v1391 = vmul.f32 %v910, %v1377
      %v1392 = vmul.f32 %v913, %v1377
      %v1393 = vmul.f32 %v918, %v1377
      %v1394 = vmul.f32 %v921, %v1377
      %v1395 = vmul.f32 %v926, %v1377
      %v1396 = vmul.f32 %v929, %v1377
      %v1397 = vmul.f32 %v934, %v1377
      %v1398 = vmul.f32 %v937, %v1377
      %v1399 = vmul.f32 %v942, %v1377
      %v1400 = vmul.f32 %v945, %v1377
      %v1401 = vmul.f32 %v950, %v1377
      %v1402 = vmul.f32 %v953, %v1377
      %v1403 = vmul.f32 %v958, %v1377
      %v1404 = vmul.f32 %v961, %v1377
      %v1405 = vmul.f32 %v966, %v1377
      %v1406 = vmul.f32 %v969, %v1377
      %v1407 = vmul.f32 %v974, %v1377
      %v1408 = vmul.f32 %v977, %v1377
      %v1409 = vmul.f32 %v982, %v1377
      %v1410 = vmul.f32 %v985, %v1377
      %v1411 = vmul.f32 %v990, %v1377
      %v1412 = vmul.f32 %v993, %v1377
      %v1413 = vmul.f32 %v998, %v1377
      %v1414 = vmul.f32 %v1001, %v1377
      %v1415 = vmul.f32 %v1006, %v1377
      %v1416 = vmul.f32 %v1009, %v1377
      %v1417 = vmul.f32 %v1014, %v1377
      %v1418 = vmul.f32 %v1017, %v1377
      %v1419 = vmul.f32 %v1022, %v1377
      %v1420 = vmul.f32 %v1025, %v1377
      %v1421 = vmul.f32 %v1030, %v1377
      %v1422 = vmul.f32 %v1033, %v1377
      %v1423 = vmul.f32 %v1038, %v1377
      %v1424 = vmul.f32 %v1041, %v1377
      %v1425 = vmul.f32 %v1046, %v1377
      %v1426 = vmul.f32 %v1049, %v1377
      %v1427 = vmul.f32 %v1054, %v1377
      %v1428 = vmul.f32 %v1057, %v1377
      %v1429 = vmul.f32 %v1062, %v1377
      %v1430 = vmul.f32 %v1065, %v1377
      %v1431 = vmul.f32 %v1070, %v1377
      %v1432 = vmul.f32 %v1073, %v1377
      %v1433 = vmul.f32 %v1078, %v1377
      %v1434 = vmul.f32 %v1081, %v1377
      %v1435 = vmul.f32 %v1086, %v1377
      %v1436 = vmul.f32 %v1089, %v1377
      %v1437 = vmul.f32 %v1094, %v1377
      %v1438 = vmul.f32 %v1097, %v1377
      %v1439 = vmul.f32 %v1102, %v1377
      %v1440 = vmul.f32 %v1105, %v1377
      %v1441 = vmul.f32 %v1110, %v1377
      %v1442 = vmul.f32 %v1113, %v1377
      %v1443 = vmul.f32 %v1118, %v1377
      %v1444 = vmul.f32 %v1121, %v1377
      %v1445 = vmul.f32 %v1126, %v1377
      %v1446 = vmul.f32 %v1129, %v1377
      %v1447 = vmul.f32 %v1134, %v1377
      %v1448 = vmul.f32 %v1137, %v1377
      %v1449 = vmul.f32 %v1142, %v1377
      %v1450 = vmul.f32 %v1145, %v1377
      %v1451 = vmul.f32 %v1150, %v1377
      %v1452 = vmul.f32 %v1153, %v1377
      %v1453 = vmul.f32 %v1158, %v1377
      %v1454 = vmul.f32 %v1161, %v1377
      %v1455 = vmul.f32 %v1166, %v1377
      %v1456 = vmul.f32 %v1169, %v1377
      %v1457 = vmul.f32 %v1174, %v1377
      %v1458 = vmul.f32 %v1177, %v1377
      %v1459 = vmul.f32 %v1182, %v1377
      %v1460 = vmul.f32 %v1185, %v1377
      %v1461 = vmul.f32 %v1190, %v1377
      %v1462 = vmul.f32 %v1193, %v1377
      %v1463 = vmul.f32 %v1198, %v1377
      %v1464 = vmul.f32 %v1201, %v1377
      %v1465 = vmul.f32 %v1206, %v1377
      %v1466 = vmul.f32 %v1209, %v1377
      %v1467 = vmul.f32 %v1214, %v1377
      %v1468 = vmul.f32 %v1217, %v1377
      %v1469 = vmul.f32 %v1222, %v1377
      %v1470 = vmul.f32 %v1225, %v1377
      %v1471 = vmul.f32 %v1230, %v1377
      %v1472 = vmul.f32 %v1233, %v1377
      %v1473 = vmul.f32 %v1238, %v1377
      %v1474 = vmul.f32 %v1241, %v1377
      %v1475 = vmul.f32 %v1246, %v1377
      %v1476 = vmul.f32 %v1249, %v1377
      %v1477 = vmul.f32 %v1254, %v1377
      %v1478 = vmul.f32 %v1257, %v1377
      %v1479 = vmul.f32 %v1262, %v1377
      %v1480 = vmul.f32 %v1265, %v1377
      %v1481 = vmul.f32 %v1270, %v1377
      %v1482 = vmul.f32 %v1273, %v1377
      %v1483 = vmul.f32 %v1278, %v1377
      %v1484 = vmul.f32 %v1281, %v1377
      %v1485 = vmul.f32 %v1286, %v1377
      %v1486 = vmul.f32 %v1289, %v1377
      %v1487 = vmul.f32 %v1294, %v1377
      %v1488 = vmul.f32 %v1297, %v1377
      %v1489 = vmul.f32 %v1302, %v1377
      %v1490 = vmul.f32 %v1305, %v1377
      %v1491 = vmul.f32 %v1310, %v1377
      %v1492 = vmul.f32 %v1313, %v1377
      %v1493 = vmul.f32 %v1318, %v1377
      %v1494 = vmul.f32 %v1321, %v1377
      %v1495 = vmul.f32 %v1326, %v1377
      %v1496 = vmul.f32 %v1329, %v1377
      %v1497 = vmul.f32 %v1334, %v1377
      %v1498 = vmul.f32 %v1337, %v1377
      %v1499 = vmul.f32 %v1342, %v1377
      %v1500 = vmul.f32 %v1345, %v1377
      %v1501 = vmul.f32 %v1350, %v1377
      %v1502 = vmul.f32 %v1353, %v1377
      %v1503 = vmul.f32 %v1358, %v1377
      %v1504 = vmul.f32 %v1361, %v1377
      %v1505 = vmul.f32 %v1366, %v1377
      %v1506 = vmul.f32 %v1369, %v1377
      %v1507 = vld [vmem:[%s3] sm:$0x1]
      %v1509 = vlaneseq
      %v1510 = vshrl.u32 %v1509, 7
      %v1511 = vsub.s32 0, %v1510
      %v1512 = vrot.slane %v1507, %v1511
      %v1514 = vadd.f32 %v1379, %v1512
      %v1515 = vadd.f32 %v1380, %v1512
      %v1516 = vadd.f32 %v1381, %v1512
      %v1517 = vadd.f32 %v1382, %v1512
      %v1518 = vadd.f32 %v1383, %v1512
      %v1519 = vadd.f32 %v1384, %v1512
      %v1520 = vadd.f32 %v1385, %v1512
      %v1521 = vadd.f32 %v1386, %v1512
      %v1522 = vadd.f32 %v1387, %v1512
      %v1523 = vadd.f32 %v1388, %v1512
      %v1524 = vadd.f32 %v1389, %v1512
      %v1525 = vadd.f32 %v1390, %v1512
      %v1526 = vadd.f32 %v1391, %v1512
      %v1527 = vadd.f32 %v1392, %v1512
      %v1528 = vadd.f32 %v1393, %v1512
      %v1529 = vadd.f32 %v1394, %v1512
      %v1530 = vadd.f32 %v1395, %v1512
      %v1531 = vadd.f32 %v1396, %v1512
      %v1532 = vadd.f32 %v1397, %v1512
      %v1533 = vadd.f32 %v1398, %v1512
      %v1534 = vadd.f32 %v1399, %v1512
      %v1535 = vadd.f32 %v1400, %v1512
      %v1536 = vadd.f32 %v1401, %v1512
      %v1537 = vadd.f32 %v1402, %v1512
      %v1538 = vadd.f32 %v1403, %v1512
      %v1539 = vadd.f32 %v1404, %v1512
      %v1540 = vadd.f32 %v1405, %v1512
      %v1541 = vadd.f32 %v1406, %v1512
      %v1542 = vadd.f32 %v1407, %v1512
      %v1543 = vadd.f32 %v1408, %v1512
      %v1544 = vadd.f32 %v1409, %v1512
      %v1545 = vadd.f32 %v1410, %v1512
      %v1546 = vadd.f32 %v1411, %v1512
      %v1547 = vadd.f32 %v1412, %v1512
      %v1548 = vadd.f32 %v1413, %v1512
      %v1549 = vadd.f32 %v1414, %v1512
      %v1550 = vadd.f32 %v1415, %v1512
      %v1551 = vadd.f32 %v1416, %v1512
      %v1552 = vadd.f32 %v1417, %v1512
      %v1553 = vadd.f32 %v1418, %v1512
      %v1554 = vadd.f32 %v1419, %v1512
      %v1555 = vadd.f32 %v1420, %v1512
      %v1556 = vadd.f32 %v1421, %v1512
      %v1557 = vadd.f32 %v1422, %v1512
      %v1558 = vadd.f32 %v1423, %v1512
      %v1559 = vadd.f32 %v1424, %v1512
      %v1560 = vadd.f32 %v1425, %v1512
      %v1561 = vadd.f32 %v1426, %v1512
      %v1562 = vadd.f32 %v1427, %v1512
      %v1563 = vadd.f32 %v1428, %v1512
      %v1564 = vadd.f32 %v1429, %v1512
      %v1565 = vadd.f32 %v1430, %v1512
      %v1566 = vadd.f32 %v1431, %v1512
      %v1567 = vadd.f32 %v1432, %v1512
      %v1568 = vadd.f32 %v1433, %v1512
      %v1569 = vadd.f32 %v1434, %v1512
      %v1570 = vadd.f32 %v1435, %v1512
      %v1571 = vadd.f32 %v1436, %v1512
      %v1572 = vadd.f32 %v1437, %v1512
      %v1573 = vadd.f32 %v1438, %v1512
      %v1574 = vadd.f32 %v1439, %v1512
      %v1575 = vadd.f32 %v1440, %v1512
      %v1576 = vadd.f32 %v1441, %v1512
      %v1577 = vadd.f32 %v1442, %v1512
      %v1578 = vadd.f32 %v1443, %v1512
      %v1579 = vadd.f32 %v1444, %v1512
      %v1580 = vadd.f32 %v1445, %v1512
      %v1581 = vadd.f32 %v1446, %v1512
      %v1582 = vadd.f32 %v1447, %v1512
      %v1583 = vadd.f32 %v1448, %v1512
      %v1584 = vadd.f32 %v1449, %v1512
      %v1585 = vadd.f32 %v1450, %v1512
      %v1586 = vadd.f32 %v1451, %v1512
      %v1587 = vadd.f32 %v1452, %v1512
      %v1588 = vadd.f32 %v1453, %v1512
      %v1589 = vadd.f32 %v1454, %v1512
      %v1590 = vadd.f32 %v1455, %v1512
      %v1591 = vadd.f32 %v1456, %v1512
      %v1592 = vadd.f32 %v1457, %v1512
      %v1593 = vadd.f32 %v1458, %v1512
      %v1594 = vadd.f32 %v1459, %v1512
      %v1595 = vadd.f32 %v1460, %v1512
      %v1596 = vadd.f32 %v1461, %v1512
      %v1597 = vadd.f32 %v1462, %v1512
      %v1598 = vadd.f32 %v1463, %v1512
      %v1599 = vadd.f32 %v1464, %v1512
      %v1600 = vadd.f32 %v1465, %v1512
      %v1601 = vadd.f32 %v1466, %v1512
      %v1602 = vadd.f32 %v1467, %v1512
      %v1603 = vadd.f32 %v1468, %v1512
      %v1604 = vadd.f32 %v1469, %v1512
      %v1605 = vadd.f32 %v1470, %v1512
      %v1606 = vadd.f32 %v1471, %v1512
      %v1607 = vadd.f32 %v1472, %v1512
      %v1608 = vadd.f32 %v1473, %v1512
      %v1609 = vadd.f32 %v1474, %v1512
      %v1610 = vadd.f32 %v1475, %v1512
      %v1611 = vadd.f32 %v1476, %v1512
      %v1612 = vadd.f32 %v1477, %v1512
      %v1613 = vadd.f32 %v1478, %v1512
      %v1614 = vadd.f32 %v1479, %v1512
      %v1615 = vadd.f32 %v1480, %v1512
      %v1616 = vadd.f32 %v1481, %v1512
      %v1617 = vadd.f32 %v1482, %v1512
      %v1618 = vadd.f32 %v1483, %v1512
      %v1619 = vadd.f32 %v1484, %v1512
      %v1620 = vadd.f32 %v1485, %v1512
      %v1621 = vadd.f32 %v1486, %v1512
      %v1622 = vadd.f32 %v1487, %v1512
      %v1623 = vadd.f32 %v1488, %v1512
      %v1624 = vadd.f32 %v1489, %v1512
      %v1625 = vadd.f32 %v1490, %v1512
      %v1626 = vadd.f32 %v1491, %v1512
      %v1627 = vadd.f32 %v1492, %v1512
      %v1628 = vadd.f32 %v1493, %v1512
      %v1629 = vadd.f32 %v1494, %v1512
      %v1630 = vadd.f32 %v1495, %v1512
      %v1631 = vadd.f32 %v1496, %v1512
      %v1632 = vadd.f32 %v1497, %v1512
      %v1633 = vadd.f32 %v1498, %v1512
      %v1634 = vadd.f32 %v1499, %v1512
      %v1635 = vadd.f32 %v1500, %v1512
      %v1636 = vadd.f32 %v1501, %v1512
      %v1637 = vadd.f32 %v1502, %v1512
      %v1638 = vadd.f32 %v1503, %v1512
      %v1639 = vadd.f32 %v1504, %v1512
      %v1640 = vadd.f32 %v1505, %v1512
      %v1641 = vadd.f32 %v1506, %v1512
      %v1642 = vld [vmem:[%s242] sm:$0xf]
      %v1643 = vld [vmem:[%s242 + $0x4] sm:$0xf]
      %v1644 = vld [vmem:[%s242 + $0x8] sm:$0xf]
      %v1645 = vld [vmem:[%s242 + $0xc] sm:$0xf]
      %v1646 = vld [vmem:[%s242 + $0x10] sm:$0xf]
      %v1647 = vld [vmem:[%s242 + $0x14] sm:$0xf]
      %v1648 = vld [vmem:[%s242 + $0x18] sm:$0xf]
      %v1649 = vld [vmem:[%s242 + $0x1c] sm:$0xf]
      %v1650 = vld [vmem:[%s242 + $0x20] sm:$0xf]
      %v1651 = vld [vmem:[%s242 + $0x24] sm:$0xf]
      %v1652 = vld [vmem:[%s242 + $0x28] sm:$0xf]
      %v1653 = vld [vmem:[%s242 + $0x2c] sm:$0xf]
      %v1654 = vld [vmem:[%s242 + $0x30] sm:$0xf]
      %v1655 = vld [vmem:[%s242 + $0x34] sm:$0xf]
      %v1656 = vld [vmem:[%s242 + $0x38] sm:$0xf]
      %v1657 = vld [vmem:[%s242 + $0x3c] sm:$0xf]
      %v1658 = vld [vmem:[%s242 + $0x40] sm:$0xf]
      %v1659 = vld [vmem:[%s242 + $0x44] sm:$0xf]
      %v1660 = vld [vmem:[%s242 + $0x48] sm:$0xf]
      %v1661 = vld [vmem:[%s242 + $0x4c] sm:$0xf]
      %v1662 = vld [vmem:[%s242 + $0x50] sm:$0xf]
      %v1663 = vld [vmem:[%s242 + $0x54] sm:$0xf]
      %v1664 = vld [vmem:[%s242 + $0x58] sm:$0xf]
      %v1665 = vld [vmem:[%s242 + $0x5c] sm:$0xf]
      %v1666 = vld [vmem:[%s242 + $0x60] sm:$0xf]
      %v1667 = vld [vmem:[%s242 + $0x64] sm:$0xf]
      %v1668 = vld [vmem:[%s242 + $0x68] sm:$0xf]
      %v1669 = vld [vmem:[%s242 + $0x6c] sm:$0xf]
      %v1670 = vld [vmem:[%s242 + $0x70] sm:$0xf]
      %v1671 = vld [vmem:[%s242 + $0x74] sm:$0xf]
      %v1672 = vld [vmem:[%s242 + $0x78] sm:$0xf]
      %v1673 = vld [vmem:[%s242 + $0x7c] sm:$0xf]
      %v1674 = vld [vmem:[%s242 + $0x80] sm:$0xf]
      %v1675 = vld [vmem:[%s242 + $0x84] sm:$0xf]
      %v1676 = vld [vmem:[%s242 + $0x88] sm:$0xf]
      %v1677 = vld [vmem:[%s242 + $0x8c] sm:$0xf]
      %v1678 = vld [vmem:[%s242 + $0x90] sm:$0xf]
      %v1679 = vld [vmem:[%s242 + $0x94] sm:$0xf]
      %v1680 = vld [vmem:[%s242 + $0x98] sm:$0xf]
      %v1681 = vld [vmem:[%s242 + $0x9c] sm:$0xf]
      %v1682 = vld [vmem:[%s242 + $0xa0] sm:$0xf]
      %v1683 = vld [vmem:[%s242 + $0xa4] sm:$0xf]
      %v1684 = vld [vmem:[%s242 + $0xa8] sm:$0xf]
      %v1685 = vld [vmem:[%s242 + $0xac] sm:$0xf]
      %v1686 = vld [vmem:[%s242 + $0xb0] sm:$0xf]
      %v1687 = vld [vmem:[%s242 + $0xb4] sm:$0xf]
      %v1688 = vld [vmem:[%s242 + $0xb8] sm:$0xf]
      %v1689 = vld [vmem:[%s242 + $0xbc] sm:$0xf]
      %v1690 = vld [vmem:[%s242 + $0xc0] sm:$0xf]
      %v1691 = vld [vmem:[%s242 + $0xc4] sm:$0xf]
      %v1692 = vld [vmem:[%s242 + $0xc8] sm:$0xf]
      %v1693 = vld [vmem:[%s242 + $0xcc] sm:$0xf]
      %v1694 = vld [vmem:[%s242 + $0xd0] sm:$0xf]
      %v1695 = vld [vmem:[%s242 + $0xd4] sm:$0xf]
      %v1696 = vld [vmem:[%s242 + $0xd8] sm:$0xf]
      %v1697 = vld [vmem:[%s242 + $0xdc] sm:$0xf]
      %v1698 = vld [vmem:[%s242 + $0xe0] sm:$0xf]
      %v1699 = vld [vmem:[%s242 + $0xe4] sm:$0xf]
      %v1700 = vld [vmem:[%s242 + $0xe8] sm:$0xf]
      %v1701 = vld [vmem:[%s242 + $0xec] sm:$0xf]
      %v1702 = vld [vmem:[%s242 + $0xf0] sm:$0xf]
      %v1703 = vld [vmem:[%s242 + $0xf4] sm:$0xf]
      %v1704 = vld [vmem:[%s242 + $0xf8] sm:$0xf]
      %v1705 = vld [vmem:[%s242 + $0xfc] sm:$0xf]
      %v1706 = vld [vmem:[%s242 + $0x100] sm:$0xf]
      %v1707 = vld [vmem:[%s242 + $0x104] sm:$0xf]
      %v1708 = vld [vmem:[%s242 + $0x108] sm:$0xf]
      %v1709 = vld [vmem:[%s242 + $0x10c] sm:$0xf]
      %v1710 = vld [vmem:[%s242 + $0x110] sm:$0xf]
      %v1711 = vld [vmem:[%s242 + $0x114] sm:$0xf]
      %v1712 = vld [vmem:[%s242 + $0x118] sm:$0xf]
      %v1713 = vld [vmem:[%s242 + $0x11c] sm:$0xf]
      %v1714 = vld [vmem:[%s242 + $0x120] sm:$0xf]
      %v1715 = vld [vmem:[%s242 + $0x124] sm:$0xf]
      %v1716 = vld [vmem:[%s242 + $0x128] sm:$0xf]
      %v1717 = vld [vmem:[%s242 + $0x12c] sm:$0xf]
      %v1718 = vld [vmem:[%s242 + $0x130] sm:$0xf]
      %v1719 = vld [vmem:[%s242 + $0x134] sm:$0xf]
      %v1720 = vld [vmem:[%s242 + $0x138] sm:$0xf]
      %v1721 = vld [vmem:[%s242 + $0x13c] sm:$0xf]
      %v1722 = vld [vmem:[%s242 + $0x140] sm:$0xf]
      %v1723 = vld [vmem:[%s242 + $0x144] sm:$0xf]
      %v1724 = vld [vmem:[%s242 + $0x148] sm:$0xf]
      %v1725 = vld [vmem:[%s242 + $0x14c] sm:$0xf]
      %v1726 = vld [vmem:[%s242 + $0x150] sm:$0xf]
      %v1727 = vld [vmem:[%s242 + $0x154] sm:$0xf]
      %v1728 = vld [vmem:[%s242 + $0x158] sm:$0xf]
      %v1729 = vld [vmem:[%s242 + $0x15c] sm:$0xf]
      %v1730 = vld [vmem:[%s242 + $0x160] sm:$0xf]
      %v1731 = vld [vmem:[%s242 + $0x164] sm:$0xf]
      %v1732 = vld [vmem:[%s242 + $0x168] sm:$0xf]
      %v1733 = vld [vmem:[%s242 + $0x16c] sm:$0xf]
      %v1734 = vld [vmem:[%s242 + $0x170] sm:$0xf]
      %v1735 = vld [vmem:[%s242 + $0x174] sm:$0xf]
      %v1736 = vld [vmem:[%s242 + $0x178] sm:$0xf]
      %v1737 = vld [vmem:[%s242 + $0x17c] sm:$0xf]
      %v1738 = vld [vmem:[%s242 + $0x180] sm:$0xf]
      %v1739 = vld [vmem:[%s242 + $0x184] sm:$0xf]
      %v1740 = vld [vmem:[%s242 + $0x188] sm:$0xf]
      %v1741 = vld [vmem:[%s242 + $0x18c] sm:$0xf]
      %v1742 = vld [vmem:[%s242 + $0x190] sm:$0xf]
      %v1743 = vld [vmem:[%s242 + $0x194] sm:$0xf]
      %v1744 = vld [vmem:[%s242 + $0x198] sm:$0xf]
      %v1745 = vld [vmem:[%s242 + $0x19c] sm:$0xf]
      %v1746 = vld [vmem:[%s242 + $0x1a0] sm:$0xf]
      %v1747 = vld [vmem:[%s242 + $0x1a4] sm:$0xf]
      %v1748 = vld [vmem:[%s242 + $0x1a8] sm:$0xf]
      %v1749 = vld [vmem:[%s242 + $0x1ac] sm:$0xf]
      %v1750 = vld [vmem:[%s242 + $0x1b0] sm:$0xf]
      %v1751 = vld [vmem:[%s242 + $0x1b4] sm:$0xf]
      %v1752 = vld [vmem:[%s242 + $0x1b8] sm:$0xf]
      %v1753 = vld [vmem:[%s242 + $0x1bc] sm:$0xf]
      %v1754 = vld [vmem:[%s242 + $0x1c0] sm:$0xf]
      %v1755 = vld [vmem:[%s242 + $0x1c4] sm:$0xf]
      %v1756 = vld [vmem:[%s242 + $0x1c8] sm:$0xf]
      %v1757 = vld [vmem:[%s242 + $0x1cc] sm:$0xf]
      %v1758 = vld [vmem:[%s242 + $0x1d0] sm:$0xf]
      %v1759 = vld [vmem:[%s242 + $0x1d4] sm:$0xf]
      %v1760 = vld [vmem:[%s242 + $0x1d8] sm:$0xf]
      %v1761 = vld [vmem:[%s242 + $0x1dc] sm:$0xf]
      %v1762 = vld [vmem:[%s242 + $0x1e0] sm:$0xf]
      %v1763 = vld [vmem:[%s242 + $0x1e4] sm:$0xf]
      %v1764 = vld [vmem:[%s242 + $0x1e8] sm:$0xf]
      %v1765 = vld [vmem:[%s242 + $0x1ec] sm:$0xf]
      %v1766 = vld [vmem:[%s242 + $0x1f0] sm:$0xf]
      %v1767 = vld [vmem:[%s242 + $0x1f4] sm:$0xf]
      %v1768 = vld [vmem:[%s242 + $0x1f8] sm:$0xf]
      %v1769 = vld [vmem:[%s242 + $0x1fc] sm:$0xf]
      %v1770 = vunpack.c.l.bf16 %v1642
      %v1771 = vunpack.c.l.bf16 %v1643
      %v1772 = vunpack.c.l.bf16 %v1644
      %v1773 = vunpack.c.l.bf16 %v1645
      %v1774 = vunpack.c.l.bf16 %v1646
      %v1775 = vunpack.c.l.bf16 %v1647
      %v1776 = vunpack.c.l.bf16 %v1648
      %v1777 = vunpack.c.l.bf16 %v1649
      %v1778 = vunpack.c.l.bf16 %v1650
      %v1779 = vunpack.c.l.bf16 %v1651
      %v1780 = vunpack.c.l.bf16 %v1652
      %v1781 = vunpack.c.l.bf16 %v1653
      %v1782 = vunpack.c.l.bf16 %v1654
      %v1783 = vunpack.c.l.bf16 %v1655
      %v1784 = vunpack.c.l.bf16 %v1656
      %v1785 = vunpack.c.l.bf16 %v1657
      %v1786 = vunpack.c.l.bf16 %v1658
      %v1787 = vunpack.c.l.bf16 %v1659
      %v1788 = vunpack.c.l.bf16 %v1660
      %v1789 = vunpack.c.l.bf16 %v1661
      %v1790 = vunpack.c.l.bf16 %v1662
      %v1791 = vunpack.c.l.bf16 %v1663
      %v1792 = vunpack.c.l.bf16 %v1664
      %v1793 = vunpack.c.l.bf16 %v1665
      %v1794 = vunpack.c.l.bf16 %v1666
      %v1795 = vunpack.c.l.bf16 %v1667
      %v1796 = vunpack.c.l.bf16 %v1668
      %v1797 = vunpack.c.l.bf16 %v1669
      %v1798 = vunpack.c.l.bf16 %v1670
      %v1799 = vunpack.c.l.bf16 %v1671
      %v1800 = vunpack.c.l.bf16 %v1672
      %v1801 = vunpack.c.l.bf16 %v1673
      %v1802 = vunpack.c.l.bf16 %v1674
      %v1803 = vunpack.c.l.bf16 %v1675
      %v1804 = vunpack.c.l.bf16 %v1676
      %v1805 = vunpack.c.l.bf16 %v1677
      %v1806 = vunpack.c.l.bf16 %v1678
      %v1807 = vunpack.c.l.bf16 %v1679
      %v1808 = vunpack.c.l.bf16 %v1680
      %v1809 = vunpack.c.l.bf16 %v1681
      %v1810 = vunpack.c.l.bf16 %v1682
      %v1811 = vunpack.c.l.bf16 %v1683
      %v1812 = vunpack.c.l.bf16 %v1684
      %v1813 = vunpack.c.l.bf16 %v1685
      %v1814 = vunpack.c.l.bf16 %v1686
      %v1815 = vunpack.c.l.bf16 %v1687
      %v1816 = vunpack.c.l.bf16 %v1688
      %v1817 = vunpack.c.l.bf16 %v1689
      %v1818 = vunpack.c.l.bf16 %v1690
      %v1819 = vunpack.c.l.bf16 %v1691
      %v1820 = vunpack.c.l.bf16 %v1692
      %v1821 = vunpack.c.l.bf16 %v1693
      %v1822 = vunpack.c.l.bf16 %v1694
      %v1823 = vunpack.c.l.bf16 %v1695
      %v1824 = vunpack.c.l.bf16 %v1696
      %v1825 = vunpack.c.l.bf16 %v1697
      %v1826 = vunpack.c.l.bf16 %v1698
      %v1827 = vunpack.c.l.bf16 %v1699
      %v1828 = vunpack.c.l.bf16 %v1700
      %v1829 = vunpack.c.l.bf16 %v1701
      %v1830 = vunpack.c.l.bf16 %v1702
      %v1831 = vunpack.c.l.bf16 %v1703
      %v1832 = vunpack.c.l.bf16 %v1704
      %v1833 = vunpack.c.l.bf16 %v1705
      %v1834 = vunpack.c.l.bf16 %v1706
      %v1835 = vunpack.c.l.bf16 %v1707
      %v1836 = vunpack.c.l.bf16 %v1708
      %v1837 = vunpack.c.l.bf16 %v1709
      %v1838 = vunpack.c.l.bf16 %v1710
      %v1839 = vunpack.c.l.bf16 %v1711
      %v1840 = vunpack.c.l.bf16 %v1712
      %v1841 = vunpack.c.l.bf16 %v1713
      %v1842 = vunpack.c.l.bf16 %v1714
      %v1843 = vunpack.c.l.bf16 %v1715
      %v1844 = vunpack.c.l.bf16 %v1716
      %v1845 = vunpack.c.l.bf16 %v1717
      %v1846 = vunpack.c.l.bf16 %v1718
      %v1847 = vunpack.c.l.bf16 %v1719
      %v1848 = vunpack.c.l.bf16 %v1720
      %v1849 = vunpack.c.l.bf16 %v1721
      %v1850 = vunpack.c.l.bf16 %v1722
      %v1851 = vunpack.c.l.bf16 %v1723
      %v1852 = vunpack.c.l.bf16 %v1724
      %v1853 = vunpack.c.l.bf16 %v1725
      %v1854 = vunpack.c.l.bf16 %v1726
      %v1855 = vunpack.c.l.bf16 %v1727
      %v1856 = vunpack.c.l.bf16 %v1728
      %v1857 = vunpack.c.l.bf16 %v1729
      %v1858 = vunpack.c.l.bf16 %v1730
      %v1859 = vunpack.c.l.bf16 %v1731
      %v1860 = vunpack.c.l.bf16 %v1732
      %v1861 = vunpack.c.l.bf16 %v1733
      %v1862 = vunpack.c.l.bf16 %v1734
      %v1863 = vunpack.c.l.bf16 %v1735
      %v1864 = vunpack.c.l.bf16 %v1736
      %v1865 = vunpack.c.l.bf16 %v1737
      %v1866 = vunpack.c.l.bf16 %v1738
      %v1867 = vunpack.c.l.bf16 %v1739
      %v1868 = vunpack.c.l.bf16 %v1740
      %v1869 = vunpack.c.l.bf16 %v1741
      %v1870 = vunpack.c.l.bf16 %v1742
      %v1871 = vunpack.c.l.bf16 %v1743
      %v1872 = vunpack.c.l.bf16 %v1744
      %v1873 = vunpack.c.l.bf16 %v1745
      %v1874 = vunpack.c.l.bf16 %v1746
      %v1875 = vunpack.c.l.bf16 %v1747
      %v1876 = vunpack.c.l.bf16 %v1748
      %v1877 = vunpack.c.l.bf16 %v1749
      %v1878 = vunpack.c.l.bf16 %v1750
      %v1879 = vunpack.c.l.bf16 %v1751
      %v1880 = vunpack.c.l.bf16 %v1752
      %v1881 = vunpack.c.l.bf16 %v1753
      %v1882 = vunpack.c.l.bf16 %v1754
      %v1883 = vunpack.c.l.bf16 %v1755
      %v1884 = vunpack.c.l.bf16 %v1756
      %v1885 = vunpack.c.l.bf16 %v1757
      %v1886 = vunpack.c.l.bf16 %v1758
      %v1887 = vunpack.c.l.bf16 %v1759
      %v1888 = vunpack.c.l.bf16 %v1760
      %v1889 = vunpack.c.l.bf16 %v1761
      %v1890 = vunpack.c.l.bf16 %v1762
      %v1891 = vunpack.c.l.bf16 %v1763
      %v1892 = vunpack.c.l.bf16 %v1764
      %v1893 = vunpack.c.l.bf16 %v1765
      %v1894 = vunpack.c.l.bf16 %v1766
      %v1895 = vunpack.c.l.bf16 %v1767
      %v1896 = vunpack.c.l.bf16 %v1768
      %v1897 = vunpack.c.l.bf16 %v1769
      %v1898 = vadd.f32 %v1514, %v1770
      %v1899 = vadd.f32 %v1515, %v1771
      %v1900 = vadd.f32 %v1516, %v1772
      %v1901 = vadd.f32 %v1517, %v1773
      %v1902 = vadd.f32 %v1518, %v1774
      %v1903 = vadd.f32 %v1519, %v1775
      %v1904 = vadd.f32 %v1520, %v1776
      %v1905 = vadd.f32 %v1521, %v1777
      %v1906 = vadd.f32 %v1522, %v1778
      %v1907 = vadd.f32 %v1523, %v1779
      %v1908 = vadd.f32 %v1524, %v1780
      %v1909 = vadd.f32 %v1525, %v1781
      %v1910 = vadd.f32 %v1526, %v1782
      %v1911 = vadd.f32 %v1527, %v1783
      %v1912 = vadd.f32 %v1528, %v1784
      %v1913 = vadd.f32 %v1529, %v1785
      %v1914 = vadd.f32 %v1530, %v1786
      %v1915 = vadd.f32 %v1531, %v1787
      %v1916 = vadd.f32 %v1532, %v1788
      %v1917 = vadd.f32 %v1533, %v1789
      %v1918 = vadd.f32 %v1534, %v1790
      %v1919 = vadd.f32 %v1535, %v1791
      %v1920 = vadd.f32 %v1536, %v1792
      %v1921 = vadd.f32 %v1537, %v1793
      %v1922 = vadd.f32 %v1538, %v1794
      %v1923 = vadd.f32 %v1539, %v1795
      %v1924 = vadd.f32 %v1540, %v1796
      %v1925 = vadd.f32 %v1541, %v1797
      %v1926 = vadd.f32 %v1542, %v1798
      %v1927 = vadd.f32 %v1543, %v1799
      %v1928 = vadd.f32 %v1544, %v1800
      %v1929 = vadd.f32 %v1545, %v1801
      %v1930 = vadd.f32 %v1546, %v1802
      %v1931 = vadd.f32 %v1547, %v1803
      %v1932 = vadd.f32 %v1548, %v1804
      %v1933 = vadd.f32 %v1549, %v1805
      %v1934 = vadd.f32 %v1550, %v1806
      %v1935 = vadd.f32 %v1551, %v1807
      %v1936 = vadd.f32 %v1552, %v1808
      %v1937 = vadd.f32 %v1553, %v1809
      %v1938 = vadd.f32 %v1554, %v1810
      %v1939 = vadd.f32 %v1555, %v1811
      %v1940 = vadd.f32 %v1556, %v1812
      %v1941 = vadd.f32 %v1557, %v1813
      %v1942 = vadd.f32 %v1558, %v1814
      %v1943 = vadd.f32 %v1559, %v1815
      %v1944 = vadd.f32 %v1560, %v1816
      %v1945 = vadd.f32 %v1561, %v1817
      %v1946 = vadd.f32 %v1562, %v1818
      %v1947 = vadd.f32 %v1563, %v1819
      %v1948 = vadd.f32 %v1564, %v1820
      %v1949 = vadd.f32 %v1565, %v1821
      %v1950 = vadd.f32 %v1566, %v1822
      %v1951 = vadd.f32 %v1567, %v1823
      %v1952 = vadd.f32 %v1568, %v1824
      %v1953 = vadd.f32 %v1569, %v1825
      %v1954 = vadd.f32 %v1570, %v1826
      %v1955 = vadd.f32 %v1571, %v1827
      %v1956 = vadd.f32 %v1572, %v1828
      %v1957 = vadd.f32 %v1573, %v1829
      %v1958 = vadd.f32 %v1574, %v1830
      %v1959 = vadd.f32 %v1575, %v1831
      %v1960 = vadd.f32 %v1576, %v1832
      %v1961 = vadd.f32 %v1577, %v1833
      %v1962 = vadd.f32 %v1578, %v1834
      %v1963 = vadd.f32 %v1579, %v1835
      %v1964 = vadd.f32 %v1580, %v1836
      %v1965 = vadd.f32 %v1581, %v1837
      %v1966 = vadd.f32 %v1582, %v1838
      %v1967 = vadd.f32 %v1583, %v1839
      %v1968 = vadd.f32 %v1584, %v1840
      %v1969 = vadd.f32 %v1585, %v1841
      %v1970 = vadd.f32 %v1586, %v1842
      %v1971 = vadd.f32 %v1587, %v1843
      %v1972 = vadd.f32 %v1588, %v1844
      %v1973 = vadd.f32 %v1589, %v1845
      %v1974 = vadd.f32 %v1590, %v1846
      %v1975 = vadd.f32 %v1591, %v1847
      %v1976 = vadd.f32 %v1592, %v1848
      %v1977 = vadd.f32 %v1593, %v1849
      %v1978 = vadd.f32 %v1594, %v1850
      %v1979 = vadd.f32 %v1595, %v1851
      %v1980 = vadd.f32 %v1596, %v1852
      %v1981 = vadd.f32 %v1597, %v1853
      %v1982 = vadd.f32 %v1598, %v1854
      %v1983 = vadd.f32 %v1599, %v1855
      %v1984 = vadd.f32 %v1600, %v1856
      %v1985 = vadd.f32 %v1601, %v1857
      %v1986 = vadd.f32 %v1602, %v1858
      %v1987 = vadd.f32 %v1603, %v1859
      %v1988 = vadd.f32 %v1604, %v1860
      %v1989 = vadd.f32 %v1605, %v1861
      %v1990 = vadd.f32 %v1606, %v1862
      %v1991 = vadd.f32 %v1607, %v1863
      %v1992 = vadd.f32 %v1608, %v1864
      %v1993 = vadd.f32 %v1609, %v1865
      %v1994 = vadd.f32 %v1610, %v1866
      %v1995 = vadd.f32 %v1611, %v1867
      %v1996 = vadd.f32 %v1612, %v1868
      %v1997 = vadd.f32 %v1613, %v1869
      %v1998 = vadd.f32 %v1614, %v1870
      %v1999 = vadd.f32 %v1615, %v1871
      %v2000 = vadd.f32 %v1616, %v1872
      %v2001 = vadd.f32 %v1617, %v1873
      %v2002 = vadd.f32 %v1618, %v1874
      %v2003 = vadd.f32 %v1619, %v1875
      %v2004 = vadd.f32 %v1620, %v1876
      %v2005 = vadd.f32 %v1621, %v1877
      %v2006 = vadd.f32 %v1622, %v1878
      %v2007 = vadd.f32 %v1623, %v1879
      %v2008 = vadd.f32 %v1624, %v1880
      %v2009 = vadd.f32 %v1625, %v1881
      %v2010 = vadd.f32 %v1626, %v1882
      %v2011 = vadd.f32 %v1627, %v1883
      %v2012 = vadd.f32 %v1628, %v1884
      %v2013 = vadd.f32 %v1629, %v1885
      %v2014 = vadd.f32 %v1630, %v1886
      %v2015 = vadd.f32 %v1631, %v1887
      %v2016 = vadd.f32 %v1632, %v1888
      %v2017 = vadd.f32 %v1633, %v1889
      %v2018 = vadd.f32 %v1634, %v1890
      %v2019 = vadd.f32 %v1635, %v1891
      %v2020 = vadd.f32 %v1636, %v1892
      %v2021 = vadd.f32 %v1637, %v1893
      %v2022 = vadd.f32 %v1638, %v1894
      %v2023 = vadd.f32 %v1639, %v1895
      %v2024 = vadd.f32 %v1640, %v1896
      %v2025 = vadd.f32 %v1641, %v1897
      %v2026 = vmax.f32 %v1898, 0.0
      %v2027 = vmax.f32 %v1899, 0.0
      %v2028 = vmax.f32 %v1900, 0.0
      %v2029 = vmax.f32 %v1901, 0.0
      %v2030 = vmax.f32 %v1902, 0.0
      %v2031 = vmax.f32 %v1903, 0.0
      %v2032 = vmax.f32 %v1904, 0.0
      %v2033 = vmax.f32 %v1905, 0.0
      %v2034 = vmax.f32 %v1906, 0.0
      %v2035 = vmax.f32 %v1907, 0.0
      %v2036 = vmax.f32 %v1908, 0.0
      %v2037 = vmax.f32 %v1909, 0.0
      %v2038 = vmax.f32 %v1910, 0.0
      %v2039 = vmax.f32 %v1911, 0.0
      %v2040 = vmax.f32 %v1912, 0.0
      %v2041 = vmax.f32 %v1913, 0.0
      %v2042 = vmax.f32 %v1914, 0.0
      %v2043 = vmax.f32 %v1915, 0.0
      %v2044 = vmax.f32 %v1916, 0.0
      %v2045 = vmax.f32 %v1917, 0.0
      %v2046 = vmax.f32 %v1918, 0.0
      %v2047 = vmax.f32 %v1919, 0.0
      %v2048 = vmax.f32 %v1920, 0.0
      %v2049 = vmax.f32 %v1921, 0.0
      %v2050 = vmax.f32 %v1922, 0.0
      %v2051 = vmax.f32 %v1923, 0.0
      %v2052 = vmax.f32 %v1924, 0.0
      %v2053 = vmax.f32 %v1925, 0.0
      %v2054 = vmax.f32 %v1926, 0.0
      %v2055 = vmax.f32 %v1927, 0.0
      %v2056 = vmax.f32 %v1928, 0.0
      %v2057 = vmax.f32 %v1929, 0.0
      %v2058 = vmax.f32 %v1930, 0.0
      %v2059 = vmax.f32 %v1931, 0.0
      %v2060 = vmax.f32 %v1932, 0.0
      %v2061 = vmax.f32 %v1933, 0.0
      %v2062 = vmax.f32 %v1934, 0.0
      %v2063 = vmax.f32 %v1935, 0.0
      %v2064 = vmax.f32 %v1936, 0.0
      %v2065 = vmax.f32 %v1937, 0.0
      %v2066 = vmax.f32 %v1938, 0.0
      %v2067 = vmax.f32 %v1939, 0.0
      %v2068 = vmax.f32 %v1940, 0.0
      %v2069 = vmax.f32 %v1941, 0.0
      %v2070 = vmax.f32 %v1942, 0.0
      %v2071 = vmax.f32 %v1943, 0.0
      %v2072 = vmax.f32 %v1944, 0.0
      %v2073 = vmax.f32 %v1945, 0.0
      %v2074 = vmax.f32 %v1946, 0.0
      %v2075 = vmax.f32 %v1947, 0.0
      %v2076 = vmax.f32 %v1948, 0.0
      %v2077 = vmax.f32 %v1949, 0.0
      %v2078 = vmax.f32 %v1950, 0.0
      %v2079 = vmax.f32 %v1951, 0.0
      %v2080 = vmax.f32 %v1952, 0.0
      %v2081 = vmax.f32 %v1953, 0.0
      %v2082 = vmax.f32 %v1954, 0.0
      %v2083 = vmax.f32 %v1955, 0.0
      %v2084 = vmax.f32 %v1956, 0.0
      %v2085 = vmax.f32 %v1957, 0.0
      %v2086 = vmax.f32 %v1958, 0.0
      %v2087 = vmax.f32 %v1959, 0.0
      %v2088 = vmax.f32 %v1960, 0.0
      %v2089 = vmax.f32 %v1961, 0.0
      %v2090 = vmax.f32 %v1962, 0.0
      %v2091 = vmax.f32 %v1963, 0.0
      %v2092 = vmax.f32 %v1964, 0.0
      %v2093 = vmax.f32 %v1965, 0.0
      %v2094 = vmax.f32 %v1966, 0.0
      %v2095 = vmax.f32 %v1967, 0.0
      %v2096 = vmax.f32 %v1968, 0.0
      %v2097 = vmax.f32 %v1969, 0.0
      %v2098 = vmax.f32 %v1970, 0.0
      %v2099 = vmax.f32 %v1971, 0.0
      %v2100 = vmax.f32 %v1972, 0.0
      %v2101 = vmax.f32 %v1973, 0.0
      %v2102 = vmax.f32 %v1974, 0.0
      %v2103 = vmax.f32 %v1975, 0.0
      %v2104 = vmax.f32 %v1976, 0.0
      %v2105 = vmax.f32 %v1977, 0.0
      %v2106 = vmax.f32 %v1978, 0.0
      %v2107 = vmax.f32 %v1979, 0.0
      %v2108 = vmax.f32 %v1980, 0.0
      %v2109 = vmax.f32 %v1981, 0.0
      %v2110 = vmax.f32 %v1982, 0.0
      %v2111 = vmax.f32 %v1983, 0.0
      %v2112 = vmax.f32 %v1984, 0.0
      %v2113 = vmax.f32 %v1985, 0.0
      %v2114 = vmax.f32 %v1986, 0.0
      %v2115 = vmax.f32 %v1987, 0.0
      %v2116 = vmax.f32 %v1988, 0.0
      %v2117 = vmax.f32 %v1989, 0.0
      %v2118 = vmax.f32 %v1990, 0.0
      %v2119 = vmax.f32 %v1991, 0.0
      %v2120 = vmax.f32 %v1992, 0.0
      %v2121 = vmax.f32 %v1993, 0.0
      %v2122 = vmax.f32 %v1994, 0.0
      %v2123 = vmax.f32 %v1995, 0.0
      %v2124 = vmax.f32 %v1996, 0.0
      %v2125 = vmax.f32 %v1997, 0.0
      %v2126 = vmax.f32 %v1998, 0.0
      %v2127 = vmax.f32 %v1999, 0.0
      %v2128 = vmax.f32 %v2000, 0.0
      %v2129 = vmax.f32 %v2001, 0.0
      %v2130 = vmax.f32 %v2002, 0.0
      %v2131 = vmax.f32 %v2003, 0.0
      %v2132 = vmax.f32 %v2004, 0.0
      %v2133 = vmax.f32 %v2005, 0.0
      %v2134 = vmax.f32 %v2006, 0.0
      %v2135 = vmax.f32 %v2007, 0.0
      %v2136 = vmax.f32 %v2008, 0.0
      %v2137 = vmax.f32 %v2009, 0.0
      %v2138 = vmax.f32 %v2010, 0.0
      %v2139 = vmax.f32 %v2011, 0.0
      %v2140 = vmax.f32 %v2012, 0.0
      %v2141 = vmax.f32 %v2013, 0.0
      %v2142 = vmax.f32 %v2014, 0.0
      %v2143 = vmax.f32 %v2015, 0.0
      %v2144 = vmax.f32 %v2016, 0.0
      %v2145 = vmax.f32 %v2017, 0.0
      %v2146 = vmax.f32 %v2018, 0.0
      %v2147 = vmax.f32 %v2019, 0.0
      %v2148 = vmax.f32 %v2020, 0.0
      %v2149 = vmax.f32 %v2021, 0.0
      %v2150 = vmax.f32 %v2022, 0.0
      %v2151 = vmax.f32 %v2023, 0.0
      %v2152 = vmax.f32 %v2024, 0.0
      %v2153 = vmax.f32 %v2025, 0.0
      %v2154 = vpack.c.bf16 %v2027, %v2026
      %v2155 = vpack.c.bf16 %v2029, %v2028
      %v2156 = vpack.c.bf16 %v2031, %v2030
      %v2157 = vpack.c.bf16 %v2033, %v2032
      %v2158 = vpack.c.bf16 %v2035, %v2034
      %v2159 = vpack.c.bf16 %v2037, %v2036
      %v2160 = vpack.c.bf16 %v2039, %v2038
      %v2161 = vpack.c.bf16 %v2041, %v2040
      %v2162 = vpack.c.bf16 %v2043, %v2042
      %v2163 = vpack.c.bf16 %v2045, %v2044
      %v2164 = vpack.c.bf16 %v2047, %v2046
      %v2165 = vpack.c.bf16 %v2049, %v2048
      %v2166 = vpack.c.bf16 %v2051, %v2050
      %v2167 = vpack.c.bf16 %v2053, %v2052
      %v2168 = vpack.c.bf16 %v2055, %v2054
      %v2169 = vpack.c.bf16 %v2057, %v2056
      %v2170 = vpack.c.bf16 %v2059, %v2058
      %v2171 = vpack.c.bf16 %v2061, %v2060
      %v2172 = vpack.c.bf16 %v2063, %v2062
      %v2173 = vpack.c.bf16 %v2065, %v2064
      %v2174 = vpack.c.bf16 %v2067, %v2066
      %v2175 = vpack.c.bf16 %v2069, %v2068
      %v2176 = vpack.c.bf16 %v2071, %v2070
      %v2177 = vpack.c.bf16 %v2073, %v2072
      %v2178 = vpack.c.bf16 %v2075, %v2074
      %v2179 = vpack.c.bf16 %v2077, %v2076
      %v2180 = vpack.c.bf16 %v2079, %v2078
      %v2181 = vpack.c.bf16 %v2081, %v2080
      %v2182 = vpack.c.bf16 %v2083, %v2082
      %v2183 = vpack.c.bf16 %v2085, %v2084
      %v2184 = vpack.c.bf16 %v2087, %v2086
      %v2185 = vpack.c.bf16 %v2089, %v2088
      %v2186 = vpack.c.bf16 %v2091, %v2090
      %v2187 = vpack.c.bf16 %v2093, %v2092
      %v2188 = vpack.c.bf16 %v2095, %v2094
      %v2189 = vpack.c.bf16 %v2097, %v2096
      %v2190 = vpack.c.bf16 %v2099, %v2098
      %v2191 = vpack.c.bf16 %v2101, %v2100
      %v2192 = vpack.c.bf16 %v2103, %v2102
      %v2193 = vpack.c.bf16 %v2105, %v2104
      %v2194 = vpack.c.bf16 %v2107, %v2106
      %v2195 = vpack.c.bf16 %v2109, %v2108
      %v2196 = vpack.c.bf16 %v2111, %v2110
      %v2197 = vpack.c.bf16 %v2113, %v2112
      %v2198 = vpack.c.bf16 %v2115, %v2114
      %v2199 = vpack.c.bf16 %v2117, %v2116
      %v2200 = vpack.c.bf16 %v2119, %v2118
      %v2201 = vpack.c.bf16 %v2121, %v2120
      %v2202 = vpack.c.bf16 %v2123, %v2122
      %v2203 = vpack.c.bf16 %v2125, %v2124
      %v2204 = vpack.c.bf16 %v2127, %v2126
      %v2205 = vpack.c.bf16 %v2129, %v2128
      %v2206 = vpack.c.bf16 %v2131, %v2130
      %v2207 = vpack.c.bf16 %v2133, %v2132
      %v2208 = vpack.c.bf16 %v2135, %v2134
      %v2209 = vpack.c.bf16 %v2137, %v2136
      %v2210 = vpack.c.bf16 %v2139, %v2138
      %v2211 = vpack.c.bf16 %v2141, %v2140
      %v2212 = vpack.c.bf16 %v2143, %v2142
      %v2213 = vpack.c.bf16 %v2145, %v2144
      %v2214 = vpack.c.bf16 %v2147, %v2146
      %v2215 = vpack.c.bf16 %v2149, %v2148
      %v2216 = vpack.c.bf16 %v2151, %v2150
      %v2217 = vpack.c.bf16 %v2153, %v2152
      %v2282 = vunpack.c.l.b16 %v2154
      %v2283 = vunpack.c.h.b16 %v2154
      %v2284 = vunpack.c.l.b16 %v2155
      %v2285 = vunpack.c.h.b16 %v2155
      %v2286 = vunpack.c.l.b16 %v2156
      %v2287 = vunpack.c.h.b16 %v2156
      %v2288 = vunpack.c.l.b16 %v2157
      %v2289 = vunpack.c.h.b16 %v2157
      %v2290 = vunpack.c.l.b16 %v2158
      %v2291 = vunpack.c.h.b16 %v2158
      %v2292 = vunpack.c.l.b16 %v2159
      %v2293 = vunpack.c.h.b16 %v2159
      %v2294 = vunpack.c.l.b16 %v2160
      %v2295 = vunpack.c.h.b16 %v2160
      %v2296 = vunpack.c.l.b16 %v2161
      %v2297 = vunpack.c.h.b16 %v2161
      %v2298 = vunpack.c.l.b16 %v2162
      %v2299 = vunpack.c.h.b16 %v2162
      %v2300 = vunpack.c.l.b16 %v2163
      %v2301 = vunpack.c.h.b16 %v2163
      %v2302 = vunpack.c.l.b16 %v2164
      %v2303 = vunpack.c.h.b16 %v2164
      %v2304 = vunpack.c.l.b16 %v2165
      %v2305 = vunpack.c.h.b16 %v2165
      %v2306 = vunpack.c.l.b16 %v2166
      %v2307 = vunpack.c.h.b16 %v2166
      %v2308 = vunpack.c.l.b16 %v2167
      %v2309 = vunpack.c.h.b16 %v2167
      %v2310 = vunpack.c.l.b16 %v2168
      %v2311 = vunpack.c.h.b16 %v2168
      %v2312 = vunpack.c.l.b16 %v2169
      %v2313 = vunpack.c.h.b16 %v2169
      %v2314 = vunpack.c.l.b16 %v2170
      %v2315 = vunpack.c.h.b16 %v2170
      %v2316 = vunpack.c.l.b16 %v2171
      %v2317 = vunpack.c.h.b16 %v2171
      %v2318 = vunpack.c.l.b16 %v2172
      %v2319 = vunpack.c.h.b16 %v2172
      %v2320 = vunpack.c.l.b16 %v2173
      %v2321 = vunpack.c.h.b16 %v2173
      %v2322 = vunpack.c.l.b16 %v2174
      %v2323 = vunpack.c.h.b16 %v2174
      %v2324 = vunpack.c.l.b16 %v2175
      %v2325 = vunpack.c.h.b16 %v2175
      %v2326 = vunpack.c.l.b16 %v2176
      %v2327 = vunpack.c.h.b16 %v2176
      %v2328 = vunpack.c.l.b16 %v2177
      %v2329 = vunpack.c.h.b16 %v2177
      %v2330 = vunpack.c.l.b16 %v2178
      %v2331 = vunpack.c.h.b16 %v2178
      %v2332 = vunpack.c.l.b16 %v2179
      %v2333 = vunpack.c.h.b16 %v2179
      %v2334 = vunpack.c.l.b16 %v2180
      %v2335 = vunpack.c.h.b16 %v2180
      %v2336 = vunpack.c.l.b16 %v2181
      %v2337 = vunpack.c.h.b16 %v2181
      %v2338 = vunpack.c.l.b16 %v2182
      %v2339 = vunpack.c.h.b16 %v2182
      %v2340 = vunpack.c.l.b16 %v2183
      %v2341 = vunpack.c.h.b16 %v2183
      %v2342 = vunpack.c.l.b16 %v2184
      %v2343 = vunpack.c.h.b16 %v2184
      %v2344 = vunpack.c.l.b16 %v2185
      %v2345 = vunpack.c.h.b16 %v2185
      %v2346 = vunpack.c.l.b16 %v2186
      %v2347 = vunpack.c.h.b16 %v2186
      %v2348 = vunpack.c.l.b16 %v2187
      %v2349 = vunpack.c.h.b16 %v2187
      %v2350 = vunpack.c.l.b16 %v2188
      %v2351 = vunpack.c.h.b16 %v2188
      %v2352 = vunpack.c.l.b16 %v2189
      %v2353 = vunpack.c.h.b16 %v2189
      %v2354 = vunpack.c.l.b16 %v2190
      %v2355 = vunpack.c.h.b16 %v2190
      %v2356 = vunpack.c.l.b16 %v2191
      %v2357 = vunpack.c.h.b16 %v2191
      %v2358 = vunpack.c.l.b16 %v2192
      %v2359 = vunpack.c.h.b16 %v2192
      %v2360 = vunpack.c.l.b16 %v2193
      %v2361 = vunpack.c.h.b16 %v2193
      %v2362 = vunpack.c.l.b16 %v2194
      %v2363 = vunpack.c.h.b16 %v2194
      %v2364 = vunpack.c.l.b16 %v2195
      %v2365 = vunpack.c.h.b16 %v2195
      %v2366 = vunpack.c.l.b16 %v2196
      %v2367 = vunpack.c.h.b16 %v2196
      %v2368 = vunpack.c.l.b16 %v2197
      %v2369 = vunpack.c.h.b16 %v2197
      %v2370 = vunpack.c.l.b16 %v2198
      %v2371 = vunpack.c.h.b16 %v2198
      %v2372 = vunpack.c.l.b16 %v2199
      %v2373 = vunpack.c.h.b16 %v2199
      %v2374 = vunpack.c.l.b16 %v2200
      %v2375 = vunpack.c.h.b16 %v2200
      %v2376 = vunpack.c.l.b16 %v2201
      %v2377 = vunpack.c.h.b16 %v2201
      %v2378 = vunpack.c.l.b16 %v2202
      %v2379 = vunpack.c.h.b16 %v2202
      %v2380 = vunpack.c.l.b16 %v2203
      %v2381 = vunpack.c.h.b16 %v2203
      %v2382 = vunpack.c.l.b16 %v2204
      %v2383 = vunpack.c.h.b16 %v2204
      %v2384 = vunpack.c.l.b16 %v2205
      %v2385 = vunpack.c.h.b16 %v2205
      %v2386 = vunpack.c.l.b16 %v2206
      %v2387 = vunpack.c.h.b16 %v2206
      %v2388 = vunpack.c.l.b16 %v2207
      %v2389 = vunpack.c.h.b16 %v2207
      %v2390 = vunpack.c.l.b16 %v2208
      %v2391 = vunpack.c.h.b16 %v2208
      %v2392 = vunpack.c.l.b16 %v2209
      %v2393 = vunpack.c.h.b16 %v2209
      %v2394 = vunpack.c.l.b16 %v2210
      %v2395 = vunpack.c.h.b16 %v2210
      %v2396 = vunpack.c.l.b16 %v2211
      %v2397 = vunpack.c.h.b16 %v2211
      %v2398 = vunpack.c.l.b16 %v2212
      %v2399 = vunpack.c.h.b16 %v2212
      %v2400 = vunpack.c.l.b16 %v2213
      %v2401 = vunpack.c.h.b16 %v2213
      %v2402 = vunpack.c.l.b16 %v2214
      %v2403 = vunpack.c.h.b16 %v2214
      %v2404 = vunpack.c.l.b16 %v2215
      %v2405 = vunpack.c.h.b16 %v2215
      %v2406 = vunpack.c.l.b16 %v2216
      %v2407 = vunpack.c.h.b16 %v2216
      %v2408 = vunpack.c.l.b16 %v2217
      %v2409 = vunpack.c.h.b16 %v2217
      %v2410 = vpack.c.b16 %v2282, %v2282
      %v2411 = vpack.c.b16 %v2283, %v2283
      %v2412 = vpack.c.b16 %v2284, %v2284
      %v2413 = vpack.c.b16 %v2285, %v2285
      %v2414 = vpack.c.b16 %v2286, %v2286
      %v2415 = vpack.c.b16 %v2287, %v2287
      %v2416 = vpack.c.b16 %v2288, %v2288
      %v2417 = vpack.c.b16 %v2289, %v2289
      %v2418 = vpack.c.b16 %v2290, %v2290
      %v2419 = vpack.c.b16 %v2291, %v2291
      %v2420 = vpack.c.b16 %v2292, %v2292
      %v2421 = vpack.c.b16 %v2293, %v2293
      %v2422 = vpack.c.b16 %v2294, %v2294
      %v2423 = vpack.c.b16 %v2295, %v2295
      %v2424 = vpack.c.b16 %v2296, %v2296
      %v2425 = vpack.c.b16 %v2297, %v2297
      %v2426 = vpack.c.b16 %v2298, %v2298
      %v2427 = vpack.c.b16 %v2299, %v2299
      %v2428 = vpack.c.b16 %v2300, %v2300
      %v2429 = vpack.c.b16 %v2301, %v2301
      %v2430 = vpack.c.b16 %v2302, %v2302
      %v2431 = vpack.c.b16 %v2303, %v2303
      %v2432 = vpack.c.b16 %v2304, %v2304
      %v2433 = vpack.c.b16 %v2305, %v2305
      %v2434 = vpack.c.b16 %v2306, %v2306
      %v2435 = vpack.c.b16 %v2307, %v2307
      %v2436 = vpack.c.b16 %v2308, %v2308
      %v2437 = vpack.c.b16 %v2309, %v2309
      %v2438 = vpack.c.b16 %v2310, %v2310
      %v2439 = vpack.c.b16 %v2311, %v2311
      %v2440 = vpack.c.b16 %v2312, %v2312
      %v2441 = vpack.c.b16 %v2313, %v2313
      %v2442 = vpack.c.b16 %v2314, %v2314
      %v2443 = vpack.c.b16 %v2315, %v2315
      %v2444 = vpack.c.b16 %v2316, %v2316
      %v2445 = vpack.c.b16 %v2317, %v2317
      %v2446 = vpack.c.b16 %v2318, %v2318
      %v2447 = vpack.c.b16 %v2319, %v2319
      %v2448 = vpack.c.b16 %v2320, %v2320
      %v2449 = vpack.c.b16 %v2321, %v2321
      %v2450 = vpack.c.b16 %v2322, %v2322
      %v2451 = vpack.c.b16 %v2323, %v2323
      %v2452 = vpack.c.b16 %v2324, %v2324
      %v2453 = vpack.c.b16 %v2325, %v2325
      %v2454 = vpack.c.b16 %v2326, %v2326
      %v2455 = vpack.c.b16 %v2327, %v2327
      %v2456 = vpack.c.b16 %v2328, %v2328
      %v2457 = vpack.c.b16 %v2329, %v2329
      %v2458 = vpack.c.b16 %v2330, %v2330
      %v2459 = vpack.c.b16 %v2331, %v2331
      %v2460 = vpack.c.b16 %v2332, %v2332
      %v2461 = vpack.c.b16 %v2333, %v2333
      %v2462 = vpack.c.b16 %v2334, %v2334
      %v2463 = vpack.c.b16 %v2335, %v2335
      %v2464 = vpack.c.b16 %v2336, %v2336
      %v2465 = vpack.c.b16 %v2337, %v2337
      %v2466 = vpack.c.b16 %v2338, %v2338
      %v2467 = vpack.c.b16 %v2339, %v2339
      %v2468 = vpack.c.b16 %v2340, %v2340
      %v2469 = vpack.c.b16 %v2341, %v2341
      %v2470 = vpack.c.b16 %v2342, %v2342
      %v2471 = vpack.c.b16 %v2343, %v2343
      %v2472 = vpack.c.b16 %v2344, %v2344
      %v2473 = vpack.c.b16 %v2345, %v2345
      %v2474 = vpack.c.b16 %v2346, %v2346
      %v2475 = vpack.c.b16 %v2347, %v2347
      %v2476 = vpack.c.b16 %v2348, %v2348
      %v2477 = vpack.c.b16 %v2349, %v2349
      %v2478 = vpack.c.b16 %v2350, %v2350
      %v2479 = vpack.c.b16 %v2351, %v2351
      %v2480 = vpack.c.b16 %v2352, %v2352
      %v2481 = vpack.c.b16 %v2353, %v2353
      %v2482 = vpack.c.b16 %v2354, %v2354
      %v2483 = vpack.c.b16 %v2355, %v2355
      %v2484 = vpack.c.b16 %v2356, %v2356
      %v2485 = vpack.c.b16 %v2357, %v2357
      %v2486 = vpack.c.b16 %v2358, %v2358
      %v2487 = vpack.c.b16 %v2359, %v2359
      %v2488 = vpack.c.b16 %v2360, %v2360
      %v2489 = vpack.c.b16 %v2361, %v2361
      %v2490 = vpack.c.b16 %v2362, %v2362
      %v2491 = vpack.c.b16 %v2363, %v2363
      %v2492 = vpack.c.b16 %v2364, %v2364
      %v2493 = vpack.c.b16 %v2365, %v2365
      %v2494 = vpack.c.b16 %v2366, %v2366
      %v2495 = vpack.c.b16 %v2367, %v2367
      %v2496 = vpack.c.b16 %v2368, %v2368
      %v2497 = vpack.c.b16 %v2369, %v2369
      %v2498 = vpack.c.b16 %v2370, %v2370
      %v2499 = vpack.c.b16 %v2371, %v2371
      %v2500 = vpack.c.b16 %v2372, %v2372
      %v2501 = vpack.c.b16 %v2373, %v2373
      %v2502 = vpack.c.b16 %v2374, %v2374
      %v2503 = vpack.c.b16 %v2375, %v2375
      %v2504 = vpack.c.b16 %v2376, %v2376
      %v2505 = vpack.c.b16 %v2377, %v2377
      %v2506 = vpack.c.b16 %v2378, %v2378
      %v2507 = vpack.c.b16 %v2379, %v2379
      %v2508 = vpack.c.b16 %v2380, %v2380
      %v2509 = vpack.c.b16 %v2381, %v2381
      %v2510 = vpack.c.b16 %v2382, %v2382
      %v2511 = vpack.c.b16 %v2383, %v2383
      %v2512 = vpack.c.b16 %v2384, %v2384
      %v2513 = vpack.c.b16 %v2385, %v2385
      %v2514 = vpack.c.b16 %v2386, %v2386
      %v2515 = vpack.c.b16 %v2387, %v2387
      %v2516 = vpack.c.b16 %v2388, %v2388
      %v2517 = vpack.c.b16 %v2389, %v2389
      %v2518 = vpack.c.b16 %v2390, %v2390
      %v2519 = vpack.c.b16 %v2391, %v2391
      %v2520 = vpack.c.b16 %v2392, %v2392
      %v2521 = vpack.c.b16 %v2393, %v2393
      %v2522 = vpack.c.b16 %v2394, %v2394
      %v2523 = vpack.c.b16 %v2395, %v2395
      %v2524 = vpack.c.b16 %v2396, %v2396
      %v2525 = vpack.c.b16 %v2397, %v2397
      %v2526 = vpack.c.b16 %v2398, %v2398
      %v2527 = vpack.c.b16 %v2399, %v2399
      %v2528 = vpack.c.b16 %v2400, %v2400
      %v2529 = vpack.c.b16 %v2401, %v2401
      %v2530 = vpack.c.b16 %v2402, %v2402
      %v2531 = vpack.c.b16 %v2403, %v2403
      %v2532 = vpack.c.b16 %v2404, %v2404
      %v2533 = vpack.c.b16 %v2405, %v2405
      %v2534 = vpack.c.b16 %v2406, %v2406
      %v2535 = vpack.c.b16 %v2407, %v2407
      %v2536 = vpack.c.b16 %v2408, %v2408
      %v2537 = vpack.c.b16 %v2409, %v2409
      %2666 = vst [vmem:[%s248] sm:$0xf] %v2410
      %2667 = vst [vmem:[%s248 + $0x4] sm:$0xf] %v2411
      %2668 = vst [vmem:[%s248 + $0x8] sm:$0xf] %v2412
      %2669 = vst [vmem:[%s248 + $0xc] sm:$0xf] %v2413
      %2670 = vst [vmem:[%s248 + $0x10] sm:$0xf] %v2414
      %2671 = vst [vmem:[%s248 + $0x14] sm:$0xf] %v2415
      %2672 = vst [vmem:[%s248 + $0x18] sm:$0xf] %v2416
      %2673 = vst [vmem:[%s248 + $0x1c] sm:$0xf] %v2417
      %2674 = vst [vmem:[%s248 + $0x20] sm:$0xf] %v2418
      %2675 = vst [vmem:[%s248 + $0x24] sm:$0xf] %v2419
      %2676 = vst [vmem:[%s248 + $0x28] sm:$0xf] %v2420
      %2677 = vst [vmem:[%s248 + $0x2c] sm:$0xf] %v2421
      %2678 = vst [vmem:[%s248 + $0x30] sm:$0xf] %v2422
      %2679 = vst [vmem:[%s248 + $0x34] sm:$0xf] %v2423
      %2680 = vst [vmem:[%s248 + $0x38] sm:$0xf] %v2424
      %2681 = vst [vmem:[%s248 + $0x3c] sm:$0xf] %v2425
      %2682 = vst [vmem:[%s248 + $0x40] sm:$0xf] %v2426
      %2683 = vst [vmem:[%s248 + $0x44] sm:$0xf] %v2427
      %2684 = vst [vmem:[%s248 + $0x48] sm:$0xf] %v2428
      %2685 = vst [vmem:[%s248 + $0x4c] sm:$0xf] %v2429
      %2686 = vst [vmem:[%s248 + $0x50] sm:$0xf] %v2430
      %2687 = vst [vmem:[%s248 + $0x54] sm:$0xf] %v2431
      %2688 = vst [vmem:[%s248 + $0x58] sm:$0xf] %v2432
      %2689 = vst [vmem:[%s248 + $0x5c] sm:$0xf] %v2433
      %2690 = vst [vmem:[%s248 + $0x60] sm:$0xf] %v2434
      %2691 = vst [vmem:[%s248 + $0x64] sm:$0xf] %v2435
      %2692 = vst [vmem:[%s248 + $0x68] sm:$0xf] %v2436
      %2693 = vst [vmem:[%s248 + $0x6c] sm:$0xf] %v2437
      %2694 = vst [vmem:[%s248 + $0x70] sm:$0xf] %v2438
      %2695 = vst [vmem:[%s248 + $0x74] sm:$0xf] %v2439
      %2696 = vst [vmem:[%s248 + $0x78] sm:$0xf] %v2440
      %2697 = vst [vmem:[%s248 + $0x7c] sm:$0xf] %v2441
      %2698 = vst [vmem:[%s248 + $0x80] sm:$0xf] %v2442
      %2699 = vst [vmem:[%s248 + $0x84] sm:$0xf] %v2443
      %2700 = vst [vmem:[%s248 + $0x88] sm:$0xf] %v2444
      %2701 = vst [vmem:[%s248 + $0x8c] sm:$0xf] %v2445
      %2702 = vst [vmem:[%s248 + $0x90] sm:$0xf] %v2446
      %2703 = vst [vmem:[%s248 + $0x94] sm:$0xf] %v2447
      %2704 = vst [vmem:[%s248 + $0x98] sm:$0xf] %v2448
      %2705 = vst [vmem:[%s248 + $0x9c] sm:$0xf] %v2449
      %2706 = vst [vmem:[%s248 + $0xa0] sm:$0xf] %v2450
      %2707 = vst [vmem:[%s248 + $0xa4] sm:$0xf] %v2451
      %2708 = vst [vmem:[%s248 + $0xa8] sm:$0xf] %v2452
      %2709 = vst [vmem:[%s248 + $0xac] sm:$0xf] %v2453
      %2710 = vst [vmem:[%s248 + $0xb0] sm:$0xf] %v2454
      %2711 = vst [vmem:[%s248 + $0xb4] sm:$0xf] %v2455
      %2712 = vst [vmem:[%s248 + $0xb8] sm:$0xf] %v2456
      %2713 = vst [vmem:[%s248 + $0xbc] sm:$0xf] %v2457
      %2714 = vst [vmem:[%s248 + $0xc0] sm:$0xf] %v2458
      %2715 = vst [vmem:[%s248 + $0xc4] sm:$0xf] %v2459
      %2716 = vst [vmem:[%s248 + $0xc8] sm:$0xf] %v2460
      %2717 = vst [vmem:[%s248 + $0xcc] sm:$0xf] %v2461
      %2718 = vst [vmem:[%s248 + $0xd0] sm:$0xf] %v2462
      %2719 = vst [vmem:[%s248 + $0xd4] sm:$0xf] %v2463
      %2720 = vst [vmem:[%s248 + $0xd8] sm:$0xf] %v2464
      %2721 = vst [vmem:[%s248 + $0xdc] sm:$0xf] %v2465
      %2722 = vst [vmem:[%s248 + $0xe0] sm:$0xf] %v2466
      %2723 = vst [vmem:[%s248 + $0xe4] sm:$0xf] %v2467
      %2724 = vst [vmem:[%s248 + $0xe8] sm:$0xf] %v2468
      %2725 = vst [vmem:[%s248 + $0xec] sm:$0xf] %v2469
      %2726 = vst [vmem:[%s248 + $0xf0] sm:$0xf] %v2470
      %2727 = vst [vmem:[%s248 + $0xf4] sm:$0xf] %v2471
      %2728 = vst [vmem:[%s248 + $0xf8] sm:$0xf] %v2472
      %2729 = vst [vmem:[%s248 + $0xfc] sm:$0xf] %v2473
      %2730 = vst [vmem:[%s248 + $0x100] sm:$0xf] %v2474
      %2731 = vst [vmem:[%s248 + $0x104] sm:$0xf] %v2475
      %2732 = vst [vmem:[%s248 + $0x108] sm:$0xf] %v2476
      %2733 = vst [vmem:[%s248 + $0x10c] sm:$0xf] %v2477
      %2734 = vst [vmem:[%s248 + $0x110] sm:$0xf] %v2478
      %2735 = vst [vmem:[%s248 + $0x114] sm:$0xf] %v2479
      %2736 = vst [vmem:[%s248 + $0x118] sm:$0xf] %v2480
      %2737 = vst [vmem:[%s248 + $0x11c] sm:$0xf] %v2481
      %2738 = vst [vmem:[%s248 + $0x120] sm:$0xf] %v2482
      %2739 = vst [vmem:[%s248 + $0x124] sm:$0xf] %v2483
      %2740 = vst [vmem:[%s248 + $0x128] sm:$0xf] %v2484
      %2741 = vst [vmem:[%s248 + $0x12c] sm:$0xf] %v2485
      %2742 = vst [vmem:[%s248 + $0x130] sm:$0xf] %v2486
      %2743 = vst [vmem:[%s248 + $0x134] sm:$0xf] %v2487
      %2744 = vst [vmem:[%s248 + $0x138] sm:$0xf] %v2488
      %2745 = vst [vmem:[%s248 + $0x13c] sm:$0xf] %v2489
      %2746 = vst [vmem:[%s248 + $0x140] sm:$0xf] %v2490
      %2747 = vst [vmem:[%s248 + $0x144] sm:$0xf] %v2491
      %2748 = vst [vmem:[%s248 + $0x148] sm:$0xf] %v2492
      %2749 = vst [vmem:[%s248 + $0x14c] sm:$0xf] %v2493
      %2750 = vst [vmem:[%s248 + $0x150] sm:$0xf] %v2494
      %2751 = vst [vmem:[%s248 + $0x154] sm:$0xf] %v2495
      %2752 = vst [vmem:[%s248 + $0x158] sm:$0xf] %v2496
      %2753 = vst [vmem:[%s248 + $0x15c] sm:$0xf] %v2497
      %2754 = vst [vmem:[%s248 + $0x160] sm:$0xf] %v2498
      %2755 = vst [vmem:[%s248 + $0x164] sm:$0xf] %v2499
      %2756 = vst [vmem:[%s248 + $0x168] sm:$0xf] %v2500
      %2757 = vst [vmem:[%s248 + $0x16c] sm:$0xf] %v2501
      %2758 = vst [vmem:[%s248 + $0x170] sm:$0xf] %v2502
      %2759 = vst [vmem:[%s248 + $0x174] sm:$0xf] %v2503
      %2760 = vst [vmem:[%s248 + $0x178] sm:$0xf] %v2504
      %2761 = vst [vmem:[%s248 + $0x17c] sm:$0xf] %v2505
      %2762 = vst [vmem:[%s248 + $0x180] sm:$0xf] %v2506
      %2763 = vst [vmem:[%s248 + $0x184] sm:$0xf] %v2507
      %2764 = vst [vmem:[%s248 + $0x188] sm:$0xf] %v2508
      %2765 = vst [vmem:[%s248 + $0x18c] sm:$0xf] %v2509
      %2766 = vst [vmem:[%s248 + $0x190] sm:$0xf] %v2510
      %2767 = vst [vmem:[%s248 + $0x194] sm:$0xf] %v2511
      %2768 = vst [vmem:[%s248 + $0x198] sm:$0xf] %v2512
      %2769 = vst [vmem:[%s248 + $0x19c] sm:$0xf] %v2513
      %2770 = vst [vmem:[%s248 + $0x1a0] sm:$0xf] %v2514
      %2771 = vst [vmem:[%s248 + $0x1a4] sm:$0xf] %v2515
      %2772 = vst [vmem:[%s248 + $0x1a8] sm:$0xf] %v2516
      %2773 = vst [vmem:[%s248 + $0x1ac] sm:$0xf] %v2517
      %2774 = vst [vmem:[%s248 + $0x1b0] sm:$0xf] %v2518
      %2775 = vst [vmem:[%s248 + $0x1b4] sm:$0xf] %v2519
      %2776 = vst [vmem:[%s248 + $0x1b8] sm:$0xf] %v2520
      %2777 = vst [vmem:[%s248 + $0x1bc] sm:$0xf] %v2521
      %2778 = vst [vmem:[%s248 + $0x1c0] sm:$0xf] %v2522
      %2779 = vst [vmem:[%s248 + $0x1c4] sm:$0xf] %v2523
      %2780 = vst [vmem:[%s248 + $0x1c8] sm:$0xf] %v2524
      %2781 = vst [vmem:[%s248 + $0x1cc] sm:$0xf] %v2525
      %2782 = vst [vmem:[%s248 + $0x1d0] sm:$0xf] %v2526
      %2783 = vst [vmem:[%s248 + $0x1d4] sm:$0xf] %v2527
      %2784 = vst [vmem:[%s248 + $0x1d8] sm:$0xf] %v2528
      %2785 = vst [vmem:[%s248 + $0x1dc] sm:$0xf] %v2529
      %2786 = vst [vmem:[%s248 + $0x1e0] sm:$0xf] %v2530
      %2787 = vst [vmem:[%s248 + $0x1e4] sm:$0xf] %v2531
      %2788 = vst [vmem:[%s248 + $0x1e8] sm:$0xf] %v2532
      %2789 = vst [vmem:[%s248 + $0x1ec] sm:$0xf] %v2533
      %2790 = vst [vmem:[%s248 + $0x1f0] sm:$0xf] %v2534
      %2791 = vst [vmem:[%s248 + $0x1f4] sm:$0xf] %v2535
      %2792 = vst [vmem:[%s248 + $0x1f8] sm:$0xf] %v2536
      %2793 = vst [vmem:[%s248 + $0x1fc] sm:$0xf] %v2537
      %s2794 = smul.u32 128, %s16
      %p2795 = scmp.lt.s32.totalorder %s2794, 255
      %s2796 = scalar_select %p2795, %s2794, 255
      %s2797 = smul.addr %s2796, 4
      %s2798 = scalar_lea.vmem %s5, %s2797
      // Predicated region
      $region41: #{_lambda_.11} parent=39 // pred_check
        %p2799 = pneg %p149
      $region42: #{_lambda_.11} parent=39 // pred_check_branch
        %2801 = sbr.rel (%p2799) target = $region44
      $region43: #{_lambda_.11} parent=39 // pred_region
        %s2802 = smul.u32 128, %s16
      $region44: #{_lambda_.11} parent=39 // pred_fallthru
        _
    $region40: #{_lambda_.11} parent=5 // pred_fallthru
      _
    %p2803 = scmp.le.s32.totalorder 2, %s11
    // Predicated region
    $region45: #{_lambda_.11} parent=5 // pred_check
      %p2804 = pneg %p2803
    $region46: #{_lambda_.11} parent=5 // pred_check_branch
      %2806 = sbr.rel (%p2804) target = $region48
    $region47: #{_lambda_.11} parent=5 // pred_region
      %s2807 = ssub.s32 %s11, 2
      // Predicated region
      $region49: #{_lambda_.11} parent=47 // pred_check
        %p2808 = pneg %p155
      $region50: #{_lambda_.11} parent=47 // pred_check_branch
        %2810 = sbr.rel (%p2808) target = $region52
      $region51: #{_lambda_.11} parent=47 // pred_region
        %s2811 = smul.u32 128, %s17
        %p2812 = scmp.lt.s32.totalorder %s2811, 255
        %s2813 = scalar_select %p2812, %s2811, 255
        %s2814 = smul.addr %s2813, 4
        %s2815 = scalar_lea.vmem %s5, %s2814
      $region52: #{_lambda_.11} parent=47 // pred_fallthru
        _
    $region48: #{_lambda_.11} parent=5 // pred_fallthru
      _
  $region6: #{_lambda_.11} parent=0 // loop_footer
    %s15 = sadd.s32 1, %s11
  $region7: #{_lambda_.11} parent=0 // loop_footer_branch
    %10 = sbr.rel target = $region3
  $region8: #{_lambda_.11} parent=0 // loop_exit
    _

</llo_original>
